<compile_context>
chip_gen: v6e
topology: v6e:2x2x1
jax: 0.10.0
libtpu: 0.0.40
codegen_flags: <defaults>
</compile_context>

<pallas_src>
import functools
import math

import jax
import jax.numpy as jnp
from jax.experimental import pallas as pl
from jax.experimental.pallas import tpu as pltpu

# ----------------------------- config (small, synthetic) ------------------------------
B = 2            # batch
T = 16           # input frames
IDIM = 16        # feature dim (input_dim)
VOCAB = 10       # output_dim (vocab size)
VOCAB_PAD = 128  # lane-dense logits head (sliced back to VOCAB outside the kernel)
D = 32           # attention_dim
H = 4            # attention heads
DH = D // H
FF = 64          # linear_units
ENC_BLOCKS = 2
DEC_BLOCKS = 1
CNN_K = 7        # conformer depthwise conv kernel
PAD_K = (CNN_K - 1) // 2
L = 5            # max target length
L1 = L + 1
SOS = VOCAB - 1
EOS = VOCAB - 1
PAD_IDX = VOCAB  # padding_idx = output_dim (as in Net.__init__ when padding_idx is None)
REVERSE_WEIGHT = 0.0

# subsampled sizes of Conv2dSubsampling4 (two stride-2 kernel-3 convs, no padding)
SUB_T = ((T - 3) // 2 + 1 - 3) // 2 + 1       # time after subsampling
SUB_F = ((IDIM - 3) // 2 + 1 - 3) // 2 + 1    # freq after subsampling

ATT_SCALE = 1.0 / math.sqrt(DH)

_VMEM = functools.partial(pl.BlockSpec, memory_space=pltpu.MemorySpace.VMEM)

# ----------------------------- 128-lane-aligned packed parameter layouts ------------------------------
SLOT = 128


def _make_layout(items):
    """Each packed item gets its own 128-lane slot (every slice start is lane-aligned)."""
    off = {}
    for i, (name, width) in enumerate(items):
        assert width <= SLOT
        off[name] = i * SLOT
    return off, len(items) * SLOT


ENC_W_ITEMS = [("ff1_w1", FF), ("ff2_w1", FF), ("qkv", 3 * D), ("wo", D),
               ("pw1", 2 * D), ("pw2", D)]
ENC_W_OFF, ENC_W_COLS = _make_layout(ENC_W_ITEMS)

ENC_P_ITEMS = ([("b_ff1_1", FF), ("b_ff2_1", FF), ("b_qkv", 3 * D), ("b_o", D),
                ("b_pw1", 2 * D), ("b_pw2", D), ("b_ff1_2", D), ("b_ff2_2", D), ("b_dw", D)]
               + [("ln_g%d" % i, D) for i in range(6)]
               + [("ln_b%d" % i, D) for i in range(6)]
               + [("dw%d" % k, D) for k in range(CNN_K)])
ENC_P_OFF, ENC_P_COLS = _make_layout(ENC_P_ITEMS)

DEC_W_ITEMS = [("s_qkv", 3 * D), ("s_wo", D), ("c_q", D), ("c_kv", 2 * D),
               ("c_wo", D), ("ff_w1", FF)]
DEC_W_OFF, DEC_W_COLS = _make_layout(DEC_W_ITEMS)

DEC_P_ITEMS = ([("s_bqkv", 3 * D), ("s_bo", D), ("c_bq", D), ("c_bkv", 2 * D),
                ("c_bo", D), ("b_ff1", FF), ("b_ff2", D)]
               + [("ln_g%d" % i, D) for i in range(3)]
               + [("ln_b%d" % i, D) for i in range(3)])
DEC_P_OFF, DEC_P_COLS = _make_layout(DEC_P_ITEMS)


# ----------------------------- BlockSpec helpers for the 2-axis (batch, layer) grids ------------------------------
def _fs2(shape):
    """Full-array block, same block for every (batch, layer) grid point."""
    zeros = (0,) * len(shape)

    def imap(b, l):
        return zeros

    return pl.BlockSpec(tuple(shape), imap)


def _bs2(tail):
    """Per-batch block: leading (batch) dim squeezed, indexed by grid axis 0."""
    zeros = (0,) * len(tail)

    def imap(b, l):
        return (b,) + zeros

    return pl.BlockSpec((None,) + tuple(tail), imap)


def _ls2(tail):
    """Per-layer block: leading (layer) dim squeezed, indexed by grid axis 1."""
    zeros = (0,) * len(tail)

    def imap(b, l):
        return (l,) + zeros

    return pl.BlockSpec((None,) + tuple(tail), imap)


# ----------------------------- in-kernel helpers (pure value math) ------------------------------
def _dot(a, b):
    return jnp.dot(a, b, preferred_element_type=jnp.float32)


def _layer_norm(x, gain, bias):
    mu = jnp.mean(x, axis=-1, keepdims=True)
    var = jnp.mean((x - mu) ** 2, axis=-1, keepdims=True)
    return (x - mu) * jax.lax.rsqrt(var + 1e-5) * gain + bias


def _swish(x):
    return x * jax.nn.sigmoid(x)


def _attn_core(q_all, kv_all, bias, w_o, b_o):
    """Multi-head attention; heads statically unrolled.
    q_all: (M, D), kv_all: (N, 2D) = k|v, bias: (M, N) or (1, N) additive mask,
    w_o: (D, D), b_o: (1, D). Output projection accumulated per head (no concat)."""
    acc = b_o
    for h in range(H):
        q = q_all[:, h * DH:(h + 1) * DH]
        k = kv_all[:, h * DH:(h + 1) * DH]
        v = kv_all[:, D + h * DH:D + (h + 1) * DH]
        s = _dot(q, k.T) * ATT_SCALE + bias
        s = s - jnp.max(s, axis=-1, keepdims=True)
        probs = jnp.exp(s)
        probs = probs * pl.reciprocal(jnp.sum(probs, axis=-1, keepdims=True), approx=True)
        acc = acc + _dot(_dot(probs, v), w_o[h * DH:(h + 1) * DH, :])
    return acc


# ----------------------------- fused Pallas kernels ------------------------------
def _enc_stack_kernel(y2_ref, outw_ref, outb_ref, pe_ref, bias_ref, mcol_ref,
                      win_ref, wout_ref, pv_ref, ctc_w_ref, ctc_b_ref, after_g_ref,
                      emb_ref, log_ref, x_sc):
    """Whole conformer encoder stack for one batch element.
    grid = (batch, layer); activation carried in VMEM scratch across layers."""
    layer = pl.program_id(1)
    n_layers = pl.num_programs(1)

    # layer 0: subsampling output projection * sqrt(D) + positional encoding
    @pl.when(layer == 0)
    def _():
        x_sc[...] = ((_dot(y2_ref[...], outw_ref[...]) + outb_ref[...]) * math.sqrt(D)
                     + pe_ref[...])

    x = x_sc[...]                 # (T', D)
    rows = x.shape[0]
    bias = bias_ref[...]          # (1, T') additive key mask
    mcol = mcol_ref[...]          # (T', 1) key-validity column

    def w(name, width):
        a = ENC_W_OFF[name]
        return win_ref[:, a:a + width]

    def p(name, width):
        a = ENC_P_OFF[name]
        return pv_ref[:, a:a + width]

    def ln(y, i):
        return _layer_norm(y, p("ln_g%d" % i, D), p("ln_b%d" % i, D))

    # 1) macaron FFN (half residual, swish)
    hh = _swish(_dot(ln(x, 0), w("ff1_w1", FF)) + p("b_ff1_1", FF))
    x = x + 0.5 * (_dot(hh, wout_ref[0:FF, :]) + p("b_ff1_2", D))

    # 2) MHSA (single LN for q/k/v; fused QKV projection)
    # TODO(synk): WeNet uses relative-position attention; absolute PE + vanilla MHSA used here.
    xa = ln(x, 1)
    qkv = _dot(xa, w("qkv", 3 * D)) + p("b_qkv", 3 * D)
    x = x + _attn_core(qkv[:, :D], qkv[:, D:], bias, w("wo", D), p("b_o", D))

    # 3) convolution module: pointwise+GLU -> depthwise -> LN+swish -> pointwise
    # TODO(synk): WeNet default uses BatchNorm1d after the depthwise conv; LayerNorm used here.
    hh = ln(x, 2) * mcol
    hp = _dot(hh, w("pw1", 2 * D)) + p("b_pw1", 2 * D)
    hh = hp[:, :D] * jax.nn.sigmoid(hp[:, D:])
    row_i = jax.lax.broadcasted_iota(jnp.int32, (rows, rows), 0)
    col_j = jax.lax.broadcasted_iota(jnp.int32, (rows, rows), 1)
    acc = p("b_dw", D)
    # TODO(synk): at production T' replace these iota-built shift matmuls with
    # pltpu.roll over rows + boundary masks (VPU FMAs; avoids O(K*T'^2*D) MXU work).
    for k in range(CNN_K):
        off = k - PAD_K
        sel = jnp.where(col_j == row_i + off, 1.0, 0.0)   # per-batch shift selector
        acc = acc + _dot(sel, hh) * p("dw%d" % k, D)
    hh = _swish(ln(acc, 3))
    hh = _dot(hh, w("pw2", D)) + p("b_pw2", D)
    x = x + hh

    # 4) second macaron FFN (half residual, swish)
    hh = _swish(_dot(ln(x, 4), w("ff2_w1", FF)) + p("b_ff2_1", FF))
    x = x + 0.5 * (_dot(hh, wout_ref[FF:2 * FF, :]) + p("b_ff2_2", D))

    # 5) block-final LN, carry to next layer
    x = ln(x, 5)
    x_sc[...] = x

    # last layer: after-norm LN + CTC-style linear head (lane-dense padded vocab)
    # TODO(synk): encoder output head assumed to be a plain Linear(D, vocab) (CTC-style logits).
    @pl.when(layer == n_layers - 1)
    def _():
        g = after_g_ref[...]                     # (1, 2D): gain | bias
        xn = _layer_norm(x, g[:, :D], g[:, D:])
        emb_ref[...] = xn
        log_ref[...] = _dot(xn, ctc_w_ref[...]) + ctc_b_ref[...]


def _dec_stack_kernel(oh_ref, embt_ref, pe_ref, mem_ref, sb_ref, cb_ref,
                      win_ref, wout_ref, pv_ref, hw_ref, hb_ref, g_ref,
                      log_ref, x_sc):
    """Whole transformer decoder stack for one batch element.
    grid = (batch, layer); embedding at layer 0, output head at the last layer."""
    layer = pl.program_id(1)
    n_layers = pl.num_programs(1)

    @pl.when(layer == 0)
    def _():
        x_sc[...] = _dot(oh_ref[...], embt_ref[...]) * math.sqrt(D) + pe_ref[...]

    x = x_sc[...]                 # (L1, D)
    mem = mem_ref[...]            # (T', D) encoder memory

    def w(name, width):
        a = DEC_W_OFF[name]
        return win_ref[:, a:a + width]

    def p(name, width):
        a = DEC_P_OFF[name]
        return pv_ref[:, a:a + width]

    def ln(y, i):
        return _layer_norm(y, p("ln_g%d" % i, D), p("ln_b%d" % i, D))

    # self-attention (causal + pad mask baked into sbias)
    xa = ln(x, 0)
    qkv = _dot(xa, w("s_qkv", 3 * D)) + p("s_bqkv", 3 * D)
    x = x + _attn_core(qkv[:, :D], qkv[:, D:], sb_ref[...], w("s_wo", D), p("s_bo", D))

    # cross-attention over encoder memory
    xb = ln(x, 1)
    q_all = _dot(xb, w("c_q", D)) + p("c_bq", D)
    kv_all = _dot(mem, w("c_kv", 2 * D)) + p("c_bkv", 2 * D)
    x = x + _attn_core(q_all, kv_all, cb_ref[...], w("c_wo", D), p("c_bo", D))

    # position-wise FFN (relu)
    hh = jnp.maximum(_dot(ln(x, 2), w("ff_w1", FF)) + p("b_ff1", FF), 0.0)
    x = x + _dot(hh, wout_ref[...]) + p("b_ff2", D)

    x_sc[...] = x

    @pl.when(layer == n_layers - 1)
    def _():
        g = g_ref[...]
        xn = _layer_norm(x, g[:, :D], g[:, D:])
        log_ref[...] = _dot(xn, hw_ref[...]) + hb_ref[...]


def _mm_act_kernel(a_ref, w_ref, b_ref, o_ref, *, act):
    y = _dot(a_ref[...], w_ref[...]) + b_ref[...]
    if act == "relu":
        y = jnp.maximum(y, 0.0)
    o_ref[...] = y


def _pcall(kernel, out_shape, *args):
    return pl.pallas_call(
        kernel,
        in_specs=[_VMEM() for _ in args],
        out_specs=_VMEM(),
        out_shape=out_shape,
    )(*args)


# ----------------------------- JAX glue (index bookkeeping) ------------------------------
def sinusoidal_pe(length, dim):
    pos = jnp.arange(length, dtype=jnp.float32)[:, None]
    div = jnp.exp(jnp.arange(0, dim, 2, dtype=jnp.float32) * (-math.log(10000.0) / dim))
    pe = jnp.zeros((length, dim), jnp.float32)
    pe = pe.at[:, 0::2].set(jnp.sin(pos * div))
    pe = pe.at[:, 1::2].set(jnp.cos(pos * div))
    return pe


def _im2col_s2(x):
    """x: (B, H, W, C) NHWC -> 3x3 stride-2 (no padding) patches, (B*Ho*Wo, 9*C)."""
    bsz, hh, ww, c = x.shape
    ho = (hh - 3) // 2 + 1
    wo = (ww - 3) // 2 + 1
    patches = [x[:, di:di + 2 * ho:2, dj:dj + 2 * wo:2, :]
               for di in range(3) for dj in range(3)]
    p = jnp.concatenate(patches, axis=-1)
    return p.reshape(bsz * ho * wo, 9 * c)


def add_sos_eos(ys_pad, lens, sos, eos, ignore_id):
    bsz, max_l = ys_pad.shape
    idx = jnp.arange(max_l)
    valid = idx[None, :] < lens[:, None]
    ys_in = jnp.concatenate(
        [jnp.full((bsz, 1), sos, ys_pad.dtype), jnp.where(valid, ys_pad, eos)], axis=1)
    tok = jnp.concatenate([jnp.where(valid, ys_pad, 0),
                           jnp.zeros((bsz, 1), ys_pad.dtype)], axis=1)
    idx2 = jnp.arange(max_l + 1)
    ys_out = jnp.where(idx2[None, :] < lens[:, None], tok,
                       jnp.where(idx2[None, :] == lens[:, None], eos, ignore_id))
    return ys_in, ys_out.astype(ys_pad.dtype)


def reverse_pad_list(ys_pad, lens, pad_value):
    bsz, max_l = ys_pad.shape
    idx = jnp.arange(max_l)
    rev = jnp.clip(lens[:, None] - 1 - idx[None, :], 0, max_l - 1)
    gathered = jnp.take_along_axis(ys_pad, rev, axis=1)
    valid = idx[None, :] < lens[:, None]
    # TODO(synk): original casts pad value to float; kept int32 here (value only used as padding).
    return jnp.where(valid, gathered, jnp.int32(pad_value))


# ----------------------------- model (glue + fused Pallas calls) ------------------------------
def encoder(params, data, lens):
    bsz = data.shape[0]

    # Conv2dSubsampling4: two 3x3 stride-2 convs via im2col + Pallas matmul+relu
    x = data[..., None]                                          # (B, T, F, 1) NHWC
    p1 = _im2col_s2(x)                                           # (B*H1*W1, 9)
    y1 = _pcall(functools.partial(_mm_act_kernel, act="relu"),
                jax.ShapeDtypeStruct((p1.shape[0], D), jnp.float32),
                p1, params["sub"]["conv1_w"], params["sub"]["conv1_b"])
    h1 = (T - 3) // 2 + 1
    w1 = (IDIM - 3) // 2 + 1
    y1 = y1.reshape(bsz, h1, w1, D)
    p2 = _im2col_s2(y1)                                          # (B*T'*F', 9*D)
    y2 = _pcall(functools.partial(_mm_act_kernel, act="relu"),
                jax.ShapeDtypeStruct((p2.shape[0], D), jnp.float32),
                p2, params["sub"]["conv2_w"], params["sub"]["conv2_b"])
    y2 = y2.reshape(bsz, SUB_T, SUB_F * D)

    pe = sinusoidal_pe(SUB_T, D)                                 # (T', D), shared over batch

    # per-batch masks: key-only additive bias (1, T') and key-validity column (T', 1)
    sub_lens = ((lens - 1) // 2 - 1) // 2
    key_valid = jnp.arange(SUB_T)[None, :] < sub_lens[:, None]   # (B, T')
    enc_bias = jnp.where(key_valid, 0.0, -1e9).astype(jnp.float32)[:, None, :]   # (B, 1, T')
    mcol = key_valid.astype(jnp.float32)[:, :, None]             # (B, T', 1)

    emb, logits = pl.pallas_call(
        _enc_stack_kernel,
        grid=(bsz, ENC_BLOCKS),
        in_specs=[
            _bs2((SUB_T, SUB_F * D)),                # y2
            _fs2(params["sub"]["out_w"].shape),      # out_w
            _fs2(params["sub"]["out_b"].shape),      # out_b
            _fs2(pe.shape),                          # pe
            _bs2((1, SUB_T)),                        # enc_bias
            _bs2((SUB_T, 1)),                        # mcol
            _ls2((D, ENC_W_COLS)),                   # win  (stacked per layer)
            _ls2((2 * FF, D)),                       # wout
            _ls2((1, ENC_P_COLS)),                   # pv
            _fs2(params["ctc_w_pad"].shape),
            _fs2(params["ctc_b_pad"].shape),
            _fs2(params["enc_after_g"].shape),
        ],
        out_specs=(_bs2((SUB_T, D)), _bs2((SUB_T, VOCAB_PAD))),
        out_shape=(jax.ShapeDtypeStruct((bsz, SUB_T, D), jnp.float32),
                   jax.ShapeDtypeStruct((bsz, SUB_T, VOCAB_PAD), jnp.float32)),
        scratch_shapes=[pltpu.VMEM((SUB_T, D), jnp.float32)],
        compiler_params=pltpu.CompilerParams(
            dimension_semantics=("parallel", "arbitrary")),
    )(y2, params["sub"]["out_w"], params["sub"]["out_b"], pe,
      enc_bias, mcol,
      params["enc_win"], params["enc_wout"], params["enc_pv"],
      params["ctc_w_pad"], params["ctc_b_pad"], params["enc_after_g"])

    out = logits[:, :, :VOCAB]                                   # (B, T', VOCAB)
    return out, sub_lens, emb, key_valid


def decoder(params, memory, sub_lens, ys_in_pad, ys_in_lens):
    bsz, l1 = ys_in_pad.shape

    onehot = jax.nn.one_hot(ys_in_pad, VOCAB, dtype=jnp.float32)  # (B, L1, V)
    pe = sinusoidal_pe(l1, D)                                     # (L1, D)

    # self-attention bias: causal & key-valid (per batch); cross bias: memory key valid
    idx = jnp.arange(l1)
    causal = idx[None, :] <= idx[:, None]                         # (L1, L1)
    key_ok = idx[None, :] < ys_in_lens[:, None]                   # (B, L1)
    self_bias = jnp.where(causal[None, :, :] & key_ok[:, None, :],
                          0.0, -1e9).astype(jnp.float32)          # (B, L1, L1)
    mem_ok = jnp.arange(SUB_T)[None, :] < sub_lens[:, None]       # (B, T')
    cross_bias = jnp.where(mem_ok, 0.0, -1e9).astype(jnp.float32)[:, None, :]  # (B, 1, T')

    logits = pl.pallas_call(
        _dec_stack_kernel,
        grid=(bsz, DEC_BLOCKS),
        in_specs=[
            _bs2((l1, VOCAB)),                       # onehot
            _fs2(params["embed"].shape),             # embedding table
            _fs2(pe.shape),                          # pe
            _bs2((SUB_T, D)),                        # encoder memory
            _bs2((l1, l1)),                          # self bias
            _bs2((1, SUB_T)),                        # cross bias
            _ls2((D, DEC_W_COLS)),                   # win (stacked per layer)
            _ls2((FF, D)),                           # wout
            _ls2((1, DEC_P_COLS)),                   # pv
            _fs2(params["dec_out_w_pad"].shape),
            _fs2(params["dec_out_b_pad"].shape),
            _fs2(params["dec_after_g"].shape),
        ],
        out_specs=_bs2((l1, VOCAB_PAD)),
        out_shape=jax.ShapeDtypeStruct((bsz, l1, VOCAB_PAD), jnp.float32),
        scratch_shapes=[pltpu.VMEM((l1, D), jnp.float32)],
        compiler_params=pltpu.CompilerParams(
            dimension_semantics=("parallel", "arbitrary")),
    )(onehot, params["embed"], pe, memory, self_bias, cross_bias,
      params["dec_win"], params["dec_wout"], params["dec_pv"],
      params["dec_out_w_pad"], params["dec_out_b_pad"], params["dec_after_g"])

    dec_out = logits[:, :, :VOCAB]
    # transformer decoder + reverse_weight == 0.0  ->  r_decoder_out is scalar 0.0
    return dec_out, jnp.array(0.0, jnp.float32)


@jax.jit
def conformer_aed_forward(params, data, lens, aed_target, aed_lens):
    out, out_lens, out_embed, _ = encoder(params, data, lens)
    ys_in_pad, ys_out_pad = add_sos_eos(aed_target, aed_lens, SOS, EOS, PAD_IDX)
    ys_in_lens = aed_lens + 1
    r_ys_pad = reverse_pad_list(aed_target, aed_lens, PAD_IDX)
    r_ys_in_pad, r_ys_out_pad = add_sos_eos(r_ys_pad, aed_lens, SOS, EOS, PAD_IDX)
    del r_ys_in_pad  # unused: transformer decoder with reverse_weight = 0.0
    decoder_out, r_decoder_out = decoder(params, out_embed, out_lens, ys_in_pad, ys_in_lens)
    return out, out_lens, decoder_out, ys_out_pad, r_decoder_out, r_ys_out_pad


# ----------------------------- deterministic parameter init + packing ------------------------------
class Init:
    def __init__(self, key):
        self.key = key

    def n(self, shape, scale=0.1):
        self.key, k = jax.random.split(self.key)
        return scale * jax.random.normal(k, shape, jnp.float32)

    @staticmethod
    def z(shape):
        return jnp.zeros(shape, jnp.float32)

    @staticmethod
    def o(shape):
        return jnp.ones(shape, jnp.float32)


def _pack_cols(parts, offsets, total_cols, n_rows):
    """Place each (rows, width) / (width,) part at its 128-aligned lane slot."""
    out = jnp.zeros((n_rows, total_cols), jnp.float32)
    for name, arr in parts:
        a = jnp.asarray(arr, jnp.float32)
        if a.ndim == 1:
            a = a[None, :]
        out = out.at[:, offsets[name]:offsets[name] + a.shape[-1]].set(
            jnp.broadcast_to(a, (n_rows, a.shape[-1])))
    return out


def _init_enc_layer(ini):
    ff1_w1, ff1_b1 = ini.n((D, FF)), ini.z((FF,))
    ff1_w2, ff1_b2 = ini.n((FF, D)), ini.z((D,))
    ff2_w1, ff2_b1 = ini.n((D, FF)), ini.z((FF,))
    ff2_w2, ff2_b2 = ini.n((FF, D)), ini.z((D,))
    wq, bq = ini.n((D, D)), ini.z((D,))
    wk, bk = ini.n((D, D)), ini.z((D,))
    wv, bv = ini.n((D, D)), ini.z((D,))
    wo, bo = ini.n((D, D)), ini.z((D,))
    pw1_w, pw1_b = ini.n((D, 2 * D)), ini.z((2 * D,))
    dw_w, dw_b = ini.n((CNN_K, D)), ini.z((D,))
    pw2_w, pw2_b = ini.n((D, D)), ini.z((D,))
    ln_g = [ini.o((D,)) for _ in range(6)]   # ln_ff1, ln_att, ln_conv, conv_norm, ln_ff2, ln_final
    ln_b = [ini.z((D,)) for _ in range(6)]

    win = _pack_cols(
        [("ff1_w1", ff1_w1), ("ff2_w1", ff2_w1),
         ("qkv", jnp.concatenate([wq, wk, wv], axis=1)),
         ("wo", wo), ("pw1", pw1_w), ("pw2", pw2_w)],
        ENC_W_OFF, ENC_W_COLS, D)
    wout = jnp.concatenate([ff1_w2, ff2_w2], axis=0)             # (2FF, D)
    pv_parts = ([("b_ff1_1", ff1_b1), ("b_ff2_1", ff2_b1),
                 ("b_qkv", jnp.concatenate([bq, bk, bv])),
                 ("b_o", bo), ("b_pw1", pw1_b), ("b_pw2", pw2_b),
                 ("b_ff1_2", ff1_b2), ("b_ff2_2", ff2_b2), ("b_dw", dw_b)]
                + [("ln_g%d" % i, ln_g[i]) for i in range(6)]
                + [("ln_b%d" % i, ln_b[i]) for i in range(6)]
                + [("dw%d" % k, dw_w[k]) for k in range(CNN_K)])
    pv = _pack_cols(pv_parts, ENC_P_OFF, ENC_P_COLS, 1)
    assert win.shape == (D, ENC_W_COLS) and wout.shape == (2 * FF, D) and pv.shape == (1, ENC_P_COLS)
    return {"win": win, "wout": wout, "pv": pv}


def _init_dec_layer(ini):
    s_wq, s_bq = ini.n((D, D)), ini.z((D,))
    s_wk, s_bk = ini.n((D, D)), ini.z((D,))
    s_wv, s_bv = ini.n((D, D)), ini.z((D,))
    s_wo, s_bo = ini.n((D, D)), ini.z((D,))
    c_wq, c_bq = ini.n((D, D)), ini.z((D,))
    c_wk, c_bk = ini.n((D, D)), ini.z((D,))
    c_wv, c_bv = ini.n((D, D)), ini.z((D,))
    c_wo, c_bo = ini.n((D, D)), ini.z((D,))
    ff_w1, ff_b1 = ini.n((D, FF)), ini.z((FF,))
    ff_w2, ff_b2 = ini.n((FF, D)), ini.z((D,))
    ln_g = [ini.o((D,)) for _ in range(3)]   # ln1, ln2, ln3
    ln_b = [ini.z((D,)) for _ in range(3)]

    win = _pack_cols(
        [("s_qkv", jnp.concatenate([s_wq, s_wk, s_wv], axis=1)),
         ("s_wo", s_wo), ("c_q", c_wq),
         ("c_kv", jnp.concatenate([c_wk, c_wv], axis=1)),
         ("c_wo", c_wo), ("ff_w1", ff_w1)],
        DEC_W_OFF, DEC_W_COLS, D)
    wout = ff_w2                                                  # (FF, D)
    pv_parts = ([("s_bqkv", jnp.concatenate([s_bq, s_bk, s_bv])),
                 ("s_bo", s_bo), ("c_bq", c_bq),
                 ("c_bkv", jnp.concatenate([c_bk, c_bv])),
                 ("c_bo", c_bo), ("b_ff1", ff_b1), ("b_ff2", ff_b2)]
                + [("ln_g%d" % i, ln_g[i]) for i in range(3)]
                + [("ln_b%d" % i, ln_b[i]) for i in range(3)])
    pv = _pack_cols(pv_parts, DEC_P_OFF, DEC_P_COLS, 1)
    assert win.shape == (D, DEC_W_COLS) and wout.shape == (FF, D) and pv.shape == (1, DEC_P_COLS)
    return {"win": win, "wout": wout, "pv": pv}


def init_params(key):
    ini = Init(key)
    gain_bias = jnp.concatenate([jnp.ones((D,), jnp.float32),
                                 jnp.zeros((D,), jnp.float32)])[None, :]
    enc_layers = [_init_enc_layer(ini) for _ in range(ENC_BLOCKS)]
    dec_layers = [_init_dec_layer(ini) for _ in range(DEC_BLOCKS)]
    return {
        "sub": {
            "conv1_w": ini.n((9, D)), "conv1_b": jnp.zeros((1, D), jnp.float32),
            "conv2_w": ini.n((9 * D, D)), "conv2_b": jnp.zeros((1, D), jnp.float32),
            "out_w": ini.n((SUB_F * D, D)), "out_b": jnp.zeros((1, D), jnp.float32),
        },
        "enc_win": jnp.stack([l["win"] for l in enc_layers]),
        "enc_wout": jnp.stack([l["wout"] for l in enc_layers]),
        "enc_pv": jnp.stack([l["pv"] for l in enc_layers]),
        "enc_after_g": gain_bias,
        "ctc_w_pad": jnp.pad(ini.n((D, VOCAB)), ((0, 0), (0, VOCAB_PAD - VOCAB))),
        "ctc_b_pad": jnp.zeros((1, VOCAB_PAD), jnp.float32),
        "embed": ini.n((VOCAB, D), scale=1.0),
        "dec_win": jnp.stack([l["win"] for l in dec_layers]),
        "dec_wout": jnp.stack([l["wout"] for l in dec_layers]),
        "dec_pv": jnp.stack([l["pv"] for l in dec_layers]),
        "dec_after_g": gain_bias,
        "dec_out_w_pad": jnp.pad(ini.n((D, VOCAB)), ((0, 0), (0, VOCAB_PAD - VOCAB))),
        "dec_out_b_pad": jnp.zeros((1, VOCAB_PAD), jnp.float32),
    }


# ----------------------------- main ------------------------------
if __name__ == "__main__":
    key = jax.random.PRNGKey(0)
    k_data, k_tgt, k_par = jax.random.split(key, 3)

    data = jax.random.normal(k_data, (B, T, IDIM), jnp.float32)
    lens = jnp.array([16, 11], jnp.int32)
    aed_lens = jnp.array([5, 3], jnp.int32)
    raw_tgt = jax.random.randint(k_tgt, (B, L), 0, VOCAB - 1, jnp.int32)
    valid = jnp.arange(L)[None, :] < aed_lens[:, None]
    aed_target = jnp.where(valid, raw_tgt, PAD_IDX).astype(jnp.int32)

    params = init_params(k_par)

    outs = conformer_aed_forward(params, data, lens, aed_target, aed_lens)
    jax.block_until_ready(outs)

    out, out_lens, decoder_out, ys_out_pad, r_decoder_out, r_ys_out_pad = outs
    assert out.shape == (B, SUB_T, VOCAB)
    assert decoder_out.shape == (B, L + 1, VOCAB)
    assert ys_out_pad.shape == (B, L + 1)
    print("KERNEL_OK")
</pallas_src>

<mosaic_0001>
module attributes {stable_mosaic.version = 11 : i64} {
  func.func @_mm_act_kernel(%arg0: memref<98x9xf32, #tpu.memory_space<vmem>>, %arg1: memref<9x32xf32, #tpu.memory_space<vmem>>, %arg2: memref<1x32xf32, #tpu.memory_space<vmem>>, %arg3: memref<98x32xf32, #tpu.memory_space<vmem>>) attributes {dimension_semantics = [], scalar_prefetch = 0 : i64, scratch_operands = 0 : i64, tpu.core_type = #tpu.core_type<tc>} {
    %c0 = arith.constant 0 : index
    %c0_0 = arith.constant 0 : index
    %0 = vector.load %arg0[%c0, %c0_0] : memref<98x9xf32, #tpu.memory_space<vmem>>, vector<98x9xf32>
    %c0_1 = arith.constant 0 : index
    %c0_2 = arith.constant 0 : index
    %1 = vector.load %arg1[%c0_1, %c0_2] : memref<9x32xf32, #tpu.memory_space<vmem>>, vector<9x32xf32>
    %cst = arith.constant dense<0.000000e+00> : vector<98x32xf32>
    %2 = tpu.matmul %0, %1, %cst {dimension_numbers = #tpu.dot_dimension_numbers<[1], [0], [0], [1], [0, 0, 1, 1], [], []>} : vector<98x9xf32>, vector<9x32xf32>, vector<98x32xf32> -> vector<98x32xf32>
    %c0_3 = arith.constant 0 : index
    %c0_4 = arith.constant 0 : index
    %3 = vector.load %arg2[%c0_3, %c0_4] : memref<1x32xf32, #tpu.memory_space<vmem>>, vector<1x32xf32>
    %4 = vector.broadcast %3 : vector<1x32xf32> to vector<98x32xf32>
    %5 = arith.addf %2, %4 : vector<98x32xf32>
    %cst_5 = arith.constant 0.000000e+00 : f32
    %6 = vector.broadcast %cst_5 : f32 to vector<98x32xf32>
    %7 = arith.maximumf %5, %6 : vector<98x32xf32>
    %c0_6 = arith.constant 0 : index
    %c0_7 = arith.constant 0 : index
    %8 = vector.load %arg3[%c0_6, %c0_7] : memref<98x32xf32, #tpu.memory_space<vmem>>, vector<98x32xf32>
    tpu.vector_store %arg3[%c0_6, %c0_7], %7 {strides = array<i32>} : memref<98x32xf32, #tpu.memory_space<vmem>>, vector<98x32xf32>,
    return
  }
}

module attributes {stable_mosaic.version = 11 : i64} {
  func.func @_mm_act_kernel(%arg0: memref<18x288xf32, #tpu.memory_space<vmem>>, %arg1: memref<288x32xf32, #tpu.memory_space<vmem>>, %arg2: memref<1x32xf32, #tpu.memory_space<vmem>>, %arg3: memref<18x32xf32, #tpu.memory_space<vmem>>) attributes {dimension_semantics = [], scalar_prefetch = 0 : i64, scratch_operands = 0 : i64, tpu.core_type = #tpu.core_type<tc>} {
    %c0 = arith.constant 0 : index
    %c0_0 = arith.constant 0 : index
    %0 = vector.load %arg0[%c0, %c0_0] : memref<18x288xf32, #tpu.memory_space<vmem>>, vector<18x288xf32>
    %c0_1 = arith.constant 0 : index
    %c0_2 = arith.constant 0 : index
    %1 = vector.load %arg1[%c0_1, %c0_2] : memref<288x32xf32, #tpu.memory_space<vmem>>, vector<288x32xf32>
    %cst = arith.constant dense<0.000000e+00> : vector<18x32xf32>
    %2 = tpu.matmul %0, %1, %cst {dimension_numbers = #tpu.dot_dimension_numbers<[1], [0], [0], [1], [0, 0, 1, 1], [], []>} : vector<18x288xf32>, vector<288x32xf32>, vector<18x32xf32> -> vector<18x32xf32>
    %c0_3 = arith.constant 0 : index
    %c0_4 = arith.constant 0 : index
    %3 = vector.load %arg2[%c0_3, %c0_4] : memref<1x32xf32, #tpu.memory_space<vmem>>, vector<1x32xf32>
    %4 = vector.broadcast %3 : vector<1x32xf32> to vector<18x32xf32>
    %5 = arith.addf %2, %4 : vector<18x32xf32>
    %cst_5 = arith.constant 0.000000e+00 : f32
    %6 = vector.broadcast %cst_5 : f32 to vector<18x32xf32>
    %7 = arith.maximumf %5, %6 : vector<18x32xf32>
    %c0_6 = arith.constant 0 : index
    %c0_7 = arith.constant 0 : index
    %8 = vector.load %arg3[%c0_6, %c0_7] : memref<18x32xf32, #tpu.memory_space<vmem>>, vector<18x32xf32>
    tpu.vector_store %arg3[%c0_6, %c0_7], %7 {strides = array<i32>} : memref<18x32xf32, #tpu.memory_space<vmem>>, vector<18x32xf32>,
    return
  }
}

module attributes {stable_mosaic.version = 11 : i64} {
  func.func @_enc_stack_kernel(%arg0: i32, %arg1: i32, %arg2: memref<1x3x96xf32, #tpu.memory_space<vmem>>, %arg3: memref<96x32xf32, #tpu.memory_space<vmem>>, %arg4: memref<1x32xf32, #tpu.memory_space<vmem>>, %arg5: memref<3x32xf32, #tpu.memory_space<vmem>>, %arg6: memref<1x1x3xf32, #tpu.memory_space<vmem>>, %arg7: memref<1x3x1xf32, #tpu.memory_space<vmem>>, %arg8: memref<1x32x768xf32, #tpu.memory_space<vmem>>, %arg9: memref<1x128x32xf32, #tpu.memory_space<vmem>>, %arg10: memref<1x1x3584xf32, #tpu.memory_space<vmem>>, %arg11: memref<32x128xf32, #tpu.memory_space<vmem>>, %arg12: memref<1x128xf32, #tpu.memory_space<vmem>>, %arg13: memref<1x64xf32, #tpu.memory_space<vmem>>, %arg14: memref<1x3x32xf32, #tpu.memory_space<vmem>>, %arg15: memref<1x3x128xf32, #tpu.memory_space<vmem>>, %arg16: memref<3x32xf32, #tpu.memory_space<vmem>>) attributes {dimension_semantics = [#tpu.dimension_semantics<parallel>, #tpu.dimension_semantics<arbitrary>], iteration_bounds = array<i64: 2, 2>, scalar_prefetch = 0 : i64, scratch_operands = 1 : i64, tpu.core_type = #tpu.core_type<tc>, window_params = [{transform_indices = @transform_0, window_bounds = array<i64: 1, 3, 96>}, {pipeline_mode = #tpu.pipeline_mode<synchronous>, transform_indices = @transform_1, window_bounds = array<i64: 96, 32>}, {pipeline_mode = #tpu.pipeline_mode<synchronous>, transform_indices = @transform_2, window_bounds = array<i64: 1, 32>}, {pipeline_mode = #tpu.pipeline_mode<synchronous>, transform_indices = @transform_3, window_bounds = array<i64: 3, 32>}, {transform_indices = @transform_4, window_bounds = array<i64: 1, 1, 3>}, {transform_indices = @transform_5, window_bounds = array<i64: 1, 3, 1>}, {transform_indices = @transform_6, window_bounds = array<i64: 1, 32, 768>}, {transform_indices = @transform_7, window_bounds = array<i64: 1, 128, 32>}, {transform_indices = @transform_8, window_bounds = array<i64: 1, 1, 3584>}, {pipeline_mode = #tpu.pipeline_mode<synchronous>, transform_indices = @transform_9, window_bounds = array<i64: 32, 128>}, {pipeline_mode = #tpu.pipeline_mode<synchronous>, transform_indices = @transform_10, window_bounds = array<i64: 1, 128>}, {pipeline_mode = #tpu.pipeline_mode<synchronous>, transform_indices = @transform_11, window_bounds = array<i64: 1, 64>}, {transform_indices = @transform_12, window_bounds = array<i64: 1, 3, 32>}, {transform_indices = @transform_13, window_bounds = array<i64: 1, 3, 128>}]} {
    %c0_i32 = arith.constant 0 : i32
    %0 = arith.cmpi eq, %arg1, %c0_i32 : i32
    %1 = arith.extui %0 : i1 to i32
    %c0_i32_0 = arith.constant 0 : i32
    %2 = arith.cmpi ne, %1, %c0_i32_0 : i32
    scf.if %2 {
      %c0_180 = arith.constant 0 : index
      %c0_181 = arith.constant 0 : index
      %c0_182 = arith.constant 0 : index
      %441 = vector.load %arg2[%c0_180, %c0_181, %c0_182] : memref<1x3x96xf32, #tpu.memory_space<vmem>>, vector<1x3x96xf32>
      %442 = vector.shape_cast %441 : vector<1x3x96xf32> to vector<3x96xf32>
      %c0_183 = arith.constant 0 : index
      %c0_184 = arith.constant 0 : index
      %443 = vector.load %arg3[%c0_183, %c0_184] : memref<96x32xf32, #tpu.memory_space<vmem>>, vector<96x32xf32>
      %cst_185 = arith.constant dense<0.000000e+00> : vector<3x32xf32>
      %444 = tpu.matmul %442, %443, %cst_185 {dimension_numbers = #tpu.dot_dimension_numbers<[1], [0], [0], [1], [0, 0, 1, 1], [], []>} : vector<3x96xf32>, vector<96x32xf32>, vector<3x32xf32> -> vector<3x32xf32>
      %c0_186 = arith.constant 0 : index
      %c0_187 = arith.constant 0 : index
      %445 = vector.load %arg4[%c0_186, %c0_187] : memref<1x32xf32, #tpu.memory_space<vmem>>, vector<1x32xf32>
      %446 = vector.broadcast %445 : vector<1x32xf32> to vector<3x32xf32>
      %447 = arith.addf %444, %446 : vector<3x32xf32>
      %cst_188 = arith.constant 5.65685415 : f32
      %448 = vector.broadcast %cst_188 : f32 to vector<3x32xf32>
      %449 = arith.mulf %447, %448 : vector<3x32xf32>
      %c0_189 = arith.constant 0 : index
      %c0_190 = arith.constant 0 : index
      %450 = vector.load %arg5[%c0_189, %c0_190] : memref<3x32xf32, #tpu.memory_space<vmem>>, vector<3x32xf32>
      %451 = arith.addf %449, %450 : vector<3x32xf32>
      %c0_191 = arith.constant 0 : index
      %c0_192 = arith.constant 0 : index
      %452 = vector.load %arg16[%c0_191, %c0_192] : memref<3x32xf32, #tpu.memory_space<vmem>>, vector<3x32xf32>
      tpu.vector_store %arg16[%c0_191, %c0_192], %451 {strides = array<i32>} : memref<3x32xf32, #tpu.memory_space<vmem>>, vector<3x32xf32>,
    } else {
    }
    %c0 = arith.constant 0 : index
    %c0_1 = arith.constant 0 : index
    %3 = vector.load %arg16[%c0, %c0_1] : memref<3x32xf32, #tpu.memory_space<vmem>>, vector<3x32xf32>
    %c0_2 = arith.constant 0 : index
    %c0_3 = arith.constant 0 : index
    %c0_4 = arith.constant 0 : index
    %4 = vector.load %arg6[%c0_2, %c0_3, %c0_4] : memref<1x1x3xf32, #tpu.memory_space<vmem>>, vector<1x1x3xf32>
    %5 = vector.shape_cast %4 : vector<1x1x3xf32> to vector<1x3xf32>
    %c0_5 = arith.constant 0 : index
    %c0_6 = arith.constant 0 : index
    %c0_7 = arith.constant 0 : index
    %6 = vector.load %arg7[%c0_5, %c0_6, %c0_7] : memref<1x3x1xf32, #tpu.memory_space<vmem>>, vector<1x3x1xf32>
    %7 = vector.shape_cast %6 : vector<1x3x1xf32> to vector<3x1xf32>
    %c0_8 = arith.constant 0 : index
    %c0_9 = arith.constant 0 : index
    %c1152 = arith.constant 1152 : index
    %8 = vector.load %arg10[%c0_8, %c0_9, %c1152] : memref<1x1x3584xf32, #tpu.memory_space<vmem>>, vector<1x1x32xf32>
    %9 = vector.shape_cast %8 : vector<1x1x32xf32> to vector<1x32xf32>
    %c0_10 = arith.constant 0 : index
    %c0_11 = arith.constant 0 : index
    %c1920 = arith.constant 1920 : index
    %10 = vector.load %arg10[%c0_10, %c0_11, %c1920] : memref<1x1x3584xf32, #tpu.memory_space<vmem>>, vector<1x1x32xf32>
    %11 = vector.shape_cast %10 : vector<1x1x32xf32> to vector<1x32xf32>
    %cst = arith.constant dense<0.000000e+00> : vector<3xf32>
    %12 = vector.multi_reduction <add>, %3, %cst [1] : vector<3x32xf32> to vector<3xf32>
    %13 = vector.shape_cast %12 : vector<3xf32> to vector<3x1xf32>
    %cst_12 = arith.constant 3.200000e+01 : f32
    %14 = vector.broadcast %cst_12 : f32 to vector<3x1xf32>
    %15 = arith.divf %13, %14 : vector<3x1xf32>
    %16 = vector.broadcast %15 : vector<3x1xf32> to vector<3x32xf32>
    %17 = arith.subf %3, %16 : vector<3x32xf32>
    %18 = arith.mulf %17, %17 : vector<3x32xf32>
    %cst_13 = arith.constant dense<0.000000e+00> : vector<3xf32>
    %19 = vector.multi_reduction <add>, %18, %cst_13 [1] : vector<3x32xf32> to vector<3xf32>
    %20 = vector.shape_cast %19 : vector<3xf32> to vector<3x1xf32>
    %cst_14 = arith.constant 3.200000e+01 : f32
    %21 = vector.broadcast %cst_14 : f32 to vector<3x1xf32>
    %22 = arith.divf %20, %21 : vector<3x1xf32>
    %23 = vector.broadcast %15 : vector<3x1xf32> to vector<3x32xf32>
    %24 = arith.subf %3, %23 : vector<3x32xf32>
    %cst_15 = arith.constant 9.99999974E-6 : f32
    %25 = vector.broadcast %cst_15 : f32 to vector<3x1xf32>
    %26 = arith.addf %22, %25 : vector<3x1xf32>
    %27 = math.rsqrt %26 : vector<3x1xf32>
    %28 = vector.broadcast %27 : vector<3x1xf32> to vector<3x32xf32>
    %29 = arith.mulf %24, %28 : vector<3x32xf32>
    %30 = vector.broadcast %9 : vector<1x32xf32> to vector<3x32xf32>
    %31 = arith.mulf %29, %30 : vector<3x32xf32>
    %32 = vector.broadcast %11 : vector<1x32xf32> to vector<3x32xf32>
    %33 = arith.addf %31, %32 : vector<3x32xf32>
    %c0_16 = arith.constant 0 : index
    %c0_17 = arith.constant 0 : index
    %c0_18 = arith.constant 0 : index
    %34 = vector.load %arg8[%c0_16, %c0_17, %c0_18] : memref<1x32x768xf32, #tpu.memory_space<vmem>>, vector<1x32x64xf32>
    %35 = vector.shape_cast %34 : vector<1x32x64xf32> to vector<32x64xf32>
    %cst_19 = arith.constant dense<0.000000e+00> : vector<3x64xf32>
    %36 = tpu.matmul %33, %35, %cst_19 {dimension_numbers = #tpu.dot_dimension_numbers<[1], [0], [0], [1], [0, 0, 1, 1], [], []>} : vector<3x32xf32>, vector<32x64xf32>, vector<3x64xf32> -> vector<3x64xf32>
    %c0_20 = arith.constant 0 : index
    %c0_21 = arith.constant 0 : index
    %c0_22 = arith.constant 0 : index
    %37 = vector.load %arg10[%c0_20, %c0_21, %c0_22] : memref<1x1x3584xf32, #tpu.memory_space<vmem>>, vector<1x1x64xf32>
    %38 = vector.shape_cast %37 : vector<1x1x64xf32> to vector<1x64xf32>
    %39 = vector.broadcast %38 : vector<1x64xf32> to vector<3x64xf32>
    %40 = arith.addf %36, %39 : vector<3x64xf32>
    %41 = arith.negf %40 : vector<3x64xf32>
    %42 = math.exp %41 : vector<3x64xf32>
    %cst_23 = arith.constant 1.000000e+00 : f32
    %43 = vector.broadcast %cst_23 : f32 to vector<3x64xf32>
    %44 = arith.addf %43, %42 : vector<3x64xf32>
    %45 = arith.divf %43, %44 : vector<3x64xf32>
    %46 = arith.mulf %40, %45 : vector<3x64xf32>
    %c0_24 = arith.constant 0 : index
    %c0_25 = arith.constant 0 : index
    %c0_26 = arith.constant 0 : index
    %47 = vector.load %arg9[%c0_24, %c0_25, %c0_26] : memref<1x128x32xf32, #tpu.memory_space<vmem>>, vector<1x64x32xf32>
    %48 = vector.shape_cast %47 : vector<1x64x32xf32> to vector<64x32xf32>
    %cst_27 = arith.constant dense<0.000000e+00> : vector<3x32xf32>
    %49 = tpu.matmul %46, %48, %cst_27 {dimension_numbers = #tpu.dot_dimension_numbers<[1], [0], [0], [1], [0, 0, 1, 1], [], []>} : vector<3x64xf32>, vector<64x32xf32>, vector<3x32xf32> -> vector<3x32xf32>
    %c0_28 = arith.constant 0 : index
    %c0_29 = arith.constant 0 : index
    %c768 = arith.constant 768 : index
    %50 = vector.load %arg10[%c0_28, %c0_29, %c768] : memref<1x1x3584xf32, #tpu.memory_space<vmem>>, vector<1x1x32xf32>
    %51 = vector.shape_cast %50 : vector<1x1x32xf32> to vector<1x32xf32>
    %52 = vector.broadcast %51 : vector<1x32xf32> to vector<3x32xf32>
    %53 = arith.addf %49, %52 : vector<3x32xf32>
    %cst_30 = arith.constant 5.000000e-01 : f32
    %54 = vector.broadcast %cst_30 : f32 to vector<3x32xf32>
    %55 = arith.mulf %54, %53 : vector<3x32xf32>
    %56 = arith.addf %3, %55 : vector<3x32xf32>
    %c0_31 = arith.constant 0 : index
    %c0_32 = arith.constant 0 : index
    %c1280 = arith.constant 1280 : index
    %57 = vector.load %arg10[%c0_31, %c0_32, %c1280] : memref<1x1x3584xf32, #tpu.memory_space<vmem>>, vector<1x1x32xf32>
    %58 = vector.shape_cast %57 : vector<1x1x32xf32> to vector<1x32xf32>
    %c0_33 = arith.constant 0 : index
    %c0_34 = arith.constant 0 : index
    %c2048 = arith.constant 2048 : index
    %59 = vector.load %arg10[%c0_33, %c0_34, %c2048] : memref<1x1x3584xf32, #tpu.memory_space<vmem>>, vector<1x1x32xf32>
    %60 = vector.shape_cast %59 : vector<1x1x32xf32> to vector<1x32xf32>
    %cst_35 = arith.constant dense<0.000000e+00> : vector<3xf32>
    %61 = vector.multi_reduction <add>, %56, %cst_35 [1] : vector<3x32xf32> to vector<3xf32>
    %62 = vector.shape_cast %61 : vector<3xf32> to vector<3x1xf32>
    %cst_36 = arith.constant 3.200000e+01 : f32
    %63 = vector.broadcast %cst_36 : f32 to vector<3x1xf32>
    %64 = arith.divf %62, %63 : vector<3x1xf32>
    %65 = vector.broadcast %64 : vector<3x1xf32> to vector<3x32xf32>
    %66 = arith.subf %56, %65 : vector<3x32xf32>
    %67 = arith.mulf %66, %66 : vector<3x32xf32>
    %cst_37 = arith.constant dense<0.000000e+00> : vector<3xf32>
    %68 = vector.multi_reduction <add>, %67, %cst_37 [1] : vector<3x32xf32> to vector<3xf32>
    %69 = vector.shape_cast %68 : vector<3xf32> to vector<3x1xf32>
    %cst_38 = arith.constant 3.200000e+01 : f32
    %70 = vector.broadcast %cst_38 : f32 to vector<3x1xf32>
    %71 = arith.divf %69, %70 : vector<3x1xf32>
    %72 = vector.broadcast %64 : vector<3x1xf32> to vector<3x32xf32>
    %73 = arith.subf %56, %72 : vector<3x32xf32>
    %cst_39 = arith.constant 9.99999974E-6 : f32
    %74 = vector.broadcast %cst_39 : f32 to vector<3x1xf32>
    %75 = arith.addf %71, %74 : vector<3x1xf32>
    %76 = math.rsqrt %75 : vector<3x1xf32>
    %77 = vector.broadcast %76 : vector<3x1xf32> to vector<3x32xf32>
    %78 = arith.mulf %73, %77 : vector<3x32xf32>
    %79 = vector.broadcast %58 : vector<1x32xf32> to vector<3x32xf32>
    %80 = arith.mulf %78, %79 : vector<3x32xf32>
    %81 = vector.broadcast %60 : vector<1x32xf32> to vector<3x32xf32>
    %82 = arith.addf %80, %81 : vector<3x32xf32>
    %c0_40 = arith.constant 0 : index
    %c0_41 = arith.constant 0 : index
    %c256 = arith.constant 256 : index
    %83 = vector.load %arg8[%c0_40, %c0_41, %c256] : memref<1x32x768xf32, #tpu.memory_space<vmem>>, vector<1x32x96xf32>
    %84 = vector.shape_cast %83 : vector<1x32x96xf32> to vector<32x96xf32>
    %cst_42 = arith.constant dense<0.000000e+00> : vector<3x96xf32>
    %85 = tpu.matmul %82, %84, %cst_42 {dimension_numbers = #tpu.dot_dimension_numbers<[1], [0], [0], [1], [0, 0, 1, 1], [], []>} : vector<3x32xf32>, vector<32x96xf32>, vector<3x96xf32> -> vector<3x96xf32>
    %c0_43 = arith.constant 0 : index
    %c0_44 = arith.constant 0 : index
    %c256_45 = arith.constant 256 : index
    %86 = vector.load %arg10[%c0_43, %c0_44, %c256_45] : memref<1x1x3584xf32, #tpu.memory_space<vmem>>, vector<1x1x96xf32>
    %87 = vector.shape_cast %86 : vector<1x1x96xf32> to vector<1x96xf32>
    %88 = vector.broadcast %87 : vector<1x96xf32> to vector<3x96xf32>
    %89 = arith.addf %85, %88 : vector<3x96xf32>
    %90 = vector.extract_strided_slice %89 {offsets = [0, 0], sizes = [3, 32], strides = [1, 1]} : vector<3x96xf32> to vector<3x32xf32>
    %91 = vector.extract_strided_slice %89 {offsets = [0, 32], sizes = [3, 64], strides = [1, 1]} : vector<3x96xf32> to vector<3x64xf32>
    %c0_46 = arith.constant 0 : index
    %c0_47 = arith.constant 0 : index
    %c384 = arith.constant 384 : index
    %92 = vector.load %arg8[%c0_46, %c0_47, %c384] : memref<1x32x768xf32, #tpu.memory_space<vmem>>, vector<1x32x32xf32>
    %93 = vector.shape_cast %92 : vector<1x32x32xf32> to vector<32x32xf32>
    %c0_48 = arith.constant 0 : index
    %c0_49 = arith.constant 0 : index
    %c384_50 = arith.constant 384 : index
    %94 = vector.load %arg10[%c0_48, %c0_49, %c384_50] : memref<1x1x3584xf32, #tpu.memory_space<vmem>>, vector<1x1x32xf32>
    %95 = vector.shape_cast %94 : vector<1x1x32xf32> to vector<1x32xf32>
    %96 = vector.extract_strided_slice %90 {offsets = [0, 0], sizes = [3, 8], strides = [1, 1]} : vector<3x32xf32> to vector<3x8xf32>
    %97 = vector.extract_strided_slice %91 {offsets = [0, 0], sizes = [3, 8], strides = [1, 1]} : vector<3x64xf32> to vector<3x8xf32>
    %98 = vector.extract_strided_slice %91 {offsets = [0, 32], sizes = [3, 8], strides = [1, 1]} : vector<3x64xf32> to vector<3x8xf32>
    %99 = tpu.transpose %97, [1, 0] : vector<3x8xf32> -> vector<8x3xf32>
    %cst_51 = arith.constant dense<0.000000e+00> : vector<3x3xf32>
    %100 = tpu.matmul %96, %99, %cst_51 {dimension_numbers = #tpu.dot_dimension_numbers<[1], [0], [0], [1], [0, 0, 1, 1], [], []>} : vector<3x8xf32>, vector<8x3xf32>, vector<3x3xf32> -> vector<3x3xf32>
    %cst_52 = arith.constant 0.353553385 : f32
    %101 = vector.broadcast %cst_52 : f32 to vector<3x3xf32>
    %102 = arith.mulf %100, %101 : vector<3x3xf32>
    %103 = vector.broadcast %5 : vector<1x3xf32> to vector<3x3xf32>
    %104 = arith.addf %102, %103 : vector<3x3xf32>
    %cst_53 = arith.constant dense<0xFF800000> : vector<3xf32>
    %105 = vector.multi_reduction <maximumf>, %104, %cst_53 [1] : vector<3x3xf32> to vector<3xf32>
    %106 = vector.shape_cast %105 : vector<3xf32> to vector<3x1xf32>
    %107 = vector.broadcast %106 : vector<3x1xf32> to vector<3x3xf32>
    %108 = arith.subf %104, %107 : vector<3x3xf32>
    %109 = math.exp %108 : vector<3x3xf32>
    %cst_54 = arith.constant dense<0.000000e+00> : vector<3xf32>
    %110 = vector.multi_reduction <add>, %109, %cst_54 [1] : vector<3x3xf32> to vector<3xf32>
    %111 = vector.shape_cast %110 : vector<3xf32> to vector<3x1xf32>
    %112 = tpu.reciprocal %111 {approx = true} : vector<3x1xf32> -> vector<3x1xf32>
    %113 = vector.broadcast %112 : vector<3x1xf32> to vector<3x3xf32>
    %114 = arith.mulf %109, %113 : vector<3x3xf32>
    %cst_55 = arith.constant dense<0.000000e+00> : vector<3x8xf32>
    %115 = tpu.matmul %114, %98, %cst_55 {dimension_numbers = #tpu.dot_dimension_numbers<[1], [0], [0], [1], [0, 0, 1, 1], [], []>} : vector<3x3xf32>, vector<3x8xf32>, vector<3x8xf32> -> vector<3x8xf32>
    %116 = vector.extract_strided_slice %93 {offsets = [0, 0], sizes = [8, 32], strides = [1, 1]} : vector<32x32xf32> to vector<8x32xf32>
    %cst_56 = arith.constant dense<0.000000e+00> : vector<3x32xf32>
    %117 = tpu.matmul %115, %116, %cst_56 {dimension_numbers = #tpu.dot_dimension_numbers<[1], [0], [0], [1], [0, 0, 1, 1], [], []>} : vector<3x8xf32>, vector<8x32xf32>, vector<3x32xf32> -> vector<3x32xf32>
    %118 = vector.broadcast %95 : vector<1x32xf32> to vector<3x32xf32>
    %119 = arith.addf %118, %117 : vector<3x32xf32>
    %120 = vector.extract_strided_slice %90 {offsets = [0, 8], sizes = [3, 8], strides = [1, 1]} : vector<3x32xf32> to vector<3x8xf32>
    %121 = vector.extract_strided_slice %91 {offsets = [0, 8], sizes = [3, 8], strides = [1, 1]} : vector<3x64xf32> to vector<3x8xf32>
    %122 = vector.extract_strided_slice %91 {offsets = [0, 40], sizes = [3, 8], strides = [1, 1]} : vector<3x64xf32> to vector<3x8xf32>
    %123 = tpu.transpose %121, [1, 0] : vector<3x8xf32> -> vector<8x3xf32>
    %cst_57 = arith.constant dense<0.000000e+00> : vector<3x3xf32>
    %124 = tpu.matmul %120, %123, %cst_57 {dimension_numbers = #tpu.dot_dimension_numbers<[1], [0], [0], [1], [0, 0, 1, 1], [], []>} : vector<3x8xf32>, vector<8x3xf32>, vector<3x3xf32> -> vector<3x3xf32>
    %cst_58 = arith.constant 0.353553385 : f32
    %125 = vector.broadcast %cst_58 : f32 to vector<3x3xf32>
    %126 = arith.mulf %124, %125 : vector<3x3xf32>
    %127 = vector.broadcast %5 : vector<1x3xf32> to vector<3x3xf32>
    %128 = arith.addf %126, %127 : vector<3x3xf32>
    %cst_59 = arith.constant dense<0xFF800000> : vector<3xf32>
    %129 = vector.multi_reduction <maximumf>, %128, %cst_59 [1] : vector<3x3xf32> to vector<3xf32>
    %130 = vector.shape_cast %129 : vector<3xf32> to vector<3x1xf32>
    %131 = vector.broadcast %130 : vector<3x1xf32> to vector<3x3xf32>
    %132 = arith.subf %128, %131 : vector<3x3xf32>
    %133 = math.exp %132 : vector<3x3xf32>
    %cst_60 = arith.constant dense<0.000000e+00> : vector<3xf32>
    %134 = vector.multi_reduction <add>, %133, %cst_60 [1] : vector<3x3xf32> to vector<3xf32>
    %135 = vector.shape_cast %134 : vector<3xf32> to vector<3x1xf32>
    %136 = tpu.reciprocal %135 {approx = true} : vector<3x1xf32> -> vector<3x1xf32>
    %137 = vector.broadcast %136 : vector<3x1xf32> to vector<3x3xf32>
    %138 = arith.mulf %133, %137 : vector<3x3xf32>
    %cst_61 = arith.constant dense<0.000000e+00> : vector<3x8xf32>
    %139 = tpu.matmul %138, %122, %cst_61 {dimension_numbers = #tpu.dot_dimension_numbers<[1], [0], [0], [1], [0, 0, 1, 1], [], []>} : vector<3x3xf32>, vector<3x8xf32>, vector<3x8xf32> -> vector<3x8xf32>
    %140 = vector.extract_strided_slice %93 {offsets = [8, 0], sizes = [8, 32], strides = [1, 1]} : vector<32x32xf32> to vector<8x32xf32>
    %cst_62 = arith.constant dense<0.000000e+00> : vector<3x32xf32>
    %141 = tpu.matmul %139, %140, %cst_62 {dimension_numbers = #tpu.dot_dimension_numbers<[1], [0], [0], [1], [0, 0, 1, 1], [], []>} : vector<3x8xf32>, vector<8x32xf32>, vector<3x32xf32> -> vector<3x32xf32>
    %142 = arith.addf %119, %141 : vector<3x32xf32>
    %143 = vector.extract_strided_slice %90 {offsets = [0, 16], sizes = [3, 8], strides = [1, 1]} : vector<3x32xf32> to vector<3x8xf32>
    %144 = vector.extract_strided_slice %91 {offsets = [0, 16], sizes = [3, 8], strides = [1, 1]} : vector<3x64xf32> to vector<3x8xf32>
    %145 = vector.extract_strided_slice %91 {offsets = [0, 48], sizes = [3, 8], strides = [1, 1]} : vector<3x64xf32> to vector<3x8xf32>
    %146 = tpu.transpose %144, [1, 0] : vector<3x8xf32> -> vector<8x3xf32>
    %cst_63 = arith.constant dense<0.000000e+00> : vector<3x3xf32>
    %147 = tpu.matmul %143, %146, %cst_63 {dimension_numbers = #tpu.dot_dimension_numbers<[1], [0], [0], [1], [0, 0, 1, 1], [], []>} : vector<3x8xf32>, vector<8x3xf32>, vector<3x3xf32> -> vector<3x3xf32>
    %cst_64 = arith.constant 0.353553385 : f32
    %148 = vector.broadcast %cst_64 : f32 to vector<3x3xf32>
    %149 = arith.mulf %147, %148 : vector<3x3xf32>
    %150 = vector.broadcast %5 : vector<1x3xf32> to vector<3x3xf32>
    %151 = arith.addf %149, %150 : vector<3x3xf32>
    %cst_65 = arith.constant dense<0xFF800000> : vector<3xf32>
    %152 = vector.multi_reduction <maximumf>, %151, %cst_65 [1] : vector<3x3xf32> to vector<3xf32>
    %153 = vector.shape_cast %152 : vector<3xf32> to vector<3x1xf32>
    %154 = vector.broadcast %153 : vector<3x1xf32> to vector<3x3xf32>
    %155 = arith.subf %151, %154 : vector<3x3xf32>
    %156 = math.exp %155 : vector<3x3xf32>
    %cst_66 = arith.constant dense<0.000000e+00> : vector<3xf32>
    %157 = vector.multi_reduction <add>, %156, %cst_66 [1] : vector<3x3xf32> to vector<3xf32>
    %158 = vector.shape_cast %157 : vector<3xf32> to vector<3x1xf32>
    %159 = tpu.reciprocal %158 {approx = true} : vector<3x1xf32> -> vector<3x1xf32>
    %160 = vector.broadcast %159 : vector<3x1xf32> to vector<3x3xf32>
    %161 = arith.mulf %156, %160 : vector<3x3xf32>
    %cst_67 = arith.constant dense<0.000000e+00> : vector<3x8xf32>
    %162 = tpu.matmul %161, %145, %cst_67 {dimension_numbers = #tpu.dot_dimension_numbers<[1], [0], [0], [1], [0, 0, 1, 1], [], []>} : vector<3x3xf32>, vector<3x8xf32>, vector<3x8xf32> -> vector<3x8xf32>
    %163 = vector.extract_strided_slice %93 {offsets = [16, 0], sizes = [8, 32], strides = [1, 1]} : vector<32x32xf32> to vector<8x32xf32>
    %cst_68 = arith.constant dense<0.000000e+00> : vector<3x32xf32>
    %164 = tpu.matmul %162, %163, %cst_68 {dimension_numbers = #tpu.dot_dimension_numbers<[1], [0], [0], [1], [0, 0, 1, 1], [], []>} : vector<3x8xf32>, vector<8x32xf32>, vector<3x32xf32> -> vector<3x32xf32>
    %165 = arith.addf %142, %164 : vector<3x32xf32>
    %166 = vector.extract_strided_slice %90 {offsets = [0, 24], sizes = [3, 8], strides = [1, 1]} : vector<3x32xf32> to vector<3x8xf32>
    %167 = vector.extract_strided_slice %91 {offsets = [0, 24], sizes = [3, 8], strides = [1, 1]} : vector<3x64xf32> to vector<3x8xf32>
    %168 = vector.extract_strided_slice %91 {offsets = [0, 56], sizes = [3, 8], strides = [1, 1]} : vector<3x64xf32> to vector<3x8xf32>
    %169 = tpu.transpose %167, [1, 0] : vector<3x8xf32> -> vector<8x3xf32>
    %cst_69 = arith.constant dense<0.000000e+00> : vector<3x3xf32>
    %170 = tpu.matmul %166, %169, %cst_69 {dimension_numbers = #tpu.dot_dimension_numbers<[1], [0], [0], [1], [0, 0, 1, 1], [], []>} : vector<3x8xf32>, vector<8x3xf32>, vector<3x3xf32> -> vector<3x3xf32>
    %cst_70 = arith.constant 0.353553385 : f32
    %171 = vector.broadcast %cst_70 : f32 to vector<3x3xf32>
    %172 = arith.mulf %170, %171 : vector<3x3xf32>
    %173 = vector.broadcast %5 : vector<1x3xf32> to vector<3x3xf32>
    %174 = arith.addf %172, %173 : vector<3x3xf32>
    %cst_71 = arith.constant dense<0xFF800000> : vector<3xf32>
    %175 = vector.multi_reduction <maximumf>, %174, %cst_71 [1] : vector<3x3xf32> to vector<3xf32>
    %176 = vector.shape_cast %175 : vector<3xf32> to vector<3x1xf32>
    %177 = vector.broadcast %176 : vector<3x1xf32> to vector<3x3xf32>
    %178 = arith.subf %174, %177 : vector<3x3xf32>
    %179 = math.exp %178 : vector<3x3xf32>
    %cst_72 = arith.constant dense<0.000000e+00> : vector<3xf32>
    %180 = vector.multi_reduction <add>, %179, %cst_72 [1] : vector<3x3xf32> to vector<3xf32>
    %181 = vector.shape_cast %180 : vector<3xf32> to vector<3x1xf32>
    %182 = tpu.reciprocal %181 {approx = true} : vector<3x1xf32> -> vector<3x1xf32>
    %183 = vector.broadcast %182 : vector<3x1xf32> to vector<3x3xf32>
    %184 = arith.mulf %179, %183 : vector<3x3xf32>
    %cst_73 = arith.constant dense<0.000000e+00> : vector<3x8xf32>
    %185 = tpu.matmul %184, %168, %cst_73 {dimension_numbers = #tpu.dot_dimension_numbers<[1], [0], [0], [1], [0, 0, 1, 1], [], []>} : vector<3x3xf32>, vector<3x8xf32>, vector<3x8xf32> -> vector<3x8xf32>
    %186 = vector.extract_strided_slice %93 {offsets = [24, 0], sizes = [8, 32], strides = [1, 1]} : vector<32x32xf32> to vector<8x32xf32>
    %cst_74 = arith.constant dense<0.000000e+00> : vector<3x32xf32>
    %187 = tpu.matmul %185, %186, %cst_74 {dimension_numbers = #tpu.dot_dimension_numbers<[1], [0], [0], [1], [0, 0, 1, 1], [], []>} : vector<3x8xf32>, vector<8x32xf32>, vector<3x32xf32> -> vector<3x32xf32>
    %188 = arith.addf %165, %187 : vector<3x32xf32>
    %189 = arith.addf %56, %188 : vector<3x32xf32>
    %c0_75 = arith.constant 0 : index
    %c0_76 = arith.constant 0 : index
    %c1408 = arith.constant 1408 : index
    %190 = vector.load %arg10[%c0_75, %c0_76, %c1408] : memref<1x1x3584xf32, #tpu.memory_space<vmem>>, vector<1x1x32xf32>
    %191 = vector.shape_cast %190 : vector<1x1x32xf32> to vector<1x32xf32>
    %c0_77 = arith.constant 0 : index
    %c0_78 = arith.constant 0 : index
    %c2176 = arith.constant 2176 : index
    %192 = vector.load %arg10[%c0_77, %c0_78, %c2176] : memref<1x1x3584xf32, #tpu.memory_space<vmem>>, vector<1x1x32xf32>
    %193 = vector.shape_cast %192 : vector<1x1x32xf32> to vector<1x32xf32>
    %cst_79 = arith.constant dense<0.000000e+00> : vector<3xf32>
    %194 = vector.multi_reduction <add>, %189, %cst_79 [1] : vector<3x32xf32> to vector<3xf32>
    %195 = vector.shape_cast %194 : vector<3xf32> to vector<3x1xf32>
    %cst_80 = arith.constant 3.200000e+01 : f32
    %196 = vector.broadcast %cst_80 : f32 to vector<3x1xf32>
    %197 = arith.divf %195, %196 : vector<3x1xf32>
    %198 = vector.broadcast %197 : vector<3x1xf32> to vector<3x32xf32>
    %199 = arith.subf %189, %198 : vector<3x32xf32>
    %200 = arith.mulf %199, %199 : vector<3x32xf32>
    %cst_81 = arith.constant dense<0.000000e+00> : vector<3xf32>
    %201 = vector.multi_reduction <add>, %200, %cst_81 [1] : vector<3x32xf32> to vector<3xf32>
    %202 = vector.shape_cast %201 : vector<3xf32> to vector<3x1xf32>
    %cst_82 = arith.constant 3.200000e+01 : f32
    %203 = vector.broadcast %cst_82 : f32 to vector<3x1xf32>
    %204 = arith.divf %202, %203 : vector<3x1xf32>
    %205 = vector.broadcast %197 : vector<3x1xf32> to vector<3x32xf32>
    %206 = arith.subf %189, %205 : vector<3x32xf32>
    %cst_83 = arith.constant 9.99999974E-6 : f32
    %207 = vector.broadcast %cst_83 : f32 to vector<3x1xf32>
    %208 = arith.addf %204, %207 : vector<3x1xf32>
    %209 = math.rsqrt %208 : vector<3x1xf32>
    %210 = vector.broadcast %209 : vector<3x1xf32> to vector<3x32xf32>
    %211 = arith.mulf %206, %210 : vector<3x32xf32>
    %212 = vector.broadcast %191 : vector<1x32xf32> to vector<3x32xf32>
    %213 = arith.mulf %211, %212 : vector<3x32xf32>
    %214 = vector.broadcast %193 : vector<1x32xf32> to vector<3x32xf32>
    %215 = arith.addf %213, %214 : vector<3x32xf32>
    %216 = vector.broadcast %7 : vector<3x1xf32> to vector<3x32xf32>
    %217 = arith.mulf %215, %216 : vector<3x32xf32>
    %c0_84 = arith.constant 0 : index
    %c0_85 = arith.constant 0 : index
    %c512 = arith.constant 512 : index
    %218 = vector.load %arg8[%c0_84, %c0_85, %c512] : memref<1x32x768xf32, #tpu.memory_space<vmem>>, vector<1x32x64xf32>
    %219 = vector.shape_cast %218 : vector<1x32x64xf32> to vector<32x64xf32>
    %cst_86 = arith.constant dense<0.000000e+00> : vector<3x64xf32>
    %220 = tpu.matmul %217, %219, %cst_86 {dimension_numbers = #tpu.dot_dimension_numbers<[1], [0], [0], [1], [0, 0, 1, 1], [], []>} : vector<3x32xf32>, vector<32x64xf32>, vector<3x64xf32> -> vector<3x64xf32>
    %c0_87 = arith.constant 0 : index
    %c0_88 = arith.constant 0 : index
    %c512_89 = arith.constant 512 : index
    %221 = vector.load %arg10[%c0_87, %c0_88, %c512_89] : memref<1x1x3584xf32, #tpu.memory_space<vmem>>, vector<1x1x64xf32>
    %222 = vector.shape_cast %221 : vector<1x1x64xf32> to vector<1x64xf32>
    %223 = vector.broadcast %222 : vector<1x64xf32> to vector<3x64xf32>
    %224 = arith.addf %220, %223 : vector<3x64xf32>
    %225 = vector.extract_strided_slice %224 {offsets = [0, 0], sizes = [3, 32], strides = [1, 1]} : vector<3x64xf32> to vector<3x32xf32>
    %226 = vector.extract_strided_slice %224 {offsets = [0, 32], sizes = [3, 32], strides = [1, 1]} : vector<3x64xf32> to vector<3x32xf32>
    %227 = arith.negf %226 : vector<3x32xf32>
    %228 = math.exp %227 : vector<3x32xf32>
    %cst_90 = arith.constant 1.000000e+00 : f32
    %229 = vector.broadcast %cst_90 : f32 to vector<3x32xf32>
    %230 = arith.addf %229, %228 : vector<3x32xf32>
    %231 = arith.divf %229, %230 : vector<3x32xf32>
    %232 = arith.mulf %225, %231 : vector<3x32xf32>
    %233 = tpu.iota {dimensions = array<i32: 0>} : vector<3x3xi32>
    %234 = tpu.iota {dimensions = array<i32: 1>} : vector<3x3xi32>
    %c0_91 = arith.constant 0 : index
    %c0_92 = arith.constant 0 : index
    %c1024 = arith.constant 1024 : index
    %235 = vector.load %arg10[%c0_91, %c0_92, %c1024] : memref<1x1x3584xf32, #tpu.memory_space<vmem>>, vector<1x1x32xf32>
    %236 = vector.shape_cast %235 : vector<1x1x32xf32> to vector<1x32xf32>
    %c-3_i32 = arith.constant -3 : i32
    %237 = vector.broadcast %c-3_i32 : i32 to vector<3x3xi32>
    %238 = arith.addi %233, %237 : vector<3x3xi32>
    %239 = arith.cmpi eq, %234, %238 : vector<3x3xi32>
    %cst_93 = arith.constant 1.000000e+00 : f32
    %cst_94 = arith.constant 0.000000e+00 : f32
    %240 = vector.broadcast %cst_93 : f32 to vector<3x3xf32>
    %241 = vector.broadcast %cst_94 : f32 to vector<3x3xf32>
    %242 = arith.select %239, %240, %241 : vector<3x3xi1>, vector<3x3xf32>
    %cst_95 = arith.constant dense<0.000000e+00> : vector<3x32xf32>
    %243 = tpu.matmul %242, %232, %cst_95 {dimension_numbers = #tpu.dot_dimension_numbers<[1], [0], [0], [1], [0, 0, 1, 1], [], []>} : vector<3x3xf32>, vector<3x32xf32>, vector<3x32xf32> -> vector<3x32xf32>
    %c0_96 = arith.constant 0 : index
    %c0_97 = arith.constant 0 : index
    %c2688 = arith.constant 2688 : index
    %244 = vector.load %arg10[%c0_96, %c0_97, %c2688] : memref<1x1x3584xf32, #tpu.memory_space<vmem>>, vector<1x1x32xf32>
    %245 = vector.shape_cast %244 : vector<1x1x32xf32> to vector<1x32xf32>
    %246 = vector.broadcast %245 : vector<1x32xf32> to vector<3x32xf32>
    %247 = arith.mulf %243, %246 : vector<3x32xf32>
    %248 = vector.broadcast %236 : vector<1x32xf32> to vector<3x32xf32>
    %249 = arith.addf %248, %247 : vector<3x32xf32>
    %c-2_i32 = arith.constant -2 : i32
    %250 = vector.broadcast %c-2_i32 : i32 to vector<3x3xi32>
    %251 = arith.addi %233, %250 : vector<3x3xi32>
    %252 = arith.cmpi eq, %234, %251 : vector<3x3xi32>
    %cst_98 = arith.constant 1.000000e+00 : f32
    %cst_99 = arith.constant 0.000000e+00 : f32
    %253 = vector.broadcast %cst_98 : f32 to vector<3x3xf32>
    %254 = vector.broadcast %cst_99 : f32 to vector<3x3xf32>
    %255 = arith.select %252, %253, %254 : vector<3x3xi1>, vector<3x3xf32>
    %cst_100 = arith.constant dense<0.000000e+00> : vector<3x32xf32>
    %256 = tpu.matmul %255, %232, %cst_100 {dimension_numbers = #tpu.dot_dimension_numbers<[1], [0], [0], [1], [0, 0, 1, 1], [], []>} : vector<3x3xf32>, vector<3x32xf32>, vector<3x32xf32> -> vector<3x32xf32>
    %c0_101 = arith.constant 0 : index
    %c0_102 = arith.constant 0 : index
    %c2816 = arith.constant 2816 : index
    %257 = vector.load %arg10[%c0_101, %c0_102, %c2816] : memref<1x1x3584xf32, #tpu.memory_space<vmem>>, vector<1x1x32xf32>
    %258 = vector.shape_cast %257 : vector<1x1x32xf32> to vector<1x32xf32>
    %259 = vector.broadcast %258 : vector<1x32xf32> to vector<3x32xf32>
    %260 = arith.mulf %256, %259 : vector<3x32xf32>
    %261 = arith.addf %249, %260 : vector<3x32xf32>
    %c-1_i32 = arith.constant -1 : i32
    %262 = vector.broadcast %c-1_i32 : i32 to vector<3x3xi32>
    %263 = arith.addi %233, %262 : vector<3x3xi32>
    %264 = arith.cmpi eq, %234, %263 : vector<3x3xi32>
    %cst_103 = arith.constant 1.000000e+00 : f32
    %cst_104 = arith.constant 0.000000e+00 : f32
    %265 = vector.broadcast %cst_103 : f32 to vector<3x3xf32>
    %266 = vector.broadcast %cst_104 : f32 to vector<3x3xf32>
    %267 = arith.select %264, %265, %266 : vector<3x3xi1>, vector<3x3xf32>
    %cst_105 = arith.constant dense<0.000000e+00> : vector<3x32xf32>
    %268 = tpu.matmul %267, %232, %cst_105 {dimension_numbers = #tpu.dot_dimension_numbers<[1], [0], [0], [1], [0, 0, 1, 1], [], []>} : vector<3x3xf32>, vector<3x32xf32>, vector<3x32xf32> -> vector<3x32xf32>
    %c0_106 = arith.constant 0 : index
    %c0_107 = arith.constant 0 : index
    %c2944 = arith.constant 2944 : index
    %269 = vector.load %arg10[%c0_106, %c0_107, %c2944] : memref<1x1x3584xf32, #tpu.memory_space<vmem>>, vector<1x1x32xf32>
    %270 = vector.shape_cast %269 : vector<1x1x32xf32> to vector<1x32xf32>
    %271 = vector.broadcast %270 : vector<1x32xf32> to vector<3x32xf32>
    %272 = arith.mulf %268, %271 : vector<3x32xf32>
    %273 = arith.addf %261, %272 : vector<3x32xf32>
    %c0_i32_108 = arith.constant 0 : i32
    %274 = vector.broadcast %c0_i32_108 : i32 to vector<3x3xi32>
    %275 = arith.addi %233, %274 : vector<3x3xi32>
    %276 = arith.cmpi eq, %234, %275 : vector<3x3xi32>
    %cst_109 = arith.constant 1.000000e+00 : f32
    %cst_110 = arith.constant 0.000000e+00 : f32
    %277 = vector.broadcast %cst_109 : f32 to vector<3x3xf32>
    %278 = vector.broadcast %cst_110 : f32 to vector<3x3xf32>
    %279 = arith.select %276, %277, %278 : vector<3x3xi1>, vector<3x3xf32>
    %cst_111 = arith.constant dense<0.000000e+00> : vector<3x32xf32>
    %280 = tpu.matmul %279, %232, %cst_111 {dimension_numbers = #tpu.dot_dimension_numbers<[1], [0], [0], [1], [0, 0, 1, 1], [], []>} : vector<3x3xf32>, vector<3x32xf32>, vector<3x32xf32> -> vector<3x32xf32>
    %c0_112 = arith.constant 0 : index
    %c0_113 = arith.constant 0 : index
    %c3072 = arith.constant 3072 : index
    %281 = vector.load %arg10[%c0_112, %c0_113, %c3072] : memref<1x1x3584xf32, #tpu.memory_space<vmem>>, vector<1x1x32xf32>
    %282 = vector.shape_cast %281 : vector<1x1x32xf32> to vector<1x32xf32>
    %283 = vector.broadcast %282 : vector<1x32xf32> to vector<3x32xf32>
    %284 = arith.mulf %280, %283 : vector<3x32xf32>
    %285 = arith.addf %273, %284 : vector<3x32xf32>
    %c1_i32 = arith.constant 1 : i32
    %286 = vector.broadcast %c1_i32 : i32 to vector<3x3xi32>
    %287 = arith.addi %233, %286 : vector<3x3xi32>
    %288 = arith.cmpi eq, %234, %287 : vector<3x3xi32>
    %cst_114 = arith.constant 1.000000e+00 : f32
    %cst_115 = arith.constant 0.000000e+00 : f32
    %289 = vector.broadcast %cst_114 : f32 to vector<3x3xf32>
    %290 = vector.broadcast %cst_115 : f32 to vector<3x3xf32>
    %291 = arith.select %288, %289, %290 : vector<3x3xi1>, vector<3x3xf32>
    %cst_116 = arith.constant dense<0.000000e+00> : vector<3x32xf32>
    %292 = tpu.matmul %291, %232, %cst_116 {dimension_numbers = #tpu.dot_dimension_numbers<[1], [0], [0], [1], [0, 0, 1, 1], [], []>} : vector<3x3xf32>, vector<3x32xf32>, vector<3x32xf32> -> vector<3x32xf32>
    %c0_117 = arith.constant 0 : index
    %c0_118 = arith.constant 0 : index
    %c3200 = arith.constant 3200 : index
    %293 = vector.load %arg10[%c0_117, %c0_118, %c3200] : memref<1x1x3584xf32, #tpu.memory_space<vmem>>, vector<1x1x32xf32>
    %294 = vector.shape_cast %293 : vector<1x1x32xf32> to vector<1x32xf32>
    %295 = vector.broadcast %294 : vector<1x32xf32> to vector<3x32xf32>
    %296 = arith.mulf %292, %295 : vector<3x32xf32>
    %297 = arith.addf %285, %296 : vector<3x32xf32>
    %c2_i32 = arith.constant 2 : i32
    %298 = vector.broadcast %c2_i32 : i32 to vector<3x3xi32>
    %299 = arith.addi %233, %298 : vector<3x3xi32>
    %300 = arith.cmpi eq, %234, %299 : vector<3x3xi32>
    %cst_119 = arith.constant 1.000000e+00 : f32
    %cst_120 = arith.constant 0.000000e+00 : f32
    %301 = vector.broadcast %cst_119 : f32 to vector<3x3xf32>
    %302 = vector.broadcast %cst_120 : f32 to vector<3x3xf32>
    %303 = arith.select %300, %301, %302 : vector<3x3xi1>, vector<3x3xf32>
    %cst_121 = arith.constant dense<0.000000e+00> : vector<3x32xf32>
    %304 = tpu.matmul %303, %232, %cst_121 {dimension_numbers = #tpu.dot_dimension_numbers<[1], [0], [0], [1], [0, 0, 1, 1], [], []>} : vector<3x3xf32>, vector<3x32xf32>, vector<3x32xf32> -> vector<3x32xf32>
    %c0_122 = arith.constant 0 : index
    %c0_123 = arith.constant 0 : index
    %c3328 = arith.constant 3328 : index
    %305 = vector.load %arg10[%c0_122, %c0_123, %c3328] : memref<1x1x3584xf32, #tpu.memory_space<vmem>>, vector<1x1x32xf32>
    %306 = vector.shape_cast %305 : vector<1x1x32xf32> to vector<1x32xf32>
    %307 = vector.broadcast %306 : vector<1x32xf32> to vector<3x32xf32>
    %308 = arith.mulf %304, %307 : vector<3x32xf32>
    %309 = arith.addf %297, %308 : vector<3x32xf32>
    %c3_i32 = arith.constant 3 : i32
    %310 = vector.broadcast %c3_i32 : i32 to vector<3x3xi32>
    %311 = arith.addi %233, %310 : vector<3x3xi32>
    %312 = arith.cmpi eq, %234, %311 : vector<3x3xi32>
    %cst_124 = arith.constant 1.000000e+00 : f32
    %cst_125 = arith.constant 0.000000e+00 : f32
    %313 = vector.broadcast %cst_124 : f32 to vector<3x3xf32>
    %314 = vector.broadcast %cst_125 : f32 to vector<3x3xf32>
    %315 = arith.select %312, %313, %314 : vector<3x3xi1>, vector<3x3xf32>
    %cst_126 = arith.constant dense<0.000000e+00> : vector<3x32xf32>
    %316 = tpu.matmul %315, %232, %cst_126 {dimension_numbers = #tpu.dot_dimension_numbers<[1], [0], [0], [1], [0, 0, 1, 1], [], []>} : vector<3x3xf32>, vector<3x32xf32>, vector<3x32xf32> -> vector<3x32xf32>
    %c0_127 = arith.constant 0 : index
    %c0_128 = arith.constant 0 : index
    %c3456 = arith.constant 3456 : index
    %317 = vector.load %arg10[%c0_127, %c0_128, %c3456] : memref<1x1x3584xf32, #tpu.memory_space<vmem>>, vector<1x1x32xf32>
    %318 = vector.shape_cast %317 : vector<1x1x32xf32> to vector<1x32xf32>
    %319 = vector.broadcast %318 : vector<1x32xf32> to vector<3x32xf32>
    %320 = arith.mulf %316, %319 : vector<3x32xf32>
    %321 = arith.addf %309, %320 : vector<3x32xf32>
    %c0_129 = arith.constant 0 : index
    %c0_130 = arith.constant 0 : index
    %c1536 = arith.constant 1536 : index
    %322 = vector.load %arg10[%c0_129, %c0_130, %c1536] : memref<1x1x3584xf32, #tpu.memory_space<vmem>>, vector<1x1x32xf32>
    %323 = vector.shape_cast %322 : vector<1x1x32xf32> to vector<1x32xf32>
    %c0_131 = arith.constant 0 : index
    %c0_132 = arith.constant 0 : index
    %c2304 = arith.constant 2304 : index
    %324 = vector.load %arg10[%c0_131, %c0_132, %c2304] : memref<1x1x3584xf32, #tpu.memory_space<vmem>>, vector<1x1x32xf32>
    %325 = vector.shape_cast %324 : vector<1x1x32xf32> to vector<1x32xf32>
    %cst_133 = arith.constant dense<0.000000e+00> : vector<3xf32>
    %326 = vector.multi_reduction <add>, %321, %cst_133 [1] : vector<3x32xf32> to vector<3xf32>
    %327 = vector.shape_cast %326 : vector<3xf32> to vector<3x1xf32>
    %cst_134 = arith.constant 3.200000e+01 : f32
    %328 = vector.broadcast %cst_134 : f32 to vector<3x1xf32>
    %329 = arith.divf %327, %328 : vector<3x1xf32>
    %330 = vector.broadcast %329 : vector<3x1xf32> to vector<3x32xf32>
    %331 = arith.subf %321, %330 : vector<3x32xf32>
    %332 = arith.mulf %331, %331 : vector<3x32xf32>
    %cst_135 = arith.constant dense<0.000000e+00> : vector<3xf32>
    %333 = vector.multi_reduction <add>, %332, %cst_135 [1] : vector<3x32xf32> to vector<3xf32>
    %334 = vector.shape_cast %333 : vector<3xf32> to vector<3x1xf32>
    %cst_136 = arith.constant 3.200000e+01 : f32
    %335 = vector.broadcast %cst_136 : f32 to vector<3x1xf32>
    %336 = arith.divf %334, %335 : vector<3x1xf32>
    %337 = vector.broadcast %329 : vector<3x1xf32> to vector<3x32xf32>
    %338 = arith.subf %321, %337 : vector<3x32xf32>
    %cst_137 = arith.constant 9.99999974E-6 : f32
    %339 = vector.broadcast %cst_137 : f32 to vector<3x1xf32>
    %340 = arith.addf %336, %339 : vector<3x1xf32>
    %341 = math.rsqrt %340 : vector<3x1xf32>
    %342 = vector.broadcast %341 : vector<3x1xf32> to vector<3x32xf32>
    %343 = arith.mulf %338, %342 : vector<3x32xf32>
    %344 = vector.broadcast %323 : vector<1x32xf32> to vector<3x32xf32>
    %345 = arith.mulf %343, %344 : vector<3x32xf32>
    %346 = vector.broadcast %325 : vector<1x32xf32> to vector<3x32xf32>
    %347 = arith.addf %345, %346 : vector<3x32xf32>
    %348 = arith.negf %347 : vector<3x32xf32>
    %349 = math.exp %348 : vector<3x32xf32>
    %cst_138 = arith.constant 1.000000e+00 : f32
    %350 = vector.broadcast %cst_138 : f32 to vector<3x32xf32>
    %351 = arith.addf %350, %349 : vector<3x32xf32>
    %352 = arith.divf %350, %351 : vector<3x32xf32>
    %353 = arith.mulf %347, %352 : vector<3x32xf32>
    %c0_139 = arith.constant 0 : index
    %c0_140 = arith.constant 0 : index
    %c640 = arith.constant 640 : index
    %354 = vector.load %arg8[%c0_139, %c0_140, %c640] : memref<1x32x768xf32, #tpu.memory_space<vmem>>, vector<1x32x32xf32>
    %355 = vector.shape_cast %354 : vector<1x32x32xf32> to vector<32x32xf32>
    %cst_141 = arith.constant dense<0.000000e+00> : vector<3x32xf32>
    %356 = tpu.matmul %353, %355, %cst_141 {dimension_numbers = #tpu.dot_dimension_numbers<[1], [0], [0], [1], [0, 0, 1, 1], [], []>} : vector<3x32xf32>, vector<32x32xf32>, vector<3x32xf32> -> vector<3x32xf32>
    %c0_142 = arith.constant 0 : index
    %c0_143 = arith.constant 0 : index
    %c640_144 = arith.constant 640 : index
    %357 = vector.load %arg10[%c0_142, %c0_143, %c640_144] : memref<1x1x3584xf32, #tpu.memory_space<vmem>>, vector<1x1x32xf32>
    %358 = vector.shape_cast %357 : vector<1x1x32xf32> to vector<1x32xf32>
    %359 = vector.broadcast %358 : vector<1x32xf32> to vector<3x32xf32>
    %360 = arith.addf %356, %359 : vector<3x32xf32>
    %361 = arith.addf %189, %360 : vector<3x32xf32>
    %c0_145 = arith.constant 0 : index
    %c0_146 = arith.constant 0 : index
    %c1664 = arith.constant 1664 : index
    %362 = vector.load %arg10[%c0_145, %c0_146, %c1664] : memref<1x1x3584xf32, #tpu.memory_space<vmem>>, vector<1x1x32xf32>
    %363 = vector.shape_cast %362 : vector<1x1x32xf32> to vector<1x32xf32>
    %c0_147 = arith.constant 0 : index
    %c0_148 = arith.constant 0 : index
    %c2432 = arith.constant 2432 : index
    %364 = vector.load %arg10[%c0_147, %c0_148, %c2432] : memref<1x1x3584xf32, #tpu.memory_space<vmem>>, vector<1x1x32xf32>
    %365 = vector.shape_cast %364 : vector<1x1x32xf32> to vector<1x32xf32>
    %cst_149 = arith.constant dense<0.000000e+00> : vector<3xf32>
    %366 = vector.multi_reduction <add>, %361, %cst_149 [1] : vector<3x32xf32> to vector<3xf32>
    %367 = vector.shape_cast %366 : vector<3xf32> to vector<3x1xf32>
    %cst_150 = arith.constant 3.200000e+01 : f32
    %368 = vector.broadcast %cst_150 : f32 to vector<3x1xf32>
    %369 = arith.divf %367, %368 : vector<3x1xf32>
    %370 = vector.broadcast %369 : vector<3x1xf32> to vector<3x32xf32>
    %371 = arith.subf %361, %370 : vector<3x32xf32>
    %372 = arith.mulf %371, %371 : vector<3x32xf32>
    %cst_151 = arith.constant dense<0.000000e+00> : vector<3xf32>
    %373 = vector.multi_reduction <add>, %372, %cst_151 [1] : vector<3x32xf32> to vector<3xf32>
    %374 = vector.shape_cast %373 : vector<3xf32> to vector<3x1xf32>
    %cst_152 = arith.constant 3.200000e+01 : f32
    %375 = vector.broadcast %cst_152 : f32 to vector<3x1xf32>
    %376 = arith.divf %374, %375 : vector<3x1xf32>
    %377 = vector.broadcast %369 : vector<3x1xf32> to vector<3x32xf32>
    %378 = arith.subf %361, %377 : vector<3x32xf32>
    %cst_153 = arith.constant 9.99999974E-6 : f32
    %379 = vector.broadcast %cst_153 : f32 to vector<3x1xf32>
    %380 = arith.addf %376, %379 : vector<3x1xf32>
    %381 = math.rsqrt %380 : vector<3x1xf32>
    %382 = vector.broadcast %381 : vector<3x1xf32> to vector<3x32xf32>
    %383 = arith.mulf %378, %382 : vector<3x32xf32>
    %384 = vector.broadcast %363 : vector<1x32xf32> to vector<3x32xf32>
    %385 = arith.mulf %383, %384 : vector<3x32xf32>
    %386 = vector.broadcast %365 : vector<1x32xf32> to vector<3x32xf32>
    %387 = arith.addf %385, %386 : vector<3x32xf32>
    %c0_154 = arith.constant 0 : index
    %c0_155 = arith.constant 0 : index
    %c128 = arith.constant 128 : index
    %388 = vector.load %arg8[%c0_154, %c0_155, %c128] : memref<1x32x768xf32, #tpu.memory_space<vmem>>, vector<1x32x64xf32>
    %389 = vector.shape_cast %388 : vector<1x32x64xf32> to vector<32x64xf32>
    %cst_156 = arith.constant dense<0.000000e+00> : vector<3x64xf32>
    %390 = tpu.matmul %387, %389, %cst_156 {dimension_numbers = #tpu.dot_dimension_numbers<[1], [0], [0], [1], [0, 0, 1, 1], [], []>} : vector<3x32xf32>, vector<32x64xf32>, vector<3x64xf32> -> vector<3x64xf32>
    %c0_157 = arith.constant 0 : index
    %c0_158 = arith.constant 0 : index
    %c128_159 = arith.constant 128 : index
    %391 = vector.load %arg10[%c0_157, %c0_158, %c128_159] : memref<1x1x3584xf32, #tpu.memory_space<vmem>>, vector<1x1x64xf32>
    %392 = vector.shape_cast %391 : vector<1x1x64xf32> to vector<1x64xf32>
    %393 = vector.broadcast %392 : vector<1x64xf32> to vector<3x64xf32>
    %394 = arith.addf %390, %393 : vector<3x64xf32>
    %395 = arith.negf %394 : vector<3x64xf32>
    %396 = math.exp %395 : vector<3x64xf32>
    %cst_160 = arith.constant 1.000000e+00 : f32
    %397 = vector.broadcast %cst_160 : f32 to vector<3x64xf32>
    %398 = arith.addf %397, %396 : vector<3x64xf32>
    %399 = arith.divf %397, %398 : vector<3x64xf32>
    %400 = arith.mulf %394, %399 : vector<3x64xf32>
    %c0_161 = arith.constant 0 : index
    %c64 = arith.constant 64 : index
    %c0_162 = arith.constant 0 : index
    %401 = vector.load %arg9[%c0_161, %c64, %c0_162] : memref<1x128x32xf32, #tpu.memory_space<vmem>>, vector<1x64x32xf32>
    %402 = vector.shape_cast %401 : vector<1x64x32xf32> to vector<64x32xf32>
    %cst_163 = arith.constant dense<0.000000e+00> : vector<3x32xf32>
    %403 = tpu.matmul %400, %402, %cst_163 {dimension_numbers = #tpu.dot_dimension_numbers<[1], [0], [0], [1], [0, 0, 1, 1], [], []>} : vector<3x64xf32>, vector<64x32xf32>, vector<3x32xf32> -> vector<3x32xf32>
    %c0_164 = arith.constant 0 : index
    %c0_165 = arith.constant 0 : index
    %c896 = arith.constant 896 : index
    %404 = vector.load %arg10[%c0_164, %c0_165, %c896] : memref<1x1x3584xf32, #tpu.memory_space<vmem>>, vector<1x1x32xf32>
    %405 = vector.shape_cast %404 : vector<1x1x32xf32> to vector<1x32xf32>
    %406 = vector.broadcast %405 : vector<1x32xf32> to vector<3x32xf32>
    %407 = arith.addf %403, %406 : vector<3x32xf32>
    %cst_166 = arith.constant 5.000000e-01 : f32
    %408 = vector.broadcast %cst_166 : f32 to vector<3x32xf32>
    %409 = arith.mulf %408, %407 : vector<3x32xf32>
    %410 = arith.addf %361, %409 : vector<3x32xf32>
    %c0_167 = arith.constant 0 : index
    %c0_168 = arith.constant 0 : index
    %c1792 = arith.constant 1792 : index
    %411 = vector.load %arg10[%c0_167, %c0_168, %c1792] : memref<1x1x3584xf32, #tpu.memory_space<vmem>>, vector<1x1x32xf32>
    %412 = vector.shape_cast %411 : vector<1x1x32xf32> to vector<1x32xf32>
    %c0_169 = arith.constant 0 : index
    %c0_170 = arith.constant 0 : index
    %c2560 = arith.constant 2560 : index
    %413 = vector.load %arg10[%c0_169, %c0_170, %c2560] : memref<1x1x3584xf32, #tpu.memory_space<vmem>>, vector<1x1x32xf32>
    %414 = vector.shape_cast %413 : vector<1x1x32xf32> to vector<1x32xf32>
    %cst_171 = arith.constant dense<0.000000e+00> : vector<3xf32>
    %415 = vector.multi_reduction <add>, %410, %cst_171 [1] : vector<3x32xf32> to vector<3xf32>
    %416 = vector.shape_cast %415 : vector<3xf32> to vector<3x1xf32>
    %cst_172 = arith.constant 3.200000e+01 : f32
    %417 = vector.broadcast %cst_172 : f32 to vector<3x1xf32>
    %418 = arith.divf %416, %417 : vector<3x1xf32>
    %419 = vector.broadcast %418 : vector<3x1xf32> to vector<3x32xf32>
    %420 = arith.subf %410, %419 : vector<3x32xf32>
    %421 = arith.mulf %420, %420 : vector<3x32xf32>
    %cst_173 = arith.constant dense<0.000000e+00> : vector<3xf32>
    %422 = vector.multi_reduction <add>, %421, %cst_173 [1] : vector<3x32xf32> to vector<3xf32>
    %423 = vector.shape_cast %422 : vector<3xf32> to vector<3x1xf32>
    %cst_174 = arith.constant 3.200000e+01 : f32
    %424 = vector.broadcast %cst_174 : f32 to vector<3x1xf32>
    %425 = arith.divf %423, %424 : vector<3x1xf32>
    %426 = vector.broadcast %418 : vector<3x1xf32> to vector<3x32xf32>
    %427 = arith.subf %410, %426 : vector<3x32xf32>
    %cst_175 = arith.constant 9.99999974E-6 : f32
    %428 = vector.broadcast %cst_175 : f32 to vector<3x1xf32>
    %429 = arith.addf %425, %428 : vector<3x1xf32>
    %430 = math.rsqrt %429 : vector<3x1xf32>
    %431 = vector.broadcast %430 : vector<3x1xf32> to vector<3x32xf32>
    %432 = arith.mulf %427, %431 : vector<3x32xf32>
    %433 = vector.broadcast %412 : vector<1x32xf32> to vector<3x32xf32>
    %434 = arith.mulf %432, %433 : vector<3x32xf32>
    %435 = vector.broadcast %414 : vector<1x32xf32> to vector<3x32xf32>
    %436 = arith.addf %434, %435 : vector<3x32xf32>
    %c0_176 = arith.constant 0 : index
    %c0_177 = arith.constant 0 : index
    %437 = vector.load %arg16[%c0_176, %c0_177] : memref<3x32xf32, #tpu.memory_space<vmem>>, vector<3x32xf32>
    tpu.vector_store %arg16[%c0_176, %c0_177], %436 {strides = array<i32>} : memref<3x32xf32, #tpu.memory_space<vmem>>, vector<3x32xf32>,
    %c1_i32_178 = arith.constant 1 : i32
    %438 = arith.cmpi eq, %arg1, %c1_i32_178 : i32
    %439 = arith.extui %438 : i1 to i32
    %c0_i32_179 = arith.constant 0 : i32
    %440 = arith.cmpi ne, %439, %c0_i32_179 : i32
    scf.if %440 {
      %c0_180 = arith.constant 0 : index
      %c0_181 = arith.constant 0 : index
      %441 = vector.load %arg13[%c0_180, %c0_181] : memref<1x64xf32, #tpu.memory_space<vmem>>, vector<1x64xf32>
      %442 = vector.extract_strided_slice %441 {offsets = [0, 0], sizes = [1, 32], strides = [1, 1]} : vector<1x64xf32> to vector<1x32xf32>
      %443 = vector.extract_strided_slice %441 {offsets = [0, 32], sizes = [1, 32], strides = [1, 1]} : vector<1x64xf32> to vector<1x32xf32>
      %cst_182 = arith.constant dense<0.000000e+00> : vector<3xf32>
      %444 = vector.multi_reduction <add>, %436, %cst_182 [1] : vector<3x32xf32> to vector<3xf32>
      %445 = vector.shape_cast %444 : vector<3xf32> to vector<3x1xf32>
      %cst_183 = arith.constant 3.200000e+01 : f32
      %446 = vector.broadcast %cst_183 : f32 to vector<3x1xf32>
      %447 = arith.divf %445, %446 : vector<3x1xf32>
      %448 = vector.broadcast %447 : vector<3x1xf32> to vector<3x32xf32>
      %449 = arith.subf %436, %448 : vector<3x32xf32>
      %450 = arith.mulf %449, %449 : vector<3x32xf32>
      %cst_184 = arith.constant dense<0.000000e+00> : vector<3xf32>
      %451 = vector.multi_reduction <add>, %450, %cst_184 [1] : vector<3x32xf32> to vector<3xf32>
      %452 = vector.shape_cast %451 : vector<3xf32> to vector<3x1xf32>
      %cst_185 = arith.constant 3.200000e+01 : f32
      %453 = vector.broadcast %cst_185 : f32 to vector<3x1xf32>
      %454 = arith.divf %452, %453 : vector<3x1xf32>
      %455 = vector.broadcast %447 : vector<3x1xf32> to vector<3x32xf32>
      %456 = arith.subf %436, %455 : vector<3x32xf32>
      %cst_186 = arith.constant 9.99999974E-6 : f32
      %457 = vector.broadcast %cst_186 : f32 to vector<3x1xf32>
      %458 = arith.addf %454, %457 : vector<3x1xf32>
      %459 = math.rsqrt %458 : vector<3x1xf32>
      %460 = vector.broadcast %459 : vector<3x1xf32> to vector<3x32xf32>
      %461 = arith.mulf %456, %460 : vector<3x32xf32>
      %462 = vector.broadcast %442 : vector<1x32xf32> to vector<3x32xf32>
      %463 = arith.mulf %461, %462 : vector<3x32xf32>
      %464 = vector.broadcast %443 : vector<1x32xf32> to vector<3x32xf32>
      %465 = arith.addf %463, %464 : vector<3x32xf32>
      %c0_187 = arith.constant 0 : index
      %c0_188 = arith.constant 0 : index
      %c0_189 = arith.constant 0 : index
      %466 = vector.load %arg14[%c0_187, %c0_188, %c0_189] : memref<1x3x32xf32, #tpu.memory_space<vmem>>, vector<1x3x32xf32>
      %467 = vector.shape_cast %466 : vector<1x3x32xf32> to vector<3x32xf32>
      %468 = vector.shape_cast %465 : vector<3x32xf32> to vector<1x3x32xf32>
      tpu.vector_store %arg14[%c0_187, %c0_188, %c0_189], %468 {strides = array<i32>} : memref<1x3x32xf32, #tpu.memory_space<vmem>>, vector<1x3x32xf32>,
      %c0_190 = arith.constant 0 : index
      %c0_191 = arith.constant 0 : index
      %469 = vector.load %arg11[%c0_190, %c0_191] : memref<32x128xf32, #tpu.memory_space<vmem>>, vector<32x128xf32>
      %cst_192 = arith.constant dense<0.000000e+00> : vector<3x128xf32>
      %470 = tpu.matmul %465, %469, %cst_192 {dimension_numbers = #tpu.dot_dimension_numbers<[1], [0], [0], [1], [0, 0, 1, 1], [], []>} : vector<3x32xf32>, vector<32x128xf32>, vector<3x128xf32> -> vector<3x128xf32>
      %c0_193 = arith.constant 0 : index
      %c0_194 = arith.constant 0 : index
      %471 = vector.load %arg12[%c0_193, %c0_194] : memref<1x128xf32, #tpu.memory_space<vmem>>, vector<1x128xf32>
      %472 = vector.broadcast %471 : vector<1x128xf32> to vector<3x128xf32>
      %473 = arith.addf %470, %472 : vector<3x128xf32>
      %c0_195 = arith.constant 0 : index
      %c0_196 = arith.constant 0 : index
      %c0_197 = arith.constant 0 : index
      %474 = vector.load %arg15[%c0_195, %c0_196, %c0_197] : memref<1x3x128xf32, #tpu.memory_space<vmem>>, vector<1x3x128xf32>
      %475 = vector.shape_cast %474 : vector<1x3x128xf32> to vector<3x128xf32>
      %476 = vector.shape_cast %473 : vector<3x128xf32> to vector<1x3x128xf32>
      tpu.vector_store %arg15[%c0_195, %c0_196, %c0_197], %476 {strides = array<i32>} : memref<1x3x128xf32, #tpu.memory_space<vmem>>, vector<1x3x128xf32>,
    } else {
    }
    return
  }
  func.func @transform_0(%arg0: i32, %arg1: i32) -> (i32, i32, i32) {
    %c0_i32 = arith.constant 0 : i32
    %c0_i32_0 = arith.constant 0 : i32
    %c0_i32_1 = arith.constant 0 : i32
    return %arg0, %c0_i32, %c0_i32_0 : i32, i32, i32
  }
  func.func @transform_1(%arg0: i32, %arg1: i32) -> (i32, i32) {
    %c0_i32 = arith.constant 0 : i32
    %c0_i32_0 = arith.constant 0 : i32
    %c0_i32_1 = arith.constant 0 : i32
    return %c0_i32, %c0_i32_0 : i32, i32
  }
  func.func @transform_2(%arg0: i32, %arg1: i32) -> (i32, i32) {
    %c0_i32 = arith.constant 0 : i32
    %c0_i32_0 = arith.constant 0 : i32
    %c0_i32_1 = arith.constant 0 : i32
    return %c0_i32, %c0_i32_0 : i32, i32
  }
  func.func @transform_3(%arg0: i32, %arg1: i32) -> (i32, i32) {
    %c0_i32 = arith.constant 0 : i32
    %c0_i32_0 = arith.constant 0 : i32
    %c0_i32_1 = arith.constant 0 : i32
    return %c0_i32, %c0_i32_0 : i32, i32
  }
  func.func @transform_4(%arg0: i32, %arg1: i32) -> (i32, i32, i32) {
    %c0_i32 = arith.constant 0 : i32
    %c0_i32_0 = arith.constant 0 : i32
    %c0_i32_1 = arith.constant 0 : i32
    return %arg0, %c0_i32, %c0_i32_0 : i32, i32, i32
  }
  func.func @transform_5(%arg0: i32, %arg1: i32) -> (i32, i32, i32) {
    %c0_i32 = arith.constant 0 : i32
    %c0_i32_0 = arith.constant 0 : i32
    %c0_i32_1 = arith.constant 0 : i32
    return %arg0, %c0_i32, %c0_i32_0 : i32, i32, i32
  }
  func.func @transform_6(%arg0: i32, %arg1: i32) -> (i32, i32, i32) {
    %c0_i32 = arith.constant 0 : i32
    %c0_i32_0 = arith.constant 0 : i32
    %c0_i32_1 = arith.constant 0 : i32
    return %arg1, %c0_i32, %c0_i32_0 : i32, i32, i32
  }
  func.func @transform_7(%arg0: i32, %arg1: i32) -> (i32, i32, i32) {
    %c0_i32 = arith.constant 0 : i32
    %c0_i32_0 = arith.constant 0 : i32
    %c0_i32_1 = arith.constant 0 : i32
    return %arg1, %c0_i32, %c0_i32_0 : i32, i32, i32
  }
  func.func @transform_8(%arg0: i32, %arg1: i32) -> (i32, i32, i32) {
    %c0_i32 = arith.constant 0 : i32
    %c0_i32_0 = arith.constant 0 : i32
    %c0_i32_1 = arith.constant 0 : i32
    return %arg1, %c0_i32, %c0_i32_0 : i32, i32, i32
  }
  func.func @transform_9(%arg0: i32, %arg1: i32) -> (i32, i32) {
    %c0_i32 = arith.constant 0 : i32
    %c0_i32_0 = arith.constant 0 : i32
    %c0_i32_1 = arith.constant 0 : i32
    return %c0_i32, %c0_i32_0 : i32, i32
  }
  func.func @transform_10(%arg0: i32, %arg1: i32) -> (i32, i32) {
    %c0_i32 = arith.constant 0 : i32
    %c0_i32_0 = arith.constant 0 : i32
    %c0_i32_1 = arith.constant 0 : i32
    return %c0_i32, %c0_i32_0 : i32, i32
  }
  func.func @transform_11(%arg0: i32, %arg1: i32) -> (i32, i32) {
    %c0_i32 = arith.constant 0 : i32
    %c0_i32_0 = arith.constant 0 : i32
    %c0_i32_1 = arith.constant 0 : i32
    return %c0_i32, %c0_i32_0 : i32, i32
  }
  func.func @transform_12(%arg0: i32, %arg1: i32) -> (i32, i32, i32) {
    %c0_i32 = arith.constant 0 : i32
    %c0_i32_0 = arith.constant 0 : i32
    %c0_i32_1 = arith.constant 0 : i32
    return %arg0, %c0_i32, %c0_i32_0 : i32, i32, i32
  }
  func.func @transform_13(%arg0: i32, %arg1: i32) -> (i32, i32, i32) {
    %c0_i32 = arith.constant 0 : i32
    %c0_i32_0 = arith.constant 0 : i32
    %c0_i32_1 = arith.constant 0 : i32
    return %arg0, %c0_i32, %c0_i32_0 : i32, i32, i32
  }
}

module attributes {stable_mosaic.version = 11 : i64} {
  func.func @_dec_stack_kernel(%arg0: i32, %arg1: i32, %arg2: memref<1x6x10xf32, #tpu.memory_space<vmem>>, %arg3: memref<10x32xf32, #tpu.memory_space<vmem>>, %arg4: memref<6x32xf32, #tpu.memory_space<vmem>>, %arg5: memref<1x3x32xf32, #tpu.memory_space<vmem>>, %arg6: memref<1x6x6xf32, #tpu.memory_space<vmem>>, %arg7: memref<1x1x3xf32, #tpu.memory_space<vmem>>, %arg8: memref<1x32x768xf32, #tpu.memory_space<vmem>>, %arg9: memref<1x64x32xf32, #tpu.memory_space<vmem>>, %arg10: memref<1x1x1664xf32, #tpu.memory_space<vmem>>, %arg11: memref<32x128xf32, #tpu.memory_space<vmem>>, %arg12: memref<1x128xf32, #tpu.memory_space<vmem>>, %arg13: memref<1x64xf32, #tpu.memory_space<vmem>>, %arg14: memref<1x6x128xf32, #tpu.memory_space<vmem>>, %arg15: memref<6x32xf32, #tpu.memory_space<vmem>>) attributes {dimension_semantics = [#tpu.dimension_semantics<parallel>, #tpu.dimension_semantics<arbitrary>], iteration_bounds = array<i64: 2, 1>, scalar_prefetch = 0 : i64, scratch_operands = 1 : i64, tpu.core_type = #tpu.core_type<tc>, window_params = [{transform_indices = @transform_0, window_bounds = array<i64: 1, 6, 10>}, {pipeline_mode = #tpu.pipeline_mode<synchronous>, transform_indices = @transform_1, window_bounds = array<i64: 10, 32>}, {pipeline_mode = #tpu.pipeline_mode<synchronous>, transform_indices = @transform_2, window_bounds = array<i64: 6, 32>}, {transform_indices = @transform_3, window_bounds = array<i64: 1, 3, 32>}, {transform_indices = @transform_4, window_bounds = array<i64: 1, 6, 6>}, {transform_indices = @transform_5, window_bounds = array<i64: 1, 1, 3>}, {transform_indices = @transform_6, window_bounds = array<i64: 1, 32, 768>}, {transform_indices = @transform_7, window_bounds = array<i64: 1, 64, 32>}, {transform_indices = @transform_8, window_bounds = array<i64: 1, 1, 1664>}, {pipeline_mode = #tpu.pipeline_mode<synchronous>, transform_indices = @transform_9, window_bounds = array<i64: 32, 128>}, {pipeline_mode = #tpu.pipeline_mode<synchronous>, transform_indices = @transform_10, window_bounds = array<i64: 1, 128>}, {pipeline_mode = #tpu.pipeline_mode<synchronous>, transform_indices = @transform_11, window_bounds = array<i64: 1, 64>}, {transform_indices = @transform_12, window_bounds = array<i64: 1, 6, 128>}]} {
    %c0_i32 = arith.constant 0 : i32
    %0 = arith.cmpi eq, %arg1, %c0_i32 : i32
    %1 = arith.extui %0 : i1 to i32
    %c0_i32_0 = arith.constant 0 : i32
    %2 = arith.cmpi ne, %1, %c0_i32_0 : i32
    scf.if %2 {
      %c0_131 = arith.constant 0 : index
      %c0_132 = arith.constant 0 : index
      %c0_133 = arith.constant 0 : index
      %324 = vector.load %arg2[%c0_131, %c0_132, %c0_133] : memref<1x6x10xf32, #tpu.memory_space<vmem>>, vector<1x6x10xf32>
      %325 = vector.shape_cast %324 : vector<1x6x10xf32> to vector<6x10xf32>
      %c0_134 = arith.constant 0 : index
      %c0_135 = arith.constant 0 : index
      %326 = vector.load %arg3[%c0_134, %c0_135] : memref<10x32xf32, #tpu.memory_space<vmem>>, vector<10x32xf32>
      %cst_136 = arith.constant dense<0.000000e+00> : vector<6x32xf32>
      %327 = tpu.matmul %325, %326, %cst_136 {dimension_numbers = #tpu.dot_dimension_numbers<[1], [0], [0], [1], [0, 0, 1, 1], [], []>} : vector<6x10xf32>, vector<10x32xf32>, vector<6x32xf32> -> vector<6x32xf32>
      %cst_137 = arith.constant 5.65685415 : f32
      %328 = vector.broadcast %cst_137 : f32 to vector<6x32xf32>
      %329 = arith.mulf %327, %328 : vector<6x32xf32>
      %c0_138 = arith.constant 0 : index
      %c0_139 = arith.constant 0 : index
      %330 = vector.load %arg4[%c0_138, %c0_139] : memref<6x32xf32, #tpu.memory_space<vmem>>, vector<6x32xf32>
      %331 = arith.addf %329, %330 : vector<6x32xf32>
      %c0_140 = arith.constant 0 : index
      %c0_141 = arith.constant 0 : index
      %332 = vector.load %arg15[%c0_140, %c0_141] : memref<6x32xf32, #tpu.memory_space<vmem>>, vector<6x32xf32>
      tpu.vector_store %arg15[%c0_140, %c0_141], %331 {strides = array<i32>} : memref<6x32xf32, #tpu.memory_space<vmem>>, vector<6x32xf32>,
    } else {
    }
    %c0 = arith.constant 0 : index
    %c0_1 = arith.constant 0 : index
    %3 = vector.load %arg15[%c0, %c0_1] : memref<6x32xf32, #tpu.memory_space<vmem>>, vector<6x32xf32>
    %c0_2 = arith.constant 0 : index
    %c0_3 = arith.constant 0 : index
    %c0_4 = arith.constant 0 : index
    %4 = vector.load %arg5[%c0_2, %c0_3, %c0_4] : memref<1x3x32xf32, #tpu.memory_space<vmem>>, vector<1x3x32xf32>
    %5 = vector.shape_cast %4 : vector<1x3x32xf32> to vector<3x32xf32>
    %c0_5 = arith.constant 0 : index
    %c0_6 = arith.constant 0 : index
    %c896 = arith.constant 896 : index
    %6 = vector.load %arg10[%c0_5, %c0_6, %c896] : memref<1x1x1664xf32, #tpu.memory_space<vmem>>, vector<1x1x32xf32>
    %7 = vector.shape_cast %6 : vector<1x1x32xf32> to vector<1x32xf32>
    %c0_7 = arith.constant 0 : index
    %c0_8 = arith.constant 0 : index
    %c1280 = arith.constant 1280 : index
    %8 = vector.load %arg10[%c0_7, %c0_8, %c1280] : memref<1x1x1664xf32, #tpu.memory_space<vmem>>, vector<1x1x32xf32>
    %9 = vector.shape_cast %8 : vector<1x1x32xf32> to vector<1x32xf32>
    %cst = arith.constant dense<0.000000e+00> : vector<6xf32>
    %10 = vector.multi_reduction <add>, %3, %cst [1] : vector<6x32xf32> to vector<6xf32>
    %11 = vector.shape_cast %10 : vector<6xf32> to vector<6x1xf32>
    %cst_9 = arith.constant 3.200000e+01 : f32
    %12 = vector.broadcast %cst_9 : f32 to vector<6x1xf32>
    %13 = arith.divf %11, %12 : vector<6x1xf32>
    %14 = vector.broadcast %13 : vector<6x1xf32> to vector<6x32xf32>
    %15 = arith.subf %3, %14 : vector<6x32xf32>
    %16 = arith.mulf %15, %15 : vector<6x32xf32>
    %cst_10 = arith.constant dense<0.000000e+00> : vector<6xf32>
    %17 = vector.multi_reduction <add>, %16, %cst_10 [1] : vector<6x32xf32> to vector<6xf32>
    %18 = vector.shape_cast %17 : vector<6xf32> to vector<6x1xf32>
    %cst_11 = arith.constant 3.200000e+01 : f32
    %19 = vector.broadcast %cst_11 : f32 to vector<6x1xf32>
    %20 = arith.divf %18, %19 : vector<6x1xf32>
    %21 = vector.broadcast %13 : vector<6x1xf32> to vector<6x32xf32>
    %22 = arith.subf %3, %21 : vector<6x32xf32>
    %cst_12 = arith.constant 9.99999974E-6 : f32
    %23 = vector.broadcast %cst_12 : f32 to vector<6x1xf32>
    %24 = arith.addf %20, %23 : vector<6x1xf32>
    %25 = math.rsqrt %24 : vector<6x1xf32>
    %26 = vector.broadcast %25 : vector<6x1xf32> to vector<6x32xf32>
    %27 = arith.mulf %22, %26 : vector<6x32xf32>
    %28 = vector.broadcast %7 : vector<1x32xf32> to vector<6x32xf32>
    %29 = arith.mulf %27, %28 : vector<6x32xf32>
    %30 = vector.broadcast %9 : vector<1x32xf32> to vector<6x32xf32>
    %31 = arith.addf %29, %30 : vector<6x32xf32>
    %c0_13 = arith.constant 0 : index
    %c0_14 = arith.constant 0 : index
    %c0_15 = arith.constant 0 : index
    %32 = vector.load %arg8[%c0_13, %c0_14, %c0_15] : memref<1x32x768xf32, #tpu.memory_space<vmem>>, vector<1x32x96xf32>
    %33 = vector.shape_cast %32 : vector<1x32x96xf32> to vector<32x96xf32>
    %cst_16 = arith.constant dense<0.000000e+00> : vector<6x96xf32>
    %34 = tpu.matmul %31, %33, %cst_16 {dimension_numbers = #tpu.dot_dimension_numbers<[1], [0], [0], [1], [0, 0, 1, 1], [], []>} : vector<6x32xf32>, vector<32x96xf32>, vector<6x96xf32> -> vector<6x96xf32>
    %c0_17 = arith.constant 0 : index
    %c0_18 = arith.constant 0 : index
    %c0_19 = arith.constant 0 : index
    %35 = vector.load %arg10[%c0_17, %c0_18, %c0_19] : memref<1x1x1664xf32, #tpu.memory_space<vmem>>, vector<1x1x96xf32>
    %36 = vector.shape_cast %35 : vector<1x1x96xf32> to vector<1x96xf32>
    %37 = vector.broadcast %36 : vector<1x96xf32> to vector<6x96xf32>
    %38 = arith.addf %34, %37 : vector<6x96xf32>
    %39 = vector.extract_strided_slice %38 {offsets = [0, 0], sizes = [6, 32], strides = [1, 1]} : vector<6x96xf32> to vector<6x32xf32>
    %40 = vector.extract_strided_slice %38 {offsets = [0, 32], sizes = [6, 64], strides = [1, 1]} : vector<6x96xf32> to vector<6x64xf32>
    %c0_20 = arith.constant 0 : index
    %c0_21 = arith.constant 0 : index
    %c0_22 = arith.constant 0 : index
    %41 = vector.load %arg6[%c0_20, %c0_21, %c0_22] : memref<1x6x6xf32, #tpu.memory_space<vmem>>, vector<1x6x6xf32>
    %42 = vector.shape_cast %41 : vector<1x6x6xf32> to vector<6x6xf32>
    %c0_23 = arith.constant 0 : index
    %c0_24 = arith.constant 0 : index
    %c128 = arith.constant 128 : index
    %43 = vector.load %arg8[%c0_23, %c0_24, %c128] : memref<1x32x768xf32, #tpu.memory_space<vmem>>, vector<1x32x32xf32>
    %44 = vector.shape_cast %43 : vector<1x32x32xf32> to vector<32x32xf32>
    %c0_25 = arith.constant 0 : index
    %c0_26 = arith.constant 0 : index
    %c128_27 = arith.constant 128 : index
    %45 = vector.load %arg10[%c0_25, %c0_26, %c128_27] : memref<1x1x1664xf32, #tpu.memory_space<vmem>>, vector<1x1x32xf32>
    %46 = vector.shape_cast %45 : vector<1x1x32xf32> to vector<1x32xf32>
    %47 = vector.extract_strided_slice %39 {offsets = [0, 0], sizes = [6, 8], strides = [1, 1]} : vector<6x32xf32> to vector<6x8xf32>
    %48 = vector.extract_strided_slice %40 {offsets = [0, 0], sizes = [6, 8], strides = [1, 1]} : vector<6x64xf32> to vector<6x8xf32>
    %49 = vector.extract_strided_slice %40 {offsets = [0, 32], sizes = [6, 8], strides = [1, 1]} : vector<6x64xf32> to vector<6x8xf32>
    %50 = tpu.transpose %48, [1, 0] : vector<6x8xf32> -> vector<8x6xf32>
    %cst_28 = arith.constant dense<0.000000e+00> : vector<6x6xf32>
    %51 = tpu.matmul %47, %50, %cst_28 {dimension_numbers = #tpu.dot_dimension_numbers<[1], [0], [0], [1], [0, 0, 1, 1], [], []>} : vector<6x8xf32>, vector<8x6xf32>, vector<6x6xf32> -> vector<6x6xf32>
    %cst_29 = arith.constant 0.353553385 : f32
    %52 = vector.broadcast %cst_29 : f32 to vector<6x6xf32>
    %53 = arith.mulf %51, %52 : vector<6x6xf32>
    %54 = arith.addf %53, %42 : vector<6x6xf32>
    %cst_30 = arith.constant dense<0xFF800000> : vector<6xf32>
    %55 = vector.multi_reduction <maximumf>, %54, %cst_30 [1] : vector<6x6xf32> to vector<6xf32>
    %56 = vector.shape_cast %55 : vector<6xf32> to vector<6x1xf32>
    %57 = vector.broadcast %56 : vector<6x1xf32> to vector<6x6xf32>
    %58 = arith.subf %54, %57 : vector<6x6xf32>
    %59 = math.exp %58 : vector<6x6xf32>
    %cst_31 = arith.constant dense<0.000000e+00> : vector<6xf32>
    %60 = vector.multi_reduction <add>, %59, %cst_31 [1] : vector<6x6xf32> to vector<6xf32>
    %61 = vector.shape_cast %60 : vector<6xf32> to vector<6x1xf32>
    %62 = tpu.reciprocal %61 {approx = true} : vector<6x1xf32> -> vector<6x1xf32>
    %63 = vector.broadcast %62 : vector<6x1xf32> to vector<6x6xf32>
    %64 = arith.mulf %59, %63 : vector<6x6xf32>
    %cst_32 = arith.constant dense<0.000000e+00> : vector<6x8xf32>
    %65 = tpu.matmul %64, %49, %cst_32 {dimension_numbers = #tpu.dot_dimension_numbers<[1], [0], [0], [1], [0, 0, 1, 1], [], []>} : vector<6x6xf32>, vector<6x8xf32>, vector<6x8xf32> -> vector<6x8xf32>
    %66 = vector.extract_strided_slice %44 {offsets = [0, 0], sizes = [8, 32], strides = [1, 1]} : vector<32x32xf32> to vector<8x32xf32>
    %cst_33 = arith.constant dense<0.000000e+00> : vector<6x32xf32>
    %67 = tpu.matmul %65, %66, %cst_33 {dimension_numbers = #tpu.dot_dimension_numbers<[1], [0], [0], [1], [0, 0, 1, 1], [], []>} : vector<6x8xf32>, vector<8x32xf32>, vector<6x32xf32> -> vector<6x32xf32>
    %68 = vector.broadcast %46 : vector<1x32xf32> to vector<6x32xf32>
    %69 = arith.addf %68, %67 : vector<6x32xf32>
    %70 = vector.extract_strided_slice %39 {offsets = [0, 8], sizes = [6, 8], strides = [1, 1]} : vector<6x32xf32> to vector<6x8xf32>
    %71 = vector.extract_strided_slice %40 {offsets = [0, 8], sizes = [6, 8], strides = [1, 1]} : vector<6x64xf32> to vector<6x8xf32>
    %72 = vector.extract_strided_slice %40 {offsets = [0, 40], sizes = [6, 8], strides = [1, 1]} : vector<6x64xf32> to vector<6x8xf32>
    %73 = tpu.transpose %71, [1, 0] : vector<6x8xf32> -> vector<8x6xf32>
    %cst_34 = arith.constant dense<0.000000e+00> : vector<6x6xf32>
    %74 = tpu.matmul %70, %73, %cst_34 {dimension_numbers = #tpu.dot_dimension_numbers<[1], [0], [0], [1], [0, 0, 1, 1], [], []>} : vector<6x8xf32>, vector<8x6xf32>, vector<6x6xf32> -> vector<6x6xf32>
    %cst_35 = arith.constant 0.353553385 : f32
    %75 = vector.broadcast %cst_35 : f32 to vector<6x6xf32>
    %76 = arith.mulf %74, %75 : vector<6x6xf32>
    %77 = arith.addf %76, %42 : vector<6x6xf32>
    %cst_36 = arith.constant dense<0xFF800000> : vector<6xf32>
    %78 = vector.multi_reduction <maximumf>, %77, %cst_36 [1] : vector<6x6xf32> to vector<6xf32>
    %79 = vector.shape_cast %78 : vector<6xf32> to vector<6x1xf32>
    %80 = vector.broadcast %79 : vector<6x1xf32> to vector<6x6xf32>
    %81 = arith.subf %77, %80 : vector<6x6xf32>
    %82 = math.exp %81 : vector<6x6xf32>
    %cst_37 = arith.constant dense<0.000000e+00> : vector<6xf32>
    %83 = vector.multi_reduction <add>, %82, %cst_37 [1] : vector<6x6xf32> to vector<6xf32>
    %84 = vector.shape_cast %83 : vector<6xf32> to vector<6x1xf32>
    %85 = tpu.reciprocal %84 {approx = true} : vector<6x1xf32> -> vector<6x1xf32>
    %86 = vector.broadcast %85 : vector<6x1xf32> to vector<6x6xf32>
    %87 = arith.mulf %82, %86 : vector<6x6xf32>
    %cst_38 = arith.constant dense<0.000000e+00> : vector<6x8xf32>
    %88 = tpu.matmul %87, %72, %cst_38 {dimension_numbers = #tpu.dot_dimension_numbers<[1], [0], [0], [1], [0, 0, 1, 1], [], []>} : vector<6x6xf32>, vector<6x8xf32>, vector<6x8xf32> -> vector<6x8xf32>
    %89 = vector.extract_strided_slice %44 {offsets = [8, 0], sizes = [8, 32], strides = [1, 1]} : vector<32x32xf32> to vector<8x32xf32>
    %cst_39 = arith.constant dense<0.000000e+00> : vector<6x32xf32>
    %90 = tpu.matmul %88, %89, %cst_39 {dimension_numbers = #tpu.dot_dimension_numbers<[1], [0], [0], [1], [0, 0, 1, 1], [], []>} : vector<6x8xf32>, vector<8x32xf32>, vector<6x32xf32> -> vector<6x32xf32>
    %91 = arith.addf %69, %90 : vector<6x32xf32>
    %92 = vector.extract_strided_slice %39 {offsets = [0, 16], sizes = [6, 8], strides = [1, 1]} : vector<6x32xf32> to vector<6x8xf32>
    %93 = vector.extract_strided_slice %40 {offsets = [0, 16], sizes = [6, 8], strides = [1, 1]} : vector<6x64xf32> to vector<6x8xf32>
    %94 = vector.extract_strided_slice %40 {offsets = [0, 48], sizes = [6, 8], strides = [1, 1]} : vector<6x64xf32> to vector<6x8xf32>
    %95 = tpu.transpose %93, [1, 0] : vector<6x8xf32> -> vector<8x6xf32>
    %cst_40 = arith.constant dense<0.000000e+00> : vector<6x6xf32>
    %96 = tpu.matmul %92, %95, %cst_40 {dimension_numbers = #tpu.dot_dimension_numbers<[1], [0], [0], [1], [0, 0, 1, 1], [], []>} : vector<6x8xf32>, vector<8x6xf32>, vector<6x6xf32> -> vector<6x6xf32>
    %cst_41 = arith.constant 0.353553385 : f32
    %97 = vector.broadcast %cst_41 : f32 to vector<6x6xf32>
    %98 = arith.mulf %96, %97 : vector<6x6xf32>
    %99 = arith.addf %98, %42 : vector<6x6xf32>
    %cst_42 = arith.constant dense<0xFF800000> : vector<6xf32>
    %100 = vector.multi_reduction <maximumf>, %99, %cst_42 [1] : vector<6x6xf32> to vector<6xf32>
    %101 = vector.shape_cast %100 : vector<6xf32> to vector<6x1xf32>
    %102 = vector.broadcast %101 : vector<6x1xf32> to vector<6x6xf32>
    %103 = arith.subf %99, %102 : vector<6x6xf32>
    %104 = math.exp %103 : vector<6x6xf32>
    %cst_43 = arith.constant dense<0.000000e+00> : vector<6xf32>
    %105 = vector.multi_reduction <add>, %104, %cst_43 [1] : vector<6x6xf32> to vector<6xf32>
    %106 = vector.shape_cast %105 : vector<6xf32> to vector<6x1xf32>
    %107 = tpu.reciprocal %106 {approx = true} : vector<6x1xf32> -> vector<6x1xf32>
    %108 = vector.broadcast %107 : vector<6x1xf32> to vector<6x6xf32>
    %109 = arith.mulf %104, %108 : vector<6x6xf32>
    %cst_44 = arith.constant dense<0.000000e+00> : vector<6x8xf32>
    %110 = tpu.matmul %109, %94, %cst_44 {dimension_numbers = #tpu.dot_dimension_numbers<[1], [0], [0], [1], [0, 0, 1, 1], [], []>} : vector<6x6xf32>, vector<6x8xf32>, vector<6x8xf32> -> vector<6x8xf32>
    %111 = vector.extract_strided_slice %44 {offsets = [16, 0], sizes = [8, 32], strides = [1, 1]} : vector<32x32xf32> to vector<8x32xf32>
    %cst_45 = arith.constant dense<0.000000e+00> : vector<6x32xf32>
    %112 = tpu.matmul %110, %111, %cst_45 {dimension_numbers = #tpu.dot_dimension_numbers<[1], [0], [0], [1], [0, 0, 1, 1], [], []>} : vector<6x8xf32>, vector<8x32xf32>, vector<6x32xf32> -> vector<6x32xf32>
    %113 = arith.addf %91, %112 : vector<6x32xf32>
    %114 = vector.extract_strided_slice %39 {offsets = [0, 24], sizes = [6, 8], strides = [1, 1]} : vector<6x32xf32> to vector<6x8xf32>
    %115 = vector.extract_strided_slice %40 {offsets = [0, 24], sizes = [6, 8], strides = [1, 1]} : vector<6x64xf32> to vector<6x8xf32>
    %116 = vector.extract_strided_slice %40 {offsets = [0, 56], sizes = [6, 8], strides = [1, 1]} : vector<6x64xf32> to vector<6x8xf32>
    %117 = tpu.transpose %115, [1, 0] : vector<6x8xf32> -> vector<8x6xf32>
    %cst_46 = arith.constant dense<0.000000e+00> : vector<6x6xf32>
    %118 = tpu.matmul %114, %117, %cst_46 {dimension_numbers = #tpu.dot_dimension_numbers<[1], [0], [0], [1], [0, 0, 1, 1], [], []>} : vector<6x8xf32>, vector<8x6xf32>, vector<6x6xf32> -> vector<6x6xf32>
    %cst_47 = arith.constant 0.353553385 : f32
    %119 = vector.broadcast %cst_47 : f32 to vector<6x6xf32>
    %120 = arith.mulf %118, %119 : vector<6x6xf32>
    %121 = arith.addf %120, %42 : vector<6x6xf32>
    %cst_48 = arith.constant dense<0xFF800000> : vector<6xf32>
    %122 = vector.multi_reduction <maximumf>, %121, %cst_48 [1] : vector<6x6xf32> to vector<6xf32>
    %123 = vector.shape_cast %122 : vector<6xf32> to vector<6x1xf32>
    %124 = vector.broadcast %123 : vector<6x1xf32> to vector<6x6xf32>
    %125 = arith.subf %121, %124 : vector<6x6xf32>
    %126 = math.exp %125 : vector<6x6xf32>
    %cst_49 = arith.constant dense<0.000000e+00> : vector<6xf32>
    %127 = vector.multi_reduction <add>, %126, %cst_49 [1] : vector<6x6xf32> to vector<6xf32>
    %128 = vector.shape_cast %127 : vector<6xf32> to vector<6x1xf32>
    %129 = tpu.reciprocal %128 {approx = true} : vector<6x1xf32> -> vector<6x1xf32>
    %130 = vector.broadcast %129 : vector<6x1xf32> to vector<6x6xf32>
    %131 = arith.mulf %126, %130 : vector<6x6xf32>
    %cst_50 = arith.constant dense<0.000000e+00> : vector<6x8xf32>
    %132 = tpu.matmul %131, %116, %cst_50 {dimension_numbers = #tpu.dot_dimension_numbers<[1], [0], [0], [1], [0, 0, 1, 1], [], []>} : vector<6x6xf32>, vector<6x8xf32>, vector<6x8xf32> -> vector<6x8xf32>
    %133 = vector.extract_strided_slice %44 {offsets = [24, 0], sizes = [8, 32], strides = [1, 1]} : vector<32x32xf32> to vector<8x32xf32>
    %cst_51 = arith.constant dense<0.000000e+00> : vector<6x32xf32>
    %134 = tpu.matmul %132, %133, %cst_51 {dimension_numbers = #tpu.dot_dimension_numbers<[1], [0], [0], [1], [0, 0, 1, 1], [], []>} : vector<6x8xf32>, vector<8x32xf32>, vector<6x32xf32> -> vector<6x32xf32>
    %135 = arith.addf %113, %134 : vector<6x32xf32>
    %136 = arith.addf %3, %135 : vector<6x32xf32>
    %c0_52 = arith.constant 0 : index
    %c0_53 = arith.constant 0 : index
    %c1024 = arith.constant 1024 : index
    %137 = vector.load %arg10[%c0_52, %c0_53, %c1024] : memref<1x1x1664xf32, #tpu.memory_space<vmem>>, vector<1x1x32xf32>
    %138 = vector.shape_cast %137 : vector<1x1x32xf32> to vector<1x32xf32>
    %c0_54 = arith.constant 0 : index
    %c0_55 = arith.constant 0 : index
    %c1408 = arith.constant 1408 : index
    %139 = vector.load %arg10[%c0_54, %c0_55, %c1408] : memref<1x1x1664xf32, #tpu.memory_space<vmem>>, vector<1x1x32xf32>
    %140 = vector.shape_cast %139 : vector<1x1x32xf32> to vector<1x32xf32>
    %cst_56 = arith.constant dense<0.000000e+00> : vector<6xf32>
    %141 = vector.multi_reduction <add>, %136, %cst_56 [1] : vector<6x32xf32> to vector<6xf32>
    %142 = vector.shape_cast %141 : vector<6xf32> to vector<6x1xf32>
    %cst_57 = arith.constant 3.200000e+01 : f32
    %143 = vector.broadcast %cst_57 : f32 to vector<6x1xf32>
    %144 = arith.divf %142, %143 : vector<6x1xf32>
    %145 = vector.broadcast %144 : vector<6x1xf32> to vector<6x32xf32>
    %146 = arith.subf %136, %145 : vector<6x32xf32>
    %147 = arith.mulf %146, %146 : vector<6x32xf32>
    %cst_58 = arith.constant dense<0.000000e+00> : vector<6xf32>
    %148 = vector.multi_reduction <add>, %147, %cst_58 [1] : vector<6x32xf32> to vector<6xf32>
    %149 = vector.shape_cast %148 : vector<6xf32> to vector<6x1xf32>
    %cst_59 = arith.constant 3.200000e+01 : f32
    %150 = vector.broadcast %cst_59 : f32 to vector<6x1xf32>
    %151 = arith.divf %149, %150 : vector<6x1xf32>
    %152 = vector.broadcast %144 : vector<6x1xf32> to vector<6x32xf32>
    %153 = arith.subf %136, %152 : vector<6x32xf32>
    %cst_60 = arith.constant 9.99999974E-6 : f32
    %154 = vector.broadcast %cst_60 : f32 to vector<6x1xf32>
    %155 = arith.addf %151, %154 : vector<6x1xf32>
    %156 = math.rsqrt %155 : vector<6x1xf32>
    %157 = vector.broadcast %156 : vector<6x1xf32> to vector<6x32xf32>
    %158 = arith.mulf %153, %157 : vector<6x32xf32>
    %159 = vector.broadcast %138 : vector<1x32xf32> to vector<6x32xf32>
    %160 = arith.mulf %158, %159 : vector<6x32xf32>
    %161 = vector.broadcast %140 : vector<1x32xf32> to vector<6x32xf32>
    %162 = arith.addf %160, %161 : vector<6x32xf32>
    %c0_61 = arith.constant 0 : index
    %c0_62 = arith.constant 0 : index
    %c256 = arith.constant 256 : index
    %163 = vector.load %arg8[%c0_61, %c0_62, %c256] : memref<1x32x768xf32, #tpu.memory_space<vmem>>, vector<1x32x32xf32>
    %164 = vector.shape_cast %163 : vector<1x32x32xf32> to vector<32x32xf32>
    %cst_63 = arith.constant dense<0.000000e+00> : vector<6x32xf32>
    %165 = tpu.matmul %162, %164, %cst_63 {dimension_numbers = #tpu.dot_dimension_numbers<[1], [0], [0], [1], [0, 0, 1, 1], [], []>} : vector<6x32xf32>, vector<32x32xf32>, vector<6x32xf32> -> vector<6x32xf32>
    %c0_64 = arith.constant 0 : index
    %c0_65 = arith.constant 0 : index
    %c256_66 = arith.constant 256 : index
    %166 = vector.load %arg10[%c0_64, %c0_65, %c256_66] : memref<1x1x1664xf32, #tpu.memory_space<vmem>>, vector<1x1x32xf32>
    %167 = vector.shape_cast %166 : vector<1x1x32xf32> to vector<1x32xf32>
    %168 = vector.broadcast %167 : vector<1x32xf32> to vector<6x32xf32>
    %169 = arith.addf %165, %168 : vector<6x32xf32>
    %c0_67 = arith.constant 0 : index
    %c0_68 = arith.constant 0 : index
    %c384 = arith.constant 384 : index
    %170 = vector.load %arg8[%c0_67, %c0_68, %c384] : memref<1x32x768xf32, #tpu.memory_space<vmem>>, vector<1x32x64xf32>
    %171 = vector.shape_cast %170 : vector<1x32x64xf32> to vector<32x64xf32>
    %cst_69 = arith.constant dense<0.000000e+00> : vector<3x64xf32>
    %172 = tpu.matmul %5, %171, %cst_69 {dimension_numbers = #tpu.dot_dimension_numbers<[1], [0], [0], [1], [0, 0, 1, 1], [], []>} : vector<3x32xf32>, vector<32x64xf32>, vector<3x64xf32> -> vector<3x64xf32>
    %c0_70 = arith.constant 0 : index
    %c0_71 = arith.constant 0 : index
    %c384_72 = arith.constant 384 : index
    %173 = vector.load %arg10[%c0_70, %c0_71, %c384_72] : memref<1x1x1664xf32, #tpu.memory_space<vmem>>, vector<1x1x64xf32>
    %174 = vector.shape_cast %173 : vector<1x1x64xf32> to vector<1x64xf32>
    %175 = vector.broadcast %174 : vector<1x64xf32> to vector<3x64xf32>
    %176 = arith.addf %172, %175 : vector<3x64xf32>
    %c0_73 = arith.constant 0 : index
    %c0_74 = arith.constant 0 : index
    %c0_75 = arith.constant 0 : index
    %177 = vector.load %arg7[%c0_73, %c0_74, %c0_75] : memref<1x1x3xf32, #tpu.memory_space<vmem>>, vector<1x1x3xf32>
    %178 = vector.shape_cast %177 : vector<1x1x3xf32> to vector<1x3xf32>
    %c0_76 = arith.constant 0 : index
    %c0_77 = arith.constant 0 : index
    %c512 = arith.constant 512 : index
    %179 = vector.load %arg8[%c0_76, %c0_77, %c512] : memref<1x32x768xf32, #tpu.memory_space<vmem>>, vector<1x32x32xf32>
    %180 = vector.shape_cast %179 : vector<1x32x32xf32> to vector<32x32xf32>
    %c0_78 = arith.constant 0 : index
    %c0_79 = arith.constant 0 : index
    %c512_80 = arith.constant 512 : index
    %181 = vector.load %arg10[%c0_78, %c0_79, %c512_80] : memref<1x1x1664xf32, #tpu.memory_space<vmem>>, vector<1x1x32xf32>
    %182 = vector.shape_cast %181 : vector<1x1x32xf32> to vector<1x32xf32>
    %183 = vector.extract_strided_slice %169 {offsets = [0, 0], sizes = [6, 8], strides = [1, 1]} : vector<6x32xf32> to vector<6x8xf32>
    %184 = vector.extract_strided_slice %176 {offsets = [0, 0], sizes = [3, 8], strides = [1, 1]} : vector<3x64xf32> to vector<3x8xf32>
    %185 = vector.extract_strided_slice %176 {offsets = [0, 32], sizes = [3, 8], strides = [1, 1]} : vector<3x64xf32> to vector<3x8xf32>
    %186 = tpu.transpose %184, [1, 0] : vector<3x8xf32> -> vector<8x3xf32>
    %cst_81 = arith.constant dense<0.000000e+00> : vector<6x3xf32>
    %187 = tpu.matmul %183, %186, %cst_81 {dimension_numbers = #tpu.dot_dimension_numbers<[1], [0], [0], [1], [0, 0, 1, 1], [], []>} : vector<6x8xf32>, vector<8x3xf32>, vector<6x3xf32> -> vector<6x3xf32>
    %cst_82 = arith.constant 0.353553385 : f32
    %188 = vector.broadcast %cst_82 : f32 to vector<6x3xf32>
    %189 = arith.mulf %187, %188 : vector<6x3xf32>
    %190 = vector.broadcast %178 : vector<1x3xf32> to vector<6x3xf32>
    %191 = arith.addf %189, %190 : vector<6x3xf32>
    %cst_83 = arith.constant dense<0xFF800000> : vector<6xf32>
    %192 = vector.multi_reduction <maximumf>, %191, %cst_83 [1] : vector<6x3xf32> to vector<6xf32>
    %193 = vector.shape_cast %192 : vector<6xf32> to vector<6x1xf32>
    %194 = vector.broadcast %193 : vector<6x1xf32> to vector<6x3xf32>
    %195 = arith.subf %191, %194 : vector<6x3xf32>
    %196 = math.exp %195 : vector<6x3xf32>
    %cst_84 = arith.constant dense<0.000000e+00> : vector<6xf32>
    %197 = vector.multi_reduction <add>, %196, %cst_84 [1] : vector<6x3xf32> to vector<6xf32>
    %198 = vector.shape_cast %197 : vector<6xf32> to vector<6x1xf32>
    %199 = tpu.reciprocal %198 {approx = true} : vector<6x1xf32> -> vector<6x1xf32>
    %200 = vector.broadcast %199 : vector<6x1xf32> to vector<6x3xf32>
    %201 = arith.mulf %196, %200 : vector<6x3xf32>
    %cst_85 = arith.constant dense<0.000000e+00> : vector<6x8xf32>
    %202 = tpu.matmul %201, %185, %cst_85 {dimension_numbers = #tpu.dot_dimension_numbers<[1], [0], [0], [1], [0, 0, 1, 1], [], []>} : vector<6x3xf32>, vector<3x8xf32>, vector<6x8xf32> -> vector<6x8xf32>
    %203 = vector.extract_strided_slice %180 {offsets = [0, 0], sizes = [8, 32], strides = [1, 1]} : vector<32x32xf32> to vector<8x32xf32>
    %cst_86 = arith.constant dense<0.000000e+00> : vector<6x32xf32>
    %204 = tpu.matmul %202, %203, %cst_86 {dimension_numbers = #tpu.dot_dimension_numbers<[1], [0], [0], [1], [0, 0, 1, 1], [], []>} : vector<6x8xf32>, vector<8x32xf32>, vector<6x32xf32> -> vector<6x32xf32>
    %205 = vector.broadcast %182 : vector<1x32xf32> to vector<6x32xf32>
    %206 = arith.addf %205, %204 : vector<6x32xf32>
    %207 = vector.extract_strided_slice %169 {offsets = [0, 8], sizes = [6, 8], strides = [1, 1]} : vector<6x32xf32> to vector<6x8xf32>
    %208 = vector.extract_strided_slice %176 {offsets = [0, 8], sizes = [3, 8], strides = [1, 1]} : vector<3x64xf32> to vector<3x8xf32>
    %209 = vector.extract_strided_slice %176 {offsets = [0, 40], sizes = [3, 8], strides = [1, 1]} : vector<3x64xf32> to vector<3x8xf32>
    %210 = tpu.transpose %208, [1, 0] : vector<3x8xf32> -> vector<8x3xf32>
    %cst_87 = arith.constant dense<0.000000e+00> : vector<6x3xf32>
    %211 = tpu.matmul %207, %210, %cst_87 {dimension_numbers = #tpu.dot_dimension_numbers<[1], [0], [0], [1], [0, 0, 1, 1], [], []>} : vector<6x8xf32>, vector<8x3xf32>, vector<6x3xf32> -> vector<6x3xf32>
    %cst_88 = arith.constant 0.353553385 : f32
    %212 = vector.broadcast %cst_88 : f32 to vector<6x3xf32>
    %213 = arith.mulf %211, %212 : vector<6x3xf32>
    %214 = vector.broadcast %178 : vector<1x3xf32> to vector<6x3xf32>
    %215 = arith.addf %213, %214 : vector<6x3xf32>
    %cst_89 = arith.constant dense<0xFF800000> : vector<6xf32>
    %216 = vector.multi_reduction <maximumf>, %215, %cst_89 [1] : vector<6x3xf32> to vector<6xf32>
    %217 = vector.shape_cast %216 : vector<6xf32> to vector<6x1xf32>
    %218 = vector.broadcast %217 : vector<6x1xf32> to vector<6x3xf32>
    %219 = arith.subf %215, %218 : vector<6x3xf32>
    %220 = math.exp %219 : vector<6x3xf32>
    %cst_90 = arith.constant dense<0.000000e+00> : vector<6xf32>
    %221 = vector.multi_reduction <add>, %220, %cst_90 [1] : vector<6x3xf32> to vector<6xf32>
    %222 = vector.shape_cast %221 : vector<6xf32> to vector<6x1xf32>
    %223 = tpu.reciprocal %222 {approx = true} : vector<6x1xf32> -> vector<6x1xf32>
    %224 = vector.broadcast %223 : vector<6x1xf32> to vector<6x3xf32>
    %225 = arith.mulf %220, %224 : vector<6x3xf32>
    %cst_91 = arith.constant dense<0.000000e+00> : vector<6x8xf32>
    %226 = tpu.matmul %225, %209, %cst_91 {dimension_numbers = #tpu.dot_dimension_numbers<[1], [0], [0], [1], [0, 0, 1, 1], [], []>} : vector<6x3xf32>, vector<3x8xf32>, vector<6x8xf32> -> vector<6x8xf32>
    %227 = vector.extract_strided_slice %180 {offsets = [8, 0], sizes = [8, 32], strides = [1, 1]} : vector<32x32xf32> to vector<8x32xf32>
    %cst_92 = arith.constant dense<0.000000e+00> : vector<6x32xf32>
    %228 = tpu.matmul %226, %227, %cst_92 {dimension_numbers = #tpu.dot_dimension_numbers<[1], [0], [0], [1], [0, 0, 1, 1], [], []>} : vector<6x8xf32>, vector<8x32xf32>, vector<6x32xf32> -> vector<6x32xf32>
    %229 = arith.addf %206, %228 : vector<6x32xf32>
    %230 = vector.extract_strided_slice %169 {offsets = [0, 16], sizes = [6, 8], strides = [1, 1]} : vector<6x32xf32> to vector<6x8xf32>
    %231 = vector.extract_strided_slice %176 {offsets = [0, 16], sizes = [3, 8], strides = [1, 1]} : vector<3x64xf32> to vector<3x8xf32>
    %232 = vector.extract_strided_slice %176 {offsets = [0, 48], sizes = [3, 8], strides = [1, 1]} : vector<3x64xf32> to vector<3x8xf32>
    %233 = tpu.transpose %231, [1, 0] : vector<3x8xf32> -> vector<8x3xf32>
    %cst_93 = arith.constant dense<0.000000e+00> : vector<6x3xf32>
    %234 = tpu.matmul %230, %233, %cst_93 {dimension_numbers = #tpu.dot_dimension_numbers<[1], [0], [0], [1], [0, 0, 1, 1], [], []>} : vector<6x8xf32>, vector<8x3xf32>, vector<6x3xf32> -> vector<6x3xf32>
    %cst_94 = arith.constant 0.353553385 : f32
    %235 = vector.broadcast %cst_94 : f32 to vector<6x3xf32>
    %236 = arith.mulf %234, %235 : vector<6x3xf32>
    %237 = vector.broadcast %178 : vector<1x3xf32> to vector<6x3xf32>
    %238 = arith.addf %236, %237 : vector<6x3xf32>
    %cst_95 = arith.constant dense<0xFF800000> : vector<6xf32>
    %239 = vector.multi_reduction <maximumf>, %238, %cst_95 [1] : vector<6x3xf32> to vector<6xf32>
    %240 = vector.shape_cast %239 : vector<6xf32> to vector<6x1xf32>
    %241 = vector.broadcast %240 : vector<6x1xf32> to vector<6x3xf32>
    %242 = arith.subf %238, %241 : vector<6x3xf32>
    %243 = math.exp %242 : vector<6x3xf32>
    %cst_96 = arith.constant dense<0.000000e+00> : vector<6xf32>
    %244 = vector.multi_reduction <add>, %243, %cst_96 [1] : vector<6x3xf32> to vector<6xf32>
    %245 = vector.shape_cast %244 : vector<6xf32> to vector<6x1xf32>
    %246 = tpu.reciprocal %245 {approx = true} : vector<6x1xf32> -> vector<6x1xf32>
    %247 = vector.broadcast %246 : vector<6x1xf32> to vector<6x3xf32>
    %248 = arith.mulf %243, %247 : vector<6x3xf32>
    %cst_97 = arith.constant dense<0.000000e+00> : vector<6x8xf32>
    %249 = tpu.matmul %248, %232, %cst_97 {dimension_numbers = #tpu.dot_dimension_numbers<[1], [0], [0], [1], [0, 0, 1, 1], [], []>} : vector<6x3xf32>, vector<3x8xf32>, vector<6x8xf32> -> vector<6x8xf32>
    %250 = vector.extract_strided_slice %180 {offsets = [16, 0], sizes = [8, 32], strides = [1, 1]} : vector<32x32xf32> to vector<8x32xf32>
    %cst_98 = arith.constant dense<0.000000e+00> : vector<6x32xf32>
    %251 = tpu.matmul %249, %250, %cst_98 {dimension_numbers = #tpu.dot_dimension_numbers<[1], [0], [0], [1], [0, 0, 1, 1], [], []>} : vector<6x8xf32>, vector<8x32xf32>, vector<6x32xf32> -> vector<6x32xf32>
    %252 = arith.addf %229, %251 : vector<6x32xf32>
    %253 = vector.extract_strided_slice %169 {offsets = [0, 24], sizes = [6, 8], strides = [1, 1]} : vector<6x32xf32> to vector<6x8xf32>
    %254 = vector.extract_strided_slice %176 {offsets = [0, 24], sizes = [3, 8], strides = [1, 1]} : vector<3x64xf32> to vector<3x8xf32>
    %255 = vector.extract_strided_slice %176 {offsets = [0, 56], sizes = [3, 8], strides = [1, 1]} : vector<3x64xf32> to vector<3x8xf32>
    %256 = tpu.transpose %254, [1, 0] : vector<3x8xf32> -> vector<8x3xf32>
    %cst_99 = arith.constant dense<0.000000e+00> : vector<6x3xf32>
    %257 = tpu.matmul %253, %256, %cst_99 {dimension_numbers = #tpu.dot_dimension_numbers<[1], [0], [0], [1], [0, 0, 1, 1], [], []>} : vector<6x8xf32>, vector<8x3xf32>, vector<6x3xf32> -> vector<6x3xf32>
    %cst_100 = arith.constant 0.353553385 : f32
    %258 = vector.broadcast %cst_100 : f32 to vector<6x3xf32>
    %259 = arith.mulf %257, %258 : vector<6x3xf32>
    %260 = vector.broadcast %178 : vector<1x3xf32> to vector<6x3xf32>
    %261 = arith.addf %259, %260 : vector<6x3xf32>
    %cst_101 = arith.constant dense<0xFF800000> : vector<6xf32>
    %262 = vector.multi_reduction <maximumf>, %261, %cst_101 [1] : vector<6x3xf32> to vector<6xf32>
    %263 = vector.shape_cast %262 : vector<6xf32> to vector<6x1xf32>
    %264 = vector.broadcast %263 : vector<6x1xf32> to vector<6x3xf32>
    %265 = arith.subf %261, %264 : vector<6x3xf32>
    %266 = math.exp %265 : vector<6x3xf32>
    %cst_102 = arith.constant dense<0.000000e+00> : vector<6xf32>
    %267 = vector.multi_reduction <add>, %266, %cst_102 [1] : vector<6x3xf32> to vector<6xf32>
    %268 = vector.shape_cast %267 : vector<6xf32> to vector<6x1xf32>
    %269 = tpu.reciprocal %268 {approx = true} : vector<6x1xf32> -> vector<6x1xf32>
    %270 = vector.broadcast %269 : vector<6x1xf32> to vector<6x3xf32>
    %271 = arith.mulf %266, %270 : vector<6x3xf32>
    %cst_103 = arith.constant dense<0.000000e+00> : vector<6x8xf32>
    %272 = tpu.matmul %271, %255, %cst_103 {dimension_numbers = #tpu.dot_dimension_numbers<[1], [0], [0], [1], [0, 0, 1, 1], [], []>} : vector<6x3xf32>, vector<3x8xf32>, vector<6x8xf32> -> vector<6x8xf32>
    %273 = vector.extract_strided_slice %180 {offsets = [24, 0], sizes = [8, 32], strides = [1, 1]} : vector<32x32xf32> to vector<8x32xf32>
    %cst_104 = arith.constant dense<0.000000e+00> : vector<6x32xf32>
    %274 = tpu.matmul %272, %273, %cst_104 {dimension_numbers = #tpu.dot_dimension_numbers<[1], [0], [0], [1], [0, 0, 1, 1], [], []>} : vector<6x8xf32>, vector<8x32xf32>, vector<6x32xf32> -> vector<6x32xf32>
    %275 = arith.addf %252, %274 : vector<6x32xf32>
    %276 = arith.addf %136, %275 : vector<6x32xf32>
    %c0_105 = arith.constant 0 : index
    %c0_106 = arith.constant 0 : index
    %c1152 = arith.constant 1152 : index
    %277 = vector.load %arg10[%c0_105, %c0_106, %c1152] : memref<1x1x1664xf32, #tpu.memory_space<vmem>>, vector<1x1x32xf32>
    %278 = vector.shape_cast %277 : vector<1x1x32xf32> to vector<1x32xf32>
    %c0_107 = arith.constant 0 : index
    %c0_108 = arith.constant 0 : index
    %c1536 = arith.constant 1536 : index
    %279 = vector.load %arg10[%c0_107, %c0_108, %c1536] : memref<1x1x1664xf32, #tpu.memory_space<vmem>>, vector<1x1x32xf32>
    %280 = vector.shape_cast %279 : vector<1x1x32xf32> to vector<1x32xf32>
    %cst_109 = arith.constant dense<0.000000e+00> : vector<6xf32>
    %281 = vector.multi_reduction <add>, %276, %cst_109 [1] : vector<6x32xf32> to vector<6xf32>
    %282 = vector.shape_cast %281 : vector<6xf32> to vector<6x1xf32>
    %cst_110 = arith.constant 3.200000e+01 : f32
    %283 = vector.broadcast %cst_110 : f32 to vector<6x1xf32>
    %284 = arith.divf %282, %283 : vector<6x1xf32>
    %285 = vector.broadcast %284 : vector<6x1xf32> to vector<6x32xf32>
    %286 = arith.subf %276, %285 : vector<6x32xf32>
    %287 = arith.mulf %286, %286 : vector<6x32xf32>
    %cst_111 = arith.constant dense<0.000000e+00> : vector<6xf32>
    %288 = vector.multi_reduction <add>, %287, %cst_111 [1] : vector<6x32xf32> to vector<6xf32>
    %289 = vector.shape_cast %288 : vector<6xf32> to vector<6x1xf32>
    %cst_112 = arith.constant 3.200000e+01 : f32
    %290 = vector.broadcast %cst_112 : f32 to vector<6x1xf32>
    %291 = arith.divf %289, %290 : vector<6x1xf32>
    %292 = vector.broadcast %284 : vector<6x1xf32> to vector<6x32xf32>
    %293 = arith.subf %276, %292 : vector<6x32xf32>
    %cst_113 = arith.constant 9.99999974E-6 : f32
    %294 = vector.broadcast %cst_113 : f32 to vector<6x1xf32>
    %295 = arith.addf %291, %294 : vector<6x1xf32>
    %296 = math.rsqrt %295 : vector<6x1xf32>
    %297 = vector.broadcast %296 : vector<6x1xf32> to vector<6x32xf32>
    %298 = arith.mulf %293, %297 : vector<6x32xf32>
    %299 = vector.broadcast %278 : vector<1x32xf32> to vector<6x32xf32>
    %300 = arith.mulf %298, %299 : vector<6x32xf32>
    %301 = vector.broadcast %280 : vector<1x32xf32> to vector<6x32xf32>
    %302 = arith.addf %300, %301 : vector<6x32xf32>
    %c0_114 = arith.constant 0 : index
    %c0_115 = arith.constant 0 : index
    %c640 = arith.constant 640 : index
    %303 = vector.load %arg8[%c0_114, %c0_115, %c640] : memref<1x32x768xf32, #tpu.memory_space<vmem>>, vector<1x32x64xf32>
    %304 = vector.shape_cast %303 : vector<1x32x64xf32> to vector<32x64xf32>
    %cst_116 = arith.constant dense<0.000000e+00> : vector<6x64xf32>
    %305 = tpu.matmul %302, %304, %cst_116 {dimension_numbers = #tpu.dot_dimension_numbers<[1], [0], [0], [1], [0, 0, 1, 1], [], []>} : vector<6x32xf32>, vector<32x64xf32>, vector<6x64xf32> -> vector<6x64xf32>
    %c0_117 = arith.constant 0 : index
    %c0_118 = arith.constant 0 : index
    %c640_119 = arith.constant 640 : index
    %306 = vector.load %arg10[%c0_117, %c0_118, %c640_119] : memref<1x1x1664xf32, #tpu.memory_space<vmem>>, vector<1x1x64xf32>
    %307 = vector.shape_cast %306 : vector<1x1x64xf32> to vector<1x64xf32>
    %308 = vector.broadcast %307 : vector<1x64xf32> to vector<6x64xf32>
    %309 = arith.addf %305, %308 : vector<6x64xf32>
    %cst_120 = arith.constant 0.000000e+00 : f32
    %310 = vector.broadcast %cst_120 : f32 to vector<6x64xf32>
    %311 = arith.maximumf %309, %310 : vector<6x64xf32>
    %c0_121 = arith.constant 0 : index
    %c0_122 = arith.constant 0 : index
    %c0_123 = arith.constant 0 : index
    %312 = vector.load %arg9[%c0_121, %c0_122, %c0_123] : memref<1x64x32xf32, #tpu.memory_space<vmem>>, vector<1x64x32xf32>
    %313 = vector.shape_cast %312 : vector<1x64x32xf32> to vector<64x32xf32>
    %cst_124 = arith.constant dense<0.000000e+00> : vector<6x32xf32>
    %314 = tpu.matmul %311, %313, %cst_124 {dimension_numbers = #tpu.dot_dimension_numbers<[1], [0], [0], [1], [0, 0, 1, 1], [], []>} : vector<6x64xf32>, vector<64x32xf32>, vector<6x32xf32> -> vector<6x32xf32>
    %315 = arith.addf %276, %314 : vector<6x32xf32>
    %c0_125 = arith.constant 0 : index
    %c0_126 = arith.constant 0 : index
    %c768 = arith.constant 768 : index
    %316 = vector.load %arg10[%c0_125, %c0_126, %c768] : memref<1x1x1664xf32, #tpu.memory_space<vmem>>, vector<1x1x32xf32>
    %317 = vector.shape_cast %316 : vector<1x1x32xf32> to vector<1x32xf32>
    %318 = vector.broadcast %317 : vector<1x32xf32> to vector<6x32xf32>
    %319 = arith.addf %315, %318 : vector<6x32xf32>
    %c0_127 = arith.constant 0 : index
    %c0_128 = arith.constant 0 : index
    %320 = vector.load %arg15[%c0_127, %c0_128] : memref<6x32xf32, #tpu.memory_space<vmem>>, vector<6x32xf32>
    tpu.vector_store %arg15[%c0_127, %c0_128], %319 {strides = array<i32>} : memref<6x32xf32, #tpu.memory_space<vmem>>, vector<6x32xf32>,
    %c0_i32_129 = arith.constant 0 : i32
    %321 = arith.cmpi eq, %arg1, %c0_i32_129 : i32
    %322 = arith.extui %321 : i1 to i32
    %c0_i32_130 = arith.constant 0 : i32
    %323 = arith.cmpi ne, %322, %c0_i32_130 : i32
    scf.if %323 {
      %c0_131 = arith.constant 0 : index
      %c0_132 = arith.constant 0 : index
      %324 = vector.load %arg13[%c0_131, %c0_132] : memref<1x64xf32, #tpu.memory_space<vmem>>, vector<1x64xf32>
      %325 = vector.extract_strided_slice %324 {offsets = [0, 0], sizes = [1, 32], strides = [1, 1]} : vector<1x64xf32> to vector<1x32xf32>
      %326 = vector.extract_strided_slice %324 {offsets = [0, 32], sizes = [1, 32], strides = [1, 1]} : vector<1x64xf32> to vector<1x32xf32>
      %cst_133 = arith.constant dense<0.000000e+00> : vector<6xf32>
      %327 = vector.multi_reduction <add>, %319, %cst_133 [1] : vector<6x32xf32> to vector<6xf32>
      %328 = vector.shape_cast %327 : vector<6xf32> to vector<6x1xf32>
      %cst_134 = arith.constant 3.200000e+01 : f32
      %329 = vector.broadcast %cst_134 : f32 to vector<6x1xf32>
      %330 = arith.divf %328, %329 : vector<6x1xf32>
      %331 = vector.broadcast %330 : vector<6x1xf32> to vector<6x32xf32>
      %332 = arith.subf %319, %331 : vector<6x32xf32>
      %333 = arith.mulf %332, %332 : vector<6x32xf32>
      %cst_135 = arith.constant dense<0.000000e+00> : vector<6xf32>
      %334 = vector.multi_reduction <add>, %333, %cst_135 [1] : vector<6x32xf32> to vector<6xf32>
      %335 = vector.shape_cast %334 : vector<6xf32> to vector<6x1xf32>
      %cst_136 = arith.constant 3.200000e+01 : f32
      %336 = vector.broadcast %cst_136 : f32 to vector<6x1xf32>
      %337 = arith.divf %335, %336 : vector<6x1xf32>
      %338 = vector.broadcast %330 : vector<6x1xf32> to vector<6x32xf32>
      %339 = arith.subf %319, %338 : vector<6x32xf32>
      %cst_137 = arith.constant 9.99999974E-6 : f32
      %340 = vector.broadcast %cst_137 : f32 to vector<6x1xf32>
      %341 = arith.addf %337, %340 : vector<6x1xf32>
      %342 = math.rsqrt %341 : vector<6x1xf32>
      %343 = vector.broadcast %342 : vector<6x1xf32> to vector<6x32xf32>
      %344 = arith.mulf %339, %343 : vector<6x32xf32>
      %345 = vector.broadcast %325 : vector<1x32xf32> to vector<6x32xf32>
      %346 = arith.mulf %344, %345 : vector<6x32xf32>
      %347 = vector.broadcast %326 : vector<1x32xf32> to vector<6x32xf32>
      %348 = arith.addf %346, %347 : vector<6x32xf32>
      %c0_138 = arith.constant 0 : index
      %c0_139 = arith.constant 0 : index
      %349 = vector.load %arg11[%c0_138, %c0_139] : memref<32x128xf32, #tpu.memory_space<vmem>>, vector<32x128xf32>
      %cst_140 = arith.constant dense<0.000000e+00> : vector<6x128xf32>
      %350 = tpu.matmul %348, %349, %cst_140 {dimension_numbers = #tpu.dot_dimension_numbers<[1], [0], [0], [1], [0, 0, 1, 1], [], []>} : vector<6x32xf32>, vector<32x128xf32>, vector<6x128xf32> -> vector<6x128xf32>
      %c0_141 = arith.constant 0 : index
      %c0_142 = arith.constant 0 : index
      %351 = vector.load %arg12[%c0_141, %c0_142] : memref<1x128xf32, #tpu.memory_space<vmem>>, vector<1x128xf32>
      %352 = vector.broadcast %351 : vector<1x128xf32> to vector<6x128xf32>
      %353 = arith.addf %350, %352 : vector<6x128xf32>
      %c0_143 = arith.constant 0 : index
      %c0_144 = arith.constant 0 : index
      %c0_145 = arith.constant 0 : index
      %354 = vector.load %arg14[%c0_143, %c0_144, %c0_145] : memref<1x6x128xf32, #tpu.memory_space<vmem>>, vector<1x6x128xf32>
      %355 = vector.shape_cast %354 : vector<1x6x128xf32> to vector<6x128xf32>
      %356 = vector.shape_cast %353 : vector<6x128xf32> to vector<1x6x128xf32>
      tpu.vector_store %arg14[%c0_143, %c0_144, %c0_145], %356 {strides = array<i32>} : memref<1x6x128xf32, #tpu.memory_space<vmem>>, vector<1x6x128xf32>,
    } else {
    }
    return
  }
  func.func @transform_0(%arg0: i32, %arg1: i32) -> (i32, i32, i32) {
    %c0_i32 = arith.constant 0 : i32
    %c0_i32_0 = arith.constant 0 : i32
    %c0_i32_1 = arith.constant 0 : i32
    return %arg0, %c0_i32, %c0_i32_0 : i32, i32, i32
  }
  func.func @transform_1(%arg0: i32, %arg1: i32) -> (i32, i32) {
    %c0_i32 = arith.constant 0 : i32
    %c0_i32_0 = arith.constant 0 : i32
    %c0_i32_1 = arith.constant 0 : i32
    return %c0_i32, %c0_i32_0 : i32, i32
  }
  func.func @transform_2(%arg0: i32, %arg1: i32) -> (i32, i32) {
    %c0_i32 = arith.constant 0 : i32
    %c0_i32_0 = arith.constant 0 : i32
    %c0_i32_1 = arith.constant 0 : i32
    return %c0_i32, %c0_i32_0 : i32, i32
  }
  func.func @transform_3(%arg0: i32, %arg1: i32) -> (i32, i32, i32) {
    %c0_i32 = arith.constant 0 : i32
    %c0_i32_0 = arith.constant 0 : i32
    %c0_i32_1 = arith.constant 0 : i32
    return %arg0, %c0_i32, %c0_i32_0 : i32, i32, i32
  }
  func.func @transform_4(%arg0: i32, %arg1: i32) -> (i32, i32, i32) {
    %c0_i32 = arith.constant 0 : i32
    %c0_i32_0 = arith.constant 0 : i32
    %c0_i32_1 = arith.constant 0 : i32
    return %arg0, %c0_i32, %c0_i32_0 : i32, i32, i32
  }
  func.func @transform_5(%arg0: i32, %arg1: i32) -> (i32, i32, i32) {
    %c0_i32 = arith.constant 0 : i32
    %c0_i32_0 = arith.constant 0 : i32
    %c0_i32_1 = arith.constant 0 : i32
    return %arg0, %c0_i32, %c0_i32_0 : i32, i32, i32
  }
  func.func @transform_6(%arg0: i32, %arg1: i32) -> (i32, i32, i32) {
    %c0_i32 = arith.constant 0 : i32
    %c0_i32_0 = arith.constant 0 : i32
    %c0_i32_1 = arith.constant 0 : i32
    return %arg1, %c0_i32, %c0_i32_0 : i32, i32, i32
  }
  func.func @transform_7(%arg0: i32, %arg1: i32) -> (i32, i32, i32) {
    %c0_i32 = arith.constant 0 : i32
    %c0_i32_0 = arith.constant 0 : i32
    %c0_i32_1 = arith.constant 0 : i32
    return %arg1, %c0_i32, %c0_i32_0 : i32, i32, i32
  }
  func.func @transform_8(%arg0: i32, %arg1: i32) -> (i32, i32, i32) {
    %c0_i32 = arith.constant 0 : i32
    %c0_i32_0 = arith.constant 0 : i32
    %c0_i32_1 = arith.constant 0 : i32
    return %arg1, %c0_i32, %c0_i32_0 : i32, i32, i32
  }
  func.func @transform_9(%arg0: i32, %arg1: i32) -> (i32, i32) {
    %c0_i32 = arith.constant 0 : i32
    %c0_i32_0 = arith.constant 0 : i32
    %c0_i32_1 = arith.constant 0 : i32
    return %c0_i32, %c0_i32_0 : i32, i32
  }
  func.func @transform_10(%arg0: i32, %arg1: i32) -> (i32, i32) {
    %c0_i32 = arith.constant 0 : i32
    %c0_i32_0 = arith.constant 0 : i32
    %c0_i32_1 = arith.constant 0 : i32
    return %c0_i32, %c0_i32_0 : i32, i32
  }
  func.func @transform_11(%arg0: i32, %arg1: i32) -> (i32, i32) {
    %c0_i32 = arith.constant 0 : i32
    %c0_i32_0 = arith.constant 0 : i32
    %c0_i32_1 = arith.constant 0 : i32
    return %c0_i32, %c0_i32_0 : i32, i32
  }
  func.func @transform_12(%arg0: i32, %arg1: i32) -> (i32, i32, i32) {
    %c0_i32 = arith.constant 0 : i32
    %c0_i32_0 = arith.constant 0 : i32
    %c0_i32_1 = arith.constant 0 : i32
    return %arg0, %c0_i32, %c0_i32_0 : i32, i32, i32
  }
}

</mosaic_0001>

<llo_original>
// kernel: conformer_aed_forward.4
$region0: #{conformer_aed_forward.4}
  #allocation0 [shape = 'u32[]', space=smem, size = 0x4, offset = 0x4, fixed_abs, tag = 'smem constant byte address 0x4 - core index']
  #allocation1 [shape = 'u32[144,128]{1,0:T(1,128)}', space=vmem, size = 0x12000, scoped, tag = 'internal scratch']
  %s0 = inlined_call_operand.vmem [shape: f32[98,9], index: 0, kind: input, shape index: {}]
  %s1 = inlined_call_operand.vmem [shape: f32[9,32], index: 1, kind: input, shape index: {}]
  %s2 = inlined_call_operand.vmem [shape: f32[1,32], index: 2, kind: input, shape index: {}]
  %s3 = inlined_call_operand.vmem [shape: f32[98,32], index: 3, kind: output, shape index: {}]
  %s4 = sld [smem:[#allocation0]]
  $region22: #{conformer_aed_forward.4} parent=0
    _
  %s6 = ssub.s32 1, %s4
  %s7 = scalar_select 0, %s6, %s4
  // Predicated region
  $region2: #{conformer_aed_forward.4} parent=0 // pred_check
    _
  $region3: #{conformer_aed_forward.4} parent=0 // pred_check_branch
    %9 = sbr.rel (0) target = $region5
  $region4: #{conformer_aed_forward.4} parent=0 // pred_region
    _
  $region5: #{conformer_aed_forward.4} parent=0 // pred_fallthru
    _
  // Predicated region
  $region6: #{conformer_aed_forward.4} parent=0 // pred_check
    _
  $region7: #{conformer_aed_forward.4} parent=0 // pred_check_branch
    %11 = sbr.rel (0) target = $region9
  $region8: #{conformer_aed_forward.4} parent=0 // pred_region
    _
  $region9: #{conformer_aed_forward.4} parent=0 // pred_fallthru
    _
  // Predicated region
  $region10: #{conformer_aed_forward.4} parent=0 // pred_check
    _
  $region11: #{conformer_aed_forward.4} parent=0 // pred_check_branch
    %13 = sbr.rel (0) target = $region13
  $region12: #{conformer_aed_forward.4} parent=0 // pred_region
    _
  $region13: #{conformer_aed_forward.4} parent=0 // pred_fallthru
    _
  %v14 = vld [vmem:[%s0] sm:$0xff]
  %v15 = vld [vmem:[%s0 + $0x8] sm:$0xff]
  %v16 = vld [vmem:[%s0 + $0x10] sm:$0xff]
  %v17 = vld [vmem:[%s0 + $0x18] sm:$0xff]
  %v18 = vld [vmem:[%s0 + $0x20] sm:$0xff]
  %v19 = vld [vmem:[%s0 + $0x28] sm:$0xff]
  %v20 = vld [vmem:[%s0 + $0x30] sm:$0xff]
  %v21 = vld [vmem:[%s0 + $0x38] sm:$0xff]
  %v22 = vld [vmem:[%s0 + $0x40] sm:$0xff]
  %v23 = vld [vmem:[%s0 + $0x48] sm:$0xff]
  %v24 = vld [vmem:[%s0 + $0x50] sm:$0xff]
  %v25 = vld [vmem:[%s0 + $0x58] sm:$0xff]
  %v26 = vld [vmem:[%s0 + $0x60] sm:$0x3]
  %v27 = vld [vmem:[%s1] sm:$0xff]
  %v28 = vld [vmem:[%s1 + $0x8] sm:$0x1]
  %v29 = vld [vmem:[%s2] sm:$0x1]
  %v31 = vlaneseq
  %v32 = vshrl.u32 %v31, 7
  %v33 = vsub.s32 0, %v32
  %v34 = vrot.slane %v29, %v33
  %vm36 = vcmask 72704
  %v38 = vsel %vm36, %v14, 0
  %v41 = vsel %vm36, %v15, 0
  %v44 = vsel %vm36, %v16, 0
  %v47 = vsel %vm36, %v17, 0
  %v50 = vsel %vm36, %v18, 0
  %v53 = vsel %vm36, %v19, 0
  %v56 = vsel %vm36, %v20, 0
  %v59 = vsel %vm36, %v21, 0
  %v62 = vsel %vm36, %v22, 0
  %v65 = vsel %vm36, %v23, 0
  %v68 = vsel %vm36, %v24, 0
  %v71 = vsel %vm36, %v25, 0
  %v74 = vsel %vm36, %v26, 0
  %vm76 = vcmask 1040384
  %v78 = vsel %vm76, %v28, 0
  %80 = vmatprep.subr.mxu0 0.0
  %81 = vmatpush1.msra.mxu0 0.0
  %82 = vmatprep.subr.mxu0 0.0
  %83 = vmatpush1.msra.mxu0 0.0
  %84 = vmatprep.subr.mxu0 0.0
  %85 = vmatpush1.msra.mxu0 0.0
  %86 = vmatprep.subr.mxu0 0.0
  %87 = vmatpush1.msra.mxu0 0.0
  %88 = vmatprep.subr.mxu0 0.0
  %89 = vmatpush1.msra.mxu0 0.0
  %90 = vmatprep.subr.mxu0 0.0
  %91 = vmatpush1.msra.mxu0 0.0
  %92 = vmatprep.subr.mxu0 0.0
  %93 = vmatpush1.msra.mxu0 0.0
  %94 = vmatprep.subr.mxu0 0.0
  %95 = vmatpush1.msra.mxu0 0.0
  %96 = vmatprep.subr.mxu0 0.0
  %97 = vmatpush1.msra.mxu0 0.0
  %98 = vmatprep.subr.mxu0 0.0
  %99 = vmatpush1.msra.mxu0 0.0
  %100 = vmatprep.subr.mxu0 0.0
  %101 = vmatpush1.msra.mxu0 0.0
  %102 = vmatprep.subr.mxu0 0.0
  %103 = vmatpush1.msra.mxu0 0.0
  %104 = vmatprep.subr.mxu0 0.0
  %105 = vmatpush1.msra.mxu0 0.0
  %106 = vmatprep.subr.mxu0 0.0
  %107 = vmatpush1.msra.mxu0 0.0
  %108 = vmatprep.subr.mxu0 0.0
  %109 = vmatpush1.msra.mxu0 %v78
  %110 = vmatprep.subr.mxu0 0.0
  %111 = vmatpush1.msra.mxu0 %v27
  %112 = vmatprep.subr.mxu0 0.0
  %113 = vmatpush2.msra.mxu0 0.0
  %114 = vmatprep.subr.mxu0 0.0
  %115 = vmatpush2.msra.mxu0 0.0
  %116 = vmatprep.subr.mxu0 0.0
  %117 = vmatpush2.msra.mxu0 0.0
  %118 = vmatprep.subr.mxu0 0.0
  %119 = vmatpush2.msra.mxu0 0.0
  %120 = vmatprep.subr.mxu0 0.0
  %121 = vmatpush2.msra.mxu0 0.0
  %122 = vmatprep.subr.mxu0 0.0
  %123 = vmatpush2.msra.mxu0 0.0
  %124 = vmatprep.subr.mxu0 0.0
  %125 = vmatpush2.msra.mxu0 0.0
  %126 = vmatprep.subr.mxu0 0.0
  %127 = vmatpush2.msra.mxu0 0.0
  %128 = vmatprep.subr.mxu0 0.0
  %129 = vmatpush2.msra.mxu0 0.0
  %130 = vmatprep.subr.mxu0 0.0
  %131 = vmatpush2.msra.mxu0 0.0
  %132 = vmatprep.subr.mxu0 0.0
  %133 = vmatpush2.msra.mxu0 0.0
  %134 = vmatprep.subr.mxu0 0.0
  %135 = vmatpush2.msra.mxu0 0.0
  %136 = vmatprep.subr.mxu0 0.0
  %137 = vmatpush2.msra.mxu0 0.0
  %138 = vmatprep.subr.mxu0 0.0
  %139 = vmatpush2.msra.mxu0 0.0
  %140 = vmatprep.subr.mxu0 0.0
  %141 = vmatpush2.msra.mxu0 0.0
  %142 = vmatprep.subr.mxu0 0.0
  %143 = vmatpush2.msra.mxu0 0.0
  %144 = vmatprep.mubr.f32.mxu0 0.0
  %145 = vmatmul.mubr.f32.gmra.mxu0 %v38
  %v146 = vpop.f32.mrf.mxu0
  %v147 = vadd.f32 %v34, %v146
  %v148 = vpop.f32.mrf.mxu0
  %149 = vmatprep.mubr.f32.mxu0 0.0
  %150 = vmatmul.mubr.f32.gmra.mxu0 %v41
  %v151 = vpop.f32.mrf.mxu0
  %v152 = vadd.f32 %v34, %v151
  %v153 = vpop.f32.mrf.mxu0
  %154 = vmatprep.mubr.f32.mxu0 0.0
  %155 = vmatmul.mubr.f32.gmra.mxu0 %v44
  %v156 = vpop.f32.mrf.mxu0
  %v157 = vadd.f32 %v34, %v156
  %v158 = vpop.f32.mrf.mxu0
  %159 = vmatprep.mubr.f32.mxu0 0.0
  %160 = vmatmul.mubr.f32.gmra.mxu0 %v47
  %v161 = vpop.f32.mrf.mxu0
  %v162 = vadd.f32 %v34, %v161
  %v163 = vpop.f32.mrf.mxu0
  %164 = vmatprep.mubr.f32.mxu0 0.0
  %165 = vmatmul.mubr.f32.gmra.mxu0 %v50
  %v166 = vpop.f32.mrf.mxu0
  %v167 = vadd.f32 %v34, %v166
  %v168 = vpop.f32.mrf.mxu0
  %169 = vmatprep.mubr.f32.mxu0 0.0
  %170 = vmatmul.mubr.f32.gmra.mxu0 %v53
  %v171 = vpop.f32.mrf.mxu0
  %v172 = vadd.f32 %v34, %v171
  %v173 = vpop.f32.mrf.mxu0
  %174 = vmatprep.mubr.f32.mxu0 0.0
  %175 = vmatmul.mubr.f32.gmra.mxu0 %v56
  %v176 = vpop.f32.mrf.mxu0
  %v177 = vadd.f32 %v34, %v176
  %v178 = vpop.f32.mrf.mxu0
  %179 = vmatprep.mubr.f32.mxu0 0.0
  %180 = vmatmul.mubr.f32.gmra.mxu0 %v59
  %v181 = vpop.f32.mrf.mxu0
  %v182 = vadd.f32 %v34, %v181
  %v183 = vpop.f32.mrf.mxu0
  %184 = vmatprep.mubr.f32.mxu0 0.0
  %185 = vmatmul.mubr.f32.gmra.mxu0 %v62
  %v186 = vpop.f32.mrf.mxu0
  %v187 = vadd.f32 %v34, %v186
  %v188 = vpop.f32.mrf.mxu0
  %189 = vmatprep.mubr.f32.mxu0 0.0
  %190 = vmatmul.mubr.f32.gmra.mxu0 %v65
  %v191 = vpop.f32.mrf.mxu0
  %v192 = vadd.f32 %v34, %v191
  %v193 = vpop.f32.mrf.mxu0
  %194 = vmatprep.mubr.f32.mxu0 0.0
  %195 = vmatmul.mubr.f32.gmra.mxu0 %v68
  %v196 = vpop.f32.mrf.mxu0
  %v197 = vadd.f32 %v34, %v196
  %v198 = vpop.f32.mrf.mxu0
  %199 = vmatprep.mubr.f32.mxu0 0.0
  %200 = vmatmul.mubr.f32.gmra.mxu0 %v71
  %v201 = vpop.f32.mrf.mxu0
  %v202 = vadd.f32 %v34, %v201
  %v203 = vpop.f32.mrf.mxu0
  %204 = vmatprep.mubr.f32.mxu0 0.0
  %205 = vmatmul.mubr.f32.gmra.mxu0 %v74
  %v206 = vpop.f32.mrf.mxu0
  %v207 = vadd.f32 %v34, %v206
  %v208 = vpop.f32.mrf.mxu0
  %209 = vdwg.mxu0
  %v210 = vmax.f32 %v147, 0.0
  %v211 = vmax.f32 %v152, 0.0
  %v212 = vmax.f32 %v157, 0.0
  %v213 = vmax.f32 %v162, 0.0
  %v214 = vmax.f32 %v167, 0.0
  %v215 = vmax.f32 %v172, 0.0
  %v216 = vmax.f32 %v177, 0.0
  %v217 = vmax.f32 %v182, 0.0
  %v218 = vmax.f32 %v187, 0.0
  %v219 = vmax.f32 %v192, 0.0
  %v220 = vmax.f32 %v197, 0.0
  %v221 = vmax.f32 %v202, 0.0
  %v222 = vmax.f32 %v207, 0.0
  %vm223 = vcmask 261120
  %224 = vst.msk [vmem:[%s3] sm:$0xff] %vm223, %v210
  %225 = vst.msk [vmem:[%s3 + $0x8] sm:$0xff] %vm223, %v211
  %226 = vst.msk [vmem:[%s3 + $0x10] sm:$0xff] %vm223, %v212
  %227 = vst.msk [vmem:[%s3 + $0x18] sm:$0xff] %vm223, %v213
  %228 = vst.msk [vmem:[%s3 + $0x20] sm:$0xff] %vm223, %v214
  %229 = vst.msk [vmem:[%s3 + $0x28] sm:$0xff] %vm223, %v215
  %230 = vst.msk [vmem:[%s3 + $0x30] sm:$0xff] %vm223, %v216
  %231 = vst.msk [vmem:[%s3 + $0x38] sm:$0xff] %vm223, %v217
  %232 = vst.msk [vmem:[%s3 + $0x40] sm:$0xff] %vm223, %v218
  %233 = vst.msk [vmem:[%s3 + $0x48] sm:$0xff] %vm223, %v219
  %234 = vst.msk [vmem:[%s3 + $0x50] sm:$0xff] %vm223, %v220
  %235 = vst.msk [vmem:[%s3 + $0x58] sm:$0xff] %vm223, %v221
  %vm236 = vcmask 254976
  %237 = vst.msk [vmem:[%s3 + $0x60] sm:$0x3] %vm236, %v222
  // Predicated region
  $region14: #{conformer_aed_forward.4} parent=0 // pred_check
    _
  $region15: #{conformer_aed_forward.4} parent=0 // pred_check_branch
    %239 = sbr.rel (0) target = $region17
  $region16: #{conformer_aed_forward.4} parent=0 // pred_region
    _
  $region17: #{conformer_aed_forward.4} parent=0 // pred_fallthru
    _
  // Predicated region
  $region18: #{conformer_aed_forward.4} parent=0 // pred_check
    _
  $region19: #{conformer_aed_forward.4} parent=0 // pred_check_branch
    %241 = sbr.rel (0) target = $region21
  $region20: #{conformer_aed_forward.4} parent=0 // pred_region
    _
  $region21: #{conformer_aed_forward.4} parent=0 // pred_fallthru
    _

// kernel: conformer_aed_forward.5
$region0: #{conformer_aed_forward.5}
  #allocation0 [shape = 'u32[]', space=smem, size = 0x4, offset = 0x4, fixed_abs, tag = 'smem constant byte address 0x4 - core index']
  #allocation1 [shape = 'u32[144,128]{1,0:T(1,128)}', space=vmem, size = 0x12000, scoped, tag = 'internal scratch']
  %s0 = inlined_call_operand.vmem [shape: f32[18,288], index: 0, kind: input, shape index: {}]
  %s1 = inlined_call_operand.vmem [shape: f32[288,32], index: 1, kind: input, shape index: {}]
  %s2 = inlined_call_operand.vmem [shape: f32[1,32], index: 2, kind: input, shape index: {}]
  %s3 = inlined_call_operand.vmem [shape: f32[18,32], index: 3, kind: output, shape index: {}]
  %s4 = sld [smem:[#allocation0]]
  $region22: #{conformer_aed_forward.5} parent=0
    _
  %s6 = ssub.s32 1, %s4
  %s7 = scalar_select 0, %s6, %s4
  // Predicated region
  $region2: #{conformer_aed_forward.5} parent=0 // pred_check
    _
  $region3: #{conformer_aed_forward.5} parent=0 // pred_check_branch
    %9 = sbr.rel (0) target = $region5
  $region4: #{conformer_aed_forward.5} parent=0 // pred_region
    _
  $region5: #{conformer_aed_forward.5} parent=0 // pred_fallthru
    _
  // Predicated region
  $region6: #{conformer_aed_forward.5} parent=0 // pred_check
    _
  $region7: #{conformer_aed_forward.5} parent=0 // pred_check_branch
    %11 = sbr.rel (0) target = $region9
  $region8: #{conformer_aed_forward.5} parent=0 // pred_region
    _
  $region9: #{conformer_aed_forward.5} parent=0 // pred_fallthru
    _
  // Predicated region
  $region10: #{conformer_aed_forward.5} parent=0 // pred_check
    _
  $region11: #{conformer_aed_forward.5} parent=0 // pred_check_branch
    %13 = sbr.rel (0) target = $region13
  $region12: #{conformer_aed_forward.5} parent=0 // pred_region
    _
  $region13: #{conformer_aed_forward.5} parent=0 // pred_fallthru
    _
  %v14 = vld [vmem:[%s0] sm:$0xff]
  %v15 = vld [vmem:[%s0 + $0x8] sm:$0xff]
  %v16 = vld [vmem:[%s0 + $0x10] sm:$0xff]
  %v17 = vld [vmem:[%s0 + $0x18] sm:$0xff]
  %v18 = vld [vmem:[%s0 + $0x20] sm:$0xff]
  %v19 = vld [vmem:[%s0 + $0x28] sm:$0xff]
  %v20 = vld [vmem:[%s0 + $0x30] sm:$0x3]
  %v21 = vld [vmem:[%s0 + $0x38] sm:$0x3]
  %v22 = vld [vmem:[%s0 + $0x40] sm:$0x3]
  %v23 = vld [vmem:[%s1] sm:$0xff]
  %v24 = vld [vmem:[%s1 + $0x8] sm:$0xff]
  %v25 = vld [vmem:[%s1 + $0x10] sm:$0xff]
  %v26 = vld [vmem:[%s1 + $0x18] sm:$0xff]
  %v27 = vld [vmem:[%s1 + $0x20] sm:$0xff]
  %v28 = vld [vmem:[%s1 + $0x28] sm:$0xff]
  %v29 = vld [vmem:[%s1 + $0x30] sm:$0xff]
  %v30 = vld [vmem:[%s1 + $0x38] sm:$0xff]
  %v31 = vld [vmem:[%s1 + $0x40] sm:$0xff]
  %v32 = vld [vmem:[%s1 + $0x48] sm:$0xff]
  %v33 = vld [vmem:[%s1 + $0x50] sm:$0xff]
  %v34 = vld [vmem:[%s1 + $0x58] sm:$0xff]
  %v35 = vld [vmem:[%s1 + $0x60] sm:$0xff]
  %v36 = vld [vmem:[%s1 + $0x68] sm:$0xff]
  %v37 = vld [vmem:[%s1 + $0x70] sm:$0xff]
  %v38 = vld [vmem:[%s1 + $0x78] sm:$0xff]
  %v39 = vld [vmem:[%s1 + $0x80] sm:$0xff]
  %v40 = vld [vmem:[%s1 + $0x88] sm:$0xff]
  %v41 = vld [vmem:[%s1 + $0x90] sm:$0xff]
  %v42 = vld [vmem:[%s1 + $0x98] sm:$0xff]
  %v43 = vld [vmem:[%s1 + $0xa0] sm:$0xff]
  %v44 = vld [vmem:[%s1 + $0xa8] sm:$0xff]
  %v45 = vld [vmem:[%s1 + $0xb0] sm:$0xff]
  %v46 = vld [vmem:[%s1 + $0xb8] sm:$0xff]
  %v47 = vld [vmem:[%s1 + $0xc0] sm:$0xff]
  %v48 = vld [vmem:[%s1 + $0xc8] sm:$0xff]
  %v49 = vld [vmem:[%s1 + $0xd0] sm:$0xff]
  %v50 = vld [vmem:[%s1 + $0xd8] sm:$0xff]
  %v51 = vld [vmem:[%s1 + $0xe0] sm:$0xff]
  %v52 = vld [vmem:[%s1 + $0xe8] sm:$0xff]
  %v53 = vld [vmem:[%s1 + $0xf0] sm:$0xff]
  %v54 = vld [vmem:[%s1 + $0xf8] sm:$0xff]
  %v55 = vld [vmem:[%s1 + $0x100] sm:$0xff]
  %v56 = vld [vmem:[%s1 + $0x108] sm:$0xff]
  %v57 = vld [vmem:[%s1 + $0x110] sm:$0xff]
  %v58 = vld [vmem:[%s1 + $0x118] sm:$0xff]
  %v59 = vld [vmem:[%s2] sm:$0x1]
  %v61 = vlaneseq
  %v62 = vshrl.u32 %v61, 7
  %v63 = vsub.s32 0, %v62
  %v64 = vrot.slane %v59, %v63
  %vm66 = vcmask 261120
  %v68 = vsel %vm66, %v16, 0
  %v71 = vsel %vm66, %v19, 0
  %v74 = vsel %vm66, %v22, 0
  %76 = vmatprep.subr.mxu0 0.0
  %77 = vmatpush1.msra.mxu0 %v38
  %78 = vmatprep.subr.mxu0 0.0
  %79 = vmatpush1.msra.mxu0 %v37
  %80 = vmatprep.subr.mxu0 0.0
  %81 = vmatpush1.msra.mxu0 %v36
  %82 = vmatprep.subr.mxu0 0.0
  %83 = vmatpush1.msra.mxu0 %v35
  %84 = vmatprep.subr.mxu0 0.0
  %85 = vmatpush1.msra.mxu0 %v34
  %86 = vmatprep.subr.mxu0 0.0
  %87 = vmatpush1.msra.mxu0 %v33
  %88 = vmatprep.subr.mxu0 0.0
  %89 = vmatpush1.msra.mxu0 %v32
  %90 = vmatprep.subr.mxu0 0.0
  %91 = vmatpush1.msra.mxu0 %v31
  %92 = vmatprep.subr.mxu0 0.0
  %93 = vmatpush1.msra.mxu0 %v30
  %94 = vmatprep.subr.mxu0 0.0
  %95 = vmatpush1.msra.mxu0 %v29
  %96 = vmatprep.subr.mxu0 0.0
  %97 = vmatpush1.msra.mxu0 %v28
  %98 = vmatprep.subr.mxu0 0.0
  %99 = vmatpush1.msra.mxu0 %v27
  %100 = vmatprep.subr.mxu0 0.0
  %101 = vmatpush1.msra.mxu0 %v26
  %102 = vmatprep.subr.mxu0 0.0
  %103 = vmatpush1.msra.mxu0 %v25
  %104 = vmatprep.subr.mxu0 0.0
  %105 = vmatpush1.msra.mxu0 %v24
  %106 = vmatprep.subr.mxu0 0.0
  %107 = vmatpush1.msra.mxu0 %v23
  %108 = vmatprep.subr.mxu0 0.0
  %109 = vmatpush2.msra.mxu0 %v54
  %110 = vmatprep.subr.mxu0 0.0
  %111 = vmatpush2.msra.mxu0 %v53
  %112 = vmatprep.subr.mxu0 0.0
  %113 = vmatpush2.msra.mxu0 %v52
  %114 = vmatprep.subr.mxu0 0.0
  %115 = vmatpush2.msra.mxu0 %v51
  %116 = vmatprep.subr.mxu0 0.0
  %117 = vmatpush2.msra.mxu0 %v50
  %118 = vmatprep.subr.mxu0 0.0
  %119 = vmatpush2.msra.mxu0 %v49
  %120 = vmatprep.subr.mxu0 0.0
  %121 = vmatpush2.msra.mxu0 %v48
  %122 = vmatprep.subr.mxu0 0.0
  %123 = vmatpush2.msra.mxu0 %v47
  %124 = vmatprep.subr.mxu0 0.0
  %125 = vmatpush2.msra.mxu0 %v46
  %126 = vmatprep.subr.mxu0 0.0
  %127 = vmatpush2.msra.mxu0 %v45
  %128 = vmatprep.subr.mxu0 0.0
  %129 = vmatpush2.msra.mxu0 %v44
  %130 = vmatprep.subr.mxu0 0.0
  %131 = vmatpush2.msra.mxu0 %v43
  %132 = vmatprep.subr.mxu0 0.0
  %133 = vmatpush2.msra.mxu0 %v42
  %134 = vmatprep.subr.mxu0 0.0
  %135 = vmatpush2.msra.mxu0 %v41
  %136 = vmatprep.subr.mxu0 0.0
  %137 = vmatpush2.msra.mxu0 %v40
  %138 = vmatprep.subr.mxu0 0.0
  %139 = vmatpush2.msra.mxu0 %v39
  %140 = vmatprep.mubr.f32.mxu0 %v15
  %141 = vmatmul.mubr.f32.gmra.mxu0 %v14
  %v142 = vpop.f32.mrf.mxu0
  %v143 = vadd.f32 %v64, %v142
  %v144 = vpop.f32.mrf.mxu0
  %145 = vmatprep.mubr.f32.mxu0 %v18
  %146 = vmatmul.mubr.f32.gmra.mxu0 %v17
  %v147 = vpop.f32.mrf.mxu0
  %v148 = vadd.f32 %v64, %v147
  %v149 = vpop.f32.mrf.mxu0
  %150 = vmatprep.mubr.f32.mxu0 %v21
  %151 = vmatmul.mubr.f32.gmra.mxu0 %v20
  %v152 = vpop.f32.mrf.mxu0
  %v153 = vadd.f32 %v64, %v152
  %v154 = vpop.f32.mrf.mxu0
  %155 = vdwg.mxu0
  %156 = vmatprep.subr.mxu0 0.0
  %157 = vmatpush1.msra.mxu0 0.0
  %158 = vmatprep.subr.mxu0 0.0
  %159 = vmatpush1.msra.mxu0 0.0
  %160 = vmatprep.subr.mxu0 0.0
  %161 = vmatpush1.msra.mxu0 0.0
  %162 = vmatprep.subr.mxu0 0.0
  %163 = vmatpush1.msra.mxu0 0.0
  %164 = vmatprep.subr.mxu0 0.0
  %165 = vmatpush1.msra.mxu0 0.0
  %166 = vmatprep.subr.mxu0 0.0
  %167 = vmatpush1.msra.mxu0 0.0
  %168 = vmatprep.subr.mxu0 0.0
  %169 = vmatpush1.msra.mxu0 0.0
  %170 = vmatprep.subr.mxu0 0.0
  %171 = vmatpush1.msra.mxu0 0.0
  %172 = vmatprep.subr.mxu0 0.0
  %173 = vmatpush1.msra.mxu0 0.0
  %174 = vmatprep.subr.mxu0 0.0
  %175 = vmatpush1.msra.mxu0 0.0
  %176 = vmatprep.subr.mxu0 0.0
  %177 = vmatpush1.msra.mxu0 0.0
  %178 = vmatprep.subr.mxu0 0.0
  %179 = vmatpush1.msra.mxu0 0.0
  %180 = vmatprep.subr.mxu0 0.0
  %181 = vmatpush1.msra.mxu0 %v58
  %182 = vmatprep.subr.mxu0 0.0
  %183 = vmatpush1.msra.mxu0 %v57
  %184 = vmatprep.subr.mxu0 0.0
  %185 = vmatpush1.msra.mxu0 %v56
  %186 = vmatprep.subr.mxu0 0.0
  %187 = vmatpush1.msra.mxu0 %v55
  %188 = vmatprep.subr.mxu0 0.0
  %189 = vmatpush2.msra.mxu0 0.0
  %190 = vmatprep.subr.mxu0 0.0
  %191 = vmatpush2.msra.mxu0 0.0
  %192 = vmatprep.subr.mxu0 0.0
  %193 = vmatpush2.msra.mxu0 0.0
  %194 = vmatprep.subr.mxu0 0.0
  %195 = vmatpush2.msra.mxu0 0.0
  %196 = vmatprep.subr.mxu0 0.0
  %197 = vmatpush2.msra.mxu0 0.0
  %198 = vmatprep.subr.mxu0 0.0
  %199 = vmatpush2.msra.mxu0 0.0
  %200 = vmatprep.subr.mxu0 0.0
  %201 = vmatpush2.msra.mxu0 0.0
  %202 = vmatprep.subr.mxu0 0.0
  %203 = vmatpush2.msra.mxu0 0.0
  %204 = vmatprep.subr.mxu0 0.0
  %205 = vmatpush2.msra.mxu0 0.0
  %206 = vmatprep.subr.mxu0 0.0
  %207 = vmatpush2.msra.mxu0 0.0
  %208 = vmatprep.subr.mxu0 0.0
  %209 = vmatpush2.msra.mxu0 0.0
  %210 = vmatprep.subr.mxu0 0.0
  %211 = vmatpush2.msra.mxu0 0.0
  %212 = vmatprep.subr.mxu0 0.0
  %213 = vmatpush2.msra.mxu0 0.0
  %214 = vmatprep.subr.mxu0 0.0
  %215 = vmatpush2.msra.mxu0 0.0
  %216 = vmatprep.subr.mxu0 0.0
  %217 = vmatpush2.msra.mxu0 0.0
  %218 = vmatprep.subr.mxu0 0.0
  %219 = vmatpush2.msra.mxu0 0.0
  %220 = vmatprep.mubr.f32.mxu0 0.0
  %221 = vmatmul.mubr.f32.gmra.mxu0 %v68
  %v222 = vpop.f32.mrf.mxu0
  %v223 = vadd.f32 %v143, %v222
  %v224 = vpop.f32.mrf.mxu0
  %225 = vmatprep.mubr.f32.mxu0 0.0
  %226 = vmatmul.mubr.f32.gmra.mxu0 %v71
  %v227 = vpop.f32.mrf.mxu0
  %v228 = vadd.f32 %v148, %v227
  %v229 = vpop.f32.mrf.mxu0
  %230 = vmatprep.mubr.f32.mxu0 0.0
  %231 = vmatmul.mubr.f32.gmra.mxu0 %v74
  %v232 = vpop.f32.mrf.mxu0
  %v233 = vadd.f32 %v153, %v232
  %v234 = vpop.f32.mrf.mxu0
  %235 = vdwg.mxu0
  %v236 = vmax.f32 %v223, 0.0
  %v237 = vmax.f32 %v228, 0.0
  %v238 = vmax.f32 %v233, 0.0
  %239 = vst.msk [vmem:[%s3] sm:$0xff] %vm66, %v236
  %240 = vst.msk [vmem:[%s3 + $0x8] sm:$0xff] %vm66, %v237
  %vm241 = vcmask 254976
  %242 = vst.msk [vmem:[%s3 + $0x10] sm:$0x3] %vm241, %v238
  // Predicated region
  $region14: #{conformer_aed_forward.5} parent=0 // pred_check
    _
  $region15: #{conformer_aed_forward.5} parent=0 // pred_check_branch
    %244 = sbr.rel (0) target = $region17
  $region16: #{conformer_aed_forward.5} parent=0 // pred_region
    _
  $region17: #{conformer_aed_forward.5} parent=0 // pred_fallthru
    _
  // Predicated region
  $region18: #{conformer_aed_forward.5} parent=0 // pred_check
    _
  $region19: #{conformer_aed_forward.5} parent=0 // pred_check_branch
    %246 = sbr.rel (0) target = $region21
  $region20: #{conformer_aed_forward.5} parent=0 // pred_region
    _
  $region21: #{conformer_aed_forward.5} parent=0 // pred_fallthru
    _

// kernel: conformer_aed_forward.6
$region0: #{conformer_aed_forward.6}
  #allocation0 [shape = 'u32[]', space=smem, size = 0x4, offset = 0x4, fixed_abs, tag = 'smem constant byte address 0x4 - core index']
  #allocation1 [shape = 'u32[144,128]{1,0:T(1,128)}', space=vmem, size = 0x12000, scoped, tag = 'internal scratch']
  #allocation2 [shape = 'f32[3,32]{1,0:T(4,128)}', space=vmem, size = 0x800, scoped, tag = 'scratch operand']
  %s0 = inlined_call_operand.vmem [shape: f32[2,3,96], index: 0, kind: input, shape index: {}]
  %s1 = inlined_call_operand.vmem [shape: f32[96,32], index: 1, kind: input, shape index: {}]
  %s2 = inlined_call_operand.vmem [shape: f32[1,32], index: 2, kind: input, shape index: {}]
  %s3 = inlined_call_operand.vmem [shape: f32[3,32], index: 3, kind: input, shape index: {}]
  %s4 = inlined_call_operand.vmem [shape: f32[2,1,3], index: 4, kind: input, shape index: {}]
  %s5 = inlined_call_operand.vmem [shape: f32[2,3,1], index: 5, kind: input, shape index: {}]
  %s6 = inlined_call_operand.vmem [shape: f32[2,32,768], index: 6, kind: input, shape index: {}]
  %s7 = inlined_call_operand.vmem [shape: f32[2,128,32], index: 7, kind: input, shape index: {}]
  %s8 = inlined_call_operand.vmem [shape: f32[2,1,3584], index: 8, kind: input, shape index: {}]
  %s9 = inlined_call_operand.vmem [shape: f32[32,128], index: 9, kind: input, shape index: {}]
  %s10 = inlined_call_operand.vmem [shape: f32[1,128], index: 10, kind: input, shape index: {}]
  %s11 = inlined_call_operand.vmem [shape: f32[1,64], index: 11, kind: input, shape index: {}]
  %s12 = inlined_call_operand.vmem [shape: f32[2,3,32], index: 12, kind: output, shape index: {0}]
  %s13 = inlined_call_operand.vmem [shape: f32[2,3,128], index: 13, kind: output, shape index: {1}]
  %14 = xla_tuple %s12, %s13
  %s15 = sld [smem:[#allocation0]]
  $region97: #{conformer_aed_forward.6} parent=0
    _
  %s17 = ssub.s32 1, %s15
  %s18 = scalar_select 0, %s17, %s15
  loop: start=0, step=1, limit=6
  $region2: #{conformer_aed_forward.6} parent=0 // loop_pre_header
    _
  $region3: #{conformer_aed_forward.6} parent=0 // loop_header
    %s20 = sphi 0, %s24
    %p21 = scmp.ge.s32.totalorder %s20, 6
    %s27 = sphi 0, %s39
    %s28 = sphi 0, %s35
    %s29 = sphi 0, %s27
    %s30 = sphi 0, %s28
    %s31 = sphi 0, %s29
    %s32 = sphi 0, %s30
    %s42 = sphi 0, %s44
    %s45 = sphi 0, %s42
    %s46 = sphi 0, %s45
    %s62 = sphi 0, %s46
    %s66 = sphi 0, %s66
    %s68 = sphi 0, %s66
    %s69 = sphi 0, %s68
    %s83 = sphi 0, %s69
    %s87 = sphi 0, %s87
    %s89 = sphi 0, %s87
    %s90 = sphi 0, %s89
    %s104 = sphi 0, %s90
    %s108 = sphi 0, %s108
    %s110 = sphi 0, %s108
    %s111 = sphi 0, %s110
    %s125 = sphi 0, %s111
    %s131 = sphi 0, %s133
    %s134 = sphi 0, %s131
    %s135 = sphi 0, %s134
    %s151 = sphi 0, %s135
    %s157 = sphi 0, %s159
    %s160 = sphi 0, %s157
    %s161 = sphi 0, %s160
    %s177 = sphi 0, %s161
    %s183 = sphi 0, %s185
    %s186 = sphi 0, %s183
    %s187 = sphi 0, %s186
    %s203 = sphi 0, %s187
    %s209 = sphi 0, %s211
    %s212 = sphi 0, %s209
    %s213 = sphi 0, %s212
    %s229 = sphi 0, %s213
    %s235 = sphi 0, %s237
    %s238 = sphi 0, %s235
    %s239 = sphi 0, %s238
    %s255 = sphi 0, %s239
    %s259 = sphi 0, %s259
    %s261 = sphi 0, %s259
    %s262 = sphi 0, %s261
    %s276 = sphi 0, %s262
    %s280 = sphi 0, %s280
    %s282 = sphi 0, %s280
    %s283 = sphi 0, %s282
    %s297 = sphi 0, %s283
    %s301 = sphi 0, %s301
    %s303 = sphi 0, %s301
    %s304 = sphi 0, %s303
    %s318 = sphi 0, %s304
    %s324 = sphi 0, %s326
    %s327 = sphi 0, %s324
    %s328 = sphi 0, %s327
    %s344 = sphi 0, %s328
    %s350 = sphi 0, %s352
    %s353 = sphi 0, %s350
    %s354 = sphi 0, %s353
    %s370 = sphi 0, %s354
  $region4: #{conformer_aed_forward.6} parent=0 // loop_header_branch
    %23 = sbr.rel (%p21) target = $region8
  $region5: #{conformer_aed_forward.6} parent=0 // loop_body
    %s25 = ssub.s32 %s20, 1
    %s26 = ssub.s32 %s20, 2
    %s33 = sadd.s32 1, %s28
    %p34 = scmp.ge.s32.totalorder %s33, 2
    %s35 = scalar_select %p34, 0, %s33
    %s36 = sadd.s32 1, %s27
    %s37 = scalar_select %p34, %s36, %s27
    %p38 = scmp.ge.s32.totalorder %s37, 2
    %s39 = scalar_select %p38, 0, %s37
    %s40 = ssub.s32 %s27, %s39
    %p41 = scmp.eq.s32.totalorder %s40, 0
    %s43 = sadd.s32 %s42, 1
    %s44 = scalar_select %p41, %s42, %s43
    %p47 = pneg %p41
    %p48 = scmp.eq.s32.totalorder %s20, 3
    %p49 = por %p47, %p48
    %p50 = scmp.ne.s32.totalorder %s42, %s45
    %p51 = scmp.eq.s32.totalorder %s20, 0
    %p52 = por %p50, %p51
    %p53 = scmp.ne.s32.totalorder %s42, %s45
    %p54 = scmp.eq.s32.totalorder %s25, 3
    %p55 = por %p53, %p54
    %p56 = scmp.ne.s32.totalorder %s45, %s46
    %p57 = scmp.eq.s32.totalorder %s25, 0
    %p58 = por %p56, %p57
    %p59 = scmp.ne.s32.totalorder %s45, %s46
    %p60 = scmp.eq.s32.totalorder %s26, 3
    %p61 = por %p59, %p60
    %p63 = scmp.ne.s32.totalorder %s46, %s62
    %p64 = scmp.eq.s32.totalorder %s26, 0
    %p65 = por %p63, %p64
    %s67 = sadd.s32 %s66, 1
    %p70 = scmp.eq.s32.totalorder %s20, 3
    %p71 = scmp.ne.s32.totalorder %s66, %s68
    %p72 = scmp.eq.s32.totalorder %s20, 0
    %p73 = por %p71, %p72
    %p74 = scmp.ne.s32.totalorder %s66, %s68
    %p75 = scmp.eq.s32.totalorder %s25, 3
    %p76 = por %p74, %p75
    %p77 = scmp.ne.s32.totalorder %s68, %s69
    %p78 = scmp.eq.s32.totalorder %s25, 0
    %p79 = por %p77, %p78
    %p80 = scmp.ne.s32.totalorder %s68, %s69
    %p81 = scmp.eq.s32.totalorder %s26, 3
    %p82 = por %p80, %p81
    %p84 = scmp.ne.s32.totalorder %s69, %s83
    %p85 = scmp.eq.s32.totalorder %s26, 0
    %p86 = por %p84, %p85
    %s88 = sadd.s32 %s87, 1
    %p91 = scmp.eq.s32.totalorder %s20, 3
    %p92 = scmp.ne.s32.totalorder %s87, %s89
    %p93 = scmp.eq.s32.totalorder %s20, 0
    %p94 = por %p92, %p93
    %p95 = scmp.ne.s32.totalorder %s87, %s89
    %p96 = scmp.eq.s32.totalorder %s25, 3
    %p97 = por %p95, %p96
    %p98 = scmp.ne.s32.totalorder %s89, %s90
    %p99 = scmp.eq.s32.totalorder %s25, 0
    %p100 = por %p98, %p99
    %p101 = scmp.ne.s32.totalorder %s89, %s90
    %p102 = scmp.eq.s32.totalorder %s26, 3
    %p103 = por %p101, %p102
    %p105 = scmp.ne.s32.totalorder %s90, %s104
    %p106 = scmp.eq.s32.totalorder %s26, 0
    %p107 = por %p105, %p106
    %s109 = sadd.s32 %s108, 1
    %p112 = scmp.eq.s32.totalorder %s20, 3
    %p113 = scmp.ne.s32.totalorder %s108, %s110
    %p114 = scmp.eq.s32.totalorder %s20, 0
    %p115 = por %p113, %p114
    %p116 = scmp.ne.s32.totalorder %s108, %s110
    %p117 = scmp.eq.s32.totalorder %s25, 3
    %p118 = por %p116, %p117
    %p119 = scmp.ne.s32.totalorder %s110, %s111
    %p120 = scmp.eq.s32.totalorder %s25, 0
    %p121 = por %p119, %p120
    %p122 = scmp.ne.s32.totalorder %s110, %s111
    %p123 = scmp.eq.s32.totalorder %s26, 3
    %p124 = por %p122, %p123
    %p126 = scmp.ne.s32.totalorder %s111, %s125
    %p127 = scmp.eq.s32.totalorder %s26, 0
    %p128 = por %p126, %p127
    %s129 = ssub.s32 %s27, %s39
    %p130 = scmp.eq.s32.totalorder %s129, 0
    %s132 = sadd.s32 %s131, 1
    %s133 = scalar_select %p130, %s131, %s132
    %p136 = pneg %p130
    %p137 = scmp.eq.s32.totalorder %s20, 3
    %p138 = por %p136, %p137
    %p139 = scmp.ne.s32.totalorder %s131, %s134
    %p140 = scmp.eq.s32.totalorder %s20, 0
    %p141 = por %p139, %p140
    %p142 = scmp.ne.s32.totalorder %s131, %s134
    %p143 = scmp.eq.s32.totalorder %s25, 3
    %p144 = por %p142, %p143
    %p145 = scmp.ne.s32.totalorder %s134, %s135
    %p146 = scmp.eq.s32.totalorder %s25, 0
    %p147 = por %p145, %p146
    %p148 = scmp.ne.s32.totalorder %s134, %s135
    %p149 = scmp.eq.s32.totalorder %s26, 3
    %p150 = por %p148, %p149
    %p152 = scmp.ne.s32.totalorder %s135, %s151
    %p153 = scmp.eq.s32.totalorder %s26, 0
    %p154 = por %p152, %p153
    %s155 = ssub.s32 %s27, %s39
    %p156 = scmp.eq.s32.totalorder %s155, 0
    %s158 = sadd.s32 %s157, 1
    %s159 = scalar_select %p156, %s157, %s158
    %p162 = pneg %p156
    %p163 = scmp.eq.s32.totalorder %s20, 3
    %p164 = por %p162, %p163
    %p165 = scmp.ne.s32.totalorder %s157, %s160
    %p166 = scmp.eq.s32.totalorder %s20, 0
    %p167 = por %p165, %p166
    %p168 = scmp.ne.s32.totalorder %s157, %s160
    %p169 = scmp.eq.s32.totalorder %s25, 3
    %p170 = por %p168, %p169
    %p171 = scmp.ne.s32.totalorder %s160, %s161
    %p172 = scmp.eq.s32.totalorder %s25, 0
    %p173 = por %p171, %p172
    %p174 = scmp.ne.s32.totalorder %s160, %s161
    %p175 = scmp.eq.s32.totalorder %s26, 3
    %p176 = por %p174, %p175
    %p178 = scmp.ne.s32.totalorder %s161, %s177
    %p179 = scmp.eq.s32.totalorder %s26, 0
    %p180 = por %p178, %p179
    %s181 = ssub.s32 %s28, %s35
    %p182 = scmp.eq.s32.totalorder %s181, 0
    %s184 = sadd.s32 %s183, 1
    %s185 = scalar_select %p182, %s183, %s184
    %p188 = pneg %p182
    %p189 = scmp.eq.s32.totalorder %s20, 3
    %p190 = por %p188, %p189
    %p191 = scmp.ne.s32.totalorder %s183, %s186
    %p192 = scmp.eq.s32.totalorder %s20, 0
    %p193 = por %p191, %p192
    %p194 = scmp.ne.s32.totalorder %s183, %s186
    %p195 = scmp.eq.s32.totalorder %s25, 3
    %p196 = por %p194, %p195
    %p197 = scmp.ne.s32.totalorder %s186, %s187
    %p198 = scmp.eq.s32.totalorder %s25, 0
    %p199 = por %p197, %p198
    %p200 = scmp.ne.s32.totalorder %s186, %s187
    %p201 = scmp.eq.s32.totalorder %s26, 3
    %p202 = por %p200, %p201
    %p204 = scmp.ne.s32.totalorder %s187, %s203
    %p205 = scmp.eq.s32.totalorder %s26, 0
    %p206 = por %p204, %p205
    %s207 = ssub.s32 %s28, %s35
    %p208 = scmp.eq.s32.totalorder %s207, 0
    %s210 = sadd.s32 %s209, 1
    %s211 = scalar_select %p208, %s209, %s210
    %p214 = pneg %p208
    %p215 = scmp.eq.s32.totalorder %s20, 3
    %p216 = por %p214, %p215
    %p217 = scmp.ne.s32.totalorder %s209, %s212
    %p218 = scmp.eq.s32.totalorder %s20, 0
    %p219 = por %p217, %p218
    %p220 = scmp.ne.s32.totalorder %s209, %s212
    %p221 = scmp.eq.s32.totalorder %s25, 3
    %p222 = por %p220, %p221
    %p223 = scmp.ne.s32.totalorder %s212, %s213
    %p224 = scmp.eq.s32.totalorder %s25, 0
    %p225 = por %p223, %p224
    %p226 = scmp.ne.s32.totalorder %s212, %s213
    %p227 = scmp.eq.s32.totalorder %s26, 3
    %p228 = por %p226, %p227
    %p230 = scmp.ne.s32.totalorder %s213, %s229
    %p231 = scmp.eq.s32.totalorder %s26, 0
    %p232 = por %p230, %p231
    %s233 = ssub.s32 %s28, %s35
    %p234 = scmp.eq.s32.totalorder %s233, 0
    %s236 = sadd.s32 %s235, 1
    %s237 = scalar_select %p234, %s235, %s236
    %p240 = pneg %p234
    %p241 = scmp.eq.s32.totalorder %s20, 3
    %p242 = por %p240, %p241
    %p243 = scmp.ne.s32.totalorder %s235, %s238
    %p244 = scmp.eq.s32.totalorder %s20, 0
    %p245 = por %p243, %p244
    %p246 = scmp.ne.s32.totalorder %s235, %s238
    %p247 = scmp.eq.s32.totalorder %s25, 3
    %p248 = por %p246, %p247
    %p249 = scmp.ne.s32.totalorder %s238, %s239
    %p250 = scmp.eq.s32.totalorder %s25, 0
    %p251 = por %p249, %p250
    %p252 = scmp.ne.s32.totalorder %s238, %s239
    %p253 = scmp.eq.s32.totalorder %s26, 3
    %p254 = por %p252, %p253
    %p256 = scmp.ne.s32.totalorder %s239, %s255
    %p257 = scmp.eq.s32.totalorder %s26, 0
    %p258 = por %p256, %p257
    %s260 = sadd.s32 %s259, 1
    %p263 = scmp.eq.s32.totalorder %s20, 3
    %p264 = scmp.ne.s32.totalorder %s259, %s261
    %p265 = scmp.eq.s32.totalorder %s20, 0
    %p266 = por %p264, %p265
    %p267 = scmp.ne.s32.totalorder %s259, %s261
    %p268 = scmp.eq.s32.totalorder %s25, 3
    %p269 = por %p267, %p268
    %p270 = scmp.ne.s32.totalorder %s261, %s262
    %p271 = scmp.eq.s32.totalorder %s25, 0
    %p272 = por %p270, %p271
    %p273 = scmp.ne.s32.totalorder %s261, %s262
    %p274 = scmp.eq.s32.totalorder %s26, 3
    %p275 = por %p273, %p274
    %p277 = scmp.ne.s32.totalorder %s262, %s276
    %p278 = scmp.eq.s32.totalorder %s26, 0
    %p279 = por %p277, %p278
    %s281 = sadd.s32 %s280, 1
    %p284 = scmp.eq.s32.totalorder %s20, 3
    %p285 = scmp.ne.s32.totalorder %s280, %s282
    %p286 = scmp.eq.s32.totalorder %s20, 0
    %p287 = por %p285, %p286
    %p288 = scmp.ne.s32.totalorder %s280, %s282
    %p289 = scmp.eq.s32.totalorder %s25, 3
    %p290 = por %p288, %p289
    %p291 = scmp.ne.s32.totalorder %s282, %s283
    %p292 = scmp.eq.s32.totalorder %s25, 0
    %p293 = por %p291, %p292
    %p294 = scmp.ne.s32.totalorder %s282, %s283
    %p295 = scmp.eq.s32.totalorder %s26, 3
    %p296 = por %p294, %p295
    %p298 = scmp.ne.s32.totalorder %s283, %s297
    %p299 = scmp.eq.s32.totalorder %s26, 0
    %p300 = por %p298, %p299
    %s302 = sadd.s32 %s301, 1
    %p305 = scmp.eq.s32.totalorder %s20, 3
    %p306 = scmp.ne.s32.totalorder %s301, %s303
    %p307 = scmp.eq.s32.totalorder %s20, 0
    %p308 = por %p306, %p307
    %p309 = scmp.ne.s32.totalorder %s301, %s303
    %p310 = scmp.eq.s32.totalorder %s25, 3
    %p311 = por %p309, %p310
    %p312 = scmp.ne.s32.totalorder %s303, %s304
    %p313 = scmp.eq.s32.totalorder %s25, 0
    %p314 = por %p312, %p313
    %p315 = scmp.ne.s32.totalorder %s303, %s304
    %p316 = scmp.eq.s32.totalorder %s26, 3
    %p317 = por %p315, %p316
    %p319 = scmp.ne.s32.totalorder %s304, %s318
    %p320 = scmp.eq.s32.totalorder %s26, 0
    %p321 = por %p319, %p320
    %s322 = ssub.s32 %s27, %s39
    %p323 = scmp.eq.s32.totalorder %s322, 0
    %s325 = sadd.s32 %s324, 1
    %s326 = scalar_select %p323, %s324, %s325
    %p329 = pneg %p323
    %p330 = scmp.eq.s32.totalorder %s20, 3
    %p331 = por %p329, %p330
    %p332 = scmp.ne.s32.totalorder %s324, %s327
    %p333 = scmp.eq.s32.totalorder %s20, 0
    %p334 = por %p332, %p333
    %p335 = scmp.ne.s32.totalorder %s324, %s327
    %p336 = scmp.eq.s32.totalorder %s25, 3
    %p337 = por %p335, %p336
    %p338 = scmp.ne.s32.totalorder %s327, %s328
    %p339 = scmp.eq.s32.totalorder %s25, 0
    %p340 = por %p338, %p339
    %p341 = scmp.ne.s32.totalorder %s327, %s328
    %p342 = scmp.eq.s32.totalorder %s26, 3
    %p343 = por %p341, %p342
    %p345 = scmp.ne.s32.totalorder %s328, %s344
    %p346 = scmp.eq.s32.totalorder %s26, 0
    %p347 = por %p345, %p346
    %s348 = ssub.s32 %s27, %s39
    %p349 = scmp.eq.s32.totalorder %s348, 0
    %s351 = sadd.s32 %s350, 1
    %s352 = scalar_select %p349, %s350, %s351
    %p355 = pneg %p349
    %p356 = scmp.eq.s32.totalorder %s20, 3
    %p357 = por %p355, %p356
    %p358 = scmp.ne.s32.totalorder %s350, %s353
    %p359 = scmp.eq.s32.totalorder %s20, 0
    %p360 = por %p358, %p359
    %p361 = scmp.ne.s32.totalorder %s350, %s353
    %p362 = scmp.eq.s32.totalorder %s25, 3
    %p363 = por %p361, %p362
    %p364 = scmp.ne.s32.totalorder %s353, %s354
    %p365 = scmp.eq.s32.totalorder %s25, 0
    %p366 = por %p364, %p365
    %p367 = scmp.ne.s32.totalorder %s353, %s354
    %p368 = scmp.eq.s32.totalorder %s26, 3
    %p369 = por %p367, %p368
    %p371 = scmp.ne.s32.totalorder %s354, %s370
    %p372 = scmp.eq.s32.totalorder %s26, 0
    %p373 = por %p371, %p372
    %p374 = scmp.le.s32.totalorder 1, %s20
    %p375 = scmp.lt.s32.totalorder %s20, 5
    %p376 = pnand %p374, %p375
    %p377 = pneg %p376
    // Predicated region
    $region9: #{conformer_aed_forward.6} parent=5 // pred_check
      _
    $region10: #{conformer_aed_forward.6} parent=5 // pred_check_branch
      %379 = sbr.rel (%p376) target = $region12
    $region11: #{conformer_aed_forward.6} parent=5 // pred_region
      %s380 = ssub.s32 %s20, 1
      // Predicated region
      $region13: #{conformer_aed_forward.6} parent=11 // pred_check
        %p381 = pneg %p79
      $region14: #{conformer_aed_forward.6} parent=11 // pred_check_branch
        %383 = sbr.rel (%p381) target = $region16
      $region15: #{conformer_aed_forward.6} parent=11 // pred_region
        _
      $region16: #{conformer_aed_forward.6} parent=11 // pred_fallthru
        _
      // Predicated region
      $region17: #{conformer_aed_forward.6} parent=11 // pred_check
        %p384 = pneg %p100
      $region18: #{conformer_aed_forward.6} parent=11 // pred_check_branch
        %386 = sbr.rel (%p384) target = $region20
      $region19: #{conformer_aed_forward.6} parent=11 // pred_region
        _
      $region20: #{conformer_aed_forward.6} parent=11 // pred_fallthru
        _
      // Predicated region
      $region21: #{conformer_aed_forward.6} parent=11 // pred_check
        %p387 = pneg %p121
      $region22: #{conformer_aed_forward.6} parent=11 // pred_check_branch
        %389 = sbr.rel (%p387) target = $region24
      $region23: #{conformer_aed_forward.6} parent=11 // pred_region
        _
      $region24: #{conformer_aed_forward.6} parent=11 // pred_fallthru
        _
      // Predicated region
      $region25: #{conformer_aed_forward.6} parent=11 // pred_check
        %p390 = pneg %p272
      $region26: #{conformer_aed_forward.6} parent=11 // pred_check_branch
        %392 = sbr.rel (%p390) target = $region28
      $region27: #{conformer_aed_forward.6} parent=11 // pred_region
        _
      $region28: #{conformer_aed_forward.6} parent=11 // pred_fallthru
        _
      // Predicated region
      $region29: #{conformer_aed_forward.6} parent=11 // pred_check
        %p393 = pneg %p293
      $region30: #{conformer_aed_forward.6} parent=11 // pred_check_branch
        %395 = sbr.rel (%p393) target = $region32
      $region31: #{conformer_aed_forward.6} parent=11 // pred_region
        _
      $region32: #{conformer_aed_forward.6} parent=11 // pred_fallthru
        _
      // Predicated region
      $region33: #{conformer_aed_forward.6} parent=11 // pred_check
        %p396 = pneg %p314
      $region34: #{conformer_aed_forward.6} parent=11 // pred_check_branch
        %398 = sbr.rel (%p396) target = $region36
      $region35: #{conformer_aed_forward.6} parent=11 // pred_region
        _
      $region36: #{conformer_aed_forward.6} parent=11 // pred_fallthru
        _
    $region12: #{conformer_aed_forward.6} parent=5 // pred_fallthru
      _
    %p399 = scmp.lt.s32.totalorder %s20, 4
    // Predicated region
    $region37: #{conformer_aed_forward.6} parent=5 // pred_check
      %p400 = pneg %p399
    $region38: #{conformer_aed_forward.6} parent=5 // pred_check_branch
      %402 = sbr.rel (%p400) target = $region40
    $region39: #{conformer_aed_forward.6} parent=5 // pred_region
      // Predicated region
      $region41: #{conformer_aed_forward.6} parent=39 // pred_check
        %p403 = pneg %p52
      $region42: #{conformer_aed_forward.6} parent=39 // pred_check_branch
        %405 = sbr.rel (%p403) target = $region44
      $region43: #{conformer_aed_forward.6} parent=39 // pred_region
        %p406 = scmp.lt.s32.totalorder %s27, 1
        %s407 = scalar_select %p406, %s27, 1
        %s408 = smul.addr %s407, 4
        %s409 = scalar_lea.vmem %s0, %s408
      $region44: #{conformer_aed_forward.6} parent=39 // pred_fallthru
        _
      // Predicated region
      $region45: #{conformer_aed_forward.6} parent=39 // pred_check
        %p410 = pneg %p141
      $region46: #{conformer_aed_forward.6} parent=39 // pred_check_branch
        %412 = sbr.rel (%p410) target = $region48
      $region47: #{conformer_aed_forward.6} parent=39 // pred_region
        %p413 = scmp.lt.s32.totalorder %s27, 1
        %s414 = scalar_select %p413, %s27, 1
        %s415 = scalar_lea.vmem %s4, %s414
      $region48: #{conformer_aed_forward.6} parent=39 // pred_fallthru
        _
      // Predicated region
      $region49: #{conformer_aed_forward.6} parent=39 // pred_check
        %p416 = pneg %p167
      $region50: #{conformer_aed_forward.6} parent=39 // pred_check_branch
        %418 = sbr.rel (%p416) target = $region52
      $region51: #{conformer_aed_forward.6} parent=39 // pred_region
        %p419 = scmp.lt.s32.totalorder %s27, 1
        %s420 = scalar_select %p419, %s27, 1
        %s421 = smul.addr %s420, 4
        %s422 = scalar_lea.vmem %s5, %s421
      $region52: #{conformer_aed_forward.6} parent=39 // pred_fallthru
        _
      // Predicated region
      $region53: #{conformer_aed_forward.6} parent=39 // pred_check
        %p423 = pneg %p193
      $region54: #{conformer_aed_forward.6} parent=39 // pred_check_branch
        %425 = sbr.rel (%p423) target = $region56
      $region55: #{conformer_aed_forward.6} parent=39 // pred_region
        %p426 = scmp.lt.s32.totalorder %s28, 1
        %s427 = scalar_select %p426, %s28, 1
        %s428 = smul.addr %s427, 24
        %s429 = smul.addr %s428, 8
        %s430 = scalar_lea.vmem %s6, %s429
      $region56: #{conformer_aed_forward.6} parent=39 // pred_fallthru
        _
      // Predicated region
      $region57: #{conformer_aed_forward.6} parent=39 // pred_check
        %p431 = pneg %p219
      $region58: #{conformer_aed_forward.6} parent=39 // pred_check_branch
        %433 = sbr.rel (%p431) target = $region60
      $region59: #{conformer_aed_forward.6} parent=39 // pred_region
        %p434 = scmp.lt.s32.totalorder %s28, 1
        %s435 = scalar_select %p434, %s28, 1
        %s436 = smul.addr %s435, 16
        %s437 = smul.addr %s436, 8
        %s438 = scalar_lea.vmem %s7, %s437
      $region60: #{conformer_aed_forward.6} parent=39 // pred_fallthru
        _
      // Predicated region
      $region61: #{conformer_aed_forward.6} parent=39 // pred_check
        %p439 = pneg %p245
      $region62: #{conformer_aed_forward.6} parent=39 // pred_check_branch
        %441 = sbr.rel (%p439) target = $region64
      $region63: #{conformer_aed_forward.6} parent=39 // pred_region
        %p442 = scmp.lt.s32.totalorder %s28, 1
        %s443 = scalar_select %p442, %s28, 1
        %s444 = smul.addr %s443, 28
        %s445 = scalar_lea.vmem %s8, %s444
      $region64: #{conformer_aed_forward.6} parent=39 // pred_fallthru
        _
    $region40: #{conformer_aed_forward.6} parent=5 // pred_fallthru
      _
    %p446 = scmp.le.s32.totalorder 1, %s20
    %p447 = scmp.lt.s32.totalorder %s20, 5
    %p448 = pnand %p446, %p447
    %p449 = pneg %p448
    // Predicated region
    $region65: #{conformer_aed_forward.6} parent=5 // pred_check
      _
    $region66: #{conformer_aed_forward.6} parent=5 // pred_check_branch
      %451 = sbr.rel (%p448) target = $region68
    $region67: #{conformer_aed_forward.6} parent=5 // pred_region
      %s452 = ssub.s32 %s20, 1
      %p453 = scmp.lt.s32.totalorder %s29, 1
      %s454 = scalar_select %p453, %s29, 1
      %s455 = smul.addr %s454, 4
      %s456 = scalar_lea.vmem %s0, %s455
      %p457 = pneg %p58
      %p458 = pneg %p55
      %p459 = pneg %p79
      %p460 = pneg %p76
      %p461 = pneg %p100
      %p462 = pneg %p97
      %p463 = pneg %p121
      %p464 = pneg %p118
      %p465 = scmp.lt.s32.totalorder %s29, 1
      %s466 = scalar_select %p465, %s29, 1
      %s467 = scalar_lea.vmem %s4, %s466
      %p468 = pneg %p147
      %p469 = pneg %p144
      %p470 = scmp.lt.s32.totalorder %s29, 1
      %s471 = scalar_select %p470, %s29, 1
      %s472 = smul.addr %s471, 4
      %s473 = scalar_lea.vmem %s5, %s472
      %p474 = pneg %p173
      %p475 = pneg %p170
      %p476 = scmp.lt.s32.totalorder %s30, 1
      %s477 = scalar_select %p476, %s30, 1
      %s478 = smul.addr %s477, 24
      %s479 = smul.addr %s478, 8
      %s480 = scalar_lea.vmem %s6, %s479
      %p481 = pneg %p199
      %p482 = pneg %p196
      %p483 = scmp.lt.s32.totalorder %s30, 1
      %s484 = scalar_select %p483, %s30, 1
      %s485 = smul.addr %s484, 16
      %s486 = smul.addr %s485, 8
      %s487 = scalar_lea.vmem %s7, %s486
      %p488 = pneg %p225
      %p489 = pneg %p222
      %p490 = scmp.lt.s32.totalorder %s30, 1
      %s491 = scalar_select %p490, %s30, 1
      %s492 = smul.addr %s491, 28
      %s493 = scalar_lea.vmem %s8, %s492
      %p494 = pneg %p251
      %p495 = pneg %p248
      %p496 = pneg %p272
      %p497 = pneg %p269
      %p498 = pneg %p293
      %p499 = pneg %p290
      %p500 = pneg %p314
      %p501 = pneg %p311
      %p502 = pneg %p340
      %p503 = pneg %p337
      %p504 = scmp.lt.s32.totalorder %s29, 1
      %s505 = scalar_select %p504, %s29, 1
      %s506 = smul.addr %s505, 4
      %s507 = scalar_lea.vmem %s12, %s506
      %p508 = pneg %p366
      %p509 = pneg %p363
      %p510 = scmp.lt.s32.totalorder %s29, 1
      %s511 = scalar_select %p510, %s29, 1
      %s512 = smul.addr %s511, 4
      %s513 = scalar_lea.vmem %s13, %s512
      %p514 = scmp.lt.s32.totalorder %s29, 1
      %s515 = scalar_select %p514, %s29, 1
      %s516 = smul.addr %s515, 4
      %s517 = scalar_lea.vmem %s0, %s516
      %p518 = scmp.lt.s32.totalorder %s29, 1
      %s519 = scalar_select %p518, %s29, 1
      %s520 = scalar_lea.vmem %s4, %s519
      %p521 = scmp.lt.s32.totalorder %s29, 1
      %s522 = scalar_select %p521, %s29, 1
      %s523 = smul.addr %s522, 4
      %s524 = scalar_lea.vmem %s5, %s523
      %p525 = scmp.lt.s32.totalorder %s30, 1
      %s526 = scalar_select %p525, %s30, 1
      %s527 = smul.addr %s526, 24
      %s528 = smul.addr %s527, 8
      %s529 = scalar_lea.vmem %s6, %s528
      %p530 = scmp.lt.s32.totalorder %s30, 1
      %s531 = scalar_select %p530, %s30, 1
      %s532 = smul.addr %s531, 16
      %s533 = smul.addr %s532, 8
      %s534 = scalar_lea.vmem %s7, %s533
      %p535 = scmp.lt.s32.totalorder %s30, 1
      %s536 = scalar_select %p535, %s30, 1
      %s537 = smul.addr %s536, 28
      %s538 = scalar_lea.vmem %s8, %s537
      %p539 = scmp.lt.s32.totalorder %s29, 1
      %s540 = scalar_select %p539, %s29, 1
      %s541 = smul.addr %s540, 4
      %s542 = scalar_lea.vmem %s12, %s541
      %p543 = scmp.lt.s32.totalorder %s29, 1
      %s544 = scalar_select %p543, %s29, 1
      %s545 = smul.addr %s544, 4
      %s546 = scalar_lea.vmem %s13, %s545
      %p547 = scmp.eq.s32.totalorder %s30, 0
      // Predicated region
      $region69: #{conformer_aed_forward.6} parent=67 // pred_check
        %p548 = pneg %p547
      $region70: #{conformer_aed_forward.6} parent=67 // pred_check_branch
        %550 = sbr.rel (%p548) target = $region72
      $region71: #{conformer_aed_forward.6} parent=67 // pred_region
        %v551 = vld [vmem:[%s517] sm:$0x7]
        %v552 = vld [vmem:[%s1] sm:$0xff]
        %v553 = vld [vmem:[%s1 + $0x8] sm:$0xff]
        %v554 = vld [vmem:[%s1 + $0x10] sm:$0xff]
        %v555 = vld [vmem:[%s1 + $0x18] sm:$0xff]
        %v556 = vld [vmem:[%s1 + $0x20] sm:$0xff]
        %v557 = vld [vmem:[%s1 + $0x28] sm:$0xff]
        %v558 = vld [vmem:[%s1 + $0x30] sm:$0xff]
        %v559 = vld [vmem:[%s1 + $0x38] sm:$0xff]
        %v560 = vld [vmem:[%s1 + $0x40] sm:$0xff]
        %v561 = vld [vmem:[%s1 + $0x48] sm:$0xff]
        %v562 = vld [vmem:[%s1 + $0x50] sm:$0xff]
        %v563 = vld [vmem:[%s1 + $0x58] sm:$0xff]
        %v564 = vld [vmem:[%s2] sm:$0x1]
        %v566 = vlaneseq
        %v567 = vshrl.u32 %v566, 7
        %v568 = vsub.s32 0, %v567
        %v569 = vrot.slane %v564, %v568
        %vm571 = vcmask 785408
        %v573 = vsel %vm571, %v551, 0
        %575 = vmatprep.subr.mxu0 0.0
        %576 = vmatpush1.msra.mxu0 0.0
        %577 = vmatprep.subr.mxu0 0.0
        %578 = vmatpush1.msra.mxu0 0.0
        %579 = vmatprep.subr.mxu0 0.0
        %580 = vmatpush1.msra.mxu0 0.0
        %581 = vmatprep.subr.mxu0 0.0
        %582 = vmatpush1.msra.mxu0 0.0
        %583 = vmatprep.subr.mxu0 0.0
        %584 = vmatpush1.msra.mxu0 %v563
        %585 = vmatprep.subr.mxu0 0.0
        %586 = vmatpush1.msra.mxu0 %v562
        %587 = vmatprep.subr.mxu0 0.0
        %588 = vmatpush1.msra.mxu0 %v561
        %589 = vmatprep.subr.mxu0 0.0
        %590 = vmatpush1.msra.mxu0 %v560
        %591 = vmatprep.subr.mxu0 0.0
        %592 = vmatpush1.msra.mxu0 %v559
        %593 = vmatprep.subr.mxu0 0.0
        %594 = vmatpush1.msra.mxu0 %v558
        %595 = vmatprep.subr.mxu0 0.0
        %596 = vmatpush1.msra.mxu0 %v557
        %597 = vmatprep.subr.mxu0 0.0
        %598 = vmatpush1.msra.mxu0 %v556
        %599 = vmatprep.subr.mxu0 0.0
        %600 = vmatpush1.msra.mxu0 %v555
        %601 = vmatprep.subr.mxu0 0.0
        %602 = vmatpush1.msra.mxu0 %v554
        %603 = vmatprep.subr.mxu0 0.0
        %604 = vmatpush1.msra.mxu0 %v553
        %605 = vmatprep.subr.mxu0 0.0
        %606 = vmatpush1.msra.mxu0 %v552
        %607 = vmatprep.subr.mxu0 0.0
        %608 = vmatpush2.msra.mxu0 0.0
        %609 = vmatprep.subr.mxu0 0.0
        %610 = vmatpush2.msra.mxu0 0.0
        %611 = vmatprep.subr.mxu0 0.0
        %612 = vmatpush2.msra.mxu0 0.0
        %613 = vmatprep.subr.mxu0 0.0
        %614 = vmatpush2.msra.mxu0 0.0
        %615 = vmatprep.subr.mxu0 0.0
        %616 = vmatpush2.msra.mxu0 0.0
        %617 = vmatprep.subr.mxu0 0.0
        %618 = vmatpush2.msra.mxu0 0.0
        %619 = vmatprep.subr.mxu0 0.0
        %620 = vmatpush2.msra.mxu0 0.0
        %621 = vmatprep.subr.mxu0 0.0
        %622 = vmatpush2.msra.mxu0 0.0
        %623 = vmatprep.subr.mxu0 0.0
        %624 = vmatpush2.msra.mxu0 0.0
        %625 = vmatprep.subr.mxu0 0.0
        %626 = vmatpush2.msra.mxu0 0.0
        %627 = vmatprep.subr.mxu0 0.0
        %628 = vmatpush2.msra.mxu0 0.0
        %629 = vmatprep.subr.mxu0 0.0
        %630 = vmatpush2.msra.mxu0 0.0
        %631 = vmatprep.subr.mxu0 0.0
        %632 = vmatpush2.msra.mxu0 0.0
        %633 = vmatprep.subr.mxu0 0.0
        %634 = vmatpush2.msra.mxu0 0.0
        %635 = vmatprep.subr.mxu0 0.0
        %636 = vmatpush2.msra.mxu0 0.0
        %637 = vmatprep.subr.mxu0 0.0
        %638 = vmatpush2.msra.mxu0 0.0
        %639 = vmatprep.mubr.f32.mxu0 0.0
        %640 = vmatmul.mubr.f32.gmra.mxu0 %v573
        %v641 = vpop.f32.mrf.mxu0
        %v642 = vadd.f32 %v569, %v641
        %v643 = vpop.f32.mrf.mxu0
        %644 = vdwg.mxu0
        %v645 = vmul.f32 %v642, 5.656854
        %v646 = vld [vmem:[%s3] sm:$0x7]
        %v647 = vadd.f32 %v645, %v646
        %vm648 = vcmask 256000
        %649 = vst.msk [vmem:[#allocation2] sm:$0x7] %vm648, %v647
      $region72: #{conformer_aed_forward.6} parent=67 // pred_fallthru
        _
      %v650 = vld [vmem:[#allocation2] sm:$0x7]
      %v651 = vld [vmem:[%s520] sm:$0x1]
      %v652 = vld [vmem:[%s524] sm:$0x7]
      %v653 = vld [vmem:[%s538 + $0x9] sm:$0x1]
      %v654 = vld [vmem:[%s538 + $0xf] sm:$0x1]
      %vm655 = vcmask 256000
      %v656 = vsel %vm655, %v650, 0.0
      %657 = vadd.xlane.f32.xlu0 %v656
      %v658 = vpop.xlane.xlu0 %657
      %v659 = vrcp.pop 32.0
      %v660 = vmul.f32 %v658, %v659
      %v661 = vsub.f32 %v650, %v660
      %v662 = vmul.f32 %v661, %v661
      %v663 = vsel %vm655, %v662, 0.0
      %664 = vadd.xlane.f32.xlu0 %v663
      %v665 = vpop.xlane.xlu0 %664
      %v666 = vmul.f32 %v665, %v659
      %v667 = vadd.f32 %v666, 1e-05
      %v668 = vrsqrt.pop %v667
      %v669 = vmul.f32 %v661, %v668
      %v671 = vlaneseq
      %v672 = vshrl.u32 %v671, 7
      %v673 = vsub.s32 0, %v672
      %v674 = vrot.slane %v653, %v673
      %v676 = vmul.f32 %v669, %v674
      %v678 = vlaneseq
      %v679 = vshrl.u32 %v678, 7
      %v680 = vsub.s32 0, %v679
      %v681 = vrot.slane %v654, %v680
      %v683 = vadd.f32 %v676, %v681
      %v684 = vld [vmem:[%s529] sm:$0xff]
      %v685 = vld [vmem:[%s529 + $0x30] sm:$0xff]
      %v686 = vld [vmem:[%s529 + $0x60] sm:$0xff]
      %v687 = vld [vmem:[%s529 + $0x90] sm:$0xff]
      %v688 = vld [vmem:[%s538] sm:$0x1]
      %v690 = vlaneseq
      %v691 = vshrl.u32 %v690, 7
      %v692 = vsub.s32 0, %v691
      %v693 = vrot.slane %v688, %v692
      %vm695 = vcmask 261120
      %v697 = vsel %vm695, %v683, 0
      %699 = vmatprep.subr.mxu0 0.0
      %700 = vmatpush1.msra.mxu0 0.0
      %701 = vmatprep.subr.mxu0 0.0
      %702 = vmatpush1.msra.mxu0 0.0
      %703 = vmatprep.subr.mxu0 0.0
      %704 = vmatpush1.msra.mxu0 0.0
      %705 = vmatprep.subr.mxu0 0.0
      %706 = vmatpush1.msra.mxu0 0.0
      %707 = vmatprep.subr.mxu0 0.0
      %708 = vmatpush1.msra.mxu0 0.0
      %709 = vmatprep.subr.mxu0 0.0
      %710 = vmatpush1.msra.mxu0 0.0
      %711 = vmatprep.subr.mxu0 0.0
      %712 = vmatpush1.msra.mxu0 0.0
      %713 = vmatprep.subr.mxu0 0.0
      %714 = vmatpush1.msra.mxu0 0.0
      %715 = vmatprep.subr.mxu0 0.0
      %716 = vmatpush1.msra.mxu0 0.0
      %717 = vmatprep.subr.mxu0 0.0
      %718 = vmatpush1.msra.mxu0 0.0
      %719 = vmatprep.subr.mxu0 0.0
      %720 = vmatpush1.msra.mxu0 0.0
      %721 = vmatprep.subr.mxu0 0.0
      %722 = vmatpush1.msra.mxu0 0.0
      %723 = vmatprep.subr.mxu0 0.0
      %724 = vmatpush1.msra.mxu0 %v687
      %725 = vmatprep.subr.mxu0 0.0
      %726 = vmatpush1.msra.mxu0 %v686
      %727 = vmatprep.subr.mxu0 0.0
      %728 = vmatpush1.msra.mxu0 %v685
      %729 = vmatprep.subr.mxu0 0.0
      %730 = vmatpush1.msra.mxu0 %v684
      %731 = vmatprep.subr.mxu0 0.0
      %732 = vmatpush2.msra.mxu0 0.0
      %733 = vmatprep.subr.mxu0 0.0
      %734 = vmatpush2.msra.mxu0 0.0
      %735 = vmatprep.subr.mxu0 0.0
      %736 = vmatpush2.msra.mxu0 0.0
      %737 = vmatprep.subr.mxu0 0.0
      %738 = vmatpush2.msra.mxu0 0.0
      %739 = vmatprep.subr.mxu0 0.0
      %740 = vmatpush2.msra.mxu0 0.0
      %741 = vmatprep.subr.mxu0 0.0
      %742 = vmatpush2.msra.mxu0 0.0
      %743 = vmatprep.subr.mxu0 0.0
      %744 = vmatpush2.msra.mxu0 0.0
      %745 = vmatprep.subr.mxu0 0.0
      %746 = vmatpush2.msra.mxu0 0.0
      %747 = vmatprep.subr.mxu0 0.0
      %748 = vmatpush2.msra.mxu0 0.0
      %749 = vmatprep.subr.mxu0 0.0
      %750 = vmatpush2.msra.mxu0 0.0
      %751 = vmatprep.subr.mxu0 0.0
      %752 = vmatpush2.msra.mxu0 0.0
      %753 = vmatprep.subr.mxu0 0.0
      %754 = vmatpush2.msra.mxu0 0.0
      %755 = vmatprep.subr.mxu0 0.0
      %756 = vmatpush2.msra.mxu0 0.0
      %757 = vmatprep.subr.mxu0 0.0
      %758 = vmatpush2.msra.mxu0 0.0
      %759 = vmatprep.subr.mxu0 0.0
      %760 = vmatpush2.msra.mxu0 0.0
      %761 = vmatprep.subr.mxu0 0.0
      %762 = vmatpush2.msra.mxu0 0.0
      %763 = vmatprep.mubr.f32.mxu0 0.0
      %764 = vmatmul.mubr.f32.gmra.mxu0 %v697
      %v765 = vpop.f32.mrf.mxu0
      %v766 = vadd.f32 %v693, %v765
      %v767 = vpop.f32.mrf.mxu0
      %768 = vdwg.mxu0
      %v769 = vxor.u32 %v766, 2147483648
      %v770 = vmul.f32 %v769, 1.442695
      %v771 = vpow.pop %v770
      %v772 = vadd.f32 %v771, 1.0
      %v773 = vrcp.pop %v772
      %v774 = vmul.f32 1.0, %v773
      %v775 = vmul.f32 %v766, %v774
      %v776 = vld [vmem:[%s534] sm:$0xff]
      %v777 = vld [vmem:[%s534 + $0x8] sm:$0xff]
      %v778 = vld [vmem:[%s534 + $0x10] sm:$0xff]
      %v779 = vld [vmem:[%s534 + $0x18] sm:$0xff]
      %v780 = vld [vmem:[%s534 + $0x20] sm:$0xff]
      %v781 = vld [vmem:[%s534 + $0x28] sm:$0xff]
      %v782 = vld [vmem:[%s534 + $0x30] sm:$0xff]
      %v783 = vld [vmem:[%s534 + $0x38] sm:$0xff]
      %v784 = vld [vmem:[%s538 + $0x6] sm:$0x1]
      %v786 = vlaneseq
      %v787 = vshrl.u32 %v786, 7
      %v788 = vsub.s32 0, %v787
      %v789 = vrot.slane %v784, %v788
      %vm791 = vcmask 523264
      %v793 = vsel %vm791, %v775, 0
      %795 = vmatprep.subr.mxu0 0.0
      %796 = vmatpush1.msra.mxu0 0.0
      %797 = vmatprep.subr.mxu0 0.0
      %798 = vmatpush1.msra.mxu0 0.0
      %799 = vmatprep.subr.mxu0 0.0
      %800 = vmatpush1.msra.mxu0 0.0
      %801 = vmatprep.subr.mxu0 0.0
      %802 = vmatpush1.msra.mxu0 0.0
      %803 = vmatprep.subr.mxu0 0.0
      %804 = vmatpush1.msra.mxu0 0.0
      %805 = vmatprep.subr.mxu0 0.0
      %806 = vmatpush1.msra.mxu0 0.0
      %807 = vmatprep.subr.mxu0 0.0
      %808 = vmatpush1.msra.mxu0 0.0
      %809 = vmatprep.subr.mxu0 0.0
      %810 = vmatpush1.msra.mxu0 0.0
      %811 = vmatprep.subr.mxu0 0.0
      %812 = vmatpush1.msra.mxu0 %v783
      %813 = vmatprep.subr.mxu0 0.0
      %814 = vmatpush1.msra.mxu0 %v782
      %815 = vmatprep.subr.mxu0 0.0
      %816 = vmatpush1.msra.mxu0 %v781
      %817 = vmatprep.subr.mxu0 0.0
      %818 = vmatpush1.msra.mxu0 %v780
      %819 = vmatprep.subr.mxu0 0.0
      %820 = vmatpush1.msra.mxu0 %v779
      %821 = vmatprep.subr.mxu0 0.0
      %822 = vmatpush1.msra.mxu0 %v778
      %823 = vmatprep.subr.mxu0 0.0
      %824 = vmatpush1.msra.mxu0 %v777
      %825 = vmatprep.subr.mxu0 0.0
      %826 = vmatpush1.msra.mxu0 %v776
      %827 = vmatprep.subr.mxu0 0.0
      %828 = vmatpush2.msra.mxu0 0.0
      %829 = vmatprep.subr.mxu0 0.0
      %830 = vmatpush2.msra.mxu0 0.0
      %831 = vmatprep.subr.mxu0 0.0
      %832 = vmatpush2.msra.mxu0 0.0
      %833 = vmatprep.subr.mxu0 0.0
      %834 = vmatpush2.msra.mxu0 0.0
      %835 = vmatprep.subr.mxu0 0.0
      %836 = vmatpush2.msra.mxu0 0.0
      %837 = vmatprep.subr.mxu0 0.0
      %838 = vmatpush2.msra.mxu0 0.0
      %839 = vmatprep.subr.mxu0 0.0
      %840 = vmatpush2.msra.mxu0 0.0
      %841 = vmatprep.subr.mxu0 0.0
      %842 = vmatpush2.msra.mxu0 0.0
      %843 = vmatprep.subr.mxu0 0.0
      %844 = vmatpush2.msra.mxu0 0.0
      %845 = vmatprep.subr.mxu0 0.0
      %846 = vmatpush2.msra.mxu0 0.0
      %847 = vmatprep.subr.mxu0 0.0
      %848 = vmatpush2.msra.mxu0 0.0
      %849 = vmatprep.subr.mxu0 0.0
      %850 = vmatpush2.msra.mxu0 0.0
      %851 = vmatprep.subr.mxu0 0.0
      %852 = vmatpush2.msra.mxu0 0.0
      %853 = vmatprep.subr.mxu0 0.0
      %854 = vmatpush2.msra.mxu0 0.0
      %855 = vmatprep.subr.mxu0 0.0
      %856 = vmatpush2.msra.mxu0 0.0
      %857 = vmatprep.subr.mxu0 0.0
      %858 = vmatpush2.msra.mxu0 0.0
      %859 = vmatprep.mubr.f32.mxu0 0.0
      %860 = vmatmul.mubr.f32.gmra.mxu0 %v793
      %v861 = vpop.f32.mrf.mxu0
      %v862 = vadd.f32 %v789, %v861
      %v863 = vpop.f32.mrf.mxu0
      %864 = vdwg.mxu0
      %v865 = vmul.f32 %v862, 0.5
      %v866 = vadd.f32 %v650, %v865
      %v867 = vld [vmem:[%s538 + $0xa] sm:$0x1]
      %v868 = vld [vmem:[%s538 + $0x10] sm:$0x1]
      %v869 = vsel %vm655, %v866, 0.0
      %870 = vadd.xlane.f32.xlu0 %v869
      %v871 = vpop.xlane.xlu0 %870
      %v872 = vmul.f32 %v871, %v659
      %v873 = vsub.f32 %v866, %v872
      %v874 = vmul.f32 %v873, %v873
      %v875 = vsel %vm655, %v874, 0.0
      %876 = vadd.xlane.f32.xlu0 %v875
      %v877 = vpop.xlane.xlu0 %876
      %v878 = vmul.f32 %v877, %v659
      %v879 = vadd.f32 %v878, 1e-05
      %v880 = vrsqrt.pop %v879
      %v881 = vmul.f32 %v873, %v880
      %v883 = vlaneseq
      %v884 = vshrl.u32 %v883, 7
      %v885 = vsub.s32 0, %v884
      %v886 = vrot.slane %v867, %v885
      %v888 = vmul.f32 %v881, %v886
      %v890 = vlaneseq
      %v891 = vshrl.u32 %v890, 7
      %v892 = vsub.s32 0, %v891
      %v893 = vrot.slane %v868, %v892
      %v895 = vadd.f32 %v888, %v893
      %v896 = vld [vmem:[%s529 + $0x10] sm:$0xff]
      %v897 = vld [vmem:[%s529 + $0x40] sm:$0xff]
      %v898 = vld [vmem:[%s529 + $0x70] sm:$0xff]
      %v899 = vld [vmem:[%s529 + $0xa0] sm:$0xff]
      %v900 = vld [vmem:[%s538 + $0x2] sm:$0x1]
      %v902 = vlaneseq
      %v903 = vshrl.u32 %v902, 7
      %v904 = vsub.s32 0, %v903
      %v905 = vrot.slane %v900, %v904
      %v908 = vsel %vm695, %v895, 0
      %910 = vmatprep.subr.mxu0 0.0
      %911 = vmatpush1.msra.mxu0 0.0
      %912 = vmatprep.subr.mxu0 0.0
      %913 = vmatpush1.msra.mxu0 0.0
      %914 = vmatprep.subr.mxu0 0.0
      %915 = vmatpush1.msra.mxu0 0.0
      %916 = vmatprep.subr.mxu0 0.0
      %917 = vmatpush1.msra.mxu0 0.0
      %918 = vmatprep.subr.mxu0 0.0
      %919 = vmatpush1.msra.mxu0 0.0
      %920 = vmatprep.subr.mxu0 0.0
      %921 = vmatpush1.msra.mxu0 0.0
      %922 = vmatprep.subr.mxu0 0.0
      %923 = vmatpush1.msra.mxu0 0.0
      %924 = vmatprep.subr.mxu0 0.0
      %925 = vmatpush1.msra.mxu0 0.0
      %926 = vmatprep.subr.mxu0 0.0
      %927 = vmatpush1.msra.mxu0 0.0
      %928 = vmatprep.subr.mxu0 0.0
      %929 = vmatpush1.msra.mxu0 0.0
      %930 = vmatprep.subr.mxu0 0.0
      %931 = vmatpush1.msra.mxu0 0.0
      %932 = vmatprep.subr.mxu0 0.0
      %933 = vmatpush1.msra.mxu0 0.0
      %934 = vmatprep.subr.mxu0 0.0
      %935 = vmatpush1.msra.mxu0 %v899
      %936 = vmatprep.subr.mxu0 0.0
      %937 = vmatpush1.msra.mxu0 %v898
      %938 = vmatprep.subr.mxu0 0.0
      %939 = vmatpush1.msra.mxu0 %v897
      %940 = vmatprep.subr.mxu0 0.0
      %941 = vmatpush1.msra.mxu0 %v896
      %942 = vmatprep.subr.mxu0 0.0
      %943 = vmatpush2.msra.mxu0 0.0
      %944 = vmatprep.subr.mxu0 0.0
      %945 = vmatpush2.msra.mxu0 0.0
      %946 = vmatprep.subr.mxu0 0.0
      %947 = vmatpush2.msra.mxu0 0.0
      %948 = vmatprep.subr.mxu0 0.0
      %949 = vmatpush2.msra.mxu0 0.0
      %950 = vmatprep.subr.mxu0 0.0
      %951 = vmatpush2.msra.mxu0 0.0
      %952 = vmatprep.subr.mxu0 0.0
      %953 = vmatpush2.msra.mxu0 0.0
      %954 = vmatprep.subr.mxu0 0.0
      %955 = vmatpush2.msra.mxu0 0.0
      %956 = vmatprep.subr.mxu0 0.0
      %957 = vmatpush2.msra.mxu0 0.0
      %958 = vmatprep.subr.mxu0 0.0
      %959 = vmatpush2.msra.mxu0 0.0
      %960 = vmatprep.subr.mxu0 0.0
      %961 = vmatpush2.msra.mxu0 0.0
      %962 = vmatprep.subr.mxu0 0.0
      %963 = vmatpush2.msra.mxu0 0.0
      %964 = vmatprep.subr.mxu0 0.0
      %965 = vmatpush2.msra.mxu0 0.0
      %966 = vmatprep.subr.mxu0 0.0
      %967 = vmatpush2.msra.mxu0 0.0
      %968 = vmatprep.subr.mxu0 0.0
      %969 = vmatpush2.msra.mxu0 0.0
      %970 = vmatprep.subr.mxu0 0.0
      %971 = vmatpush2.msra.mxu0 0.0
      %972 = vmatprep.subr.mxu0 0.0
      %973 = vmatpush2.msra.mxu0 0.0
      %974 = vmatprep.mubr.f32.mxu0 0.0
      %975 = vmatmul.mubr.f32.gmra.mxu0 %v908
      %v976 = vpop.f32.mrf.mxu0
      %v977 = vadd.f32 %v905, %v976
      %v978 = vpop.f32.mrf.mxu0
      %979 = vdwg.mxu0
      %v980 = vld [vmem:[%s529 + $0x18] sm:$0xff]
      %v981 = vld [vmem:[%s529 + $0x48] sm:$0xff]
      %v982 = vld [vmem:[%s529 + $0x78] sm:$0xff]
      %v983 = vld [vmem:[%s529 + $0xa8] sm:$0xff]
      %v984 = vld [vmem:[%s538 + $0x3] sm:$0x1]
      %986 = vrot.lane.b32.xlu0 %v977, 96
      %v987 = vpop.permute.xlu0 %986
      %vm988 = vcmask 64512
      %v989 = vsel %vm988, %v977, 0
      %v991 = vsel %vm988, %v987, 0
      %993 = vmatprep.subr.mxu0 0.0
      %994 = vmatpush1.xpose.msra.mxu0 0.0
      %995 = vmatprep.subr.mxu0 0.0
      %996 = vmatpush1.xpose.msra.mxu0 0.0
      %997 = vmatprep.subr.mxu0 0.0
      %998 = vmatpush1.xpose.msra.mxu0 0.0
      %999 = vmatprep.subr.mxu0 0.0
      %1000 = vmatpush1.xpose.msra.mxu0 0.0
      %1001 = vmatprep.subr.mxu0 0.0
      %1002 = vmatpush1.xpose.msra.mxu0 0.0
      %1003 = vmatprep.subr.mxu0 0.0
      %1004 = vmatpush1.xpose.msra.mxu0 0.0
      %1005 = vmatprep.subr.mxu0 0.0
      %1006 = vmatpush1.xpose.msra.mxu0 0.0
      %1007 = vmatprep.subr.mxu0 0.0
      %1008 = vmatpush1.xpose.msra.mxu0 0.0
      %1009 = vmatprep.subr.mxu0 0.0
      %1010 = vmatpush1.xpose.msra.mxu0 0.0
      %1011 = vmatprep.subr.mxu0 0.0
      %1012 = vmatpush1.xpose.msra.mxu0 0.0
      %1013 = vmatprep.subr.mxu0 0.0
      %1014 = vmatpush1.xpose.msra.mxu0 0.0
      %1015 = vmatprep.subr.mxu0 0.0
      %1016 = vmatpush1.xpose.msra.mxu0 0.0
      %1017 = vmatprep.subr.mxu0 0.0
      %1018 = vmatpush1.xpose.msra.mxu0 0.0
      %1019 = vmatprep.subr.mxu0 0.0
      %1020 = vmatpush1.xpose.msra.mxu0 0.0
      %1021 = vmatprep.subr.mxu0 0.0
      %1022 = vmatpush1.xpose.msra.mxu0 0.0
      %1023 = vmatprep.subr.mxu0 0.0
      %1024 = vmatpush1.xpose.msra.mxu0 %v991
      %1025 = vmatprep.subr.mxu0 0.0
      %1026 = vmatpush2.xpose.msra.mxu0 0.0
      %1027 = vmatprep.subr.mxu0 0.0
      %1028 = vmatpush2.xpose.msra.mxu0 0.0
      %1029 = vmatprep.subr.mxu0 0.0
      %1030 = vmatpush2.xpose.msra.mxu0 0.0
      %1031 = vmatprep.subr.mxu0 0.0
      %1032 = vmatpush2.xpose.msra.mxu0 0.0
      %1033 = vmatprep.subr.mxu0 0.0
      %1034 = vmatpush2.xpose.msra.mxu0 0.0
      %1035 = vmatprep.subr.mxu0 0.0
      %1036 = vmatpush2.xpose.msra.mxu0 0.0
      %1037 = vmatprep.subr.mxu0 0.0
      %1038 = vmatpush2.xpose.msra.mxu0 0.0
      %1039 = vmatprep.subr.mxu0 0.0
      %1040 = vmatpush2.xpose.msra.mxu0 0.0
      %1041 = vmatprep.subr.mxu0 0.0
      %1042 = vmatpush2.xpose.msra.mxu0 0.0
      %1043 = vmatprep.subr.mxu0 0.0
      %1044 = vmatpush2.xpose.msra.mxu0 0.0
      %1045 = vmatprep.subr.mxu0 0.0
      %1046 = vmatpush2.xpose.msra.mxu0 0.0
      %1047 = vmatprep.subr.mxu0 0.0
      %1048 = vmatpush2.xpose.msra.mxu0 0.0
      %1049 = vmatprep.subr.mxu0 0.0
      %1050 = vmatpush2.xpose.msra.mxu0 0.0
      %1051 = vmatprep.subr.mxu0 0.0
      %1052 = vmatpush2.xpose.msra.mxu0 0.0
      %1053 = vmatprep.subr.mxu0 0.0
      %1054 = vmatpush2.xpose.msra.mxu0 0.0
      %1055 = vmatprep.subr.mxu0 0.0
      %1056 = vmatpush2.xpose.msra.mxu0 0.0
      %1057 = vmatprep.mubr.f32.mxu0 0.0
      %1058 = vmatmul.mubr.f32.gmra.mxu0 %v989
      %v1059 = vpop.f32.mrf.mxu0
      %v1060 = vadd.f32 0.0, %v1059
      %v1061 = vpop.f32.mrf.mxu0
      %1062 = vdwg.mxu0
      %v1063 = vmul.f32 %v1060, 0.35355338
      %v1065 = vlaneseq
      %v1066 = vshrl.u32 %v1065, 7
      %v1067 = vsub.s32 0, %v1066
      %v1068 = vrot.slane %v651, %v1067
      %v1070 = vadd.f32 %v1063, %v1068
      %vm1071 = vcmask 18432
      %v1072 = vsel %vm1071, %v1070, -inf
      %1073 = vmax.xlane.f32.xlu0 %v1072
      %v1074 = vpop.xlane.xlu0 %1073
      %v1075 = vsub.f32 %v1070, %v1074
      %v1076 = vmul.f32 %v1075, 1.442695
      %v1077 = vpow.pop %v1076
      %v1078 = vsel %vm1071, %v1077, 0.0
      %1079 = vadd.xlane.f32.xlu0 %v1078
      %v1080 = vpop.xlane.xlu0 %1079
      %v1081 = vrcp.pop %v1080
      %v1082 = vmul.f32 %v1077, %v1081
      %1083 = vrot.lane.b32.xlu0 %v977, 64
      %v1084 = vpop.permute.xlu0 %1083
      %vm1085 = vcmask 23552
      %v1087 = vsel %vm1085, %v1082, 0
      %vm1089 = vcmask 1042432
      %v1090 = vsel %vm1089, %v1084, 0
      %1092 = vmatprep.subr.mxu0 0.0
      %1093 = vmatpush1.msra.mxu0 0.0
      %1094 = vmatprep.subr.mxu0 0.0
      %1095 = vmatpush1.msra.mxu0 0.0
      %1096 = vmatprep.subr.mxu0 0.0
      %1097 = vmatpush1.msra.mxu0 0.0
      %1098 = vmatprep.subr.mxu0 0.0
      %1099 = vmatpush1.msra.mxu0 0.0
      %1100 = vmatprep.subr.mxu0 0.0
      %1101 = vmatpush1.msra.mxu0 0.0
      %1102 = vmatprep.subr.mxu0 0.0
      %1103 = vmatpush1.msra.mxu0 0.0
      %1104 = vmatprep.subr.mxu0 0.0
      %1105 = vmatpush1.msra.mxu0 0.0
      %1106 = vmatprep.subr.mxu0 0.0
      %1107 = vmatpush1.msra.mxu0 0.0
      %1108 = vmatprep.subr.mxu0 0.0
      %1109 = vmatpush1.msra.mxu0 0.0
      %1110 = vmatprep.subr.mxu0 0.0
      %1111 = vmatpush1.msra.mxu0 0.0
      %1112 = vmatprep.subr.mxu0 0.0
      %1113 = vmatpush1.msra.mxu0 0.0
      %1114 = vmatprep.subr.mxu0 0.0
      %1115 = vmatpush1.msra.mxu0 0.0
      %1116 = vmatprep.subr.mxu0 0.0
      %1117 = vmatpush1.msra.mxu0 0.0
      %1118 = vmatprep.subr.mxu0 0.0
      %1119 = vmatpush1.msra.mxu0 0.0
      %1120 = vmatprep.subr.mxu0 0.0
      %1121 = vmatpush1.msra.mxu0 0.0
      %1122 = vmatprep.subr.mxu0 0.0
      %1123 = vmatpush1.msra.mxu0 %v1090
      %1124 = vmatprep.subr.mxu0 0.0
      %1125 = vmatpush2.msra.mxu0 0.0
      %1126 = vmatprep.subr.mxu0 0.0
      %1127 = vmatpush2.msra.mxu0 0.0
      %1128 = vmatprep.subr.mxu0 0.0
      %1129 = vmatpush2.msra.mxu0 0.0
      %1130 = vmatprep.subr.mxu0 0.0
      %1131 = vmatpush2.msra.mxu0 0.0
      %1132 = vmatprep.subr.mxu0 0.0
      %1133 = vmatpush2.msra.mxu0 0.0
      %1134 = vmatprep.subr.mxu0 0.0
      %1135 = vmatpush2.msra.mxu0 0.0
      %1136 = vmatprep.subr.mxu0 0.0
      %1137 = vmatpush2.msra.mxu0 0.0
      %1138 = vmatprep.subr.mxu0 0.0
      %1139 = vmatpush2.msra.mxu0 0.0
      %1140 = vmatprep.subr.mxu0 0.0
      %1141 = vmatpush2.msra.mxu0 0.0
      %1142 = vmatprep.subr.mxu0 0.0
      %1143 = vmatpush2.msra.mxu0 0.0
      %1144 = vmatprep.subr.mxu0 0.0
      %1145 = vmatpush2.msra.mxu0 0.0
      %1146 = vmatprep.subr.mxu0 0.0
      %1147 = vmatpush2.msra.mxu0 0.0
      %1148 = vmatprep.subr.mxu0 0.0
      %1149 = vmatpush2.msra.mxu0 0.0
      %1150 = vmatprep.subr.mxu0 0.0
      %1151 = vmatpush2.msra.mxu0 0.0
      %1152 = vmatprep.subr.mxu0 0.0
      %1153 = vmatpush2.msra.mxu0 0.0
      %1154 = vmatprep.subr.mxu0 0.0
      %1155 = vmatpush2.msra.mxu0 0.0
      %1156 = vmatprep.mubr.f32.mxu0 0.0
      %1157 = vmatmul.mubr.f32.gmra.mxu0 %v1087
      %v1158 = vpop.f32.mrf.mxu0
      %v1159 = vadd.f32 0.0, %v1158
      %v1160 = vpop.f32.mrf.mxu0
      %1161 = vdwg.mxu0
      %v1163 = vsel %vm988, %v1159, 0
      %1165 = vmatprep.subr.mxu0 0.0
      %1166 = vmatpush1.msra.mxu0 0.0
      %1167 = vmatprep.subr.mxu0 0.0
      %1168 = vmatpush1.msra.mxu0 0.0
      %1169 = vmatprep.subr.mxu0 0.0
      %1170 = vmatpush1.msra.mxu0 0.0
      %1171 = vmatprep.subr.mxu0 0.0
      %1172 = vmatpush1.msra.mxu0 0.0
      %1173 = vmatprep.subr.mxu0 0.0
      %1174 = vmatpush1.msra.mxu0 0.0
      %1175 = vmatprep.subr.mxu0 0.0
      %1176 = vmatpush1.msra.mxu0 0.0
      %1177 = vmatprep.subr.mxu0 0.0
      %1178 = vmatpush1.msra.mxu0 0.0
      %1179 = vmatprep.subr.mxu0 0.0
      %1180 = vmatpush1.msra.mxu0 0.0
      %1181 = vmatprep.subr.mxu0 0.0
      %1182 = vmatpush1.msra.mxu0 0.0
      %1183 = vmatprep.subr.mxu0 0.0
      %1184 = vmatpush1.msra.mxu0 0.0
      %1185 = vmatprep.subr.mxu0 0.0
      %1186 = vmatpush1.msra.mxu0 0.0
      %1187 = vmatprep.subr.mxu0 0.0
      %1188 = vmatpush1.msra.mxu0 0.0
      %1189 = vmatprep.subr.mxu0 0.0
      %1190 = vmatpush1.msra.mxu0 0.0
      %1191 = vmatprep.subr.mxu0 0.0
      %1192 = vmatpush1.msra.mxu0 0.0
      %1193 = vmatprep.subr.mxu0 0.0
      %1194 = vmatpush1.msra.mxu0 0.0
      %1195 = vmatprep.subr.mxu0 0.0
      %1196 = vmatpush1.msra.mxu0 %v980
      %1197 = vmatprep.subr.mxu0 0.0
      %1198 = vmatpush2.msra.mxu0 0.0
      %1199 = vmatprep.subr.mxu0 0.0
      %1200 = vmatpush2.msra.mxu0 0.0
      %1201 = vmatprep.subr.mxu0 0.0
      %1202 = vmatpush2.msra.mxu0 0.0
      %1203 = vmatprep.subr.mxu0 0.0
      %1204 = vmatpush2.msra.mxu0 0.0
      %1205 = vmatprep.subr.mxu0 0.0
      %1206 = vmatpush2.msra.mxu0 0.0
      %1207 = vmatprep.subr.mxu0 0.0
      %1208 = vmatpush2.msra.mxu0 0.0
      %1209 = vmatprep.subr.mxu0 0.0
      %1210 = vmatpush2.msra.mxu0 0.0
      %1211 = vmatprep.subr.mxu0 0.0
      %1212 = vmatpush2.msra.mxu0 0.0
      %1213 = vmatprep.subr.mxu0 0.0
      %1214 = vmatpush2.msra.mxu0 0.0
      %1215 = vmatprep.subr.mxu0 0.0
      %1216 = vmatpush2.msra.mxu0 0.0
      %1217 = vmatprep.subr.mxu0 0.0
      %1218 = vmatpush2.msra.mxu0 0.0
      %1219 = vmatprep.subr.mxu0 0.0
      %1220 = vmatpush2.msra.mxu0 0.0
      %1221 = vmatprep.subr.mxu0 0.0
      %1222 = vmatpush2.msra.mxu0 0.0
      %1223 = vmatprep.subr.mxu0 0.0
      %1224 = vmatpush2.msra.mxu0 0.0
      %1225 = vmatprep.subr.mxu0 0.0
      %1226 = vmatpush2.msra.mxu0 0.0
      %1227 = vmatprep.subr.mxu0 0.0
      %1228 = vmatpush2.msra.mxu0 0.0
      %1229 = vmatprep.mubr.f32.mxu0 0.0
      %1230 = vmatmul.mubr.f32.gmra.mxu0 %v1163
      %v1231 = vpop.f32.mrf.mxu0
      %v1232 = vadd.f32 0.0, %v1231
      %v1233 = vpop.f32.mrf.mxu0
      %1234 = vdwg.mxu0
      %v1236 = vlaneseq
      %v1237 = vshrl.u32 %v1236, 7
      %v1238 = vsub.s32 0, %v1237
      %v1239 = vrot.slane %v984, %v1238
      %v1241 = vadd.f32 %v1239, %v1232
      %1242 = vrot.lane.b32.xlu0 %v977, 120
      %v1243 = vpop.permute.xlu0 %1242
      %1244 = vrot.lane.b32.xlu0 %v977, 88
      %v1245 = vpop.permute.xlu0 %1244
      %v1246 = vsel %vm988, %v1243, 0
      %v1248 = vsel %vm988, %v1245, 0
      %1250 = vmatprep.subr.mxu0 0.0
      %1251 = vmatpush1.xpose.msra.mxu0 0.0
      %1252 = vmatprep.subr.mxu0 0.0
      %1253 = vmatpush1.xpose.msra.mxu0 0.0
      %1254 = vmatprep.subr.mxu0 0.0
      %1255 = vmatpush1.xpose.msra.mxu0 0.0
      %1256 = vmatprep.subr.mxu0 0.0
      %1257 = vmatpush1.xpose.msra.mxu0 0.0
      %1258 = vmatprep.subr.mxu0 0.0
      %1259 = vmatpush1.xpose.msra.mxu0 0.0
      %1260 = vmatprep.subr.mxu0 0.0
      %1261 = vmatpush1.xpose.msra.mxu0 0.0
      %1262 = vmatprep.subr.mxu0 0.0
      %1263 = vmatpush1.xpose.msra.mxu0 0.0
      %1264 = vmatprep.subr.mxu0 0.0
      %1265 = vmatpush1.xpose.msra.mxu0 0.0
      %1266 = vmatprep.subr.mxu0 0.0
      %1267 = vmatpush1.xpose.msra.mxu0 0.0
      %1268 = vmatprep.subr.mxu0 0.0
      %1269 = vmatpush1.xpose.msra.mxu0 0.0
      %1270 = vmatprep.subr.mxu0 0.0
      %1271 = vmatpush1.xpose.msra.mxu0 0.0
      %1272 = vmatprep.subr.mxu0 0.0
      %1273 = vmatpush1.xpose.msra.mxu0 0.0
      %1274 = vmatprep.subr.mxu0 0.0
      %1275 = vmatpush1.xpose.msra.mxu0 0.0
      %1276 = vmatprep.subr.mxu0 0.0
      %1277 = vmatpush1.xpose.msra.mxu0 0.0
      %1278 = vmatprep.subr.mxu0 0.0
      %1279 = vmatpush1.xpose.msra.mxu0 0.0
      %1280 = vmatprep.subr.mxu0 0.0
      %1281 = vmatpush1.xpose.msra.mxu0 %v1248
      %1282 = vmatprep.subr.mxu0 0.0
      %1283 = vmatpush2.xpose.msra.mxu0 0.0
      %1284 = vmatprep.subr.mxu0 0.0
      %1285 = vmatpush2.xpose.msra.mxu0 0.0
      %1286 = vmatprep.subr.mxu0 0.0
      %1287 = vmatpush2.xpose.msra.mxu0 0.0
      %1288 = vmatprep.subr.mxu0 0.0
      %1289 = vmatpush2.xpose.msra.mxu0 0.0
      %1290 = vmatprep.subr.mxu0 0.0
      %1291 = vmatpush2.xpose.msra.mxu0 0.0
      %1292 = vmatprep.subr.mxu0 0.0
      %1293 = vmatpush2.xpose.msra.mxu0 0.0
      %1294 = vmatprep.subr.mxu0 0.0
      %1295 = vmatpush2.xpose.msra.mxu0 0.0
      %1296 = vmatprep.subr.mxu0 0.0
      %1297 = vmatpush2.xpose.msra.mxu0 0.0
      %1298 = vmatprep.subr.mxu0 0.0
      %1299 = vmatpush2.xpose.msra.mxu0 0.0
      %1300 = vmatprep.subr.mxu0 0.0
      %1301 = vmatpush2.xpose.msra.mxu0 0.0
      %1302 = vmatprep.subr.mxu0 0.0
      %1303 = vmatpush2.xpose.msra.mxu0 0.0
      %1304 = vmatprep.subr.mxu0 0.0
      %1305 = vmatpush2.xpose.msra.mxu0 0.0
      %1306 = vmatprep.subr.mxu0 0.0
      %1307 = vmatpush2.xpose.msra.mxu0 0.0
      %1308 = vmatprep.subr.mxu0 0.0
      %1309 = vmatpush2.xpose.msra.mxu0 0.0
      %1310 = vmatprep.subr.mxu0 0.0
      %1311 = vmatpush2.xpose.msra.mxu0 0.0
      %1312 = vmatprep.subr.mxu0 0.0
      %1313 = vmatpush2.xpose.msra.mxu0 0.0
      %1314 = vmatprep.mubr.f32.mxu0 0.0
      %1315 = vmatmul.mubr.f32.gmra.mxu0 %v1246
      %v1316 = vpop.f32.mrf.mxu0
      %v1317 = vadd.f32 0.0, %v1316
      %v1318 = vpop.f32.mrf.mxu0
      %1319 = vdwg.mxu0
      %v1320 = vmul.f32 %v1317, 0.35355338
      %v1321 = vadd.f32 %v1320, %v1068
      %v1322 = vsel %vm1071, %v1321, -inf
      %1323 = vmax.xlane.f32.xlu0 %v1322
      %v1324 = vpop.xlane.xlu0 %1323
      %v1325 = vsub.f32 %v1321, %v1324
      %v1326 = vmul.f32 %v1325, 1.442695
      %v1327 = vpow.pop %v1326
      %v1328 = vsel %vm1071, %v1327, 0.0
      %1329 = vadd.xlane.f32.xlu0 %v1328
      %v1330 = vpop.xlane.xlu0 %1329
      %v1331 = vrcp.pop %v1330
      %v1332 = vmul.f32 %v1327, %v1331
      %1333 = vrot.lane.b32.xlu0 %v977, 56
      %v1334 = vpop.permute.xlu0 %1333
      %v1336 = vsel %vm1085, %v1332, 0
      %v1338 = vsel %vm1089, %v1334, 0
      %1340 = vmatprep.subr.mxu0 0.0
      %1341 = vmatpush1.msra.mxu0 0.0
      %1342 = vmatprep.subr.mxu0 0.0
      %1343 = vmatpush1.msra.mxu0 0.0
      %1344 = vmatprep.subr.mxu0 0.0
      %1345 = vmatpush1.msra.mxu0 0.0
      %1346 = vmatprep.subr.mxu0 0.0
      %1347 = vmatpush1.msra.mxu0 0.0
      %1348 = vmatprep.subr.mxu0 0.0
      %1349 = vmatpush1.msra.mxu0 0.0
      %1350 = vmatprep.subr.mxu0 0.0
      %1351 = vmatpush1.msra.mxu0 0.0
      %1352 = vmatprep.subr.mxu0 0.0
      %1353 = vmatpush1.msra.mxu0 0.0
      %1354 = vmatprep.subr.mxu0 0.0
      %1355 = vmatpush1.msra.mxu0 0.0
      %1356 = vmatprep.subr.mxu0 0.0
      %1357 = vmatpush1.msra.mxu0 0.0
      %1358 = vmatprep.subr.mxu0 0.0
      %1359 = vmatpush1.msra.mxu0 0.0
      %1360 = vmatprep.subr.mxu0 0.0
      %1361 = vmatpush1.msra.mxu0 0.0
      %1362 = vmatprep.subr.mxu0 0.0
      %1363 = vmatpush1.msra.mxu0 0.0
      %1364 = vmatprep.subr.mxu0 0.0
      %1365 = vmatpush1.msra.mxu0 0.0
      %1366 = vmatprep.subr.mxu0 0.0
      %1367 = vmatpush1.msra.mxu0 0.0
      %1368 = vmatprep.subr.mxu0 0.0
      %1369 = vmatpush1.msra.mxu0 0.0
      %1370 = vmatprep.subr.mxu0 0.0
      %1371 = vmatpush1.msra.mxu0 %v1338
      %1372 = vmatprep.subr.mxu0 0.0
      %1373 = vmatpush2.msra.mxu0 0.0
      %1374 = vmatprep.subr.mxu0 0.0
      %1375 = vmatpush2.msra.mxu0 0.0
      %1376 = vmatprep.subr.mxu0 0.0
      %1377 = vmatpush2.msra.mxu0 0.0
      %1378 = vmatprep.subr.mxu0 0.0
      %1379 = vmatpush2.msra.mxu0 0.0
      %1380 = vmatprep.subr.mxu0 0.0
      %1381 = vmatpush2.msra.mxu0 0.0
      %1382 = vmatprep.subr.mxu0 0.0
      %1383 = vmatpush2.msra.mxu0 0.0
      %1384 = vmatprep.subr.mxu0 0.0
      %1385 = vmatpush2.msra.mxu0 0.0
      %1386 = vmatprep.subr.mxu0 0.0
      %1387 = vmatpush2.msra.mxu0 0.0
      %1388 = vmatprep.subr.mxu0 0.0
      %1389 = vmatpush2.msra.mxu0 0.0
      %1390 = vmatprep.subr.mxu0 0.0
      %1391 = vmatpush2.msra.mxu0 0.0
      %1392 = vmatprep.subr.mxu0 0.0
      %1393 = vmatpush2.msra.mxu0 0.0
      %1394 = vmatprep.subr.mxu0 0.0
      %1395 = vmatpush2.msra.mxu0 0.0
      %1396 = vmatprep.subr.mxu0 0.0
      %1397 = vmatpush2.msra.mxu0 0.0
      %1398 = vmatprep.subr.mxu0 0.0
      %1399 = vmatpush2.msra.mxu0 0.0
      %1400 = vmatprep.subr.mxu0 0.0
      %1401 = vmatpush2.msra.mxu0 0.0
      %1402 = vmatprep.subr.mxu0 0.0
      %1403 = vmatpush2.msra.mxu0 0.0
      %1404 = vmatprep.mubr.f32.mxu0 0.0
      %1405 = vmatmul.mubr.f32.gmra.mxu0 %v1336
      %v1406 = vpop.f32.mrf.mxu0
      %v1407 = vadd.f32 0.0, %v1406
      %v1408 = vpop.f32.mrf.mxu0
      %1409 = vdwg.mxu0
      %v1411 = vsel %vm988, %v1407, 0
      %1413 = vmatprep.subr.mxu0 0.0
      %1414 = vmatpush1.msra.mxu0 0.0
      %1415 = vmatprep.subr.mxu0 0.0
      %1416 = vmatpush1.msra.mxu0 0.0
      %1417 = vmatprep.subr.mxu0 0.0
      %1418 = vmatpush1.msra.mxu0 0.0
      %1419 = vmatprep.subr.mxu0 0.0
      %1420 = vmatpush1.msra.mxu0 0.0
      %1421 = vmatprep.subr.mxu0 0.0
      %1422 = vmatpush1.msra.mxu0 0.0
      %1423 = vmatprep.subr.mxu0 0.0
      %1424 = vmatpush1.msra.mxu0 0.0
      %1425 = vmatprep.subr.mxu0 0.0
      %1426 = vmatpush1.msra.mxu0 0.0
      %1427 = vmatprep.subr.mxu0 0.0
      %1428 = vmatpush1.msra.mxu0 0.0
      %1429 = vmatprep.subr.mxu0 0.0
      %1430 = vmatpush1.msra.mxu0 0.0
      %1431 = vmatprep.subr.mxu0 0.0
      %1432 = vmatpush1.msra.mxu0 0.0
      %1433 = vmatprep.subr.mxu0 0.0
      %1434 = vmatpush1.msra.mxu0 0.0
      %1435 = vmatprep.subr.mxu0 0.0
      %1436 = vmatpush1.msra.mxu0 0.0
      %1437 = vmatprep.subr.mxu0 0.0
      %1438 = vmatpush1.msra.mxu0 0.0
      %1439 = vmatprep.subr.mxu0 0.0
      %1440 = vmatpush1.msra.mxu0 0.0
      %1441 = vmatprep.subr.mxu0 0.0
      %1442 = vmatpush1.msra.mxu0 0.0
      %1443 = vmatprep.subr.mxu0 0.0
      %1444 = vmatpush1.msra.mxu0 %v981
      %1445 = vmatprep.subr.mxu0 0.0
      %1446 = vmatpush2.msra.mxu0 0.0
      %1447 = vmatprep.subr.mxu0 0.0
      %1448 = vmatpush2.msra.mxu0 0.0
      %1449 = vmatprep.subr.mxu0 0.0
      %1450 = vmatpush2.msra.mxu0 0.0
      %1451 = vmatprep.subr.mxu0 0.0
      %1452 = vmatpush2.msra.mxu0 0.0
      %1453 = vmatprep.subr.mxu0 0.0
      %1454 = vmatpush2.msra.mxu0 0.0
      %1455 = vmatprep.subr.mxu0 0.0
      %1456 = vmatpush2.msra.mxu0 0.0
      %1457 = vmatprep.subr.mxu0 0.0
      %1458 = vmatpush2.msra.mxu0 0.0
      %1459 = vmatprep.subr.mxu0 0.0
      %1460 = vmatpush2.msra.mxu0 0.0
      %1461 = vmatprep.subr.mxu0 0.0
      %1462 = vmatpush2.msra.mxu0 0.0
      %1463 = vmatprep.subr.mxu0 0.0
      %1464 = vmatpush2.msra.mxu0 0.0
      %1465 = vmatprep.subr.mxu0 0.0
      %1466 = vmatpush2.msra.mxu0 0.0
      %1467 = vmatprep.subr.mxu0 0.0
      %1468 = vmatpush2.msra.mxu0 0.0
      %1469 = vmatprep.subr.mxu0 0.0
      %1470 = vmatpush2.msra.mxu0 0.0
      %1471 = vmatprep.subr.mxu0 0.0
      %1472 = vmatpush2.msra.mxu0 0.0
      %1473 = vmatprep.subr.mxu0 0.0
      %1474 = vmatpush2.msra.mxu0 0.0
      %1475 = vmatprep.subr.mxu0 0.0
      %1476 = vmatpush2.msra.mxu0 0.0
      %1477 = vmatprep.mubr.f32.mxu0 0.0
      %1478 = vmatmul.mubr.f32.gmra.mxu0 %v1411
      %v1479 = vpop.f32.mrf.mxu0
      %v1480 = vadd.f32 0.0, %v1479
      %v1481 = vpop.f32.mrf.mxu0
      %1482 = vdwg.mxu0
      %v1483 = vadd.f32 %v1241, %v1480
      %1484 = vrot.lane.b32.xlu0 %v977, 112
      %v1485 = vpop.permute.xlu0 %1484
      %1486 = vrot.lane.b32.xlu0 %v977, 80
      %v1487 = vpop.permute.xlu0 %1486
      %v1488 = vsel %vm988, %v1485, 0
      %v1490 = vsel %vm988, %v1487, 0
      %1492 = vmatprep.subr.mxu0 0.0
      %1493 = vmatpush1.xpose.msra.mxu0 0.0
      %1494 = vmatprep.subr.mxu0 0.0
      %1495 = vmatpush1.xpose.msra.mxu0 0.0
      %1496 = vmatprep.subr.mxu0 0.0
      %1497 = vmatpush1.xpose.msra.mxu0 0.0
      %1498 = vmatprep.subr.mxu0 0.0
      %1499 = vmatpush1.xpose.msra.mxu0 0.0
      %1500 = vmatprep.subr.mxu0 0.0
      %1501 = vmatpush1.xpose.msra.mxu0 0.0
      %1502 = vmatprep.subr.mxu0 0.0
      %1503 = vmatpush1.xpose.msra.mxu0 0.0
      %1504 = vmatprep.subr.mxu0 0.0
      %1505 = vmatpush1.xpose.msra.mxu0 0.0
      %1506 = vmatprep.subr.mxu0 0.0
      %1507 = vmatpush1.xpose.msra.mxu0 0.0
      %1508 = vmatprep.subr.mxu0 0.0
      %1509 = vmatpush1.xpose.msra.mxu0 0.0
      %1510 = vmatprep.subr.mxu0 0.0
      %1511 = vmatpush1.xpose.msra.mxu0 0.0
      %1512 = vmatprep.subr.mxu0 0.0
      %1513 = vmatpush1.xpose.msra.mxu0 0.0
      %1514 = vmatprep.subr.mxu0 0.0
      %1515 = vmatpush1.xpose.msra.mxu0 0.0
      %1516 = vmatprep.subr.mxu0 0.0
      %1517 = vmatpush1.xpose.msra.mxu0 0.0
      %1518 = vmatprep.subr.mxu0 0.0
      %1519 = vmatpush1.xpose.msra.mxu0 0.0
      %1520 = vmatprep.subr.mxu0 0.0
      %1521 = vmatpush1.xpose.msra.mxu0 0.0
      %1522 = vmatprep.subr.mxu0 0.0
      %1523 = vmatpush1.xpose.msra.mxu0 %v1490
      %1524 = vmatprep.subr.mxu0 0.0
      %1525 = vmatpush2.xpose.msra.mxu0 0.0
      %1526 = vmatprep.subr.mxu0 0.0
      %1527 = vmatpush2.xpose.msra.mxu0 0.0
      %1528 = vmatprep.subr.mxu0 0.0
      %1529 = vmatpush2.xpose.msra.mxu0 0.0
      %1530 = vmatprep.subr.mxu0 0.0
      %1531 = vmatpush2.xpose.msra.mxu0 0.0
      %1532 = vmatprep.subr.mxu0 0.0
      %1533 = vmatpush2.xpose.msra.mxu0 0.0
      %1534 = vmatprep.subr.mxu0 0.0
      %1535 = vmatpush2.xpose.msra.mxu0 0.0
      %1536 = vmatprep.subr.mxu0 0.0
      %1537 = vmatpush2.xpose.msra.mxu0 0.0
      %1538 = vmatprep.subr.mxu0 0.0
      %1539 = vmatpush2.xpose.msra.mxu0 0.0
      %1540 = vmatprep.subr.mxu0 0.0
      %1541 = vmatpush2.xpose.msra.mxu0 0.0
      %1542 = vmatprep.subr.mxu0 0.0
      %1543 = vmatpush2.xpose.msra.mxu0 0.0
      %1544 = vmatprep.subr.mxu0 0.0
      %1545 = vmatpush2.xpose.msra.mxu0 0.0
      %1546 = vmatprep.subr.mxu0 0.0
      %1547 = vmatpush2.xpose.msra.mxu0 0.0
      %1548 = vmatprep.subr.mxu0 0.0
      %1549 = vmatpush2.xpose.msra.mxu0 0.0
      %1550 = vmatprep.subr.mxu0 0.0
      %1551 = vmatpush2.xpose.msra.mxu0 0.0
      %1552 = vmatprep.subr.mxu0 0.0
      %1553 = vmatpush2.xpose.msra.mxu0 0.0
      %1554 = vmatprep.subr.mxu0 0.0
      %1555 = vmatpush2.xpose.msra.mxu0 0.0
      %1556 = vmatprep.mubr.f32.mxu0 0.0
      %1557 = vmatmul.mubr.f32.gmra.mxu0 %v1488
      %v1558 = vpop.f32.mrf.mxu0
      %v1559 = vadd.f32 0.0, %v1558
      %v1560 = vpop.f32.mrf.mxu0
      %1561 = vdwg.mxu0
      %v1562 = vmul.f32 %v1559, 0.35355338
      %v1563 = vadd.f32 %v1562, %v1068
      %v1564 = vsel %vm1071, %v1563, -inf
      %1565 = vmax.xlane.f32.xlu0 %v1564
      %v1566 = vpop.xlane.xlu0 %1565
      %v1567 = vsub.f32 %v1563, %v1566
      %v1568 = vmul.f32 %v1567, 1.442695
      %v1569 = vpow.pop %v1568
      %v1570 = vsel %vm1071, %v1569, 0.0
      %1571 = vadd.xlane.f32.xlu0 %v1570
      %v1572 = vpop.xlane.xlu0 %1571
      %v1573 = vrcp.pop %v1572
      %v1574 = vmul.f32 %v1569, %v1573
      %1575 = vrot.lane.b32.xlu0 %v977, 48
      %v1576 = vpop.permute.xlu0 %1575
      %v1578 = vsel %vm1085, %v1574, 0
      %v1580 = vsel %vm1089, %v1576, 0
      %1582 = vmatprep.subr.mxu0 0.0
      %1583 = vmatpush1.msra.mxu0 0.0
      %1584 = vmatprep.subr.mxu0 0.0
      %1585 = vmatpush1.msra.mxu0 0.0
      %1586 = vmatprep.subr.mxu0 0.0
      %1587 = vmatpush1.msra.mxu0 0.0
      %1588 = vmatprep.subr.mxu0 0.0
      %1589 = vmatpush1.msra.mxu0 0.0
      %1590 = vmatprep.subr.mxu0 0.0
      %1591 = vmatpush1.msra.mxu0 0.0
      %1592 = vmatprep.subr.mxu0 0.0
      %1593 = vmatpush1.msra.mxu0 0.0
      %1594 = vmatprep.subr.mxu0 0.0
      %1595 = vmatpush1.msra.mxu0 0.0
      %1596 = vmatprep.subr.mxu0 0.0
      %1597 = vmatpush1.msra.mxu0 0.0
      %1598 = vmatprep.subr.mxu0 0.0
      %1599 = vmatpush1.msra.mxu0 0.0
      %1600 = vmatprep.subr.mxu0 0.0
      %1601 = vmatpush1.msra.mxu0 0.0
      %1602 = vmatprep.subr.mxu0 0.0
      %1603 = vmatpush1.msra.mxu0 0.0
      %1604 = vmatprep.subr.mxu0 0.0
      %1605 = vmatpush1.msra.mxu0 0.0
      %1606 = vmatprep.subr.mxu0 0.0
      %1607 = vmatpush1.msra.mxu0 0.0
      %1608 = vmatprep.subr.mxu0 0.0
      %1609 = vmatpush1.msra.mxu0 0.0
      %1610 = vmatprep.subr.mxu0 0.0
      %1611 = vmatpush1.msra.mxu0 0.0
      %1612 = vmatprep.subr.mxu0 0.0
      %1613 = vmatpush1.msra.mxu0 %v1580
      %1614 = vmatprep.subr.mxu0 0.0
      %1615 = vmatpush2.msra.mxu0 0.0
      %1616 = vmatprep.subr.mxu0 0.0
      %1617 = vmatpush2.msra.mxu0 0.0
      %1618 = vmatprep.subr.mxu0 0.0
      %1619 = vmatpush2.msra.mxu0 0.0
      %1620 = vmatprep.subr.mxu0 0.0
      %1621 = vmatpush2.msra.mxu0 0.0
      %1622 = vmatprep.subr.mxu0 0.0
      %1623 = vmatpush2.msra.mxu0 0.0
      %1624 = vmatprep.subr.mxu0 0.0
      %1625 = vmatpush2.msra.mxu0 0.0
      %1626 = vmatprep.subr.mxu0 0.0
      %1627 = vmatpush2.msra.mxu0 0.0
      %1628 = vmatprep.subr.mxu0 0.0
      %1629 = vmatpush2.msra.mxu0 0.0
      %1630 = vmatprep.subr.mxu0 0.0
      %1631 = vmatpush2.msra.mxu0 0.0
      %1632 = vmatprep.subr.mxu0 0.0
      %1633 = vmatpush2.msra.mxu0 0.0
      %1634 = vmatprep.subr.mxu0 0.0
      %1635 = vmatpush2.msra.mxu0 0.0
      %1636 = vmatprep.subr.mxu0 0.0
      %1637 = vmatpush2.msra.mxu0 0.0
      %1638 = vmatprep.subr.mxu0 0.0
      %1639 = vmatpush2.msra.mxu0 0.0
      %1640 = vmatprep.subr.mxu0 0.0
      %1641 = vmatpush2.msra.mxu0 0.0
      %1642 = vmatprep.subr.mxu0 0.0
      %1643 = vmatpush2.msra.mxu0 0.0
      %1644 = vmatprep.subr.mxu0 0.0
      %1645 = vmatpush2.msra.mxu0 0.0
      %1646 = vmatprep.mubr.f32.mxu0 0.0
      %1647 = vmatmul.mubr.f32.gmra.mxu0 %v1578
      %v1648 = vpop.f32.mrf.mxu0
      %v1649 = vadd.f32 0.0, %v1648
      %v1650 = vpop.f32.mrf.mxu0
      %1651 = vdwg.mxu0
      %v1653 = vsel %vm988, %v1649, 0
      %1655 = vmatprep.subr.mxu0 0.0
      %1656 = vmatpush1.msra.mxu0 0.0
      %1657 = vmatprep.subr.mxu0 0.0
      %1658 = vmatpush1.msra.mxu0 0.0
      %1659 = vmatprep.subr.mxu0 0.0
      %1660 = vmatpush1.msra.mxu0 0.0
      %1661 = vmatprep.subr.mxu0 0.0
      %1662 = vmatpush1.msra.mxu0 0.0
      %1663 = vmatprep.subr.mxu0 0.0
      %1664 = vmatpush1.msra.mxu0 0.0
      %1665 = vmatprep.subr.mxu0 0.0
      %1666 = vmatpush1.msra.mxu0 0.0
      %1667 = vmatprep.subr.mxu0 0.0
      %1668 = vmatpush1.msra.mxu0 0.0
      %1669 = vmatprep.subr.mxu0 0.0
      %1670 = vmatpush1.msra.mxu0 0.0
      %1671 = vmatprep.subr.mxu0 0.0
      %1672 = vmatpush1.msra.mxu0 0.0
      %1673 = vmatprep.subr.mxu0 0.0
      %1674 = vmatpush1.msra.mxu0 0.0
      %1675 = vmatprep.subr.mxu0 0.0
      %1676 = vmatpush1.msra.mxu0 0.0
      %1677 = vmatprep.subr.mxu0 0.0
      %1678 = vmatpush1.msra.mxu0 0.0
      %1679 = vmatprep.subr.mxu0 0.0
      %1680 = vmatpush1.msra.mxu0 0.0
      %1681 = vmatprep.subr.mxu0 0.0
      %1682 = vmatpush1.msra.mxu0 0.0
      %1683 = vmatprep.subr.mxu0 0.0
      %1684 = vmatpush1.msra.mxu0 0.0
      %1685 = vmatprep.subr.mxu0 0.0
      %1686 = vmatpush1.msra.mxu0 %v982
      %1687 = vmatprep.subr.mxu0 0.0
      %1688 = vmatpush2.msra.mxu0 0.0
      %1689 = vmatprep.subr.mxu0 0.0
      %1690 = vmatpush2.msra.mxu0 0.0
      %1691 = vmatprep.subr.mxu0 0.0
      %1692 = vmatpush2.msra.mxu0 0.0
      %1693 = vmatprep.subr.mxu0 0.0
      %1694 = vmatpush2.msra.mxu0 0.0
      %1695 = vmatprep.subr.mxu0 0.0
      %1696 = vmatpush2.msra.mxu0 0.0
      %1697 = vmatprep.subr.mxu0 0.0
      %1698 = vmatpush2.msra.mxu0 0.0
      %1699 = vmatprep.subr.mxu0 0.0
      %1700 = vmatpush2.msra.mxu0 0.0
      %1701 = vmatprep.subr.mxu0 0.0
      %1702 = vmatpush2.msra.mxu0 0.0
      %1703 = vmatprep.subr.mxu0 0.0
      %1704 = vmatpush2.msra.mxu0 0.0
      %1705 = vmatprep.subr.mxu0 0.0
      %1706 = vmatpush2.msra.mxu0 0.0
      %1707 = vmatprep.subr.mxu0 0.0
      %1708 = vmatpush2.msra.mxu0 0.0
      %1709 = vmatprep.subr.mxu0 0.0
      %1710 = vmatpush2.msra.mxu0 0.0
      %1711 = vmatprep.subr.mxu0 0.0
      %1712 = vmatpush2.msra.mxu0 0.0
      %1713 = vmatprep.subr.mxu0 0.0
      %1714 = vmatpush2.msra.mxu0 0.0
      %1715 = vmatprep.subr.mxu0 0.0
      %1716 = vmatpush2.msra.mxu0 0.0
      %1717 = vmatprep.subr.mxu0 0.0
      %1718 = vmatpush2.msra.mxu0 0.0
      %1719 = vmatprep.mubr.f32.mxu0 0.0
      %1720 = vmatmul.mubr.f32.gmra.mxu0 %v1653
      %v1721 = vpop.f32.mrf.mxu0
      %v1722 = vadd.f32 0.0, %v1721
      %v1723 = vpop.f32.mrf.mxu0
      %1724 = vdwg.mxu0
      %v1725 = vadd.f32 %v1483, %v1722
      %1726 = vrot.lane.b32.xlu0 %v977, 104
      %v1727 = vpop.permute.xlu0 %1726
      %1728 = vrot.lane.b32.xlu0 %v977, 72
      %v1729 = vpop.permute.xlu0 %1728
      %v1730 = vsel %vm988, %v1727, 0
      %v1732 = vsel %vm988, %v1729, 0
      %1734 = vmatprep.subr.mxu0 0.0
      %1735 = vmatpush1.xpose.msra.mxu0 0.0
      %1736 = vmatprep.subr.mxu0 0.0
      %1737 = vmatpush1.xpose.msra.mxu0 0.0
      %1738 = vmatprep.subr.mxu0 0.0
      %1739 = vmatpush1.xpose.msra.mxu0 0.0
      %1740 = vmatprep.subr.mxu0 0.0
      %1741 = vmatpush1.xpose.msra.mxu0 0.0
      %1742 = vmatprep.subr.mxu0 0.0
      %1743 = vmatpush1.xpose.msra.mxu0 0.0
      %1744 = vmatprep.subr.mxu0 0.0
      %1745 = vmatpush1.xpose.msra.mxu0 0.0
      %1746 = vmatprep.subr.mxu0 0.0
      %1747 = vmatpush1.xpose.msra.mxu0 0.0
      %1748 = vmatprep.subr.mxu0 0.0
      %1749 = vmatpush1.xpose.msra.mxu0 0.0
      %1750 = vmatprep.subr.mxu0 0.0
      %1751 = vmatpush1.xpose.msra.mxu0 0.0
      %1752 = vmatprep.subr.mxu0 0.0
      %1753 = vmatpush1.xpose.msra.mxu0 0.0
      %1754 = vmatprep.subr.mxu0 0.0
      %1755 = vmatpush1.xpose.msra.mxu0 0.0
      %1756 = vmatprep.subr.mxu0 0.0
      %1757 = vmatpush1.xpose.msra.mxu0 0.0
      %1758 = vmatprep.subr.mxu0 0.0
      %1759 = vmatpush1.xpose.msra.mxu0 0.0
      %1760 = vmatprep.subr.mxu0 0.0
      %1761 = vmatpush1.xpose.msra.mxu0 0.0
      %1762 = vmatprep.subr.mxu0 0.0
      %1763 = vmatpush1.xpose.msra.mxu0 0.0
      %1764 = vmatprep.subr.mxu0 0.0
      %1765 = vmatpush1.xpose.msra.mxu0 %v1732
      %1766 = vmatprep.subr.mxu0 0.0
      %1767 = vmatpush2.xpose.msra.mxu0 0.0
      %1768 = vmatprep.subr.mxu0 0.0
      %1769 = vmatpush2.xpose.msra.mxu0 0.0
      %1770 = vmatprep.subr.mxu0 0.0
      %1771 = vmatpush2.xpose.msra.mxu0 0.0
      %1772 = vmatprep.subr.mxu0 0.0
      %1773 = vmatpush2.xpose.msra.mxu0 0.0
      %1774 = vmatprep.subr.mxu0 0.0
      %1775 = vmatpush2.xpose.msra.mxu0 0.0
      %1776 = vmatprep.subr.mxu0 0.0
      %1777 = vmatpush2.xpose.msra.mxu0 0.0
      %1778 = vmatprep.subr.mxu0 0.0
      %1779 = vmatpush2.xpose.msra.mxu0 0.0
      %1780 = vmatprep.subr.mxu0 0.0
      %1781 = vmatpush2.xpose.msra.mxu0 0.0
      %1782 = vmatprep.subr.mxu0 0.0
      %1783 = vmatpush2.xpose.msra.mxu0 0.0
      %1784 = vmatprep.subr.mxu0 0.0
      %1785 = vmatpush2.xpose.msra.mxu0 0.0
      %1786 = vmatprep.subr.mxu0 0.0
      %1787 = vmatpush2.xpose.msra.mxu0 0.0
      %1788 = vmatprep.subr.mxu0 0.0
      %1789 = vmatpush2.xpose.msra.mxu0 0.0
      %1790 = vmatprep.subr.mxu0 0.0
      %1791 = vmatpush2.xpose.msra.mxu0 0.0
      %1792 = vmatprep.subr.mxu0 0.0
      %1793 = vmatpush2.xpose.msra.mxu0 0.0
      %1794 = vmatprep.subr.mxu0 0.0
      %1795 = vmatpush2.xpose.msra.mxu0 0.0
      %1796 = vmatprep.subr.mxu0 0.0
      %1797 = vmatpush2.xpose.msra.mxu0 0.0
      %1798 = vmatprep.mubr.f32.mxu0 0.0
      %1799 = vmatmul.mubr.f32.gmra.mxu0 %v1730
      %v1800 = vpop.f32.mrf.mxu0
      %v1801 = vadd.f32 0.0, %v1800
      %v1802 = vpop.f32.mrf.mxu0
      %1803 = vdwg.mxu0
      %v1804 = vmul.f32 %v1801, 0.35355338
      %v1805 = vadd.f32 %v1804, %v1068
      %v1806 = vsel %vm1071, %v1805, -inf
      %1807 = vmax.xlane.f32.xlu0 %v1806
      %v1808 = vpop.xlane.xlu0 %1807
      %v1809 = vsub.f32 %v1805, %v1808
      %v1810 = vmul.f32 %v1809, 1.442695
      %v1811 = vpow.pop %v1810
      %v1812 = vsel %vm1071, %v1811, 0.0
      %1813 = vadd.xlane.f32.xlu0 %v1812
      %v1814 = vpop.xlane.xlu0 %1813
      %v1815 = vrcp.pop %v1814
      %v1816 = vmul.f32 %v1811, %v1815
      %1817 = vrot.lane.b32.xlu0 %v977, 40
      %v1818 = vpop.permute.xlu0 %1817
      %v1820 = vsel %vm1085, %v1816, 0
      %v1822 = vsel %vm1089, %v1818, 0
      %1824 = vmatprep.subr.mxu0 0.0
      %1825 = vmatpush1.msra.mxu0 0.0
      %1826 = vmatprep.subr.mxu0 0.0
      %1827 = vmatpush1.msra.mxu0 0.0
      %1828 = vmatprep.subr.mxu0 0.0
      %1829 = vmatpush1.msra.mxu0 0.0
      %1830 = vmatprep.subr.mxu0 0.0
      %1831 = vmatpush1.msra.mxu0 0.0
      %1832 = vmatprep.subr.mxu0 0.0
      %1833 = vmatpush1.msra.mxu0 0.0
      %1834 = vmatprep.subr.mxu0 0.0
      %1835 = vmatpush1.msra.mxu0 0.0
      %1836 = vmatprep.subr.mxu0 0.0
      %1837 = vmatpush1.msra.mxu0 0.0
      %1838 = vmatprep.subr.mxu0 0.0
      %1839 = vmatpush1.msra.mxu0 0.0
      %1840 = vmatprep.subr.mxu0 0.0
      %1841 = vmatpush1.msra.mxu0 0.0
      %1842 = vmatprep.subr.mxu0 0.0
      %1843 = vmatpush1.msra.mxu0 0.0
      %1844 = vmatprep.subr.mxu0 0.0
      %1845 = vmatpush1.msra.mxu0 0.0
      %1846 = vmatprep.subr.mxu0 0.0
      %1847 = vmatpush1.msra.mxu0 0.0
      %1848 = vmatprep.subr.mxu0 0.0
      %1849 = vmatpush1.msra.mxu0 0.0
      %1850 = vmatprep.subr.mxu0 0.0
      %1851 = vmatpush1.msra.mxu0 0.0
      %1852 = vmatprep.subr.mxu0 0.0
      %1853 = vmatpush1.msra.mxu0 0.0
      %1854 = vmatprep.subr.mxu0 0.0
      %1855 = vmatpush1.msra.mxu0 %v1822
      %1856 = vmatprep.subr.mxu0 0.0
      %1857 = vmatpush2.msra.mxu0 0.0
      %1858 = vmatprep.subr.mxu0 0.0
      %1859 = vmatpush2.msra.mxu0 0.0
      %1860 = vmatprep.subr.mxu0 0.0
      %1861 = vmatpush2.msra.mxu0 0.0
      %1862 = vmatprep.subr.mxu0 0.0
      %1863 = vmatpush2.msra.mxu0 0.0
      %1864 = vmatprep.subr.mxu0 0.0
      %1865 = vmatpush2.msra.mxu0 0.0
      %1866 = vmatprep.subr.mxu0 0.0
      %1867 = vmatpush2.msra.mxu0 0.0
      %1868 = vmatprep.subr.mxu0 0.0
      %1869 = vmatpush2.msra.mxu0 0.0
      %1870 = vmatprep.subr.mxu0 0.0
      %1871 = vmatpush2.msra.mxu0 0.0
      %1872 = vmatprep.subr.mxu0 0.0
      %1873 = vmatpush2.msra.mxu0 0.0
      %1874 = vmatprep.subr.mxu0 0.0
      %1875 = vmatpush2.msra.mxu0 0.0
      %1876 = vmatprep.subr.mxu0 0.0
      %1877 = vmatpush2.msra.mxu0 0.0
      %1878 = vmatprep.subr.mxu0 0.0
      %1879 = vmatpush2.msra.mxu0 0.0
      %1880 = vmatprep.subr.mxu0 0.0
      %1881 = vmatpush2.msra.mxu0 0.0
      %1882 = vmatprep.subr.mxu0 0.0
      %1883 = vmatpush2.msra.mxu0 0.0
      %1884 = vmatprep.subr.mxu0 0.0
      %1885 = vmatpush2.msra.mxu0 0.0
      %1886 = vmatprep.subr.mxu0 0.0
      %1887 = vmatpush2.msra.mxu0 0.0
      %1888 = vmatprep.mubr.f32.mxu0 0.0
      %1889 = vmatmul.mubr.f32.gmra.mxu0 %v1820
      %v1890 = vpop.f32.mrf.mxu0
      %v1891 = vadd.f32 0.0, %v1890
      %v1892 = vpop.f32.mrf.mxu0
      %1893 = vdwg.mxu0
      %v1895 = vsel %vm988, %v1891, 0
      %1897 = vmatprep.subr.mxu0 0.0
      %1898 = vmatpush1.msra.mxu0 0.0
      %1899 = vmatprep.subr.mxu0 0.0
      %1900 = vmatpush1.msra.mxu0 0.0
      %1901 = vmatprep.subr.mxu0 0.0
      %1902 = vmatpush1.msra.mxu0 0.0
      %1903 = vmatprep.subr.mxu0 0.0
      %1904 = vmatpush1.msra.mxu0 0.0
      %1905 = vmatprep.subr.mxu0 0.0
      %1906 = vmatpush1.msra.mxu0 0.0
      %1907 = vmatprep.subr.mxu0 0.0
      %1908 = vmatpush1.msra.mxu0 0.0
      %1909 = vmatprep.subr.mxu0 0.0
      %1910 = vmatpush1.msra.mxu0 0.0
      %1911 = vmatprep.subr.mxu0 0.0
      %1912 = vmatpush1.msra.mxu0 0.0
      %1913 = vmatprep.subr.mxu0 0.0
      %1914 = vmatpush1.msra.mxu0 0.0
      %1915 = vmatprep.subr.mxu0 0.0
      %1916 = vmatpush1.msra.mxu0 0.0
      %1917 = vmatprep.subr.mxu0 0.0
      %1918 = vmatpush1.msra.mxu0 0.0
      %1919 = vmatprep.subr.mxu0 0.0
      %1920 = vmatpush1.msra.mxu0 0.0
      %1921 = vmatprep.subr.mxu0 0.0
      %1922 = vmatpush1.msra.mxu0 0.0
      %1923 = vmatprep.subr.mxu0 0.0
      %1924 = vmatpush1.msra.mxu0 0.0
      %1925 = vmatprep.subr.mxu0 0.0
      %1926 = vmatpush1.msra.mxu0 0.0
      %1927 = vmatprep.subr.mxu0 0.0
      %1928 = vmatpush1.msra.mxu0 %v983
      %1929 = vmatprep.subr.mxu0 0.0
      %1930 = vmatpush2.msra.mxu0 0.0
      %1931 = vmatprep.subr.mxu0 0.0
      %1932 = vmatpush2.msra.mxu0 0.0
      %1933 = vmatprep.subr.mxu0 0.0
      %1934 = vmatpush2.msra.mxu0 0.0
      %1935 = vmatprep.subr.mxu0 0.0
      %1936 = vmatpush2.msra.mxu0 0.0
      %1937 = vmatprep.subr.mxu0 0.0
      %1938 = vmatpush2.msra.mxu0 0.0
      %1939 = vmatprep.subr.mxu0 0.0
      %1940 = vmatpush2.msra.mxu0 0.0
      %1941 = vmatprep.subr.mxu0 0.0
      %1942 = vmatpush2.msra.mxu0 0.0
      %1943 = vmatprep.subr.mxu0 0.0
      %1944 = vmatpush2.msra.mxu0 0.0
      %1945 = vmatprep.subr.mxu0 0.0
      %1946 = vmatpush2.msra.mxu0 0.0
      %1947 = vmatprep.subr.mxu0 0.0
      %1948 = vmatpush2.msra.mxu0 0.0
      %1949 = vmatprep.subr.mxu0 0.0
      %1950 = vmatpush2.msra.mxu0 0.0
      %1951 = vmatprep.subr.mxu0 0.0
      %1952 = vmatpush2.msra.mxu0 0.0
      %1953 = vmatprep.subr.mxu0 0.0
      %1954 = vmatpush2.msra.mxu0 0.0
      %1955 = vmatprep.subr.mxu0 0.0
      %1956 = vmatpush2.msra.mxu0 0.0
      %1957 = vmatprep.subr.mxu0 0.0
      %1958 = vmatpush2.msra.mxu0 0.0
      %1959 = vmatprep.subr.mxu0 0.0
      %1960 = vmatpush2.msra.mxu0 0.0
      %1961 = vmatprep.mubr.f32.mxu0 0.0
      %1962 = vmatmul.mubr.f32.gmra.mxu0 %v1895
      %v1963 = vpop.f32.mrf.mxu0
      %v1964 = vadd.f32 0.0, %v1963
      %v1965 = vpop.f32.mrf.mxu0
      %1966 = vdwg.mxu0
      %v1967 = vadd.f32 %v1725, %v1964
      %v1968 = vadd.f32 %v866, %v1967
      %v1969 = vld [vmem:[%s538 + $0xb] sm:$0x1]
      %v1970 = vld [vmem:[%s538 + $0x11] sm:$0x1]
      %v1971 = vsel %vm655, %v1968, 0.0
      %1972 = vadd.xlane.f32.xlu0 %v1971
      %v1973 = vpop.xlane.xlu0 %1972
      %v1974 = vmul.f32 %v1973, %v659
      %v1975 = vsub.f32 %v1968, %v1974
      %v1976 = vmul.f32 %v1975, %v1975
      %v1977 = vsel %vm655, %v1976, 0.0
      %1978 = vadd.xlane.f32.xlu0 %v1977
      %v1979 = vpop.xlane.xlu0 %1978
      %v1980 = vmul.f32 %v1979, %v659
      %v1981 = vadd.f32 %v1980, 1e-05
      %v1982 = vrsqrt.pop %v1981
      %v1983 = vmul.f32 %v1975, %v1982
      %v1985 = vlaneseq
      %v1986 = vshrl.u32 %v1985, 7
      %v1987 = vsub.s32 0, %v1986
      %v1988 = vrot.slane %v1969, %v1987
      %v1990 = vmul.f32 %v1983, %v1988
      %v1992 = vlaneseq
      %v1993 = vshrl.u32 %v1992, 7
      %v1994 = vsub.s32 0, %v1993
      %v1995 = vrot.slane %v1970, %v1994
      %v1997 = vadd.f32 %v1990, %v1995
      %1999 = vset.pattern.permute.xlu0 0
      %2000 = vperm.xlu0 %1999, %v652
      %v2001 = vpop.permute.xlu0 %2000
      %v2003 = vmul.f32 %v1997, %v2001
      %v2004 = vld [vmem:[%s529 + $0x20] sm:$0xff]
      %v2005 = vld [vmem:[%s529 + $0x50] sm:$0xff]
      %v2006 = vld [vmem:[%s529 + $0x80] sm:$0xff]
      %v2007 = vld [vmem:[%s529 + $0xb0] sm:$0xff]
      %v2008 = vld [vmem:[%s538 + $0x4] sm:$0x1]
      %v2010 = vlaneseq
      %v2011 = vshrl.u32 %v2010, 7
      %v2012 = vsub.s32 0, %v2011
      %v2013 = vrot.slane %v2008, %v2012
      %v2016 = vsel %vm695, %v2003, 0
      %2018 = vmatprep.subr.mxu0 0.0
      %2019 = vmatpush1.msra.mxu0 0.0
      %2020 = vmatprep.subr.mxu0 0.0
      %2021 = vmatpush1.msra.mxu0 0.0
      %2022 = vmatprep.subr.mxu0 0.0
      %2023 = vmatpush1.msra.mxu0 0.0
      %2024 = vmatprep.subr.mxu0 0.0
      %2025 = vmatpush1.msra.mxu0 0.0
      %2026 = vmatprep.subr.mxu0 0.0
      %2027 = vmatpush1.msra.mxu0 0.0
      %2028 = vmatprep.subr.mxu0 0.0
      %2029 = vmatpush1.msra.mxu0 0.0
      %2030 = vmatprep.subr.mxu0 0.0
      %2031 = vmatpush1.msra.mxu0 0.0
      %2032 = vmatprep.subr.mxu0 0.0
      %2033 = vmatpush1.msra.mxu0 0.0
      %2034 = vmatprep.subr.mxu0 0.0
      %2035 = vmatpush1.msra.mxu0 0.0
      %2036 = vmatprep.subr.mxu0 0.0
      %2037 = vmatpush1.msra.mxu0 0.0
      %2038 = vmatprep.subr.mxu0 0.0
      %2039 = vmatpush1.msra.mxu0 0.0
      %2040 = vmatprep.subr.mxu0 0.0
      %2041 = vmatpush1.msra.mxu0 0.0
      %2042 = vmatprep.subr.mxu0 0.0
      %2043 = vmatpush1.msra.mxu0 %v2007
      %2044 = vmatprep.subr.mxu0 0.0
      %2045 = vmatpush1.msra.mxu0 %v2006
      %2046 = vmatprep.subr.mxu0 0.0
      %2047 = vmatpush1.msra.mxu0 %v2005
      %2048 = vmatprep.subr.mxu0 0.0
      %2049 = vmatpush1.msra.mxu0 %v2004
      %2050 = vmatprep.subr.mxu0 0.0
      %2051 = vmatpush2.msra.mxu0 0.0
      %2052 = vmatprep.subr.mxu0 0.0
      %2053 = vmatpush2.msra.mxu0 0.0
      %2054 = vmatprep.subr.mxu0 0.0
      %2055 = vmatpush2.msra.mxu0 0.0
      %2056 = vmatprep.subr.mxu0 0.0
      %2057 = vmatpush2.msra.mxu0 0.0
      %2058 = vmatprep.subr.mxu0 0.0
      %2059 = vmatpush2.msra.mxu0 0.0
      %2060 = vmatprep.subr.mxu0 0.0
      %2061 = vmatpush2.msra.mxu0 0.0
      %2062 = vmatprep.subr.mxu0 0.0
      %2063 = vmatpush2.msra.mxu0 0.0
      %2064 = vmatprep.subr.mxu0 0.0
      %2065 = vmatpush2.msra.mxu0 0.0
      %2066 = vmatprep.subr.mxu0 0.0
      %2067 = vmatpush2.msra.mxu0 0.0
      %2068 = vmatprep.subr.mxu0 0.0
      %2069 = vmatpush2.msra.mxu0 0.0
      %2070 = vmatprep.subr.mxu0 0.0
      %2071 = vmatpush2.msra.mxu0 0.0
      %2072 = vmatprep.subr.mxu0 0.0
      %2073 = vmatpush2.msra.mxu0 0.0
      %2074 = vmatprep.subr.mxu0 0.0
      %2075 = vmatpush2.msra.mxu0 0.0
      %2076 = vmatprep.subr.mxu0 0.0
      %2077 = vmatpush2.msra.mxu0 0.0
      %2078 = vmatprep.subr.mxu0 0.0
      %2079 = vmatpush2.msra.mxu0 0.0
      %2080 = vmatprep.subr.mxu0 0.0
      %2081 = vmatpush2.msra.mxu0 0.0
      %2082 = vmatprep.mubr.f32.mxu0 0.0
      %2083 = vmatmul.mubr.f32.gmra.mxu0 %v2016
      %v2084 = vpop.f32.mrf.mxu0
      %v2085 = vadd.f32 %v2013, %v2084
      %v2086 = vpop.f32.mrf.mxu0
      %2087 = vdwg.mxu0
      %v2088 = vxor.u32 %v2085, 2147483648
      %v2089 = vmul.f32 %v2088, 1.442695
      %v2090 = vpow.pop %v2089
      %v2091 = vadd.f32 %v2090, 1.0
      %v2092 = vrcp.pop %v2091
      %v2093 = vmul.f32 1.0, %v2092
      %2095 = vrot.lane.b32.xlu0 %v2093, 96
      %v2096 = vpop.permute.xlu0 %2095
      %v2098 = vmul.f32 %v2085, %v2096
      %v2099 = vlaneseq
      %v2100 = vshrl.u32 %v2099, 7
      %v2101 = vlaneseq
      %v2102 = vand.u32 %v2101, 127
      %v2103 = vld [vmem:[%s538 + $0x8] sm:$0x1]
      %v2104 = vadd.s32 %v2100, 4294967293
      %vm2105 = vcmp.eq.s32.totalorder %v2102, %v2104
      %v2106 = vsel %vm2105, 1.0, 0.0
      %v2108 = vsel %vm1085, %v2106, 0
      %v2111 = vsel %vm1089, %v2098, 0
      %2113 = vmatprep.subr.mxu0 0.0
      %2114 = vmatpush1.msra.mxu0 0.0
      %2115 = vmatprep.subr.mxu0 0.0
      %2116 = vmatpush1.msra.mxu0 0.0
      %2117 = vmatprep.subr.mxu0 0.0
      %2118 = vmatpush1.msra.mxu0 0.0
      %2119 = vmatprep.subr.mxu0 0.0
      %2120 = vmatpush1.msra.mxu0 0.0
      %2121 = vmatprep.subr.mxu0 0.0
      %2122 = vmatpush1.msra.mxu0 0.0
      %2123 = vmatprep.subr.mxu0 0.0
      %2124 = vmatpush1.msra.mxu0 0.0
      %2125 = vmatprep.subr.mxu0 0.0
      %2126 = vmatpush1.msra.mxu0 0.0
      %2127 = vmatprep.subr.mxu0 0.0
      %2128 = vmatpush1.msra.mxu0 0.0
      %2129 = vmatprep.subr.mxu0 0.0
      %2130 = vmatpush1.msra.mxu0 0.0
      %2131 = vmatprep.subr.mxu0 0.0
      %2132 = vmatpush1.msra.mxu0 0.0
      %2133 = vmatprep.subr.mxu0 0.0
      %2134 = vmatpush1.msra.mxu0 0.0
      %2135 = vmatprep.subr.mxu0 0.0
      %2136 = vmatpush1.msra.mxu0 0.0
      %2137 = vmatprep.subr.mxu0 0.0
      %2138 = vmatpush1.msra.mxu0 0.0
      %2139 = vmatprep.subr.mxu0 0.0
      %2140 = vmatpush1.msra.mxu0 0.0
      %2141 = vmatprep.subr.mxu0 0.0
      %2142 = vmatpush1.msra.mxu0 0.0
      %2143 = vmatprep.subr.mxu0 0.0
      %2144 = vmatpush1.msra.mxu0 %v2111
      %2145 = vmatprep.subr.mxu0 0.0
      %2146 = vmatpush2.msra.mxu0 0.0
      %2147 = vmatprep.subr.mxu0 0.0
      %2148 = vmatpush2.msra.mxu0 0.0
      %2149 = vmatprep.subr.mxu0 0.0
      %2150 = vmatpush2.msra.mxu0 0.0
      %2151 = vmatprep.subr.mxu0 0.0
      %2152 = vmatpush2.msra.mxu0 0.0
      %2153 = vmatprep.subr.mxu0 0.0
      %2154 = vmatpush2.msra.mxu0 0.0
      %2155 = vmatprep.subr.mxu0 0.0
      %2156 = vmatpush2.msra.mxu0 0.0
      %2157 = vmatprep.subr.mxu0 0.0
      %2158 = vmatpush2.msra.mxu0 0.0
      %2159 = vmatprep.subr.mxu0 0.0
      %2160 = vmatpush2.msra.mxu0 0.0
      %2161 = vmatprep.subr.mxu0 0.0
      %2162 = vmatpush2.msra.mxu0 0.0
      %2163 = vmatprep.subr.mxu0 0.0
      %2164 = vmatpush2.msra.mxu0 0.0
      %2165 = vmatprep.subr.mxu0 0.0
      %2166 = vmatpush2.msra.mxu0 0.0
      %2167 = vmatprep.subr.mxu0 0.0
      %2168 = vmatpush2.msra.mxu0 0.0
      %2169 = vmatprep.subr.mxu0 0.0
      %2170 = vmatpush2.msra.mxu0 0.0
      %2171 = vmatprep.subr.mxu0 0.0
      %2172 = vmatpush2.msra.mxu0 0.0
      %2173 = vmatprep.subr.mxu0 0.0
      %2174 = vmatpush2.msra.mxu0 0.0
      %2175 = vmatprep.subr.mxu0 0.0
      %2176 = vmatpush2.msra.mxu0 0.0
      %2177 = vmatprep.mubr.f32.mxu0 0.0
      %2178 = vmatmul.mubr.f32.gmra.mxu0 %v2108
      %v2179 = vpop.f32.mrf.mxu0
      %v2180 = vadd.f32 0.0, %v2179
      %v2181 = vpop.f32.mrf.mxu0
      %2182 = vdwg.mxu0
      %v2183 = vld [vmem:[%s538 + $0x15] sm:$0x1]
      %v2185 = vlaneseq
      %v2186 = vshrl.u32 %v2185, 7
      %v2187 = vsub.s32 0, %v2186
      %v2188 = vrot.slane %v2183, %v2187
      %v2190 = vmul.f32 %v2180, %v2188
      %v2192 = vlaneseq
      %v2193 = vshrl.u32 %v2192, 7
      %v2194 = vsub.s32 0, %v2193
      %v2195 = vrot.slane %v2103, %v2194
      %v2197 = vadd.f32 %v2195, %v2190
      %v2198 = vadd.s32 %v2100, 4294967294
      %vm2199 = vcmp.eq.s32.totalorder %v2102, %v2198
      %v2200 = vsel %vm2199, 1.0, 0.0
      %v2202 = vsel %vm1085, %v2200, 0
      %2204 = vmatprep.subr.mxu0 0.0
      %2205 = vmatpush1.msra.mxu0 0.0
      %2206 = vmatprep.subr.mxu0 0.0
      %2207 = vmatpush1.msra.mxu0 0.0
      %2208 = vmatprep.subr.mxu0 0.0
      %2209 = vmatpush1.msra.mxu0 0.0
      %2210 = vmatprep.subr.mxu0 0.0
      %2211 = vmatpush1.msra.mxu0 0.0
      %2212 = vmatprep.subr.mxu0 0.0
      %2213 = vmatpush1.msra.mxu0 0.0
      %2214 = vmatprep.subr.mxu0 0.0
      %2215 = vmatpush1.msra.mxu0 0.0
      %2216 = vmatprep.subr.mxu0 0.0
      %2217 = vmatpush1.msra.mxu0 0.0
      %2218 = vmatprep.subr.mxu0 0.0
      %2219 = vmatpush1.msra.mxu0 0.0
      %2220 = vmatprep.subr.mxu0 0.0
      %2221 = vmatpush1.msra.mxu0 0.0
      %2222 = vmatprep.subr.mxu0 0.0
      %2223 = vmatpush1.msra.mxu0 0.0
      %2224 = vmatprep.subr.mxu0 0.0
      %2225 = vmatpush1.msra.mxu0 0.0
      %2226 = vmatprep.subr.mxu0 0.0
      %2227 = vmatpush1.msra.mxu0 0.0
      %2228 = vmatprep.subr.mxu0 0.0
      %2229 = vmatpush1.msra.mxu0 0.0
      %2230 = vmatprep.subr.mxu0 0.0
      %2231 = vmatpush1.msra.mxu0 0.0
      %2232 = vmatprep.subr.mxu0 0.0
      %2233 = vmatpush1.msra.mxu0 0.0
      %2234 = vmatprep.subr.mxu0 0.0
      %2235 = vmatpush1.msra.mxu0 %v2111
      %2236 = vmatprep.subr.mxu0 0.0
      %2237 = vmatpush2.msra.mxu0 0.0
      %2238 = vmatprep.subr.mxu0 0.0
      %2239 = vmatpush2.msra.mxu0 0.0
      %2240 = vmatprep.subr.mxu0 0.0
      %2241 = vmatpush2.msra.mxu0 0.0
      %2242 = vmatprep.subr.mxu0 0.0
      %2243 = vmatpush2.msra.mxu0 0.0
      %2244 = vmatprep.subr.mxu0 0.0
      %2245 = vmatpush2.msra.mxu0 0.0
      %2246 = vmatprep.subr.mxu0 0.0
      %2247 = vmatpush2.msra.mxu0 0.0
      %2248 = vmatprep.subr.mxu0 0.0
      %2249 = vmatpush2.msra.mxu0 0.0
      %2250 = vmatprep.subr.mxu0 0.0
      %2251 = vmatpush2.msra.mxu0 0.0
      %2252 = vmatprep.subr.mxu0 0.0
      %2253 = vmatpush2.msra.mxu0 0.0
      %2254 = vmatprep.subr.mxu0 0.0
      %2255 = vmatpush2.msra.mxu0 0.0
      %2256 = vmatprep.subr.mxu0 0.0
      %2257 = vmatpush2.msra.mxu0 0.0
      %2258 = vmatprep.subr.mxu0 0.0
      %2259 = vmatpush2.msra.mxu0 0.0
      %2260 = vmatprep.subr.mxu0 0.0
      %2261 = vmatpush2.msra.mxu0 0.0
      %2262 = vmatprep.subr.mxu0 0.0
      %2263 = vmatpush2.msra.mxu0 0.0
      %2264 = vmatprep.subr.mxu0 0.0
      %2265 = vmatpush2.msra.mxu0 0.0
      %2266 = vmatprep.subr.mxu0 0.0
      %2267 = vmatpush2.msra.mxu0 0.0
      %2268 = vmatprep.mubr.f32.mxu0 0.0
      %2269 = vmatmul.mubr.f32.gmra.mxu0 %v2202
      %v2270 = vpop.f32.mrf.mxu0
      %v2271 = vadd.f32 0.0, %v2270
      %v2272 = vpop.f32.mrf.mxu0
      %2273 = vdwg.mxu0
      %v2274 = vld [vmem:[%s538 + $0x16] sm:$0x1]
      %v2276 = vlaneseq
      %v2277 = vshrl.u32 %v2276, 7
      %v2278 = vsub.s32 0, %v2277
      %v2279 = vrot.slane %v2274, %v2278
      %v2281 = vmul.f32 %v2271, %v2279
      %v2282 = vadd.f32 %v2197, %v2281
      %v2283 = vadd.s32 %v2100, 4294967295
      %vm2284 = vcmp.eq.s32.totalorder %v2102, %v2283
      %v2285 = vsel %vm2284, 1.0, 0.0
      %v2287 = vsel %vm1085, %v2285, 0
      %2289 = vmatprep.subr.mxu0 0.0
      %2290 = vmatpush1.msra.mxu0 0.0
      %2291 = vmatprep.subr.mxu0 0.0
      %2292 = vmatpush1.msra.mxu0 0.0
      %2293 = vmatprep.subr.mxu0 0.0
      %2294 = vmatpush1.msra.mxu0 0.0
      %2295 = vmatprep.subr.mxu0 0.0
      %2296 = vmatpush1.msra.mxu0 0.0
      %2297 = vmatprep.subr.mxu0 0.0
      %2298 = vmatpush1.msra.mxu0 0.0
      %2299 = vmatprep.subr.mxu0 0.0
      %2300 = vmatpush1.msra.mxu0 0.0
      %2301 = vmatprep.subr.mxu0 0.0
      %2302 = vmatpush1.msra.mxu0 0.0
      %2303 = vmatprep.subr.mxu0 0.0
      %2304 = vmatpush1.msra.mxu0 0.0
      %2305 = vmatprep.subr.mxu0 0.0
      %2306 = vmatpush1.msra.mxu0 0.0
      %2307 = vmatprep.subr.mxu0 0.0
      %2308 = vmatpush1.msra.mxu0 0.0
      %2309 = vmatprep.subr.mxu0 0.0
      %2310 = vmatpush1.msra.mxu0 0.0
      %2311 = vmatprep.subr.mxu0 0.0
      %2312 = vmatpush1.msra.mxu0 0.0
      %2313 = vmatprep.subr.mxu0 0.0
      %2314 = vmatpush1.msra.mxu0 0.0
      %2315 = vmatprep.subr.mxu0 0.0
      %2316 = vmatpush1.msra.mxu0 0.0
      %2317 = vmatprep.subr.mxu0 0.0
      %2318 = vmatpush1.msra.mxu0 0.0
      %2319 = vmatprep.subr.mxu0 0.0
      %2320 = vmatpush1.msra.mxu0 %v2111
      %2321 = vmatprep.subr.mxu0 0.0
      %2322 = vmatpush2.msra.mxu0 0.0
      %2323 = vmatprep.subr.mxu0 0.0
      %2324 = vmatpush2.msra.mxu0 0.0
      %2325 = vmatprep.subr.mxu0 0.0
      %2326 = vmatpush2.msra.mxu0 0.0
      %2327 = vmatprep.subr.mxu0 0.0
      %2328 = vmatpush2.msra.mxu0 0.0
      %2329 = vmatprep.subr.mxu0 0.0
      %2330 = vmatpush2.msra.mxu0 0.0
      %2331 = vmatprep.subr.mxu0 0.0
      %2332 = vmatpush2.msra.mxu0 0.0
      %2333 = vmatprep.subr.mxu0 0.0
      %2334 = vmatpush2.msra.mxu0 0.0
      %2335 = vmatprep.subr.mxu0 0.0
      %2336 = vmatpush2.msra.mxu0 0.0
      %2337 = vmatprep.subr.mxu0 0.0
      %2338 = vmatpush2.msra.mxu0 0.0
      %2339 = vmatprep.subr.mxu0 0.0
      %2340 = vmatpush2.msra.mxu0 0.0
      %2341 = vmatprep.subr.mxu0 0.0
      %2342 = vmatpush2.msra.mxu0 0.0
      %2343 = vmatprep.subr.mxu0 0.0
      %2344 = vmatpush2.msra.mxu0 0.0
      %2345 = vmatprep.subr.mxu0 0.0
      %2346 = vmatpush2.msra.mxu0 0.0
      %2347 = vmatprep.subr.mxu0 0.0
      %2348 = vmatpush2.msra.mxu0 0.0
      %2349 = vmatprep.subr.mxu0 0.0
      %2350 = vmatpush2.msra.mxu0 0.0
      %2351 = vmatprep.subr.mxu0 0.0
      %2352 = vmatpush2.msra.mxu0 0.0
      %2353 = vmatprep.mubr.f32.mxu0 0.0
      %2354 = vmatmul.mubr.f32.gmra.mxu0 %v2287
      %v2355 = vpop.f32.mrf.mxu0
      %v2356 = vadd.f32 0.0, %v2355
      %v2357 = vpop.f32.mrf.mxu0
      %2358 = vdwg.mxu0
      %v2359 = vld [vmem:[%s538 + $0x17] sm:$0x1]
      %v2361 = vlaneseq
      %v2362 = vshrl.u32 %v2361, 7
      %v2363 = vsub.s32 0, %v2362
      %v2364 = vrot.slane %v2359, %v2363
      %v2366 = vmul.f32 %v2356, %v2364
      %v2367 = vadd.f32 %v2282, %v2366
      %vm2368 = vcmp.eq.s32.totalorder %v2102, %v2100
      %v2369 = vsel %vm2368, 1.0, 0.0
      %v2371 = vsel %vm1085, %v2369, 0
      %2373 = vmatprep.subr.mxu0 0.0
      %2374 = vmatpush1.msra.mxu0 0.0
      %2375 = vmatprep.subr.mxu0 0.0
      %2376 = vmatpush1.msra.mxu0 0.0
      %2377 = vmatprep.subr.mxu0 0.0
      %2378 = vmatpush1.msra.mxu0 0.0
      %2379 = vmatprep.subr.mxu0 0.0
      %2380 = vmatpush1.msra.mxu0 0.0
      %2381 = vmatprep.subr.mxu0 0.0
      %2382 = vmatpush1.msra.mxu0 0.0
      %2383 = vmatprep.subr.mxu0 0.0
      %2384 = vmatpush1.msra.mxu0 0.0
      %2385 = vmatprep.subr.mxu0 0.0
      %2386 = vmatpush1.msra.mxu0 0.0
      %2387 = vmatprep.subr.mxu0 0.0
      %2388 = vmatpush1.msra.mxu0 0.0
      %2389 = vmatprep.subr.mxu0 0.0
      %2390 = vmatpush1.msra.mxu0 0.0
      %2391 = vmatprep.subr.mxu0 0.0
      %2392 = vmatpush1.msra.mxu0 0.0
      %2393 = vmatprep.subr.mxu0 0.0
      %2394 = vmatpush1.msra.mxu0 0.0
      %2395 = vmatprep.subr.mxu0 0.0
      %2396 = vmatpush1.msra.mxu0 0.0
      %2397 = vmatprep.subr.mxu0 0.0
      %2398 = vmatpush1.msra.mxu0 0.0
      %2399 = vmatprep.subr.mxu0 0.0
      %2400 = vmatpush1.msra.mxu0 0.0
      %2401 = vmatprep.subr.mxu0 0.0
      %2402 = vmatpush1.msra.mxu0 0.0
      %2403 = vmatprep.subr.mxu0 0.0
      %2404 = vmatpush1.msra.mxu0 %v2111
      %2405 = vmatprep.subr.mxu0 0.0
      %2406 = vmatpush2.msra.mxu0 0.0
      %2407 = vmatprep.subr.mxu0 0.0
      %2408 = vmatpush2.msra.mxu0 0.0
      %2409 = vmatprep.subr.mxu0 0.0
      %2410 = vmatpush2.msra.mxu0 0.0
      %2411 = vmatprep.subr.mxu0 0.0
      %2412 = vmatpush2.msra.mxu0 0.0
      %2413 = vmatprep.subr.mxu0 0.0
      %2414 = vmatpush2.msra.mxu0 0.0
      %2415 = vmatprep.subr.mxu0 0.0
      %2416 = vmatpush2.msra.mxu0 0.0
      %2417 = vmatprep.subr.mxu0 0.0
      %2418 = vmatpush2.msra.mxu0 0.0
      %2419 = vmatprep.subr.mxu0 0.0
      %2420 = vmatpush2.msra.mxu0 0.0
      %2421 = vmatprep.subr.mxu0 0.0
      %2422 = vmatpush2.msra.mxu0 0.0
      %2423 = vmatprep.subr.mxu0 0.0
      %2424 = vmatpush2.msra.mxu0 0.0
      %2425 = vmatprep.subr.mxu0 0.0
      %2426 = vmatpush2.msra.mxu0 0.0
      %2427 = vmatprep.subr.mxu0 0.0
      %2428 = vmatpush2.msra.mxu0 0.0
      %2429 = vmatprep.subr.mxu0 0.0
      %2430 = vmatpush2.msra.mxu0 0.0
      %2431 = vmatprep.subr.mxu0 0.0
      %2432 = vmatpush2.msra.mxu0 0.0
      %2433 = vmatprep.subr.mxu0 0.0
      %2434 = vmatpush2.msra.mxu0 0.0
      %2435 = vmatprep.subr.mxu0 0.0
      %2436 = vmatpush2.msra.mxu0 0.0
      %2437 = vmatprep.mubr.f32.mxu0 0.0
      %2438 = vmatmul.mubr.f32.gmra.mxu0 %v2371
      %v2439 = vpop.f32.mrf.mxu0
      %v2440 = vadd.f32 0.0, %v2439
      %v2441 = vpop.f32.mrf.mxu0
      %2442 = vdwg.mxu0
      %v2443 = vld [vmem:[%s538 + $0x18] sm:$0x1]
      %v2445 = vlaneseq
      %v2446 = vshrl.u32 %v2445, 7
      %v2447 = vsub.s32 0, %v2446
      %v2448 = vrot.slane %v2443, %v2447
      %v2450 = vmul.f32 %v2440, %v2448
      %v2451 = vadd.f32 %v2367, %v2450
      %v2452 = vadd.s32 %v2100, 1
      %vm2453 = vcmp.eq.s32.totalorder %v2102, %v2452
      %v2454 = vsel %vm2453, 1.0, 0.0
      %v2456 = vsel %vm1085, %v2454, 0
      %2458 = vmatprep.subr.mxu0 0.0
      %2459 = vmatpush1.msra.mxu0 0.0
      %2460 = vmatprep.subr.mxu0 0.0
      %2461 = vmatpush1.msra.mxu0 0.0
      %2462 = vmatprep.subr.mxu0 0.0
      %2463 = vmatpush1.msra.mxu0 0.0
      %2464 = vmatprep.subr.mxu0 0.0
      %2465 = vmatpush1.msra.mxu0 0.0
      %2466 = vmatprep.subr.mxu0 0.0
      %2467 = vmatpush1.msra.mxu0 0.0
      %2468 = vmatprep.subr.mxu0 0.0
      %2469 = vmatpush1.msra.mxu0 0.0
      %2470 = vmatprep.subr.mxu0 0.0
      %2471 = vmatpush1.msra.mxu0 0.0
      %2472 = vmatprep.subr.mxu0 0.0
      %2473 = vmatpush1.msra.mxu0 0.0
      %2474 = vmatprep.subr.mxu0 0.0
      %2475 = vmatpush1.msra.mxu0 0.0
      %2476 = vmatprep.subr.mxu0 0.0
      %2477 = vmatpush1.msra.mxu0 0.0
      %2478 = vmatprep.subr.mxu0 0.0
      %2479 = vmatpush1.msra.mxu0 0.0
      %2480 = vmatprep.subr.mxu0 0.0
      %2481 = vmatpush1.msra.mxu0 0.0
      %2482 = vmatprep.subr.mxu0 0.0
      %2483 = vmatpush1.msra.mxu0 0.0
      %2484 = vmatprep.subr.mxu0 0.0
      %2485 = vmatpush1.msra.mxu0 0.0
      %2486 = vmatprep.subr.mxu0 0.0
      %2487 = vmatpush1.msra.mxu0 0.0
      %2488 = vmatprep.subr.mxu0 0.0
      %2489 = vmatpush1.msra.mxu0 %v2111
      %2490 = vmatprep.subr.mxu0 0.0
      %2491 = vmatpush2.msra.mxu0 0.0
      %2492 = vmatprep.subr.mxu0 0.0
      %2493 = vmatpush2.msra.mxu0 0.0
      %2494 = vmatprep.subr.mxu0 0.0
      %2495 = vmatpush2.msra.mxu0 0.0
      %2496 = vmatprep.subr.mxu0 0.0
      %2497 = vmatpush2.msra.mxu0 0.0
      %2498 = vmatprep.subr.mxu0 0.0
      %2499 = vmatpush2.msra.mxu0 0.0
      %2500 = vmatprep.subr.mxu0 0.0
      %2501 = vmatpush2.msra.mxu0 0.0
      %2502 = vmatprep.subr.mxu0 0.0
      %2503 = vmatpush2.msra.mxu0 0.0
      %2504 = vmatprep.subr.mxu0 0.0
      %2505 = vmatpush2.msra.mxu0 0.0
      %2506 = vmatprep.subr.mxu0 0.0
      %2507 = vmatpush2.msra.mxu0 0.0
      %2508 = vmatprep.subr.mxu0 0.0
      %2509 = vmatpush2.msra.mxu0 0.0
      %2510 = vmatprep.subr.mxu0 0.0
      %2511 = vmatpush2.msra.mxu0 0.0
      %2512 = vmatprep.subr.mxu0 0.0
      %2513 = vmatpush2.msra.mxu0 0.0
      %2514 = vmatprep.subr.mxu0 0.0
      %2515 = vmatpush2.msra.mxu0 0.0
      %2516 = vmatprep.subr.mxu0 0.0
      %2517 = vmatpush2.msra.mxu0 0.0
      %2518 = vmatprep.subr.mxu0 0.0
      %2519 = vmatpush2.msra.mxu0 0.0
      %2520 = vmatprep.subr.mxu0 0.0
      %2521 = vmatpush2.msra.mxu0 0.0
      %2522 = vmatprep.mubr.f32.mxu0 0.0
      %2523 = vmatmul.mubr.f32.gmra.mxu0 %v2456
      %v2524 = vpop.f32.mrf.mxu0
      %v2525 = vadd.f32 0.0, %v2524
      %v2526 = vpop.f32.mrf.mxu0
      %2527 = vdwg.mxu0
      %v2528 = vld [vmem:[%s538 + $0x19] sm:$0x1]
      %v2530 = vlaneseq
      %v2531 = vshrl.u32 %v2530, 7
      %v2532 = vsub.s32 0, %v2531
      %v2533 = vrot.slane %v2528, %v2532
      %v2535 = vmul.f32 %v2525, %v2533
      %v2536 = vadd.f32 %v2451, %v2535
      %v2537 = vadd.s32 %v2100, 2
      %vm2538 = vcmp.eq.s32.totalorder %v2102, %v2537
      %v2539 = vsel %vm2538, 1.0, 0.0
      %v2541 = vsel %vm1085, %v2539, 0
      %2543 = vmatprep.subr.mxu0 0.0
      %2544 = vmatpush1.msra.mxu0 0.0
      %2545 = vmatprep.subr.mxu0 0.0
      %2546 = vmatpush1.msra.mxu0 0.0
      %2547 = vmatprep.subr.mxu0 0.0
      %2548 = vmatpush1.msra.mxu0 0.0
      %2549 = vmatprep.subr.mxu0 0.0
      %2550 = vmatpush1.msra.mxu0 0.0
      %2551 = vmatprep.subr.mxu0 0.0
      %2552 = vmatpush1.msra.mxu0 0.0
      %2553 = vmatprep.subr.mxu0 0.0
      %2554 = vmatpush1.msra.mxu0 0.0
      %2555 = vmatprep.subr.mxu0 0.0
      %2556 = vmatpush1.msra.mxu0 0.0
      %2557 = vmatprep.subr.mxu0 0.0
      %2558 = vmatpush1.msra.mxu0 0.0
      %2559 = vmatprep.subr.mxu0 0.0
      %2560 = vmatpush1.msra.mxu0 0.0
      %2561 = vmatprep.subr.mxu0 0.0
      %2562 = vmatpush1.msra.mxu0 0.0
      %2563 = vmatprep.subr.mxu0 0.0
      %2564 = vmatpush1.msra.mxu0 0.0
      %2565 = vmatprep.subr.mxu0 0.0
      %2566 = vmatpush1.msra.mxu0 0.0
      %2567 = vmatprep.subr.mxu0 0.0
      %2568 = vmatpush1.msra.mxu0 0.0
      %2569 = vmatprep.subr.mxu0 0.0
      %2570 = vmatpush1.msra.mxu0 0.0
      %2571 = vmatprep.subr.mxu0 0.0
      %2572 = vmatpush1.msra.mxu0 0.0
      %2573 = vmatprep.subr.mxu0 0.0
      %2574 = vmatpush1.msra.mxu0 %v2111
      %2575 = vmatprep.subr.mxu0 0.0
      %2576 = vmatpush2.msra.mxu0 0.0
      %2577 = vmatprep.subr.mxu0 0.0
      %2578 = vmatpush2.msra.mxu0 0.0
      %2579 = vmatprep.subr.mxu0 0.0
      %2580 = vmatpush2.msra.mxu0 0.0
      %2581 = vmatprep.subr.mxu0 0.0
      %2582 = vmatpush2.msra.mxu0 0.0
      %2583 = vmatprep.subr.mxu0 0.0
      %2584 = vmatpush2.msra.mxu0 0.0
      %2585 = vmatprep.subr.mxu0 0.0
      %2586 = vmatpush2.msra.mxu0 0.0
      %2587 = vmatprep.subr.mxu0 0.0
      %2588 = vmatpush2.msra.mxu0 0.0
      %2589 = vmatprep.subr.mxu0 0.0
      %2590 = vmatpush2.msra.mxu0 0.0
      %2591 = vmatprep.subr.mxu0 0.0
      %2592 = vmatpush2.msra.mxu0 0.0
      %2593 = vmatprep.subr.mxu0 0.0
      %2594 = vmatpush2.msra.mxu0 0.0
      %2595 = vmatprep.subr.mxu0 0.0
      %2596 = vmatpush2.msra.mxu0 0.0
      %2597 = vmatprep.subr.mxu0 0.0
      %2598 = vmatpush2.msra.mxu0 0.0
      %2599 = vmatprep.subr.mxu0 0.0
      %2600 = vmatpush2.msra.mxu0 0.0
      %2601 = vmatprep.subr.mxu0 0.0
      %2602 = vmatpush2.msra.mxu0 0.0
      %2603 = vmatprep.subr.mxu0 0.0
      %2604 = vmatpush2.msra.mxu0 0.0
      %2605 = vmatprep.subr.mxu0 0.0
      %2606 = vmatpush2.msra.mxu0 0.0
      %2607 = vmatprep.mubr.f32.mxu0 0.0
      %2608 = vmatmul.mubr.f32.gmra.mxu0 %v2541
      %v2609 = vpop.f32.mrf.mxu0
      %v2610 = vadd.f32 0.0, %v2609
      %v2611 = vpop.f32.mrf.mxu0
      %2612 = vdwg.mxu0
      %v2613 = vld [vmem:[%s538 + $0x1a] sm:$0x1]
      %v2615 = vlaneseq
      %v2616 = vshrl.u32 %v2615, 7
      %v2617 = vsub.s32 0, %v2616
      %v2618 = vrot.slane %v2613, %v2617
      %v2620 = vmul.f32 %v2610, %v2618
      %v2621 = vadd.f32 %v2536, %v2620
      %v2622 = vadd.s32 %v2100, 3
      %vm2623 = vcmp.eq.s32.totalorder %v2102, %v2622
      %v2624 = vsel %vm2623, 1.0, 0.0
      %v2626 = vsel %vm1085, %v2624, 0
      %2628 = vmatprep.subr.mxu0 0.0
      %2629 = vmatpush1.msra.mxu0 0.0
      %2630 = vmatprep.subr.mxu0 0.0
      %2631 = vmatpush1.msra.mxu0 0.0
      %2632 = vmatprep.subr.mxu0 0.0
      %2633 = vmatpush1.msra.mxu0 0.0
      %2634 = vmatprep.subr.mxu0 0.0
      %2635 = vmatpush1.msra.mxu0 0.0
      %2636 = vmatprep.subr.mxu0 0.0
      %2637 = vmatpush1.msra.mxu0 0.0
      %2638 = vmatprep.subr.mxu0 0.0
      %2639 = vmatpush1.msra.mxu0 0.0
      %2640 = vmatprep.subr.mxu0 0.0
      %2641 = vmatpush1.msra.mxu0 0.0
      %2642 = vmatprep.subr.mxu0 0.0
      %2643 = vmatpush1.msra.mxu0 0.0
      %2644 = vmatprep.subr.mxu0 0.0
      %2645 = vmatpush1.msra.mxu0 0.0
      %2646 = vmatprep.subr.mxu0 0.0
      %2647 = vmatpush1.msra.mxu0 0.0
      %2648 = vmatprep.subr.mxu0 0.0
      %2649 = vmatpush1.msra.mxu0 0.0
      %2650 = vmatprep.subr.mxu0 0.0
      %2651 = vmatpush1.msra.mxu0 0.0
      %2652 = vmatprep.subr.mxu0 0.0
      %2653 = vmatpush1.msra.mxu0 0.0
      %2654 = vmatprep.subr.mxu0 0.0
      %2655 = vmatpush1.msra.mxu0 0.0
      %2656 = vmatprep.subr.mxu0 0.0
      %2657 = vmatpush1.msra.mxu0 0.0
      %2658 = vmatprep.subr.mxu0 0.0
      %2659 = vmatpush1.msra.mxu0 %v2111
      %2660 = vmatprep.subr.mxu0 0.0
      %2661 = vmatpush2.msra.mxu0 0.0
      %2662 = vmatprep.subr.mxu0 0.0
      %2663 = vmatpush2.msra.mxu0 0.0
      %2664 = vmatprep.subr.mxu0 0.0
      %2665 = vmatpush2.msra.mxu0 0.0
      %2666 = vmatprep.subr.mxu0 0.0
      %2667 = vmatpush2.msra.mxu0 0.0
      %2668 = vmatprep.subr.mxu0 0.0
      %2669 = vmatpush2.msra.mxu0 0.0
      %2670 = vmatprep.subr.mxu0 0.0
      %2671 = vmatpush2.msra.mxu0 0.0
      %2672 = vmatprep.subr.mxu0 0.0
      %2673 = vmatpush2.msra.mxu0 0.0
      %2674 = vmatprep.subr.mxu0 0.0
      %2675 = vmatpush2.msra.mxu0 0.0
      %2676 = vmatprep.subr.mxu0 0.0
      %2677 = vmatpush2.msra.mxu0 0.0
      %2678 = vmatprep.subr.mxu0 0.0
      %2679 = vmatpush2.msra.mxu0 0.0
      %2680 = vmatprep.subr.mxu0 0.0
      %2681 = vmatpush2.msra.mxu0 0.0
      %2682 = vmatprep.subr.mxu0 0.0
      %2683 = vmatpush2.msra.mxu0 0.0
      %2684 = vmatprep.subr.mxu0 0.0
      %2685 = vmatpush2.msra.mxu0 0.0
      %2686 = vmatprep.subr.mxu0 0.0
      %2687 = vmatpush2.msra.mxu0 0.0
      %2688 = vmatprep.subr.mxu0 0.0
      %2689 = vmatpush2.msra.mxu0 0.0
      %2690 = vmatprep.subr.mxu0 0.0
      %2691 = vmatpush2.msra.mxu0 0.0
      %2692 = vmatprep.mubr.f32.mxu0 0.0
      %2693 = vmatmul.mubr.f32.gmra.mxu0 %v2626
      %v2694 = vpop.f32.mrf.mxu0
      %v2695 = vadd.f32 0.0, %v2694
      %v2696 = vpop.f32.mrf.mxu0
      %2697 = vdwg.mxu0
      %v2698 = vld [vmem:[%s538 + $0x1b] sm:$0x1]
      %v2700 = vlaneseq
      %v2701 = vshrl.u32 %v2700, 7
      %v2702 = vsub.s32 0, %v2701
      %v2703 = vrot.slane %v2698, %v2702
      %v2705 = vmul.f32 %v2695, %v2703
      %v2706 = vadd.f32 %v2621, %v2705
      %v2707 = vld [vmem:[%s538 + $0xc] sm:$0x1]
      %v2708 = vld [vmem:[%s538 + $0x12] sm:$0x1]
      %v2709 = vsel %vm655, %v2706, 0.0
      %2710 = vadd.xlane.f32.xlu0 %v2709
      %v2711 = vpop.xlane.xlu0 %2710
      %v2712 = vmul.f32 %v2711, %v659
      %v2713 = vsub.f32 %v2706, %v2712
      %v2714 = vmul.f32 %v2713, %v2713
      %v2715 = vsel %vm655, %v2714, 0.0
      %2716 = vadd.xlane.f32.xlu0 %v2715
      %v2717 = vpop.xlane.xlu0 %2716
      %v2718 = vmul.f32 %v2717, %v659
      %v2719 = vadd.f32 %v2718, 1e-05
      %v2720 = vrsqrt.pop %v2719
      %v2721 = vmul.f32 %v2713, %v2720
      %v2723 = vlaneseq
      %v2724 = vshrl.u32 %v2723, 7
      %v2725 = vsub.s32 0, %v2724
      %v2726 = vrot.slane %v2707, %v2725
      %v2728 = vmul.f32 %v2721, %v2726
      %v2730 = vlaneseq
      %v2731 = vshrl.u32 %v2730, 7
      %v2732 = vsub.s32 0, %v2731
      %v2733 = vrot.slane %v2708, %v2732
      %v2735 = vadd.f32 %v2728, %v2733
      %v2736 = vxor.u32 %v2735, 2147483648
      %v2737 = vmul.f32 %v2736, 1.442695
      %v2738 = vpow.pop %v2737
      %v2739 = vadd.f32 %v2738, 1.0
      %v2740 = vrcp.pop %v2739
      %v2741 = vmul.f32 1.0, %v2740
      %v2742 = vmul.f32 %v2735, %v2741
      %v2743 = vld [vmem:[%s529 + $0x28] sm:$0xff]
      %v2744 = vld [vmem:[%s529 + $0x58] sm:$0xff]
      %v2745 = vld [vmem:[%s529 + $0x88] sm:$0xff]
      %v2746 = vld [vmem:[%s529 + $0xb8] sm:$0xff]
      %v2747 = vld [vmem:[%s538 + $0x5] sm:$0x1]
      %v2749 = vlaneseq
      %v2750 = vshrl.u32 %v2749, 7
      %v2751 = vsub.s32 0, %v2750
      %v2752 = vrot.slane %v2747, %v2751
      %v2755 = vsel %vm695, %v2742, 0
      %2757 = vmatprep.subr.mxu0 0.0
      %2758 = vmatpush1.msra.mxu0 0.0
      %2759 = vmatprep.subr.mxu0 0.0
      %2760 = vmatpush1.msra.mxu0 0.0
      %2761 = vmatprep.subr.mxu0 0.0
      %2762 = vmatpush1.msra.mxu0 0.0
      %2763 = vmatprep.subr.mxu0 0.0
      %2764 = vmatpush1.msra.mxu0 0.0
      %2765 = vmatprep.subr.mxu0 0.0
      %2766 = vmatpush1.msra.mxu0 0.0
      %2767 = vmatprep.subr.mxu0 0.0
      %2768 = vmatpush1.msra.mxu0 0.0
      %2769 = vmatprep.subr.mxu0 0.0
      %2770 = vmatpush1.msra.mxu0 0.0
      %2771 = vmatprep.subr.mxu0 0.0
      %2772 = vmatpush1.msra.mxu0 0.0
      %2773 = vmatprep.subr.mxu0 0.0
      %2774 = vmatpush1.msra.mxu0 0.0
      %2775 = vmatprep.subr.mxu0 0.0
      %2776 = vmatpush1.msra.mxu0 0.0
      %2777 = vmatprep.subr.mxu0 0.0
      %2778 = vmatpush1.msra.mxu0 0.0
      %2779 = vmatprep.subr.mxu0 0.0
      %2780 = vmatpush1.msra.mxu0 0.0
      %2781 = vmatprep.subr.mxu0 0.0
      %2782 = vmatpush1.msra.mxu0 %v2746
      %2783 = vmatprep.subr.mxu0 0.0
      %2784 = vmatpush1.msra.mxu0 %v2745
      %2785 = vmatprep.subr.mxu0 0.0
      %2786 = vmatpush1.msra.mxu0 %v2744
      %2787 = vmatprep.subr.mxu0 0.0
      %2788 = vmatpush1.msra.mxu0 %v2743
      %2789 = vmatprep.subr.mxu0 0.0
      %2790 = vmatpush2.msra.mxu0 0.0
      %2791 = vmatprep.subr.mxu0 0.0
      %2792 = vmatpush2.msra.mxu0 0.0
      %2793 = vmatprep.subr.mxu0 0.0
      %2794 = vmatpush2.msra.mxu0 0.0
      %2795 = vmatprep.subr.mxu0 0.0
      %2796 = vmatpush2.msra.mxu0 0.0
      %2797 = vmatprep.subr.mxu0 0.0
      %2798 = vmatpush2.msra.mxu0 0.0
      %2799 = vmatprep.subr.mxu0 0.0
      %2800 = vmatpush2.msra.mxu0 0.0
      %2801 = vmatprep.subr.mxu0 0.0
      %2802 = vmatpush2.msra.mxu0 0.0
      %2803 = vmatprep.subr.mxu0 0.0
      %2804 = vmatpush2.msra.mxu0 0.0
      %2805 = vmatprep.subr.mxu0 0.0
      %2806 = vmatpush2.msra.mxu0 0.0
      %2807 = vmatprep.subr.mxu0 0.0
      %2808 = vmatpush2.msra.mxu0 0.0
      %2809 = vmatprep.subr.mxu0 0.0
      %2810 = vmatpush2.msra.mxu0 0.0
      %2811 = vmatprep.subr.mxu0 0.0
      %2812 = vmatpush2.msra.mxu0 0.0
      %2813 = vmatprep.subr.mxu0 0.0
      %2814 = vmatpush2.msra.mxu0 0.0
      %2815 = vmatprep.subr.mxu0 0.0
      %2816 = vmatpush2.msra.mxu0 0.0
      %2817 = vmatprep.subr.mxu0 0.0
      %2818 = vmatpush2.msra.mxu0 0.0
      %2819 = vmatprep.subr.mxu0 0.0
      %2820 = vmatpush2.msra.mxu0 0.0
      %2821 = vmatprep.mubr.f32.mxu0 0.0
      %2822 = vmatmul.mubr.f32.gmra.mxu0 %v2755
      %v2823 = vpop.f32.mrf.mxu0
      %v2824 = vadd.f32 %v2752, %v2823
      %v2825 = vpop.f32.mrf.mxu0
      %2826 = vdwg.mxu0
      %v2827 = vadd.f32 %v1968, %v2824
      %v2828 = vld [vmem:[%s538 + $0xd] sm:$0x1]
      %v2829 = vld [vmem:[%s538 + $0x13] sm:$0x1]
      %v2830 = vsel %vm655, %v2827, 0.0
      %2831 = vadd.xlane.f32.xlu0 %v2830
      %v2832 = vpop.xlane.xlu0 %2831
      %v2833 = vmul.f32 %v2832, %v659
      %v2834 = vsub.f32 %v2827, %v2833
      %v2835 = vmul.f32 %v2834, %v2834
      %v2836 = vsel %vm655, %v2835, 0.0
      %2837 = vadd.xlane.f32.xlu0 %v2836
      %v2838 = vpop.xlane.xlu0 %2837
      %v2839 = vmul.f32 %v2838, %v659
      %v2840 = vadd.f32 %v2839, 1e-05
      %v2841 = vrsqrt.pop %v2840
      %v2842 = vmul.f32 %v2834, %v2841
      %v2844 = vlaneseq
      %v2845 = vshrl.u32 %v2844, 7
      %v2846 = vsub.s32 0, %v2845
      %v2847 = vrot.slane %v2828, %v2846
      %v2849 = vmul.f32 %v2842, %v2847
      %v2851 = vlaneseq
      %v2852 = vshrl.u32 %v2851, 7
      %v2853 = vsub.s32 0, %v2852
      %v2854 = vrot.slane %v2829, %v2853
      %v2856 = vadd.f32 %v2849, %v2854
      %v2857 = vld [vmem:[%s529 + $0x8] sm:$0xff]
      %v2858 = vld [vmem:[%s529 + $0x38] sm:$0xff]
      %v2859 = vld [vmem:[%s529 + $0x68] sm:$0xff]
      %v2860 = vld [vmem:[%s529 + $0x98] sm:$0xff]
      %v2861 = vld [vmem:[%s538 + $0x1] sm:$0x1]
      %v2863 = vlaneseq
      %v2864 = vshrl.u32 %v2863, 7
      %v2865 = vsub.s32 0, %v2864
      %v2866 = vrot.slane %v2861, %v2865
      %v2869 = vsel %vm695, %v2856, 0
      %2871 = vmatprep.subr.mxu0 0.0
      %2872 = vmatpush1.msra.mxu0 0.0
      %2873 = vmatprep.subr.mxu0 0.0
      %2874 = vmatpush1.msra.mxu0 0.0
      %2875 = vmatprep.subr.mxu0 0.0
      %2876 = vmatpush1.msra.mxu0 0.0
      %2877 = vmatprep.subr.mxu0 0.0
      %2878 = vmatpush1.msra.mxu0 0.0
      %2879 = vmatprep.subr.mxu0 0.0
      %2880 = vmatpush1.msra.mxu0 0.0
      %2881 = vmatprep.subr.mxu0 0.0
      %2882 = vmatpush1.msra.mxu0 0.0
      %2883 = vmatprep.subr.mxu0 0.0
      %2884 = vmatpush1.msra.mxu0 0.0
      %2885 = vmatprep.subr.mxu0 0.0
      %2886 = vmatpush1.msra.mxu0 0.0
      %2887 = vmatprep.subr.mxu0 0.0
      %2888 = vmatpush1.msra.mxu0 0.0
      %2889 = vmatprep.subr.mxu0 0.0
      %2890 = vmatpush1.msra.mxu0 0.0
      %2891 = vmatprep.subr.mxu0 0.0
      %2892 = vmatpush1.msra.mxu0 0.0
      %2893 = vmatprep.subr.mxu0 0.0
      %2894 = vmatpush1.msra.mxu0 0.0
      %2895 = vmatprep.subr.mxu0 0.0
      %2896 = vmatpush1.msra.mxu0 %v2860
      %2897 = vmatprep.subr.mxu0 0.0
      %2898 = vmatpush1.msra.mxu0 %v2859
      %2899 = vmatprep.subr.mxu0 0.0
      %2900 = vmatpush1.msra.mxu0 %v2858
      %2901 = vmatprep.subr.mxu0 0.0
      %2902 = vmatpush1.msra.mxu0 %v2857
      %2903 = vmatprep.subr.mxu0 0.0
      %2904 = vmatpush2.msra.mxu0 0.0
      %2905 = vmatprep.subr.mxu0 0.0
      %2906 = vmatpush2.msra.mxu0 0.0
      %2907 = vmatprep.subr.mxu0 0.0
      %2908 = vmatpush2.msra.mxu0 0.0
      %2909 = vmatprep.subr.mxu0 0.0
      %2910 = vmatpush2.msra.mxu0 0.0
      %2911 = vmatprep.subr.mxu0 0.0
      %2912 = vmatpush2.msra.mxu0 0.0
      %2913 = vmatprep.subr.mxu0 0.0
      %2914 = vmatpush2.msra.mxu0 0.0
      %2915 = vmatprep.subr.mxu0 0.0
      %2916 = vmatpush2.msra.mxu0 0.0
      %2917 = vmatprep.subr.mxu0 0.0
      %2918 = vmatpush2.msra.mxu0 0.0
      %2919 = vmatprep.subr.mxu0 0.0
      %2920 = vmatpush2.msra.mxu0 0.0
      %2921 = vmatprep.subr.mxu0 0.0
      %2922 = vmatpush2.msra.mxu0 0.0
      %2923 = vmatprep.subr.mxu0 0.0
      %2924 = vmatpush2.msra.mxu0 0.0
      %2925 = vmatprep.subr.mxu0 0.0
      %2926 = vmatpush2.msra.mxu0 0.0
      %2927 = vmatprep.subr.mxu0 0.0
      %2928 = vmatpush2.msra.mxu0 0.0
      %2929 = vmatprep.subr.mxu0 0.0
      %2930 = vmatpush2.msra.mxu0 0.0
      %2931 = vmatprep.subr.mxu0 0.0
      %2932 = vmatpush2.msra.mxu0 0.0
      %2933 = vmatprep.subr.mxu0 0.0
      %2934 = vmatpush2.msra.mxu0 0.0
      %2935 = vmatprep.mubr.f32.mxu0 0.0
      %2936 = vmatmul.mubr.f32.gmra.mxu0 %v2869
      %v2937 = vpop.f32.mrf.mxu0
      %v2938 = vadd.f32 %v2866, %v2937
      %v2939 = vpop.f32.mrf.mxu0
      %2940 = vdwg.mxu0
      %v2941 = vxor.u32 %v2938, 2147483648
      %v2942 = vmul.f32 %v2941, 1.442695
      %v2943 = vpow.pop %v2942
      %v2944 = vadd.f32 %v2943, 1.0
      %v2945 = vrcp.pop %v2944
      %v2946 = vmul.f32 1.0, %v2945
      %v2947 = vmul.f32 %v2938, %v2946
      %v2948 = vld [vmem:[%s534 + $0x40] sm:$0xff]
      %v2949 = vld [vmem:[%s534 + $0x48] sm:$0xff]
      %v2950 = vld [vmem:[%s534 + $0x50] sm:$0xff]
      %v2951 = vld [vmem:[%s534 + $0x58] sm:$0xff]
      %v2952 = vld [vmem:[%s534 + $0x60] sm:$0xff]
      %v2953 = vld [vmem:[%s534 + $0x68] sm:$0xff]
      %v2954 = vld [vmem:[%s534 + $0x70] sm:$0xff]
      %v2955 = vld [vmem:[%s534 + $0x78] sm:$0xff]
      %v2956 = vld [vmem:[%s538 + $0x7] sm:$0x1]
      %v2958 = vlaneseq
      %v2959 = vshrl.u32 %v2958, 7
      %v2960 = vsub.s32 0, %v2959
      %v2961 = vrot.slane %v2956, %v2960
      %v2964 = vsel %vm791, %v2947, 0
      %2966 = vmatprep.subr.mxu0 0.0
      %2967 = vmatpush1.msra.mxu0 0.0
      %2968 = vmatprep.subr.mxu0 0.0
      %2969 = vmatpush1.msra.mxu0 0.0
      %2970 = vmatprep.subr.mxu0 0.0
      %2971 = vmatpush1.msra.mxu0 0.0
      %2972 = vmatprep.subr.mxu0 0.0
      %2973 = vmatpush1.msra.mxu0 0.0
      %2974 = vmatprep.subr.mxu0 0.0
      %2975 = vmatpush1.msra.mxu0 0.0
      %2976 = vmatprep.subr.mxu0 0.0
      %2977 = vmatpush1.msra.mxu0 0.0
      %2978 = vmatprep.subr.mxu0 0.0
      %2979 = vmatpush1.msra.mxu0 0.0
      %2980 = vmatprep.subr.mxu0 0.0
      %2981 = vmatpush1.msra.mxu0 0.0
      %2982 = vmatprep.subr.mxu0 0.0
      %2983 = vmatpush1.msra.mxu0 %v2955
      %2984 = vmatprep.subr.mxu0 0.0
      %2985 = vmatpush1.msra.mxu0 %v2954
      %2986 = vmatprep.subr.mxu0 0.0
      %2987 = vmatpush1.msra.mxu0 %v2953
      %2988 = vmatprep.subr.mxu0 0.0
      %2989 = vmatpush1.msra.mxu0 %v2952
      %2990 = vmatprep.subr.mxu0 0.0
      %2991 = vmatpush1.msra.mxu0 %v2951
      %2992 = vmatprep.subr.mxu0 0.0
      %2993 = vmatpush1.msra.mxu0 %v2950
      %2994 = vmatprep.subr.mxu0 0.0
      %2995 = vmatpush1.msra.mxu0 %v2949
      %2996 = vmatprep.subr.mxu0 0.0
      %2997 = vmatpush1.msra.mxu0 %v2948
      %2998 = vmatprep.subr.mxu0 0.0
      %2999 = vmatpush2.msra.mxu0 0.0
      %3000 = vmatprep.subr.mxu0 0.0
      %3001 = vmatpush2.msra.mxu0 0.0
      %3002 = vmatprep.subr.mxu0 0.0
      %3003 = vmatpush2.msra.mxu0 0.0
      %3004 = vmatprep.subr.mxu0 0.0
      %3005 = vmatpush2.msra.mxu0 0.0
      %3006 = vmatprep.subr.mxu0 0.0
      %3007 = vmatpush2.msra.mxu0 0.0
      %3008 = vmatprep.subr.mxu0 0.0
      %3009 = vmatpush2.msra.mxu0 0.0
      %3010 = vmatprep.subr.mxu0 0.0
      %3011 = vmatpush2.msra.mxu0 0.0
      %3012 = vmatprep.subr.mxu0 0.0
      %3013 = vmatpush2.msra.mxu0 0.0
      %3014 = vmatprep.subr.mxu0 0.0
      %3015 = vmatpush2.msra.mxu0 0.0
      %3016 = vmatprep.subr.mxu0 0.0
      %3017 = vmatpush2.msra.mxu0 0.0
      %3018 = vmatprep.subr.mxu0 0.0
      %3019 = vmatpush2.msra.mxu0 0.0
      %3020 = vmatprep.subr.mxu0 0.0
      %3021 = vmatpush2.msra.mxu0 0.0
      %3022 = vmatprep.subr.mxu0 0.0
      %3023 = vmatpush2.msra.mxu0 0.0
      %3024 = vmatprep.subr.mxu0 0.0
      %3025 = vmatpush2.msra.mxu0 0.0
      %3026 = vmatprep.subr.mxu0 0.0
      %3027 = vmatpush2.msra.mxu0 0.0
      %3028 = vmatprep.subr.mxu0 0.0
      %3029 = vmatpush2.msra.mxu0 0.0
      %3030 = vmatprep.mubr.f32.mxu0 0.0
      %3031 = vmatmul.mubr.f32.gmra.mxu0 %v2964
      %v3032 = vpop.f32.mrf.mxu0
      %v3033 = vadd.f32 %v2961, %v3032
      %v3034 = vpop.f32.mrf.mxu0
      %3035 = vdwg.mxu0
      %v3036 = vmul.f32 %v3033, 0.5
      %v3037 = vadd.f32 %v2827, %v3036
      %v3038 = vld [vmem:[%s538 + $0xe] sm:$0x1]
      %v3039 = vld [vmem:[%s538 + $0x14] sm:$0x1]
      %v3040 = vsel %vm655, %v3037, 0.0
      %3041 = vadd.xlane.f32.xlu0 %v3040
      %v3042 = vpop.xlane.xlu0 %3041
      %v3043 = vmul.f32 %v3042, %v659
      %v3044 = vsub.f32 %v3037, %v3043
      %v3045 = vmul.f32 %v3044, %v3044
      %v3046 = vsel %vm655, %v3045, 0.0
      %3047 = vadd.xlane.f32.xlu0 %v3046
      %v3048 = vpop.xlane.xlu0 %3047
      %v3049 = vmul.f32 %v3048, %v659
      %v3050 = vadd.f32 %v3049, 1e-05
      %v3051 = vrsqrt.pop %v3050
      %v3052 = vmul.f32 %v3044, %v3051
      %v3054 = vlaneseq
      %v3055 = vshrl.u32 %v3054, 7
      %v3056 = vsub.s32 0, %v3055
      %v3057 = vrot.slane %v3038, %v3056
      %v3059 = vmul.f32 %v3052, %v3057
      %v3061 = vlaneseq
      %v3062 = vshrl.u32 %v3061, 7
      %v3063 = vsub.s32 0, %v3062
      %v3064 = vrot.slane %v3039, %v3063
      %v3066 = vadd.f32 %v3059, %v3064
      %3067 = vst.msk [vmem:[#allocation2] sm:$0x7] %vm655, %v3066
      %p3068 = scmp.eq.s32.totalorder %s30, 1
      // Predicated region
      $region73: #{conformer_aed_forward.6} parent=67 // pred_check
        %p3069 = pneg %p3068
      $region74: #{conformer_aed_forward.6} parent=67 // pred_check_branch
        %3071 = sbr.rel (%p3069) target = $region76
      $region75: #{conformer_aed_forward.6} parent=67 // pred_region
        %v3072 = vld [vmem:[%s11] sm:$0x1]
        %v3073 = vsel %vm655, %v3066, 0.0
        %3074 = vadd.xlane.f32.xlu0 %v3073
        %v3075 = vpop.xlane.xlu0 %3074
        %v3076 = vmul.f32 %v3075, %v659
        %v3077 = vsub.f32 %v3066, %v3076
        %v3078 = vmul.f32 %v3077, %v3077
        %v3079 = vsel %vm655, %v3078, 0.0
        %3080 = vadd.xlane.f32.xlu0 %v3079
        %v3081 = vpop.xlane.xlu0 %3080
        %v3082 = vmul.f32 %v3081, %v659
        %v3083 = vadd.f32 %v3082, 1e-05
        %v3084 = vrsqrt.pop %v3083
        %v3085 = vmul.f32 %v3077, %v3084
        %v3087 = vlaneseq
        %v3088 = vshrl.u32 %v3087, 7
        %v3089 = vsub.s32 0, %v3088
        %v3090 = vrot.slane %v3072, %v3089
        %v3092 = vmul.f32 %v3085, %v3090
        %3093 = vrot.lane.b32.xlu0 %v3090, 96
        %v3094 = vpop.permute.xlu0 %3093
        %v3096 = vadd.f32 %v3092, %v3094
        %3097 = vst.msk [vmem:[%s542] sm:$0x7] %vm655, %v3096
        %v3098 = vld [vmem:[%s9] sm:$0xff]
        %v3099 = vld [vmem:[%s9 + $0x8] sm:$0xff]
        %v3100 = vld [vmem:[%s9 + $0x10] sm:$0xff]
        %v3101 = vld [vmem:[%s9 + $0x18] sm:$0xff]
        %v3102 = vld [vmem:[%s10] sm:$0x1]
        %v3104 = vlaneseq
        %v3105 = vshrl.u32 %v3104, 7
        %v3106 = vsub.s32 0, %v3105
        %v3107 = vrot.slane %v3102, %v3106
        %v3110 = vsel %vm695, %v3096, 0
        %3112 = vmatprep.subr.mxu0 0.0
        %3113 = vmatpush1.msra.mxu0 0.0
        %3114 = vmatprep.subr.mxu0 0.0
        %3115 = vmatpush1.msra.mxu0 0.0
        %3116 = vmatprep.subr.mxu0 0.0
        %3117 = vmatpush1.msra.mxu0 0.0
        %3118 = vmatprep.subr.mxu0 0.0
        %3119 = vmatpush1.msra.mxu0 0.0
        %3120 = vmatprep.subr.mxu0 0.0
        %3121 = vmatpush1.msra.mxu0 0.0
        %3122 = vmatprep.subr.mxu0 0.0
        %3123 = vmatpush1.msra.mxu0 0.0
        %3124 = vmatprep.subr.mxu0 0.0
        %3125 = vmatpush1.msra.mxu0 0.0
        %3126 = vmatprep.subr.mxu0 0.0
        %3127 = vmatpush1.msra.mxu0 0.0
        %3128 = vmatprep.subr.mxu0 0.0
        %3129 = vmatpush1.msra.mxu0 0.0
        %3130 = vmatprep.subr.mxu0 0.0
        %3131 = vmatpush1.msra.mxu0 0.0
        %3132 = vmatprep.subr.mxu0 0.0
        %3133 = vmatpush1.msra.mxu0 0.0
        %3134 = vmatprep.subr.mxu0 0.0
        %3135 = vmatpush1.msra.mxu0 0.0
        %3136 = vmatprep.subr.mxu0 0.0
        %3137 = vmatpush1.msra.mxu0 %v3101
        %3138 = vmatprep.subr.mxu0 0.0
        %3139 = vmatpush1.msra.mxu0 %v3100
        %3140 = vmatprep.subr.mxu0 0.0
        %3141 = vmatpush1.msra.mxu0 %v3099
        %3142 = vmatprep.subr.mxu0 0.0
        %3143 = vmatpush1.msra.mxu0 %v3098
        %3144 = vmatprep.subr.mxu0 0.0
        %3145 = vmatpush2.msra.mxu0 0.0
        %3146 = vmatprep.subr.mxu0 0.0
        %3147 = vmatpush2.msra.mxu0 0.0
        %3148 = vmatprep.subr.mxu0 0.0
        %3149 = vmatpush2.msra.mxu0 0.0
        %3150 = vmatprep.subr.mxu0 0.0
        %3151 = vmatpush2.msra.mxu0 0.0
        %3152 = vmatprep.subr.mxu0 0.0
        %3153 = vmatpush2.msra.mxu0 0.0
        %3154 = vmatprep.subr.mxu0 0.0
        %3155 = vmatpush2.msra.mxu0 0.0
        %3156 = vmatprep.subr.mxu0 0.0
        %3157 = vmatpush2.msra.mxu0 0.0
        %3158 = vmatprep.subr.mxu0 0.0
        %3159 = vmatpush2.msra.mxu0 0.0
        %3160 = vmatprep.subr.mxu0 0.0
        %3161 = vmatpush2.msra.mxu0 0.0
        %3162 = vmatprep.subr.mxu0 0.0
        %3163 = vmatpush2.msra.mxu0 0.0
        %3164 = vmatprep.subr.mxu0 0.0
        %3165 = vmatpush2.msra.mxu0 0.0
        %3166 = vmatprep.subr.mxu0 0.0
        %3167 = vmatpush2.msra.mxu0 0.0
        %3168 = vmatprep.subr.mxu0 0.0
        %3169 = vmatpush2.msra.mxu0 0.0
        %3170 = vmatprep.subr.mxu0 0.0
        %3171 = vmatpush2.msra.mxu0 0.0
        %3172 = vmatprep.subr.mxu0 0.0
        %3173 = vmatpush2.msra.mxu0 0.0
        %3174 = vmatprep.subr.mxu0 0.0
        %3175 = vmatpush2.msra.mxu0 0.0
        %3176 = vmatprep.mubr.f32.mxu0 0.0
        %3177 = vmatmul.mubr.f32.gmra.mxu0 %v3110
        %v3178 = vpop.f32.mrf.mxu0
        %v3179 = vadd.f32 %v3107, %v3178
        %v3180 = vpop.f32.mrf.mxu0
        %3181 = vdwg.mxu0
        %3182 = vst [vmem:[%s546] sm:$0x7] %v3179
      $region76: #{conformer_aed_forward.6} parent=67 // pred_fallthru
        _
      %p3183 = scmp.lt.s32.totalorder %s29, 1
      %s3184 = scalar_select %p3183, %s29, 1
      %s3185 = smul.addr %s3184, 4
      %s3186 = scalar_lea.vmem %s12, %s3185
      %p3187 = scmp.lt.s32.totalorder %s29, 1
      %s3188 = scalar_select %p3187, %s29, 1
      %s3189 = smul.addr %s3188, 4
      %s3190 = scalar_lea.vmem %s13, %s3189
      // Predicated region
      $region77: #{conformer_aed_forward.6} parent=67 // pred_check
        %p3191 = pneg %p337
      $region78: #{conformer_aed_forward.6} parent=67 // pred_check_branch
        %3193 = sbr.rel (%p3191) target = $region80
      $region79: #{conformer_aed_forward.6} parent=67 // pred_region
        _
      $region80: #{conformer_aed_forward.6} parent=67 // pred_fallthru
        _
      // Predicated region
      $region81: #{conformer_aed_forward.6} parent=67 // pred_check
        %p3194 = pneg %p363
      $region82: #{conformer_aed_forward.6} parent=67 // pred_check_branch
        %3196 = sbr.rel (%p3194) target = $region84
      $region83: #{conformer_aed_forward.6} parent=67 // pred_region
        _
      $region84: #{conformer_aed_forward.6} parent=67 // pred_fallthru
        _
    $region68: #{conformer_aed_forward.6} parent=5 // pred_fallthru
      _
    %p3197 = scmp.le.s32.totalorder 2, %s20
    // Predicated region
    $region85: #{conformer_aed_forward.6} parent=5 // pred_check
      %p3198 = pneg %p3197
    $region86: #{conformer_aed_forward.6} parent=5 // pred_check_branch
      %3200 = sbr.rel (%p3198) target = $region88
    $region87: #{conformer_aed_forward.6} parent=5 // pred_region
      %s3201 = ssub.s32 %s20, 2
      // Predicated region
      $region89: #{conformer_aed_forward.6} parent=87 // pred_check
        %p3202 = pneg %p343
      $region90: #{conformer_aed_forward.6} parent=87 // pred_check_branch
        %3204 = sbr.rel (%p3202) target = $region92
      $region91: #{conformer_aed_forward.6} parent=87 // pred_region
        %p3205 = scmp.lt.s32.totalorder %s31, 1
        %s3206 = scalar_select %p3205, %s31, 1
        %s3207 = smul.addr %s3206, 4
        %s3208 = scalar_lea.vmem %s12, %s3207
      $region92: #{conformer_aed_forward.6} parent=87 // pred_fallthru
        _
      // Predicated region
      $region93: #{conformer_aed_forward.6} parent=87 // pred_check
        %p3209 = pneg %p369
      $region94: #{conformer_aed_forward.6} parent=87 // pred_check_branch
        %3211 = sbr.rel (%p3209) target = $region96
      $region95: #{conformer_aed_forward.6} parent=87 // pred_region
        %p3212 = scmp.lt.s32.totalorder %s31, 1
        %s3213 = scalar_select %p3212, %s31, 1
        %s3214 = smul.addr %s3213, 4
        %s3215 = scalar_lea.vmem %s13, %s3214
      $region96: #{conformer_aed_forward.6} parent=87 // pred_fallthru
        _
    $region88: #{conformer_aed_forward.6} parent=5 // pred_fallthru
      _
  $region6: #{conformer_aed_forward.6} parent=0 // loop_footer
    %s24 = sadd.s32 1, %s20
  $region7: #{conformer_aed_forward.6} parent=0 // loop_footer_branch
    %19 = sbr.rel target = $region3
  $region8: #{conformer_aed_forward.6} parent=0 // loop_exit
    _

// kernel: conformer_aed_forward.7
$region0: #{conformer_aed_forward.7}
  #allocation0 [shape = 'u32[]', space=smem, size = 0x4, offset = 0x4, fixed_abs, tag = 'smem constant byte address 0x4 - core index']
  #allocation1 [shape = 'u32[144,128]{1,0:T(1,128)}', space=vmem, size = 0x12000, scoped, tag = 'internal scratch']
  #allocation2 [shape = 'f32[6,32]{1,0:T(8,128)}', space=vmem, size = 0x1000, scoped, tag = 'scratch operand']
  %s0 = inlined_call_operand.vmem [shape: f32[2,6,10], index: 0, kind: input, shape index: {}]
  %s1 = inlined_call_operand.vmem [shape: f32[10,32], index: 1, kind: input, shape index: {}]
  %s2 = inlined_call_operand.vmem [shape: f32[6,32], index: 2, kind: input, shape index: {}]
  %s3 = inlined_call_operand.vmem [shape: f32[2,3,32], index: 3, kind: input, shape index: {}]
  %s4 = inlined_call_operand.vmem [shape: f32[2,6,6], index: 4, kind: input, shape index: {}]
  %s5 = inlined_call_operand.vmem [shape: f32[2,1,3], index: 5, kind: input, shape index: {}]
  %s6 = inlined_call_operand.vmem [shape: f32[1,32,768], index: 6, kind: input, shape index: {}]
  %s7 = inlined_call_operand.vmem [shape: f32[1,64,32], index: 7, kind: input, shape index: {}]
  %s8 = inlined_call_operand.vmem [shape: f32[1,1,1664], index: 8, kind: input, shape index: {}]
  %s9 = inlined_call_operand.vmem [shape: f32[32,128], index: 9, kind: input, shape index: {}]
  %s10 = inlined_call_operand.vmem [shape: f32[1,128], index: 10, kind: input, shape index: {}]
  %s11 = inlined_call_operand.vmem [shape: f32[1,64], index: 11, kind: input, shape index: {}]
  %s12 = inlined_call_operand.vmem [shape: f32[2,6,128], index: 12, kind: output, shape index: {}]
  %s13 = sld [smem:[#allocation0]]
  $region89: #{conformer_aed_forward.7} parent=0
    _
  %s15 = ssub.s32 1, %s13
  %s16 = scalar_select 0, %s15, %s13
  loop: start=0, step=1, limit=4
  $region2: #{conformer_aed_forward.7} parent=0 // loop_pre_header
    _
  $region3: #{conformer_aed_forward.7} parent=0 // loop_header
    %s18 = sphi 0, %s22
    %p19 = scmp.ge.s32.totalorder %s18, 4
    %s25 = sphi 0, %s37
    %s26 = sphi 0, %s33
    %s27 = sphi 0, %s25
    %s28 = sphi 0, %s26
    %s29 = sphi 0, %s27
    %s30 = sphi 0, %s28
    %s40 = sphi 0, %s42
    %s43 = sphi 0, %s40
    %s44 = sphi 0, %s43
    %s60 = sphi 0, %s44
    %s64 = sphi 0, %s64
    %s66 = sphi 0, %s64
    %s67 = sphi 0, %s66
    %s81 = sphi 0, %s67
    %s85 = sphi 0, %s85
    %s87 = sphi 0, %s85
    %s88 = sphi 0, %s87
    %s102 = sphi 0, %s88
    %s108 = sphi 0, %s110
    %s111 = sphi 0, %s108
    %s112 = sphi 0, %s111
    %s128 = sphi 0, %s112
    %s134 = sphi 0, %s136
    %s137 = sphi 0, %s134
    %s138 = sphi 0, %s137
    %s154 = sphi 0, %s138
    %s160 = sphi 0, %s162
    %s163 = sphi 0, %s160
    %s164 = sphi 0, %s163
    %s180 = sphi 0, %s164
    %s186 = sphi 0, %s188
    %s189 = sphi 0, %s186
    %s190 = sphi 0, %s189
    %s206 = sphi 0, %s190
    %s212 = sphi 0, %s214
    %s215 = sphi 0, %s212
    %s216 = sphi 0, %s215
    %s232 = sphi 0, %s216
    %s238 = sphi 0, %s240
    %s241 = sphi 0, %s238
    %s242 = sphi 0, %s241
    %s258 = sphi 0, %s242
    %s262 = sphi 0, %s262
    %s264 = sphi 0, %s262
    %s265 = sphi 0, %s264
    %s279 = sphi 0, %s265
    %s283 = sphi 0, %s283
    %s285 = sphi 0, %s283
    %s286 = sphi 0, %s285
    %s300 = sphi 0, %s286
    %s304 = sphi 0, %s304
    %s306 = sphi 0, %s304
    %s307 = sphi 0, %s306
    %s321 = sphi 0, %s307
    %s327 = sphi 0, %s329
    %s330 = sphi 0, %s327
    %s331 = sphi 0, %s330
    %s347 = sphi 0, %s331
  $region4: #{conformer_aed_forward.7} parent=0 // loop_header_branch
    %21 = sbr.rel (%p19) target = $region8
  $region5: #{conformer_aed_forward.7} parent=0 // loop_body
    %s23 = ssub.s32 %s18, 1
    %s24 = ssub.s32 %s18, 2
    %s31 = sadd.s32 1, %s26
    %p32 = scmp.ge.s32.totalorder %s31, 1
    %s33 = scalar_select %p32, 0, %s31
    %s34 = sadd.s32 1, %s25
    %s35 = scalar_select %p32, %s34, %s25
    %p36 = scmp.ge.s32.totalorder %s35, 2
    %s37 = scalar_select %p36, 0, %s35
    %s38 = ssub.s32 %s25, %s37
    %p39 = scmp.eq.s32.totalorder %s38, 0
    %s41 = sadd.s32 %s40, 1
    %s42 = scalar_select %p39, %s40, %s41
    %p45 = pneg %p39
    %p46 = scmp.eq.s32.totalorder %s18, 1
    %p47 = por %p45, %p46
    %p48 = scmp.ne.s32.totalorder %s40, %s43
    %p49 = scmp.eq.s32.totalorder %s18, 0
    %p50 = por %p48, %p49
    %p51 = scmp.ne.s32.totalorder %s40, %s43
    %p52 = scmp.eq.s32.totalorder %s23, 1
    %p53 = por %p51, %p52
    %p54 = scmp.ne.s32.totalorder %s43, %s44
    %p55 = scmp.eq.s32.totalorder %s23, 0
    %p56 = por %p54, %p55
    %p57 = scmp.ne.s32.totalorder %s43, %s44
    %p58 = scmp.eq.s32.totalorder %s24, 1
    %p59 = por %p57, %p58
    %p61 = scmp.ne.s32.totalorder %s44, %s60
    %p62 = scmp.eq.s32.totalorder %s24, 0
    %p63 = por %p61, %p62
    %s65 = sadd.s32 %s64, 1
    %p68 = scmp.eq.s32.totalorder %s18, 1
    %p69 = scmp.ne.s32.totalorder %s64, %s66
    %p70 = scmp.eq.s32.totalorder %s18, 0
    %p71 = por %p69, %p70
    %p72 = scmp.ne.s32.totalorder %s64, %s66
    %p73 = scmp.eq.s32.totalorder %s23, 1
    %p74 = por %p72, %p73
    %p75 = scmp.ne.s32.totalorder %s66, %s67
    %p76 = scmp.eq.s32.totalorder %s23, 0
    %p77 = por %p75, %p76
    %p78 = scmp.ne.s32.totalorder %s66, %s67
    %p79 = scmp.eq.s32.totalorder %s24, 1
    %p80 = por %p78, %p79
    %p82 = scmp.ne.s32.totalorder %s67, %s81
    %p83 = scmp.eq.s32.totalorder %s24, 0
    %p84 = por %p82, %p83
    %s86 = sadd.s32 %s85, 1
    %p89 = scmp.eq.s32.totalorder %s18, 1
    %p90 = scmp.ne.s32.totalorder %s85, %s87
    %p91 = scmp.eq.s32.totalorder %s18, 0
    %p92 = por %p90, %p91
    %p93 = scmp.ne.s32.totalorder %s85, %s87
    %p94 = scmp.eq.s32.totalorder %s23, 1
    %p95 = por %p93, %p94
    %p96 = scmp.ne.s32.totalorder %s87, %s88
    %p97 = scmp.eq.s32.totalorder %s23, 0
    %p98 = por %p96, %p97
    %p99 = scmp.ne.s32.totalorder %s87, %s88
    %p100 = scmp.eq.s32.totalorder %s24, 1
    %p101 = por %p99, %p100
    %p103 = scmp.ne.s32.totalorder %s88, %s102
    %p104 = scmp.eq.s32.totalorder %s24, 0
    %p105 = por %p103, %p104
    %s106 = ssub.s32 %s25, %s37
    %p107 = scmp.eq.s32.totalorder %s106, 0
    %s109 = sadd.s32 %s108, 1
    %s110 = scalar_select %p107, %s108, %s109
    %p113 = pneg %p107
    %p114 = scmp.eq.s32.totalorder %s18, 1
    %p115 = por %p113, %p114
    %p116 = scmp.ne.s32.totalorder %s108, %s111
    %p117 = scmp.eq.s32.totalorder %s18, 0
    %p118 = por %p116, %p117
    %p119 = scmp.ne.s32.totalorder %s108, %s111
    %p120 = scmp.eq.s32.totalorder %s23, 1
    %p121 = por %p119, %p120
    %p122 = scmp.ne.s32.totalorder %s111, %s112
    %p123 = scmp.eq.s32.totalorder %s23, 0
    %p124 = por %p122, %p123
    %p125 = scmp.ne.s32.totalorder %s111, %s112
    %p126 = scmp.eq.s32.totalorder %s24, 1
    %p127 = por %p125, %p126
    %p129 = scmp.ne.s32.totalorder %s112, %s128
    %p130 = scmp.eq.s32.totalorder %s24, 0
    %p131 = por %p129, %p130
    %s132 = ssub.s32 %s25, %s37
    %p133 = scmp.eq.s32.totalorder %s132, 0
    %s135 = sadd.s32 %s134, 1
    %s136 = scalar_select %p133, %s134, %s135
    %p139 = pneg %p133
    %p140 = scmp.eq.s32.totalorder %s18, 1
    %p141 = por %p139, %p140
    %p142 = scmp.ne.s32.totalorder %s134, %s137
    %p143 = scmp.eq.s32.totalorder %s18, 0
    %p144 = por %p142, %p143
    %p145 = scmp.ne.s32.totalorder %s134, %s137
    %p146 = scmp.eq.s32.totalorder %s23, 1
    %p147 = por %p145, %p146
    %p148 = scmp.ne.s32.totalorder %s137, %s138
    %p149 = scmp.eq.s32.totalorder %s23, 0
    %p150 = por %p148, %p149
    %p151 = scmp.ne.s32.totalorder %s137, %s138
    %p152 = scmp.eq.s32.totalorder %s24, 1
    %p153 = por %p151, %p152
    %p155 = scmp.ne.s32.totalorder %s138, %s154
    %p156 = scmp.eq.s32.totalorder %s24, 0
    %p157 = por %p155, %p156
    %s158 = ssub.s32 %s25, %s37
    %p159 = scmp.eq.s32.totalorder %s158, 0
    %s161 = sadd.s32 %s160, 1
    %s162 = scalar_select %p159, %s160, %s161
    %p165 = pneg %p159
    %p166 = scmp.eq.s32.totalorder %s18, 1
    %p167 = por %p165, %p166
    %p168 = scmp.ne.s32.totalorder %s160, %s163
    %p169 = scmp.eq.s32.totalorder %s18, 0
    %p170 = por %p168, %p169
    %p171 = scmp.ne.s32.totalorder %s160, %s163
    %p172 = scmp.eq.s32.totalorder %s23, 1
    %p173 = por %p171, %p172
    %p174 = scmp.ne.s32.totalorder %s163, %s164
    %p175 = scmp.eq.s32.totalorder %s23, 0
    %p176 = por %p174, %p175
    %p177 = scmp.ne.s32.totalorder %s163, %s164
    %p178 = scmp.eq.s32.totalorder %s24, 1
    %p179 = por %p177, %p178
    %p181 = scmp.ne.s32.totalorder %s164, %s180
    %p182 = scmp.eq.s32.totalorder %s24, 0
    %p183 = por %p181, %p182
    %s184 = ssub.s32 %s26, %s33
    %p185 = scmp.eq.s32.totalorder %s184, 0
    %s187 = sadd.s32 %s186, 1
    %s188 = scalar_select %p185, %s186, %s187
    %p191 = pneg %p185
    %p192 = scmp.eq.s32.totalorder %s18, 1
    %p193 = por %p191, %p192
    %p194 = scmp.ne.s32.totalorder %s186, %s189
    %p195 = scmp.eq.s32.totalorder %s18, 0
    %p196 = por %p194, %p195
    %p197 = scmp.ne.s32.totalorder %s186, %s189
    %p198 = scmp.eq.s32.totalorder %s23, 1
    %p199 = por %p197, %p198
    %p200 = scmp.ne.s32.totalorder %s189, %s190
    %p201 = scmp.eq.s32.totalorder %s23, 0
    %p202 = por %p200, %p201
    %p203 = scmp.ne.s32.totalorder %s189, %s190
    %p204 = scmp.eq.s32.totalorder %s24, 1
    %p205 = por %p203, %p204
    %p207 = scmp.ne.s32.totalorder %s190, %s206
    %p208 = scmp.eq.s32.totalorder %s24, 0
    %p209 = por %p207, %p208
    %s210 = ssub.s32 %s26, %s33
    %p211 = scmp.eq.s32.totalorder %s210, 0
    %s213 = sadd.s32 %s212, 1
    %s214 = scalar_select %p211, %s212, %s213
    %p217 = pneg %p211
    %p218 = scmp.eq.s32.totalorder %s18, 1
    %p219 = por %p217, %p218
    %p220 = scmp.ne.s32.totalorder %s212, %s215
    %p221 = scmp.eq.s32.totalorder %s18, 0
    %p222 = por %p220, %p221
    %p223 = scmp.ne.s32.totalorder %s212, %s215
    %p224 = scmp.eq.s32.totalorder %s23, 1
    %p225 = por %p223, %p224
    %p226 = scmp.ne.s32.totalorder %s215, %s216
    %p227 = scmp.eq.s32.totalorder %s23, 0
    %p228 = por %p226, %p227
    %p229 = scmp.ne.s32.totalorder %s215, %s216
    %p230 = scmp.eq.s32.totalorder %s24, 1
    %p231 = por %p229, %p230
    %p233 = scmp.ne.s32.totalorder %s216, %s232
    %p234 = scmp.eq.s32.totalorder %s24, 0
    %p235 = por %p233, %p234
    %s236 = ssub.s32 %s26, %s33
    %p237 = scmp.eq.s32.totalorder %s236, 0
    %s239 = sadd.s32 %s238, 1
    %s240 = scalar_select %p237, %s238, %s239
    %p243 = pneg %p237
    %p244 = scmp.eq.s32.totalorder %s18, 1
    %p245 = por %p243, %p244
    %p246 = scmp.ne.s32.totalorder %s238, %s241
    %p247 = scmp.eq.s32.totalorder %s18, 0
    %p248 = por %p246, %p247
    %p249 = scmp.ne.s32.totalorder %s238, %s241
    %p250 = scmp.eq.s32.totalorder %s23, 1
    %p251 = por %p249, %p250
    %p252 = scmp.ne.s32.totalorder %s241, %s242
    %p253 = scmp.eq.s32.totalorder %s23, 0
    %p254 = por %p252, %p253
    %p255 = scmp.ne.s32.totalorder %s241, %s242
    %p256 = scmp.eq.s32.totalorder %s24, 1
    %p257 = por %p255, %p256
    %p259 = scmp.ne.s32.totalorder %s242, %s258
    %p260 = scmp.eq.s32.totalorder %s24, 0
    %p261 = por %p259, %p260
    %s263 = sadd.s32 %s262, 1
    %p266 = scmp.eq.s32.totalorder %s18, 1
    %p267 = scmp.ne.s32.totalorder %s262, %s264
    %p268 = scmp.eq.s32.totalorder %s18, 0
    %p269 = por %p267, %p268
    %p270 = scmp.ne.s32.totalorder %s262, %s264
    %p271 = scmp.eq.s32.totalorder %s23, 1
    %p272 = por %p270, %p271
    %p273 = scmp.ne.s32.totalorder %s264, %s265
    %p274 = scmp.eq.s32.totalorder %s23, 0
    %p275 = por %p273, %p274
    %p276 = scmp.ne.s32.totalorder %s264, %s265
    %p277 = scmp.eq.s32.totalorder %s24, 1
    %p278 = por %p276, %p277
    %p280 = scmp.ne.s32.totalorder %s265, %s279
    %p281 = scmp.eq.s32.totalorder %s24, 0
    %p282 = por %p280, %p281
    %s284 = sadd.s32 %s283, 1
    %p287 = scmp.eq.s32.totalorder %s18, 1
    %p288 = scmp.ne.s32.totalorder %s283, %s285
    %p289 = scmp.eq.s32.totalorder %s18, 0
    %p290 = por %p288, %p289
    %p291 = scmp.ne.s32.totalorder %s283, %s285
    %p292 = scmp.eq.s32.totalorder %s23, 1
    %p293 = por %p291, %p292
    %p294 = scmp.ne.s32.totalorder %s285, %s286
    %p295 = scmp.eq.s32.totalorder %s23, 0
    %p296 = por %p294, %p295
    %p297 = scmp.ne.s32.totalorder %s285, %s286
    %p298 = scmp.eq.s32.totalorder %s24, 1
    %p299 = por %p297, %p298
    %p301 = scmp.ne.s32.totalorder %s286, %s300
    %p302 = scmp.eq.s32.totalorder %s24, 0
    %p303 = por %p301, %p302
    %s305 = sadd.s32 %s304, 1
    %p308 = scmp.eq.s32.totalorder %s18, 1
    %p309 = scmp.ne.s32.totalorder %s304, %s306
    %p310 = scmp.eq.s32.totalorder %s18, 0
    %p311 = por %p309, %p310
    %p312 = scmp.ne.s32.totalorder %s304, %s306
    %p313 = scmp.eq.s32.totalorder %s23, 1
    %p314 = por %p312, %p313
    %p315 = scmp.ne.s32.totalorder %s306, %s307
    %p316 = scmp.eq.s32.totalorder %s23, 0
    %p317 = por %p315, %p316
    %p318 = scmp.ne.s32.totalorder %s306, %s307
    %p319 = scmp.eq.s32.totalorder %s24, 1
    %p320 = por %p318, %p319
    %p322 = scmp.ne.s32.totalorder %s307, %s321
    %p323 = scmp.eq.s32.totalorder %s24, 0
    %p324 = por %p322, %p323
    %s325 = ssub.s32 %s25, %s37
    %p326 = scmp.eq.s32.totalorder %s325, 0
    %s328 = sadd.s32 %s327, 1
    %s329 = scalar_select %p326, %s327, %s328
    %p332 = pneg %p326
    %p333 = scmp.eq.s32.totalorder %s18, 1
    %p334 = por %p332, %p333
    %p335 = scmp.ne.s32.totalorder %s327, %s330
    %p336 = scmp.eq.s32.totalorder %s18, 0
    %p337 = por %p335, %p336
    %p338 = scmp.ne.s32.totalorder %s327, %s330
    %p339 = scmp.eq.s32.totalorder %s23, 1
    %p340 = por %p338, %p339
    %p341 = scmp.ne.s32.totalorder %s330, %s331
    %p342 = scmp.eq.s32.totalorder %s23, 0
    %p343 = por %p341, %p342
    %p344 = scmp.ne.s32.totalorder %s330, %s331
    %p345 = scmp.eq.s32.totalorder %s24, 1
    %p346 = por %p344, %p345
    %p348 = scmp.ne.s32.totalorder %s331, %s347
    %p349 = scmp.eq.s32.totalorder %s24, 0
    %p350 = por %p348, %p349
    %p351 = scmp.le.s32.totalorder 1, %s18
    %p352 = scmp.lt.s32.totalorder %s18, 3
    %p353 = pnand %p351, %p352
    %p354 = pneg %p353
    // Predicated region
    $region9: #{conformer_aed_forward.7} parent=5 // pred_check
      _
    $region10: #{conformer_aed_forward.7} parent=5 // pred_check_branch
      %356 = sbr.rel (%p353) target = $region12
    $region11: #{conformer_aed_forward.7} parent=5 // pred_region
      %s357 = ssub.s32 %s18, 1
      // Predicated region
      $region13: #{conformer_aed_forward.7} parent=11 // pred_check
        %p358 = pneg %p77
      $region14: #{conformer_aed_forward.7} parent=11 // pred_check_branch
        %360 = sbr.rel (%p358) target = $region16
      $region15: #{conformer_aed_forward.7} parent=11 // pred_region
        _
      $region16: #{conformer_aed_forward.7} parent=11 // pred_fallthru
        _
      // Predicated region
      $region17: #{conformer_aed_forward.7} parent=11 // pred_check
        %p361 = pneg %p98
      $region18: #{conformer_aed_forward.7} parent=11 // pred_check_branch
        %363 = sbr.rel (%p361) target = $region20
      $region19: #{conformer_aed_forward.7} parent=11 // pred_region
        _
      $region20: #{conformer_aed_forward.7} parent=11 // pred_fallthru
        _
      // Predicated region
      $region21: #{conformer_aed_forward.7} parent=11 // pred_check
        %p364 = pneg %p202
      $region22: #{conformer_aed_forward.7} parent=11 // pred_check_branch
        %366 = sbr.rel (%p364) target = $region24
      $region23: #{conformer_aed_forward.7} parent=11 // pred_region
        %p367 = scmp.lt.s32.totalorder %s28, 0
        %s368 = scalar_select %p367, %s28, 0
        %s369 = smul.addr %s368, 24
        %s370 = smul.addr %s369, 8
        %s371 = scalar_lea.vmem %s6, %s370
      $region24: #{conformer_aed_forward.7} parent=11 // pred_fallthru
        _
      // Predicated region
      $region25: #{conformer_aed_forward.7} parent=11 // pred_check
        %p372 = pneg %p228
      $region26: #{conformer_aed_forward.7} parent=11 // pred_check_branch
        %374 = sbr.rel (%p372) target = $region28
      $region27: #{conformer_aed_forward.7} parent=11 // pred_region
        %p375 = scmp.lt.s32.totalorder %s28, 0
        %s376 = scalar_select %p375, %s28, 0
        %s377 = smul.addr %s376, 8
        %s378 = smul.addr %s377, 8
        %s379 = scalar_lea.vmem %s7, %s378
      $region28: #{conformer_aed_forward.7} parent=11 // pred_fallthru
        _
      // Predicated region
      $region29: #{conformer_aed_forward.7} parent=11 // pred_check
        %p380 = pneg %p254
      $region30: #{conformer_aed_forward.7} parent=11 // pred_check_branch
        %382 = sbr.rel (%p380) target = $region32
      $region31: #{conformer_aed_forward.7} parent=11 // pred_region
        %p383 = scmp.lt.s32.totalorder %s28, 0
        %s384 = scalar_select %p383, %s28, 0
        %s385 = smul.addr %s384, 13
        %s386 = scalar_lea.vmem %s8, %s385
      $region32: #{conformer_aed_forward.7} parent=11 // pred_fallthru
        _
      // Predicated region
      $region33: #{conformer_aed_forward.7} parent=11 // pred_check
        %p387 = pneg %p275
      $region34: #{conformer_aed_forward.7} parent=11 // pred_check_branch
        %389 = sbr.rel (%p387) target = $region36
      $region35: #{conformer_aed_forward.7} parent=11 // pred_region
        _
      $region36: #{conformer_aed_forward.7} parent=11 // pred_fallthru
        _
      // Predicated region
      $region37: #{conformer_aed_forward.7} parent=11 // pred_check
        %p390 = pneg %p296
      $region38: #{conformer_aed_forward.7} parent=11 // pred_check_branch
        %392 = sbr.rel (%p390) target = $region40
      $region39: #{conformer_aed_forward.7} parent=11 // pred_region
        _
      $region40: #{conformer_aed_forward.7} parent=11 // pred_fallthru
        _
      // Predicated region
      $region41: #{conformer_aed_forward.7} parent=11 // pred_check
        %p393 = pneg %p317
      $region42: #{conformer_aed_forward.7} parent=11 // pred_check_branch
        %395 = sbr.rel (%p393) target = $region44
      $region43: #{conformer_aed_forward.7} parent=11 // pred_region
        _
      $region44: #{conformer_aed_forward.7} parent=11 // pred_fallthru
        _
    $region12: #{conformer_aed_forward.7} parent=5 // pred_fallthru
      _
    %p396 = scmp.lt.s32.totalorder %s18, 2
    // Predicated region
    $region45: #{conformer_aed_forward.7} parent=5 // pred_check
      %p397 = pneg %p396
    $region46: #{conformer_aed_forward.7} parent=5 // pred_check_branch
      %399 = sbr.rel (%p397) target = $region48
    $region47: #{conformer_aed_forward.7} parent=5 // pred_region
      // Predicated region
      $region49: #{conformer_aed_forward.7} parent=47 // pred_check
        %p400 = pneg %p50
      $region50: #{conformer_aed_forward.7} parent=47 // pred_check_branch
        %402 = sbr.rel (%p400) target = $region52
      $region51: #{conformer_aed_forward.7} parent=47 // pred_region
        %p403 = scmp.lt.s32.totalorder %s25, 1
        %s404 = scalar_select %p403, %s25, 1
        %s405 = smul.addr %s404, 8
        %s406 = scalar_lea.vmem %s0, %s405
      $region52: #{conformer_aed_forward.7} parent=47 // pred_fallthru
        _
      // Predicated region
      $region53: #{conformer_aed_forward.7} parent=47 // pred_check
        %p407 = pneg %p118
      $region54: #{conformer_aed_forward.7} parent=47 // pred_check_branch
        %409 = sbr.rel (%p407) target = $region56
      $region55: #{conformer_aed_forward.7} parent=47 // pred_region
        %p410 = scmp.lt.s32.totalorder %s25, 1
        %s411 = scalar_select %p410, %s25, 1
        %s412 = smul.addr %s411, 4
        %s413 = scalar_lea.vmem %s3, %s412
      $region56: #{conformer_aed_forward.7} parent=47 // pred_fallthru
        _
      // Predicated region
      $region57: #{conformer_aed_forward.7} parent=47 // pred_check
        %p414 = pneg %p144
      $region58: #{conformer_aed_forward.7} parent=47 // pred_check_branch
        %416 = sbr.rel (%p414) target = $region60
      $region59: #{conformer_aed_forward.7} parent=47 // pred_region
        %p417 = scmp.lt.s32.totalorder %s25, 1
        %s418 = scalar_select %p417, %s25, 1
        %s419 = smul.addr %s418, 8
        %s420 = scalar_lea.vmem %s4, %s419
      $region60: #{conformer_aed_forward.7} parent=47 // pred_fallthru
        _
      // Predicated region
      $region61: #{conformer_aed_forward.7} parent=47 // pred_check
        %p421 = pneg %p170
      $region62: #{conformer_aed_forward.7} parent=47 // pred_check_branch
        %423 = sbr.rel (%p421) target = $region64
      $region63: #{conformer_aed_forward.7} parent=47 // pred_region
        %p424 = scmp.lt.s32.totalorder %s25, 1
        %s425 = scalar_select %p424, %s25, 1
        %s426 = scalar_lea.vmem %s5, %s425
      $region64: #{conformer_aed_forward.7} parent=47 // pred_fallthru
        _
    $region48: #{conformer_aed_forward.7} parent=5 // pred_fallthru
      _
    %p427 = scmp.le.s32.totalorder 1, %s18
    %p428 = scmp.lt.s32.totalorder %s18, 3
    %p429 = pnand %p427, %p428
    %p430 = pneg %p429
    // Predicated region
    $region65: #{conformer_aed_forward.7} parent=5 // pred_check
      _
    $region66: #{conformer_aed_forward.7} parent=5 // pred_check_branch
      %432 = sbr.rel (%p429) target = $region68
    $region67: #{conformer_aed_forward.7} parent=5 // pred_region
      %s433 = ssub.s32 %s18, 1
      %p434 = scmp.lt.s32.totalorder %s27, 1
      %s435 = scalar_select %p434, %s27, 1
      %s436 = smul.addr %s435, 8
      %s437 = scalar_lea.vmem %s0, %s436
      %p438 = pneg %p56
      %p439 = pneg %p53
      %p440 = pneg %p77
      %p441 = pneg %p74
      %p442 = pneg %p98
      %p443 = pneg %p95
      %p444 = scmp.lt.s32.totalorder %s27, 1
      %s445 = scalar_select %p444, %s27, 1
      %s446 = smul.addr %s445, 4
      %s447 = scalar_lea.vmem %s3, %s446
      %p448 = pneg %p124
      %p449 = pneg %p121
      %p450 = scmp.lt.s32.totalorder %s27, 1
      %s451 = scalar_select %p450, %s27, 1
      %s452 = smul.addr %s451, 8
      %s453 = scalar_lea.vmem %s4, %s452
      %p454 = pneg %p150
      %p455 = pneg %p147
      %p456 = scmp.lt.s32.totalorder %s27, 1
      %s457 = scalar_select %p456, %s27, 1
      %s458 = scalar_lea.vmem %s5, %s457
      %p459 = pneg %p176
      %p460 = pneg %p173
      %p461 = scmp.lt.s32.totalorder %s28, 0
      %s462 = scalar_select %p461, %s28, 0
      %s463 = smul.addr %s462, 24
      %s464 = smul.addr %s463, 8
      %s465 = scalar_lea.vmem %s6, %s464
      %p466 = pneg %p202
      %p467 = pneg %p199
      %p468 = scmp.lt.s32.totalorder %s28, 0
      %s469 = scalar_select %p468, %s28, 0
      %s470 = smul.addr %s469, 8
      %s471 = smul.addr %s470, 8
      %s472 = scalar_lea.vmem %s7, %s471
      %p473 = pneg %p228
      %p474 = pneg %p225
      %p475 = scmp.lt.s32.totalorder %s28, 0
      %s476 = scalar_select %p475, %s28, 0
      %s477 = smul.addr %s476, 13
      %s478 = scalar_lea.vmem %s8, %s477
      %p479 = pneg %p254
      %p480 = pneg %p251
      %p481 = pneg %p275
      %p482 = pneg %p272
      %p483 = pneg %p296
      %p484 = pneg %p293
      %p485 = pneg %p317
      %p486 = pneg %p314
      %p487 = pneg %p343
      %p488 = pneg %p340
      %p489 = scmp.lt.s32.totalorder %s27, 1
      %s490 = scalar_select %p489, %s27, 1
      %s491 = smul.addr %s490, 8
      %s492 = scalar_lea.vmem %s12, %s491
      %p493 = scmp.lt.s32.totalorder %s27, 1
      %s494 = scalar_select %p493, %s27, 1
      %s495 = smul.addr %s494, 8
      %s496 = scalar_lea.vmem %s0, %s495
      %p497 = scmp.lt.s32.totalorder %s27, 1
      %s498 = scalar_select %p497, %s27, 1
      %s499 = smul.addr %s498, 4
      %s500 = scalar_lea.vmem %s3, %s499
      %p501 = scmp.lt.s32.totalorder %s27, 1
      %s502 = scalar_select %p501, %s27, 1
      %s503 = smul.addr %s502, 8
      %s504 = scalar_lea.vmem %s4, %s503
      %p505 = scmp.lt.s32.totalorder %s27, 1
      %s506 = scalar_select %p505, %s27, 1
      %s507 = scalar_lea.vmem %s5, %s506
      %p508 = scmp.lt.s32.totalorder %s28, 0
      %s509 = scalar_select %p508, %s28, 0
      %s510 = smul.addr %s509, 24
      %s511 = smul.addr %s510, 8
      %s512 = scalar_lea.vmem %s6, %s511
      %p513 = scmp.lt.s32.totalorder %s28, 0
      %s514 = scalar_select %p513, %s28, 0
      %s515 = smul.addr %s514, 8
      %s516 = smul.addr %s515, 8
      %s517 = scalar_lea.vmem %s7, %s516
      %p518 = scmp.lt.s32.totalorder %s28, 0
      %s519 = scalar_select %p518, %s28, 0
      %s520 = smul.addr %s519, 13
      %s521 = scalar_lea.vmem %s8, %s520
      %p522 = scmp.lt.s32.totalorder %s27, 1
      %s523 = scalar_select %p522, %s27, 1
      %s524 = smul.addr %s523, 8
      %s525 = scalar_lea.vmem %s12, %s524
      %p526 = scmp.eq.s32.totalorder %s28, 0
      // Predicated region
      $region69: #{conformer_aed_forward.7} parent=67 // pred_check
        %p527 = pneg %p526
      $region70: #{conformer_aed_forward.7} parent=67 // pred_check_branch
        %529 = sbr.rel (%p527) target = $region72
      $region71: #{conformer_aed_forward.7} parent=67 // pred_region
        %v530 = vld [vmem:[%s496] sm:$0x3f]
        %v531 = vld [vmem:[%s1] sm:$0xff]
        %v532 = vld [vmem:[%s1 + $0x8] sm:$0x3]
        %vm533 = vcmask 80896
        %v535 = vsel %vm533, %v530, 0
        %vm537 = vcmask 1041408
        %v539 = vsel %vm537, %v532, 0
        %541 = vmatprep.subr.mxu0 0.0
        %542 = vmatpush1.msra.mxu0 0.0
        %543 = vmatprep.subr.mxu0 0.0
        %544 = vmatpush1.msra.mxu0 0.0
        %545 = vmatprep.subr.mxu0 0.0
        %546 = vmatpush1.msra.mxu0 0.0
        %547 = vmatprep.subr.mxu0 0.0
        %548 = vmatpush1.msra.mxu0 0.0
        %549 = vmatprep.subr.mxu0 0.0
        %550 = vmatpush1.msra.mxu0 0.0
        %551 = vmatprep.subr.mxu0 0.0
        %552 = vmatpush1.msra.mxu0 0.0
        %553 = vmatprep.subr.mxu0 0.0
        %554 = vmatpush1.msra.mxu0 0.0
        %555 = vmatprep.subr.mxu0 0.0
        %556 = vmatpush1.msra.mxu0 0.0
        %557 = vmatprep.subr.mxu0 0.0
        %558 = vmatpush1.msra.mxu0 0.0
        %559 = vmatprep.subr.mxu0 0.0
        %560 = vmatpush1.msra.mxu0 0.0
        %561 = vmatprep.subr.mxu0 0.0
        %562 = vmatpush1.msra.mxu0 0.0
        %563 = vmatprep.subr.mxu0 0.0
        %564 = vmatpush1.msra.mxu0 0.0
        %565 = vmatprep.subr.mxu0 0.0
        %566 = vmatpush1.msra.mxu0 0.0
        %567 = vmatprep.subr.mxu0 0.0
        %568 = vmatpush1.msra.mxu0 0.0
        %569 = vmatprep.subr.mxu0 0.0
        %570 = vmatpush1.msra.mxu0 %v539
        %571 = vmatprep.subr.mxu0 0.0
        %572 = vmatpush1.msra.mxu0 %v531
        %573 = vmatprep.subr.mxu0 0.0
        %574 = vmatpush2.msra.mxu0 0.0
        %575 = vmatprep.subr.mxu0 0.0
        %576 = vmatpush2.msra.mxu0 0.0
        %577 = vmatprep.subr.mxu0 0.0
        %578 = vmatpush2.msra.mxu0 0.0
        %579 = vmatprep.subr.mxu0 0.0
        %580 = vmatpush2.msra.mxu0 0.0
        %581 = vmatprep.subr.mxu0 0.0
        %582 = vmatpush2.msra.mxu0 0.0
        %583 = vmatprep.subr.mxu0 0.0
        %584 = vmatpush2.msra.mxu0 0.0
        %585 = vmatprep.subr.mxu0 0.0
        %586 = vmatpush2.msra.mxu0 0.0
        %587 = vmatprep.subr.mxu0 0.0
        %588 = vmatpush2.msra.mxu0 0.0
        %589 = vmatprep.subr.mxu0 0.0
        %590 = vmatpush2.msra.mxu0 0.0
        %591 = vmatprep.subr.mxu0 0.0
        %592 = vmatpush2.msra.mxu0 0.0
        %593 = vmatprep.subr.mxu0 0.0
        %594 = vmatpush2.msra.mxu0 0.0
        %595 = vmatprep.subr.mxu0 0.0
        %596 = vmatpush2.msra.mxu0 0.0
        %597 = vmatprep.subr.mxu0 0.0
        %598 = vmatpush2.msra.mxu0 0.0
        %599 = vmatprep.subr.mxu0 0.0
        %600 = vmatpush2.msra.mxu0 0.0
        %601 = vmatprep.subr.mxu0 0.0
        %602 = vmatpush2.msra.mxu0 0.0
        %603 = vmatprep.subr.mxu0 0.0
        %604 = vmatpush2.msra.mxu0 0.0
        %605 = vmatprep.mubr.f32.mxu0 0.0
        %606 = vmatmul.mubr.f32.gmra.mxu0 %v535
        %v607 = vpop.f32.mrf.mxu0
        %v608 = vadd.f32 0.0, %v607
        %v609 = vpop.f32.mrf.mxu0
        %610 = vdwg.mxu0
        %v611 = vmul.f32 %v608, 5.656854
        %v612 = vld [vmem:[%s2] sm:$0x3f]
        %v613 = vadd.f32 %v611, %v612
        %vm614 = vcmask 259072
        %615 = vst.msk [vmem:[#allocation2] sm:$0x3f] %vm614, %v613
      $region72: #{conformer_aed_forward.7} parent=67 // pred_fallthru
        _
      %v616 = vld [vmem:[#allocation2] sm:$0x3f]
      %v617 = vld [vmem:[%s500] sm:$0x7]
      %v618 = vld [vmem:[%s521 + $0x7] sm:$0x1]
      %v619 = vld [vmem:[%s521 + $0xa] sm:$0x1]
      %vm620 = vcmask 259072
      %v621 = vsel %vm620, %v616, 0.0
      %622 = vadd.xlane.f32.xlu0 %v621
      %v623 = vpop.xlane.xlu0 %622
      %v624 = vrcp.pop 32.0
      %v625 = vmul.f32 %v623, %v624
      %v626 = vsub.f32 %v616, %v625
      %v627 = vmul.f32 %v626, %v626
      %v628 = vsel %vm620, %v627, 0.0
      %629 = vadd.xlane.f32.xlu0 %v628
      %v630 = vpop.xlane.xlu0 %629
      %v631 = vmul.f32 %v630, %v624
      %v632 = vadd.f32 %v631, 1e-05
      %v633 = vrsqrt.pop %v632
      %v634 = vmul.f32 %v626, %v633
      %v636 = vlaneseq
      %v637 = vshrl.u32 %v636, 7
      %v638 = vsub.s32 0, %v637
      %v639 = vrot.slane %v618, %v638
      %v641 = vmul.f32 %v634, %v639
      %v643 = vlaneseq
      %v644 = vshrl.u32 %v643, 7
      %v645 = vsub.s32 0, %v644
      %v646 = vrot.slane %v619, %v645
      %v648 = vadd.f32 %v641, %v646
      %v649 = vld [vmem:[%s512] sm:$0xff]
      %v650 = vld [vmem:[%s512 + $0x30] sm:$0xff]
      %v651 = vld [vmem:[%s512 + $0x60] sm:$0xff]
      %v652 = vld [vmem:[%s512 + $0x90] sm:$0xff]
      %v653 = vld [vmem:[%s521] sm:$0x1]
      %v655 = vlaneseq
      %v656 = vshrl.u32 %v655, 7
      %v657 = vsub.s32 0, %v656
      %v658 = vrot.slane %v653, %v657
      %vm660 = vcmask 261120
      %v662 = vsel %vm660, %v648, 0
      %664 = vmatprep.subr.mxu0 0.0
      %665 = vmatpush1.msra.mxu0 0.0
      %666 = vmatprep.subr.mxu0 0.0
      %667 = vmatpush1.msra.mxu0 0.0
      %668 = vmatprep.subr.mxu0 0.0
      %669 = vmatpush1.msra.mxu0 0.0
      %670 = vmatprep.subr.mxu0 0.0
      %671 = vmatpush1.msra.mxu0 0.0
      %672 = vmatprep.subr.mxu0 0.0
      %673 = vmatpush1.msra.mxu0 0.0
      %674 = vmatprep.subr.mxu0 0.0
      %675 = vmatpush1.msra.mxu0 0.0
      %676 = vmatprep.subr.mxu0 0.0
      %677 = vmatpush1.msra.mxu0 0.0
      %678 = vmatprep.subr.mxu0 0.0
      %679 = vmatpush1.msra.mxu0 0.0
      %680 = vmatprep.subr.mxu0 0.0
      %681 = vmatpush1.msra.mxu0 0.0
      %682 = vmatprep.subr.mxu0 0.0
      %683 = vmatpush1.msra.mxu0 0.0
      %684 = vmatprep.subr.mxu0 0.0
      %685 = vmatpush1.msra.mxu0 0.0
      %686 = vmatprep.subr.mxu0 0.0
      %687 = vmatpush1.msra.mxu0 0.0
      %688 = vmatprep.subr.mxu0 0.0
      %689 = vmatpush1.msra.mxu0 %v652
      %690 = vmatprep.subr.mxu0 0.0
      %691 = vmatpush1.msra.mxu0 %v651
      %692 = vmatprep.subr.mxu0 0.0
      %693 = vmatpush1.msra.mxu0 %v650
      %694 = vmatprep.subr.mxu0 0.0
      %695 = vmatpush1.msra.mxu0 %v649
      %696 = vmatprep.subr.mxu0 0.0
      %697 = vmatpush2.msra.mxu0 0.0
      %698 = vmatprep.subr.mxu0 0.0
      %699 = vmatpush2.msra.mxu0 0.0
      %700 = vmatprep.subr.mxu0 0.0
      %701 = vmatpush2.msra.mxu0 0.0
      %702 = vmatprep.subr.mxu0 0.0
      %703 = vmatpush2.msra.mxu0 0.0
      %704 = vmatprep.subr.mxu0 0.0
      %705 = vmatpush2.msra.mxu0 0.0
      %706 = vmatprep.subr.mxu0 0.0
      %707 = vmatpush2.msra.mxu0 0.0
      %708 = vmatprep.subr.mxu0 0.0
      %709 = vmatpush2.msra.mxu0 0.0
      %710 = vmatprep.subr.mxu0 0.0
      %711 = vmatpush2.msra.mxu0 0.0
      %712 = vmatprep.subr.mxu0 0.0
      %713 = vmatpush2.msra.mxu0 0.0
      %714 = vmatprep.subr.mxu0 0.0
      %715 = vmatpush2.msra.mxu0 0.0
      %716 = vmatprep.subr.mxu0 0.0
      %717 = vmatpush2.msra.mxu0 0.0
      %718 = vmatprep.subr.mxu0 0.0
      %719 = vmatpush2.msra.mxu0 0.0
      %720 = vmatprep.subr.mxu0 0.0
      %721 = vmatpush2.msra.mxu0 0.0
      %722 = vmatprep.subr.mxu0 0.0
      %723 = vmatpush2.msra.mxu0 0.0
      %724 = vmatprep.subr.mxu0 0.0
      %725 = vmatpush2.msra.mxu0 0.0
      %726 = vmatprep.subr.mxu0 0.0
      %727 = vmatpush2.msra.mxu0 0.0
      %728 = vmatprep.mubr.f32.mxu0 0.0
      %729 = vmatmul.mubr.f32.gmra.mxu0 %v662
      %v730 = vpop.f32.mrf.mxu0
      %v731 = vadd.f32 %v658, %v730
      %v732 = vpop.f32.mrf.mxu0
      %733 = vdwg.mxu0
      %v734 = vld [vmem:[%s504] sm:$0x3f]
      %v735 = vld [vmem:[%s512 + $0x8] sm:$0xff]
      %v736 = vld [vmem:[%s512 + $0x38] sm:$0xff]
      %v737 = vld [vmem:[%s512 + $0x68] sm:$0xff]
      %v738 = vld [vmem:[%s512 + $0x98] sm:$0xff]
      %v739 = vld [vmem:[%s521 + $0x1] sm:$0x1]
      %741 = vrot.lane.b32.xlu0 %v731, 96
      %v742 = vpop.permute.xlu0 %741
      %vm743 = vcmask 64512
      %v744 = vsel %vm743, %v731, 0
      %v746 = vsel %vm743, %v742, 0
      %748 = vmatprep.subr.mxu0 0.0
      %749 = vmatpush1.xpose.msra.mxu0 0.0
      %750 = vmatprep.subr.mxu0 0.0
      %751 = vmatpush1.xpose.msra.mxu0 0.0
      %752 = vmatprep.subr.mxu0 0.0
      %753 = vmatpush1.xpose.msra.mxu0 0.0
      %754 = vmatprep.subr.mxu0 0.0
      %755 = vmatpush1.xpose.msra.mxu0 0.0
      %756 = vmatprep.subr.mxu0 0.0
      %757 = vmatpush1.xpose.msra.mxu0 0.0
      %758 = vmatprep.subr.mxu0 0.0
      %759 = vmatpush1.xpose.msra.mxu0 0.0
      %760 = vmatprep.subr.mxu0 0.0
      %761 = vmatpush1.xpose.msra.mxu0 0.0
      %762 = vmatprep.subr.mxu0 0.0
      %763 = vmatpush1.xpose.msra.mxu0 0.0
      %764 = vmatprep.subr.mxu0 0.0
      %765 = vmatpush1.xpose.msra.mxu0 0.0
      %766 = vmatprep.subr.mxu0 0.0
      %767 = vmatpush1.xpose.msra.mxu0 0.0
      %768 = vmatprep.subr.mxu0 0.0
      %769 = vmatpush1.xpose.msra.mxu0 0.0
      %770 = vmatprep.subr.mxu0 0.0
      %771 = vmatpush1.xpose.msra.mxu0 0.0
      %772 = vmatprep.subr.mxu0 0.0
      %773 = vmatpush1.xpose.msra.mxu0 0.0
      %774 = vmatprep.subr.mxu0 0.0
      %775 = vmatpush1.xpose.msra.mxu0 0.0
      %776 = vmatprep.subr.mxu0 0.0
      %777 = vmatpush1.xpose.msra.mxu0 0.0
      %778 = vmatprep.subr.mxu0 0.0
      %779 = vmatpush1.xpose.msra.mxu0 %v746
      %780 = vmatprep.subr.mxu0 0.0
      %781 = vmatpush2.xpose.msra.mxu0 0.0
      %782 = vmatprep.subr.mxu0 0.0
      %783 = vmatpush2.xpose.msra.mxu0 0.0
      %784 = vmatprep.subr.mxu0 0.0
      %785 = vmatpush2.xpose.msra.mxu0 0.0
      %786 = vmatprep.subr.mxu0 0.0
      %787 = vmatpush2.xpose.msra.mxu0 0.0
      %788 = vmatprep.subr.mxu0 0.0
      %789 = vmatpush2.xpose.msra.mxu0 0.0
      %790 = vmatprep.subr.mxu0 0.0
      %791 = vmatpush2.xpose.msra.mxu0 0.0
      %792 = vmatprep.subr.mxu0 0.0
      %793 = vmatpush2.xpose.msra.mxu0 0.0
      %794 = vmatprep.subr.mxu0 0.0
      %795 = vmatpush2.xpose.msra.mxu0 0.0
      %796 = vmatprep.subr.mxu0 0.0
      %797 = vmatpush2.xpose.msra.mxu0 0.0
      %798 = vmatprep.subr.mxu0 0.0
      %799 = vmatpush2.xpose.msra.mxu0 0.0
      %800 = vmatprep.subr.mxu0 0.0
      %801 = vmatpush2.xpose.msra.mxu0 0.0
      %802 = vmatprep.subr.mxu0 0.0
      %803 = vmatpush2.xpose.msra.mxu0 0.0
      %804 = vmatprep.subr.mxu0 0.0
      %805 = vmatpush2.xpose.msra.mxu0 0.0
      %806 = vmatprep.subr.mxu0 0.0
      %807 = vmatpush2.xpose.msra.mxu0 0.0
      %808 = vmatprep.subr.mxu0 0.0
      %809 = vmatpush2.xpose.msra.mxu0 0.0
      %810 = vmatprep.subr.mxu0 0.0
      %811 = vmatpush2.xpose.msra.mxu0 0.0
      %812 = vmatprep.mubr.f32.mxu0 0.0
      %813 = vmatmul.mubr.f32.gmra.mxu0 %v744
      %v814 = vpop.f32.mrf.mxu0
      %v815 = vadd.f32 0.0, %v814
      %v816 = vpop.f32.mrf.mxu0
      %817 = vdwg.mxu0
      %v818 = vmul.f32 %v815, 0.35355338
      %v819 = vadd.f32 %v818, %v734
      %vm820 = vcmask 46080
      %v821 = vsel %vm820, %v819, -inf
      %822 = vmax.xlane.f32.xlu0 %v821
      %v823 = vpop.xlane.xlu0 %822
      %v824 = vsub.f32 %v819, %v823
      %v825 = vmul.f32 %v824, 1.442695
      %v826 = vpow.pop %v825
      %v827 = vsel %vm820, %v826, 0.0
      %828 = vadd.xlane.f32.xlu0 %v827
      %v829 = vpop.xlane.xlu0 %828
      %v830 = vrcp.pop %v829
      %v831 = vmul.f32 %v826, %v830
      %832 = vrot.lane.b32.xlu0 %v731, 64
      %v833 = vpop.permute.xlu0 %832
      %vm834 = vcmask 48128
      %v836 = vsel %vm834, %v831, 0
      %vm838 = vcmask 1045504
      %v839 = vsel %vm838, %v833, 0
      %841 = vmatprep.subr.mxu0 0.0
      %842 = vmatpush1.msra.mxu0 0.0
      %843 = vmatprep.subr.mxu0 0.0
      %844 = vmatpush1.msra.mxu0 0.0
      %845 = vmatprep.subr.mxu0 0.0
      %846 = vmatpush1.msra.mxu0 0.0
      %847 = vmatprep.subr.mxu0 0.0
      %848 = vmatpush1.msra.mxu0 0.0
      %849 = vmatprep.subr.mxu0 0.0
      %850 = vmatpush1.msra.mxu0 0.0
      %851 = vmatprep.subr.mxu0 0.0
      %852 = vmatpush1.msra.mxu0 0.0
      %853 = vmatprep.subr.mxu0 0.0
      %854 = vmatpush1.msra.mxu0 0.0
      %855 = vmatprep.subr.mxu0 0.0
      %856 = vmatpush1.msra.mxu0 0.0
      %857 = vmatprep.subr.mxu0 0.0
      %858 = vmatpush1.msra.mxu0 0.0
      %859 = vmatprep.subr.mxu0 0.0
      %860 = vmatpush1.msra.mxu0 0.0
      %861 = vmatprep.subr.mxu0 0.0
      %862 = vmatpush1.msra.mxu0 0.0
      %863 = vmatprep.subr.mxu0 0.0
      %864 = vmatpush1.msra.mxu0 0.0
      %865 = vmatprep.subr.mxu0 0.0
      %866 = vmatpush1.msra.mxu0 0.0
      %867 = vmatprep.subr.mxu0 0.0
      %868 = vmatpush1.msra.mxu0 0.0
      %869 = vmatprep.subr.mxu0 0.0
      %870 = vmatpush1.msra.mxu0 0.0
      %871 = vmatprep.subr.mxu0 0.0
      %872 = vmatpush1.msra.mxu0 %v839
      %873 = vmatprep.subr.mxu0 0.0
      %874 = vmatpush2.msra.mxu0 0.0
      %875 = vmatprep.subr.mxu0 0.0
      %876 = vmatpush2.msra.mxu0 0.0
      %877 = vmatprep.subr.mxu0 0.0
      %878 = vmatpush2.msra.mxu0 0.0
      %879 = vmatprep.subr.mxu0 0.0
      %880 = vmatpush2.msra.mxu0 0.0
      %881 = vmatprep.subr.mxu0 0.0
      %882 = vmatpush2.msra.mxu0 0.0
      %883 = vmatprep.subr.mxu0 0.0
      %884 = vmatpush2.msra.mxu0 0.0
      %885 = vmatprep.subr.mxu0 0.0
      %886 = vmatpush2.msra.mxu0 0.0
      %887 = vmatprep.subr.mxu0 0.0
      %888 = vmatpush2.msra.mxu0 0.0
      %889 = vmatprep.subr.mxu0 0.0
      %890 = vmatpush2.msra.mxu0 0.0
      %891 = vmatprep.subr.mxu0 0.0
      %892 = vmatpush2.msra.mxu0 0.0
      %893 = vmatprep.subr.mxu0 0.0
      %894 = vmatpush2.msra.mxu0 0.0
      %895 = vmatprep.subr.mxu0 0.0
      %896 = vmatpush2.msra.mxu0 0.0
      %897 = vmatprep.subr.mxu0 0.0
      %898 = vmatpush2.msra.mxu0 0.0
      %899 = vmatprep.subr.mxu0 0.0
      %900 = vmatpush2.msra.mxu0 0.0
      %901 = vmatprep.subr.mxu0 0.0
      %902 = vmatpush2.msra.mxu0 0.0
      %903 = vmatprep.subr.mxu0 0.0
      %904 = vmatpush2.msra.mxu0 0.0
      %905 = vmatprep.mubr.f32.mxu0 0.0
      %906 = vmatmul.mubr.f32.gmra.mxu0 %v836
      %v907 = vpop.f32.mrf.mxu0
      %v908 = vadd.f32 0.0, %v907
      %v909 = vpop.f32.mrf.mxu0
      %910 = vdwg.mxu0
      %v912 = vsel %vm743, %v908, 0
      %914 = vmatprep.subr.mxu0 0.0
      %915 = vmatpush1.msra.mxu0 0.0
      %916 = vmatprep.subr.mxu0 0.0
      %917 = vmatpush1.msra.mxu0 0.0
      %918 = vmatprep.subr.mxu0 0.0
      %919 = vmatpush1.msra.mxu0 0.0
      %920 = vmatprep.subr.mxu0 0.0
      %921 = vmatpush1.msra.mxu0 0.0
      %922 = vmatprep.subr.mxu0 0.0
      %923 = vmatpush1.msra.mxu0 0.0
      %924 = vmatprep.subr.mxu0 0.0
      %925 = vmatpush1.msra.mxu0 0.0
      %926 = vmatprep.subr.mxu0 0.0
      %927 = vmatpush1.msra.mxu0 0.0
      %928 = vmatprep.subr.mxu0 0.0
      %929 = vmatpush1.msra.mxu0 0.0
      %930 = vmatprep.subr.mxu0 0.0
      %931 = vmatpush1.msra.mxu0 0.0
      %932 = vmatprep.subr.mxu0 0.0
      %933 = vmatpush1.msra.mxu0 0.0
      %934 = vmatprep.subr.mxu0 0.0
      %935 = vmatpush1.msra.mxu0 0.0
      %936 = vmatprep.subr.mxu0 0.0
      %937 = vmatpush1.msra.mxu0 0.0
      %938 = vmatprep.subr.mxu0 0.0
      %939 = vmatpush1.msra.mxu0 0.0
      %940 = vmatprep.subr.mxu0 0.0
      %941 = vmatpush1.msra.mxu0 0.0
      %942 = vmatprep.subr.mxu0 0.0
      %943 = vmatpush1.msra.mxu0 0.0
      %944 = vmatprep.subr.mxu0 0.0
      %945 = vmatpush1.msra.mxu0 %v735
      %946 = vmatprep.subr.mxu0 0.0
      %947 = vmatpush2.msra.mxu0 0.0
      %948 = vmatprep.subr.mxu0 0.0
      %949 = vmatpush2.msra.mxu0 0.0
      %950 = vmatprep.subr.mxu0 0.0
      %951 = vmatpush2.msra.mxu0 0.0
      %952 = vmatprep.subr.mxu0 0.0
      %953 = vmatpush2.msra.mxu0 0.0
      %954 = vmatprep.subr.mxu0 0.0
      %955 = vmatpush2.msra.mxu0 0.0
      %956 = vmatprep.subr.mxu0 0.0
      %957 = vmatpush2.msra.mxu0 0.0
      %958 = vmatprep.subr.mxu0 0.0
      %959 = vmatpush2.msra.mxu0 0.0
      %960 = vmatprep.subr.mxu0 0.0
      %961 = vmatpush2.msra.mxu0 0.0
      %962 = vmatprep.subr.mxu0 0.0
      %963 = vmatpush2.msra.mxu0 0.0
      %964 = vmatprep.subr.mxu0 0.0
      %965 = vmatpush2.msra.mxu0 0.0
      %966 = vmatprep.subr.mxu0 0.0
      %967 = vmatpush2.msra.mxu0 0.0
      %968 = vmatprep.subr.mxu0 0.0
      %969 = vmatpush2.msra.mxu0 0.0
      %970 = vmatprep.subr.mxu0 0.0
      %971 = vmatpush2.msra.mxu0 0.0
      %972 = vmatprep.subr.mxu0 0.0
      %973 = vmatpush2.msra.mxu0 0.0
      %974 = vmatprep.subr.mxu0 0.0
      %975 = vmatpush2.msra.mxu0 0.0
      %976 = vmatprep.subr.mxu0 0.0
      %977 = vmatpush2.msra.mxu0 0.0
      %978 = vmatprep.mubr.f32.mxu0 0.0
      %979 = vmatmul.mubr.f32.gmra.mxu0 %v912
      %v980 = vpop.f32.mrf.mxu0
      %v981 = vadd.f32 0.0, %v980
      %v982 = vpop.f32.mrf.mxu0
      %983 = vdwg.mxu0
      %v985 = vlaneseq
      %v986 = vshrl.u32 %v985, 7
      %v987 = vsub.s32 0, %v986
      %v988 = vrot.slane %v739, %v987
      %v990 = vadd.f32 %v988, %v981
      %991 = vrot.lane.b32.xlu0 %v731, 120
      %v992 = vpop.permute.xlu0 %991
      %993 = vrot.lane.b32.xlu0 %v731, 88
      %v994 = vpop.permute.xlu0 %993
      %v995 = vsel %vm743, %v992, 0
      %v997 = vsel %vm743, %v994, 0
      %999 = vmatprep.subr.mxu0 0.0
      %1000 = vmatpush1.xpose.msra.mxu0 0.0
      %1001 = vmatprep.subr.mxu0 0.0
      %1002 = vmatpush1.xpose.msra.mxu0 0.0
      %1003 = vmatprep.subr.mxu0 0.0
      %1004 = vmatpush1.xpose.msra.mxu0 0.0
      %1005 = vmatprep.subr.mxu0 0.0
      %1006 = vmatpush1.xpose.msra.mxu0 0.0
      %1007 = vmatprep.subr.mxu0 0.0
      %1008 = vmatpush1.xpose.msra.mxu0 0.0
      %1009 = vmatprep.subr.mxu0 0.0
      %1010 = vmatpush1.xpose.msra.mxu0 0.0
      %1011 = vmatprep.subr.mxu0 0.0
      %1012 = vmatpush1.xpose.msra.mxu0 0.0
      %1013 = vmatprep.subr.mxu0 0.0
      %1014 = vmatpush1.xpose.msra.mxu0 0.0
      %1015 = vmatprep.subr.mxu0 0.0
      %1016 = vmatpush1.xpose.msra.mxu0 0.0
      %1017 = vmatprep.subr.mxu0 0.0
      %1018 = vmatpush1.xpose.msra.mxu0 0.0
      %1019 = vmatprep.subr.mxu0 0.0
      %1020 = vmatpush1.xpose.msra.mxu0 0.0
      %1021 = vmatprep.subr.mxu0 0.0
      %1022 = vmatpush1.xpose.msra.mxu0 0.0
      %1023 = vmatprep.subr.mxu0 0.0
      %1024 = vmatpush1.xpose.msra.mxu0 0.0
      %1025 = vmatprep.subr.mxu0 0.0
      %1026 = vmatpush1.xpose.msra.mxu0 0.0
      %1027 = vmatprep.subr.mxu0 0.0
      %1028 = vmatpush1.xpose.msra.mxu0 0.0
      %1029 = vmatprep.subr.mxu0 0.0
      %1030 = vmatpush1.xpose.msra.mxu0 %v997
      %1031 = vmatprep.subr.mxu0 0.0
      %1032 = vmatpush2.xpose.msra.mxu0 0.0
      %1033 = vmatprep.subr.mxu0 0.0
      %1034 = vmatpush2.xpose.msra.mxu0 0.0
      %1035 = vmatprep.subr.mxu0 0.0
      %1036 = vmatpush2.xpose.msra.mxu0 0.0
      %1037 = vmatprep.subr.mxu0 0.0
      %1038 = vmatpush2.xpose.msra.mxu0 0.0
      %1039 = vmatprep.subr.mxu0 0.0
      %1040 = vmatpush2.xpose.msra.mxu0 0.0
      %1041 = vmatprep.subr.mxu0 0.0
      %1042 = vmatpush2.xpose.msra.mxu0 0.0
      %1043 = vmatprep.subr.mxu0 0.0
      %1044 = vmatpush2.xpose.msra.mxu0 0.0
      %1045 = vmatprep.subr.mxu0 0.0
      %1046 = vmatpush2.xpose.msra.mxu0 0.0
      %1047 = vmatprep.subr.mxu0 0.0
      %1048 = vmatpush2.xpose.msra.mxu0 0.0
      %1049 = vmatprep.subr.mxu0 0.0
      %1050 = vmatpush2.xpose.msra.mxu0 0.0
      %1051 = vmatprep.subr.mxu0 0.0
      %1052 = vmatpush2.xpose.msra.mxu0 0.0
      %1053 = vmatprep.subr.mxu0 0.0
      %1054 = vmatpush2.xpose.msra.mxu0 0.0
      %1055 = vmatprep.subr.mxu0 0.0
      %1056 = vmatpush2.xpose.msra.mxu0 0.0
      %1057 = vmatprep.subr.mxu0 0.0
      %1058 = vmatpush2.xpose.msra.mxu0 0.0
      %1059 = vmatprep.subr.mxu0 0.0
      %1060 = vmatpush2.xpose.msra.mxu0 0.0
      %1061 = vmatprep.subr.mxu0 0.0
      %1062 = vmatpush2.xpose.msra.mxu0 0.0
      %1063 = vmatprep.mubr.f32.mxu0 0.0
      %1064 = vmatmul.mubr.f32.gmra.mxu0 %v995
      %v1065 = vpop.f32.mrf.mxu0
      %v1066 = vadd.f32 0.0, %v1065
      %v1067 = vpop.f32.mrf.mxu0
      %1068 = vdwg.mxu0
      %v1069 = vmul.f32 %v1066, 0.35355338
      %v1070 = vadd.f32 %v1069, %v734
      %v1071 = vsel %vm820, %v1070, -inf
      %1072 = vmax.xlane.f32.xlu0 %v1071
      %v1073 = vpop.xlane.xlu0 %1072
      %v1074 = vsub.f32 %v1070, %v1073
      %v1075 = vmul.f32 %v1074, 1.442695
      %v1076 = vpow.pop %v1075
      %v1077 = vsel %vm820, %v1076, 0.0
      %1078 = vadd.xlane.f32.xlu0 %v1077
      %v1079 = vpop.xlane.xlu0 %1078
      %v1080 = vrcp.pop %v1079
      %v1081 = vmul.f32 %v1076, %v1080
      %1082 = vrot.lane.b32.xlu0 %v731, 56
      %v1083 = vpop.permute.xlu0 %1082
      %v1085 = vsel %vm834, %v1081, 0
      %v1087 = vsel %vm838, %v1083, 0
      %1089 = vmatprep.subr.mxu0 0.0
      %1090 = vmatpush1.msra.mxu0 0.0
      %1091 = vmatprep.subr.mxu0 0.0
      %1092 = vmatpush1.msra.mxu0 0.0
      %1093 = vmatprep.subr.mxu0 0.0
      %1094 = vmatpush1.msra.mxu0 0.0
      %1095 = vmatprep.subr.mxu0 0.0
      %1096 = vmatpush1.msra.mxu0 0.0
      %1097 = vmatprep.subr.mxu0 0.0
      %1098 = vmatpush1.msra.mxu0 0.0
      %1099 = vmatprep.subr.mxu0 0.0
      %1100 = vmatpush1.msra.mxu0 0.0
      %1101 = vmatprep.subr.mxu0 0.0
      %1102 = vmatpush1.msra.mxu0 0.0
      %1103 = vmatprep.subr.mxu0 0.0
      %1104 = vmatpush1.msra.mxu0 0.0
      %1105 = vmatprep.subr.mxu0 0.0
      %1106 = vmatpush1.msra.mxu0 0.0
      %1107 = vmatprep.subr.mxu0 0.0
      %1108 = vmatpush1.msra.mxu0 0.0
      %1109 = vmatprep.subr.mxu0 0.0
      %1110 = vmatpush1.msra.mxu0 0.0
      %1111 = vmatprep.subr.mxu0 0.0
      %1112 = vmatpush1.msra.mxu0 0.0
      %1113 = vmatprep.subr.mxu0 0.0
      %1114 = vmatpush1.msra.mxu0 0.0
      %1115 = vmatprep.subr.mxu0 0.0
      %1116 = vmatpush1.msra.mxu0 0.0
      %1117 = vmatprep.subr.mxu0 0.0
      %1118 = vmatpush1.msra.mxu0 0.0
      %1119 = vmatprep.subr.mxu0 0.0
      %1120 = vmatpush1.msra.mxu0 %v1087
      %1121 = vmatprep.subr.mxu0 0.0
      %1122 = vmatpush2.msra.mxu0 0.0
      %1123 = vmatprep.subr.mxu0 0.0
      %1124 = vmatpush2.msra.mxu0 0.0
      %1125 = vmatprep.subr.mxu0 0.0
      %1126 = vmatpush2.msra.mxu0 0.0
      %1127 = vmatprep.subr.mxu0 0.0
      %1128 = vmatpush2.msra.mxu0 0.0
      %1129 = vmatprep.subr.mxu0 0.0
      %1130 = vmatpush2.msra.mxu0 0.0
      %1131 = vmatprep.subr.mxu0 0.0
      %1132 = vmatpush2.msra.mxu0 0.0
      %1133 = vmatprep.subr.mxu0 0.0
      %1134 = vmatpush2.msra.mxu0 0.0
      %1135 = vmatprep.subr.mxu0 0.0
      %1136 = vmatpush2.msra.mxu0 0.0
      %1137 = vmatprep.subr.mxu0 0.0
      %1138 = vmatpush2.msra.mxu0 0.0
      %1139 = vmatprep.subr.mxu0 0.0
      %1140 = vmatpush2.msra.mxu0 0.0
      %1141 = vmatprep.subr.mxu0 0.0
      %1142 = vmatpush2.msra.mxu0 0.0
      %1143 = vmatprep.subr.mxu0 0.0
      %1144 = vmatpush2.msra.mxu0 0.0
      %1145 = vmatprep.subr.mxu0 0.0
      %1146 = vmatpush2.msra.mxu0 0.0
      %1147 = vmatprep.subr.mxu0 0.0
      %1148 = vmatpush2.msra.mxu0 0.0
      %1149 = vmatprep.subr.mxu0 0.0
      %1150 = vmatpush2.msra.mxu0 0.0
      %1151 = vmatprep.subr.mxu0 0.0
      %1152 = vmatpush2.msra.mxu0 0.0
      %1153 = vmatprep.mubr.f32.mxu0 0.0
      %1154 = vmatmul.mubr.f32.gmra.mxu0 %v1085
      %v1155 = vpop.f32.mrf.mxu0
      %v1156 = vadd.f32 0.0, %v1155
      %v1157 = vpop.f32.mrf.mxu0
      %1158 = vdwg.mxu0
      %v1160 = vsel %vm743, %v1156, 0
      %1162 = vmatprep.subr.mxu0 0.0
      %1163 = vmatpush1.msra.mxu0 0.0
      %1164 = vmatprep.subr.mxu0 0.0
      %1165 = vmatpush1.msra.mxu0 0.0
      %1166 = vmatprep.subr.mxu0 0.0
      %1167 = vmatpush1.msra.mxu0 0.0
      %1168 = vmatprep.subr.mxu0 0.0
      %1169 = vmatpush1.msra.mxu0 0.0
      %1170 = vmatprep.subr.mxu0 0.0
      %1171 = vmatpush1.msra.mxu0 0.0
      %1172 = vmatprep.subr.mxu0 0.0
      %1173 = vmatpush1.msra.mxu0 0.0
      %1174 = vmatprep.subr.mxu0 0.0
      %1175 = vmatpush1.msra.mxu0 0.0
      %1176 = vmatprep.subr.mxu0 0.0
      %1177 = vmatpush1.msra.mxu0 0.0
      %1178 = vmatprep.subr.mxu0 0.0
      %1179 = vmatpush1.msra.mxu0 0.0
      %1180 = vmatprep.subr.mxu0 0.0
      %1181 = vmatpush1.msra.mxu0 0.0
      %1182 = vmatprep.subr.mxu0 0.0
      %1183 = vmatpush1.msra.mxu0 0.0
      %1184 = vmatprep.subr.mxu0 0.0
      %1185 = vmatpush1.msra.mxu0 0.0
      %1186 = vmatprep.subr.mxu0 0.0
      %1187 = vmatpush1.msra.mxu0 0.0
      %1188 = vmatprep.subr.mxu0 0.0
      %1189 = vmatpush1.msra.mxu0 0.0
      %1190 = vmatprep.subr.mxu0 0.0
      %1191 = vmatpush1.msra.mxu0 0.0
      %1192 = vmatprep.subr.mxu0 0.0
      %1193 = vmatpush1.msra.mxu0 %v736
      %1194 = vmatprep.subr.mxu0 0.0
      %1195 = vmatpush2.msra.mxu0 0.0
      %1196 = vmatprep.subr.mxu0 0.0
      %1197 = vmatpush2.msra.mxu0 0.0
      %1198 = vmatprep.subr.mxu0 0.0
      %1199 = vmatpush2.msra.mxu0 0.0
      %1200 = vmatprep.subr.mxu0 0.0
      %1201 = vmatpush2.msra.mxu0 0.0
      %1202 = vmatprep.subr.mxu0 0.0
      %1203 = vmatpush2.msra.mxu0 0.0
      %1204 = vmatprep.subr.mxu0 0.0
      %1205 = vmatpush2.msra.mxu0 0.0
      %1206 = vmatprep.subr.mxu0 0.0
      %1207 = vmatpush2.msra.mxu0 0.0
      %1208 = vmatprep.subr.mxu0 0.0
      %1209 = vmatpush2.msra.mxu0 0.0
      %1210 = vmatprep.subr.mxu0 0.0
      %1211 = vmatpush2.msra.mxu0 0.0
      %1212 = vmatprep.subr.mxu0 0.0
      %1213 = vmatpush2.msra.mxu0 0.0
      %1214 = vmatprep.subr.mxu0 0.0
      %1215 = vmatpush2.msra.mxu0 0.0
      %1216 = vmatprep.subr.mxu0 0.0
      %1217 = vmatpush2.msra.mxu0 0.0
      %1218 = vmatprep.subr.mxu0 0.0
      %1219 = vmatpush2.msra.mxu0 0.0
      %1220 = vmatprep.subr.mxu0 0.0
      %1221 = vmatpush2.msra.mxu0 0.0
      %1222 = vmatprep.subr.mxu0 0.0
      %1223 = vmatpush2.msra.mxu0 0.0
      %1224 = vmatprep.subr.mxu0 0.0
      %1225 = vmatpush2.msra.mxu0 0.0
      %1226 = vmatprep.mubr.f32.mxu0 0.0
      %1227 = vmatmul.mubr.f32.gmra.mxu0 %v1160
      %v1228 = vpop.f32.mrf.mxu0
      %v1229 = vadd.f32 0.0, %v1228
      %v1230 = vpop.f32.mrf.mxu0
      %1231 = vdwg.mxu0
      %v1232 = vadd.f32 %v990, %v1229
      %1233 = vrot.lane.b32.xlu0 %v731, 112
      %v1234 = vpop.permute.xlu0 %1233
      %1235 = vrot.lane.b32.xlu0 %v731, 80
      %v1236 = vpop.permute.xlu0 %1235
      %v1237 = vsel %vm743, %v1234, 0
      %v1239 = vsel %vm743, %v1236, 0
      %1241 = vmatprep.subr.mxu0 0.0
      %1242 = vmatpush1.xpose.msra.mxu0 0.0
      %1243 = vmatprep.subr.mxu0 0.0
      %1244 = vmatpush1.xpose.msra.mxu0 0.0
      %1245 = vmatprep.subr.mxu0 0.0
      %1246 = vmatpush1.xpose.msra.mxu0 0.0
      %1247 = vmatprep.subr.mxu0 0.0
      %1248 = vmatpush1.xpose.msra.mxu0 0.0
      %1249 = vmatprep.subr.mxu0 0.0
      %1250 = vmatpush1.xpose.msra.mxu0 0.0
      %1251 = vmatprep.subr.mxu0 0.0
      %1252 = vmatpush1.xpose.msra.mxu0 0.0
      %1253 = vmatprep.subr.mxu0 0.0
      %1254 = vmatpush1.xpose.msra.mxu0 0.0
      %1255 = vmatprep.subr.mxu0 0.0
      %1256 = vmatpush1.xpose.msra.mxu0 0.0
      %1257 = vmatprep.subr.mxu0 0.0
      %1258 = vmatpush1.xpose.msra.mxu0 0.0
      %1259 = vmatprep.subr.mxu0 0.0
      %1260 = vmatpush1.xpose.msra.mxu0 0.0
      %1261 = vmatprep.subr.mxu0 0.0
      %1262 = vmatpush1.xpose.msra.mxu0 0.0
      %1263 = vmatprep.subr.mxu0 0.0
      %1264 = vmatpush1.xpose.msra.mxu0 0.0
      %1265 = vmatprep.subr.mxu0 0.0
      %1266 = vmatpush1.xpose.msra.mxu0 0.0
      %1267 = vmatprep.subr.mxu0 0.0
      %1268 = vmatpush1.xpose.msra.mxu0 0.0
      %1269 = vmatprep.subr.mxu0 0.0
      %1270 = vmatpush1.xpose.msra.mxu0 0.0
      %1271 = vmatprep.subr.mxu0 0.0
      %1272 = vmatpush1.xpose.msra.mxu0 %v1239
      %1273 = vmatprep.subr.mxu0 0.0
      %1274 = vmatpush2.xpose.msra.mxu0 0.0
      %1275 = vmatprep.subr.mxu0 0.0
      %1276 = vmatpush2.xpose.msra.mxu0 0.0
      %1277 = vmatprep.subr.mxu0 0.0
      %1278 = vmatpush2.xpose.msra.mxu0 0.0
      %1279 = vmatprep.subr.mxu0 0.0
      %1280 = vmatpush2.xpose.msra.mxu0 0.0
      %1281 = vmatprep.subr.mxu0 0.0
      %1282 = vmatpush2.xpose.msra.mxu0 0.0
      %1283 = vmatprep.subr.mxu0 0.0
      %1284 = vmatpush2.xpose.msra.mxu0 0.0
      %1285 = vmatprep.subr.mxu0 0.0
      %1286 = vmatpush2.xpose.msra.mxu0 0.0
      %1287 = vmatprep.subr.mxu0 0.0
      %1288 = vmatpush2.xpose.msra.mxu0 0.0
      %1289 = vmatprep.subr.mxu0 0.0
      %1290 = vmatpush2.xpose.msra.mxu0 0.0
      %1291 = vmatprep.subr.mxu0 0.0
      %1292 = vmatpush2.xpose.msra.mxu0 0.0
      %1293 = vmatprep.subr.mxu0 0.0
      %1294 = vmatpush2.xpose.msra.mxu0 0.0
      %1295 = vmatprep.subr.mxu0 0.0
      %1296 = vmatpush2.xpose.msra.mxu0 0.0
      %1297 = vmatprep.subr.mxu0 0.0
      %1298 = vmatpush2.xpose.msra.mxu0 0.0
      %1299 = vmatprep.subr.mxu0 0.0
      %1300 = vmatpush2.xpose.msra.mxu0 0.0
      %1301 = vmatprep.subr.mxu0 0.0
      %1302 = vmatpush2.xpose.msra.mxu0 0.0
      %1303 = vmatprep.subr.mxu0 0.0
      %1304 = vmatpush2.xpose.msra.mxu0 0.0
      %1305 = vmatprep.mubr.f32.mxu0 0.0
      %1306 = vmatmul.mubr.f32.gmra.mxu0 %v1237
      %v1307 = vpop.f32.mrf.mxu0
      %v1308 = vadd.f32 0.0, %v1307
      %v1309 = vpop.f32.mrf.mxu0
      %1310 = vdwg.mxu0
      %v1311 = vmul.f32 %v1308, 0.35355338
      %v1312 = vadd.f32 %v1311, %v734
      %v1313 = vsel %vm820, %v1312, -inf
      %1314 = vmax.xlane.f32.xlu0 %v1313
      %v1315 = vpop.xlane.xlu0 %1314
      %v1316 = vsub.f32 %v1312, %v1315
      %v1317 = vmul.f32 %v1316, 1.442695
      %v1318 = vpow.pop %v1317
      %v1319 = vsel %vm820, %v1318, 0.0
      %1320 = vadd.xlane.f32.xlu0 %v1319
      %v1321 = vpop.xlane.xlu0 %1320
      %v1322 = vrcp.pop %v1321
      %v1323 = vmul.f32 %v1318, %v1322
      %1324 = vrot.lane.b32.xlu0 %v731, 48
      %v1325 = vpop.permute.xlu0 %1324
      %v1327 = vsel %vm834, %v1323, 0
      %v1329 = vsel %vm838, %v1325, 0
      %1331 = vmatprep.subr.mxu0 0.0
      %1332 = vmatpush1.msra.mxu0 0.0
      %1333 = vmatprep.subr.mxu0 0.0
      %1334 = vmatpush1.msra.mxu0 0.0
      %1335 = vmatprep.subr.mxu0 0.0
      %1336 = vmatpush1.msra.mxu0 0.0
      %1337 = vmatprep.subr.mxu0 0.0
      %1338 = vmatpush1.msra.mxu0 0.0
      %1339 = vmatprep.subr.mxu0 0.0
      %1340 = vmatpush1.msra.mxu0 0.0
      %1341 = vmatprep.subr.mxu0 0.0
      %1342 = vmatpush1.msra.mxu0 0.0
      %1343 = vmatprep.subr.mxu0 0.0
      %1344 = vmatpush1.msra.mxu0 0.0
      %1345 = vmatprep.subr.mxu0 0.0
      %1346 = vmatpush1.msra.mxu0 0.0
      %1347 = vmatprep.subr.mxu0 0.0
      %1348 = vmatpush1.msra.mxu0 0.0
      %1349 = vmatprep.subr.mxu0 0.0
      %1350 = vmatpush1.msra.mxu0 0.0
      %1351 = vmatprep.subr.mxu0 0.0
      %1352 = vmatpush1.msra.mxu0 0.0
      %1353 = vmatprep.subr.mxu0 0.0
      %1354 = vmatpush1.msra.mxu0 0.0
      %1355 = vmatprep.subr.mxu0 0.0
      %1356 = vmatpush1.msra.mxu0 0.0
      %1357 = vmatprep.subr.mxu0 0.0
      %1358 = vmatpush1.msra.mxu0 0.0
      %1359 = vmatprep.subr.mxu0 0.0
      %1360 = vmatpush1.msra.mxu0 0.0
      %1361 = vmatprep.subr.mxu0 0.0
      %1362 = vmatpush1.msra.mxu0 %v1329
      %1363 = vmatprep.subr.mxu0 0.0
      %1364 = vmatpush2.msra.mxu0 0.0
      %1365 = vmatprep.subr.mxu0 0.0
      %1366 = vmatpush2.msra.mxu0 0.0
      %1367 = vmatprep.subr.mxu0 0.0
      %1368 = vmatpush2.msra.mxu0 0.0
      %1369 = vmatprep.subr.mxu0 0.0
      %1370 = vmatpush2.msra.mxu0 0.0
      %1371 = vmatprep.subr.mxu0 0.0
      %1372 = vmatpush2.msra.mxu0 0.0
      %1373 = vmatprep.subr.mxu0 0.0
      %1374 = vmatpush2.msra.mxu0 0.0
      %1375 = vmatprep.subr.mxu0 0.0
      %1376 = vmatpush2.msra.mxu0 0.0
      %1377 = vmatprep.subr.mxu0 0.0
      %1378 = vmatpush2.msra.mxu0 0.0
      %1379 = vmatprep.subr.mxu0 0.0
      %1380 = vmatpush2.msra.mxu0 0.0
      %1381 = vmatprep.subr.mxu0 0.0
      %1382 = vmatpush2.msra.mxu0 0.0
      %1383 = vmatprep.subr.mxu0 0.0
      %1384 = vmatpush2.msra.mxu0 0.0
      %1385 = vmatprep.subr.mxu0 0.0
      %1386 = vmatpush2.msra.mxu0 0.0
      %1387 = vmatprep.subr.mxu0 0.0
      %1388 = vmatpush2.msra.mxu0 0.0
      %1389 = vmatprep.subr.mxu0 0.0
      %1390 = vmatpush2.msra.mxu0 0.0
      %1391 = vmatprep.subr.mxu0 0.0
      %1392 = vmatpush2.msra.mxu0 0.0
      %1393 = vmatprep.subr.mxu0 0.0
      %1394 = vmatpush2.msra.mxu0 0.0
      %1395 = vmatprep.mubr.f32.mxu0 0.0
      %1396 = vmatmul.mubr.f32.gmra.mxu0 %v1327
      %v1397 = vpop.f32.mrf.mxu0
      %v1398 = vadd.f32 0.0, %v1397
      %v1399 = vpop.f32.mrf.mxu0
      %1400 = vdwg.mxu0
      %v1402 = vsel %vm743, %v1398, 0
      %1404 = vmatprep.subr.mxu0 0.0
      %1405 = vmatpush1.msra.mxu0 0.0
      %1406 = vmatprep.subr.mxu0 0.0
      %1407 = vmatpush1.msra.mxu0 0.0
      %1408 = vmatprep.subr.mxu0 0.0
      %1409 = vmatpush1.msra.mxu0 0.0
      %1410 = vmatprep.subr.mxu0 0.0
      %1411 = vmatpush1.msra.mxu0 0.0
      %1412 = vmatprep.subr.mxu0 0.0
      %1413 = vmatpush1.msra.mxu0 0.0
      %1414 = vmatprep.subr.mxu0 0.0
      %1415 = vmatpush1.msra.mxu0 0.0
      %1416 = vmatprep.subr.mxu0 0.0
      %1417 = vmatpush1.msra.mxu0 0.0
      %1418 = vmatprep.subr.mxu0 0.0
      %1419 = vmatpush1.msra.mxu0 0.0
      %1420 = vmatprep.subr.mxu0 0.0
      %1421 = vmatpush1.msra.mxu0 0.0
      %1422 = vmatprep.subr.mxu0 0.0
      %1423 = vmatpush1.msra.mxu0 0.0
      %1424 = vmatprep.subr.mxu0 0.0
      %1425 = vmatpush1.msra.mxu0 0.0
      %1426 = vmatprep.subr.mxu0 0.0
      %1427 = vmatpush1.msra.mxu0 0.0
      %1428 = vmatprep.subr.mxu0 0.0
      %1429 = vmatpush1.msra.mxu0 0.0
      %1430 = vmatprep.subr.mxu0 0.0
      %1431 = vmatpush1.msra.mxu0 0.0
      %1432 = vmatprep.subr.mxu0 0.0
      %1433 = vmatpush1.msra.mxu0 0.0
      %1434 = vmatprep.subr.mxu0 0.0
      %1435 = vmatpush1.msra.mxu0 %v737
      %1436 = vmatprep.subr.mxu0 0.0
      %1437 = vmatpush2.msra.mxu0 0.0
      %1438 = vmatprep.subr.mxu0 0.0
      %1439 = vmatpush2.msra.mxu0 0.0
      %1440 = vmatprep.subr.mxu0 0.0
      %1441 = vmatpush2.msra.mxu0 0.0
      %1442 = vmatprep.subr.mxu0 0.0
      %1443 = vmatpush2.msra.mxu0 0.0
      %1444 = vmatprep.subr.mxu0 0.0
      %1445 = vmatpush2.msra.mxu0 0.0
      %1446 = vmatprep.subr.mxu0 0.0
      %1447 = vmatpush2.msra.mxu0 0.0
      %1448 = vmatprep.subr.mxu0 0.0
      %1449 = vmatpush2.msra.mxu0 0.0
      %1450 = vmatprep.subr.mxu0 0.0
      %1451 = vmatpush2.msra.mxu0 0.0
      %1452 = vmatprep.subr.mxu0 0.0
      %1453 = vmatpush2.msra.mxu0 0.0
      %1454 = vmatprep.subr.mxu0 0.0
      %1455 = vmatpush2.msra.mxu0 0.0
      %1456 = vmatprep.subr.mxu0 0.0
      %1457 = vmatpush2.msra.mxu0 0.0
      %1458 = vmatprep.subr.mxu0 0.0
      %1459 = vmatpush2.msra.mxu0 0.0
      %1460 = vmatprep.subr.mxu0 0.0
      %1461 = vmatpush2.msra.mxu0 0.0
      %1462 = vmatprep.subr.mxu0 0.0
      %1463 = vmatpush2.msra.mxu0 0.0
      %1464 = vmatprep.subr.mxu0 0.0
      %1465 = vmatpush2.msra.mxu0 0.0
      %1466 = vmatprep.subr.mxu0 0.0
      %1467 = vmatpush2.msra.mxu0 0.0
      %1468 = vmatprep.mubr.f32.mxu0 0.0
      %1469 = vmatmul.mubr.f32.gmra.mxu0 %v1402
      %v1470 = vpop.f32.mrf.mxu0
      %v1471 = vadd.f32 0.0, %v1470
      %v1472 = vpop.f32.mrf.mxu0
      %1473 = vdwg.mxu0
      %v1474 = vadd.f32 %v1232, %v1471
      %1475 = vrot.lane.b32.xlu0 %v731, 104
      %v1476 = vpop.permute.xlu0 %1475
      %1477 = vrot.lane.b32.xlu0 %v731, 72
      %v1478 = vpop.permute.xlu0 %1477
      %v1479 = vsel %vm743, %v1476, 0
      %v1481 = vsel %vm743, %v1478, 0
      %1483 = vmatprep.subr.mxu0 0.0
      %1484 = vmatpush1.xpose.msra.mxu0 0.0
      %1485 = vmatprep.subr.mxu0 0.0
      %1486 = vmatpush1.xpose.msra.mxu0 0.0
      %1487 = vmatprep.subr.mxu0 0.0
      %1488 = vmatpush1.xpose.msra.mxu0 0.0
      %1489 = vmatprep.subr.mxu0 0.0
      %1490 = vmatpush1.xpose.msra.mxu0 0.0
      %1491 = vmatprep.subr.mxu0 0.0
      %1492 = vmatpush1.xpose.msra.mxu0 0.0
      %1493 = vmatprep.subr.mxu0 0.0
      %1494 = vmatpush1.xpose.msra.mxu0 0.0
      %1495 = vmatprep.subr.mxu0 0.0
      %1496 = vmatpush1.xpose.msra.mxu0 0.0
      %1497 = vmatprep.subr.mxu0 0.0
      %1498 = vmatpush1.xpose.msra.mxu0 0.0
      %1499 = vmatprep.subr.mxu0 0.0
      %1500 = vmatpush1.xpose.msra.mxu0 0.0
      %1501 = vmatprep.subr.mxu0 0.0
      %1502 = vmatpush1.xpose.msra.mxu0 0.0
      %1503 = vmatprep.subr.mxu0 0.0
      %1504 = vmatpush1.xpose.msra.mxu0 0.0
      %1505 = vmatprep.subr.mxu0 0.0
      %1506 = vmatpush1.xpose.msra.mxu0 0.0
      %1507 = vmatprep.subr.mxu0 0.0
      %1508 = vmatpush1.xpose.msra.mxu0 0.0
      %1509 = vmatprep.subr.mxu0 0.0
      %1510 = vmatpush1.xpose.msra.mxu0 0.0
      %1511 = vmatprep.subr.mxu0 0.0
      %1512 = vmatpush1.xpose.msra.mxu0 0.0
      %1513 = vmatprep.subr.mxu0 0.0
      %1514 = vmatpush1.xpose.msra.mxu0 %v1481
      %1515 = vmatprep.subr.mxu0 0.0
      %1516 = vmatpush2.xpose.msra.mxu0 0.0
      %1517 = vmatprep.subr.mxu0 0.0
      %1518 = vmatpush2.xpose.msra.mxu0 0.0
      %1519 = vmatprep.subr.mxu0 0.0
      %1520 = vmatpush2.xpose.msra.mxu0 0.0
      %1521 = vmatprep.subr.mxu0 0.0
      %1522 = vmatpush2.xpose.msra.mxu0 0.0
      %1523 = vmatprep.subr.mxu0 0.0
      %1524 = vmatpush2.xpose.msra.mxu0 0.0
      %1525 = vmatprep.subr.mxu0 0.0
      %1526 = vmatpush2.xpose.msra.mxu0 0.0
      %1527 = vmatprep.subr.mxu0 0.0
      %1528 = vmatpush2.xpose.msra.mxu0 0.0
      %1529 = vmatprep.subr.mxu0 0.0
      %1530 = vmatpush2.xpose.msra.mxu0 0.0
      %1531 = vmatprep.subr.mxu0 0.0
      %1532 = vmatpush2.xpose.msra.mxu0 0.0
      %1533 = vmatprep.subr.mxu0 0.0
      %1534 = vmatpush2.xpose.msra.mxu0 0.0
      %1535 = vmatprep.subr.mxu0 0.0
      %1536 = vmatpush2.xpose.msra.mxu0 0.0
      %1537 = vmatprep.subr.mxu0 0.0
      %1538 = vmatpush2.xpose.msra.mxu0 0.0
      %1539 = vmatprep.subr.mxu0 0.0
      %1540 = vmatpush2.xpose.msra.mxu0 0.0
      %1541 = vmatprep.subr.mxu0 0.0
      %1542 = vmatpush2.xpose.msra.mxu0 0.0
      %1543 = vmatprep.subr.mxu0 0.0
      %1544 = vmatpush2.xpose.msra.mxu0 0.0
      %1545 = vmatprep.subr.mxu0 0.0
      %1546 = vmatpush2.xpose.msra.mxu0 0.0
      %1547 = vmatprep.mubr.f32.mxu0 0.0
      %1548 = vmatmul.mubr.f32.gmra.mxu0 %v1479
      %v1549 = vpop.f32.mrf.mxu0
      %v1550 = vadd.f32 0.0, %v1549
      %v1551 = vpop.f32.mrf.mxu0
      %1552 = vdwg.mxu0
      %v1553 = vmul.f32 %v1550, 0.35355338
      %v1554 = vadd.f32 %v1553, %v734
      %v1555 = vsel %vm820, %v1554, -inf
      %1556 = vmax.xlane.f32.xlu0 %v1555
      %v1557 = vpop.xlane.xlu0 %1556
      %v1558 = vsub.f32 %v1554, %v1557
      %v1559 = vmul.f32 %v1558, 1.442695
      %v1560 = vpow.pop %v1559
      %v1561 = vsel %vm820, %v1560, 0.0
      %1562 = vadd.xlane.f32.xlu0 %v1561
      %v1563 = vpop.xlane.xlu0 %1562
      %v1564 = vrcp.pop %v1563
      %v1565 = vmul.f32 %v1560, %v1564
      %1566 = vrot.lane.b32.xlu0 %v731, 40
      %v1567 = vpop.permute.xlu0 %1566
      %v1569 = vsel %vm834, %v1565, 0
      %v1571 = vsel %vm838, %v1567, 0
      %1573 = vmatprep.subr.mxu0 0.0
      %1574 = vmatpush1.msra.mxu0 0.0
      %1575 = vmatprep.subr.mxu0 0.0
      %1576 = vmatpush1.msra.mxu0 0.0
      %1577 = vmatprep.subr.mxu0 0.0
      %1578 = vmatpush1.msra.mxu0 0.0
      %1579 = vmatprep.subr.mxu0 0.0
      %1580 = vmatpush1.msra.mxu0 0.0
      %1581 = vmatprep.subr.mxu0 0.0
      %1582 = vmatpush1.msra.mxu0 0.0
      %1583 = vmatprep.subr.mxu0 0.0
      %1584 = vmatpush1.msra.mxu0 0.0
      %1585 = vmatprep.subr.mxu0 0.0
      %1586 = vmatpush1.msra.mxu0 0.0
      %1587 = vmatprep.subr.mxu0 0.0
      %1588 = vmatpush1.msra.mxu0 0.0
      %1589 = vmatprep.subr.mxu0 0.0
      %1590 = vmatpush1.msra.mxu0 0.0
      %1591 = vmatprep.subr.mxu0 0.0
      %1592 = vmatpush1.msra.mxu0 0.0
      %1593 = vmatprep.subr.mxu0 0.0
      %1594 = vmatpush1.msra.mxu0 0.0
      %1595 = vmatprep.subr.mxu0 0.0
      %1596 = vmatpush1.msra.mxu0 0.0
      %1597 = vmatprep.subr.mxu0 0.0
      %1598 = vmatpush1.msra.mxu0 0.0
      %1599 = vmatprep.subr.mxu0 0.0
      %1600 = vmatpush1.msra.mxu0 0.0
      %1601 = vmatprep.subr.mxu0 0.0
      %1602 = vmatpush1.msra.mxu0 0.0
      %1603 = vmatprep.subr.mxu0 0.0
      %1604 = vmatpush1.msra.mxu0 %v1571
      %1605 = vmatprep.subr.mxu0 0.0
      %1606 = vmatpush2.msra.mxu0 0.0
      %1607 = vmatprep.subr.mxu0 0.0
      %1608 = vmatpush2.msra.mxu0 0.0
      %1609 = vmatprep.subr.mxu0 0.0
      %1610 = vmatpush2.msra.mxu0 0.0
      %1611 = vmatprep.subr.mxu0 0.0
      %1612 = vmatpush2.msra.mxu0 0.0
      %1613 = vmatprep.subr.mxu0 0.0
      %1614 = vmatpush2.msra.mxu0 0.0
      %1615 = vmatprep.subr.mxu0 0.0
      %1616 = vmatpush2.msra.mxu0 0.0
      %1617 = vmatprep.subr.mxu0 0.0
      %1618 = vmatpush2.msra.mxu0 0.0
      %1619 = vmatprep.subr.mxu0 0.0
      %1620 = vmatpush2.msra.mxu0 0.0
      %1621 = vmatprep.subr.mxu0 0.0
      %1622 = vmatpush2.msra.mxu0 0.0
      %1623 = vmatprep.subr.mxu0 0.0
      %1624 = vmatpush2.msra.mxu0 0.0
      %1625 = vmatprep.subr.mxu0 0.0
      %1626 = vmatpush2.msra.mxu0 0.0
      %1627 = vmatprep.subr.mxu0 0.0
      %1628 = vmatpush2.msra.mxu0 0.0
      %1629 = vmatprep.subr.mxu0 0.0
      %1630 = vmatpush2.msra.mxu0 0.0
      %1631 = vmatprep.subr.mxu0 0.0
      %1632 = vmatpush2.msra.mxu0 0.0
      %1633 = vmatprep.subr.mxu0 0.0
      %1634 = vmatpush2.msra.mxu0 0.0
      %1635 = vmatprep.subr.mxu0 0.0
      %1636 = vmatpush2.msra.mxu0 0.0
      %1637 = vmatprep.mubr.f32.mxu0 0.0
      %1638 = vmatmul.mubr.f32.gmra.mxu0 %v1569
      %v1639 = vpop.f32.mrf.mxu0
      %v1640 = vadd.f32 0.0, %v1639
      %v1641 = vpop.f32.mrf.mxu0
      %1642 = vdwg.mxu0
      %v1644 = vsel %vm743, %v1640, 0
      %1646 = vmatprep.subr.mxu0 0.0
      %1647 = vmatpush1.msra.mxu0 0.0
      %1648 = vmatprep.subr.mxu0 0.0
      %1649 = vmatpush1.msra.mxu0 0.0
      %1650 = vmatprep.subr.mxu0 0.0
      %1651 = vmatpush1.msra.mxu0 0.0
      %1652 = vmatprep.subr.mxu0 0.0
      %1653 = vmatpush1.msra.mxu0 0.0
      %1654 = vmatprep.subr.mxu0 0.0
      %1655 = vmatpush1.msra.mxu0 0.0
      %1656 = vmatprep.subr.mxu0 0.0
      %1657 = vmatpush1.msra.mxu0 0.0
      %1658 = vmatprep.subr.mxu0 0.0
      %1659 = vmatpush1.msra.mxu0 0.0
      %1660 = vmatprep.subr.mxu0 0.0
      %1661 = vmatpush1.msra.mxu0 0.0
      %1662 = vmatprep.subr.mxu0 0.0
      %1663 = vmatpush1.msra.mxu0 0.0
      %1664 = vmatprep.subr.mxu0 0.0
      %1665 = vmatpush1.msra.mxu0 0.0
      %1666 = vmatprep.subr.mxu0 0.0
      %1667 = vmatpush1.msra.mxu0 0.0
      %1668 = vmatprep.subr.mxu0 0.0
      %1669 = vmatpush1.msra.mxu0 0.0
      %1670 = vmatprep.subr.mxu0 0.0
      %1671 = vmatpush1.msra.mxu0 0.0
      %1672 = vmatprep.subr.mxu0 0.0
      %1673 = vmatpush1.msra.mxu0 0.0
      %1674 = vmatprep.subr.mxu0 0.0
      %1675 = vmatpush1.msra.mxu0 0.0
      %1676 = vmatprep.subr.mxu0 0.0
      %1677 = vmatpush1.msra.mxu0 %v738
      %1678 = vmatprep.subr.mxu0 0.0
      %1679 = vmatpush2.msra.mxu0 0.0
      %1680 = vmatprep.subr.mxu0 0.0
      %1681 = vmatpush2.msra.mxu0 0.0
      %1682 = vmatprep.subr.mxu0 0.0
      %1683 = vmatpush2.msra.mxu0 0.0
      %1684 = vmatprep.subr.mxu0 0.0
      %1685 = vmatpush2.msra.mxu0 0.0
      %1686 = vmatprep.subr.mxu0 0.0
      %1687 = vmatpush2.msra.mxu0 0.0
      %1688 = vmatprep.subr.mxu0 0.0
      %1689 = vmatpush2.msra.mxu0 0.0
      %1690 = vmatprep.subr.mxu0 0.0
      %1691 = vmatpush2.msra.mxu0 0.0
      %1692 = vmatprep.subr.mxu0 0.0
      %1693 = vmatpush2.msra.mxu0 0.0
      %1694 = vmatprep.subr.mxu0 0.0
      %1695 = vmatpush2.msra.mxu0 0.0
      %1696 = vmatprep.subr.mxu0 0.0
      %1697 = vmatpush2.msra.mxu0 0.0
      %1698 = vmatprep.subr.mxu0 0.0
      %1699 = vmatpush2.msra.mxu0 0.0
      %1700 = vmatprep.subr.mxu0 0.0
      %1701 = vmatpush2.msra.mxu0 0.0
      %1702 = vmatprep.subr.mxu0 0.0
      %1703 = vmatpush2.msra.mxu0 0.0
      %1704 = vmatprep.subr.mxu0 0.0
      %1705 = vmatpush2.msra.mxu0 0.0
      %1706 = vmatprep.subr.mxu0 0.0
      %1707 = vmatpush2.msra.mxu0 0.0
      %1708 = vmatprep.subr.mxu0 0.0
      %1709 = vmatpush2.msra.mxu0 0.0
      %1710 = vmatprep.mubr.f32.mxu0 0.0
      %1711 = vmatmul.mubr.f32.gmra.mxu0 %v1644
      %v1712 = vpop.f32.mrf.mxu0
      %v1713 = vadd.f32 0.0, %v1712
      %v1714 = vpop.f32.mrf.mxu0
      %1715 = vdwg.mxu0
      %v1716 = vadd.f32 %v1474, %v1713
      %v1717 = vadd.f32 %v616, %v1716
      %v1718 = vld [vmem:[%s521 + $0x8] sm:$0x1]
      %v1719 = vld [vmem:[%s521 + $0xb] sm:$0x1]
      %v1720 = vsel %vm620, %v1717, 0.0
      %1721 = vadd.xlane.f32.xlu0 %v1720
      %v1722 = vpop.xlane.xlu0 %1721
      %v1723 = vmul.f32 %v1722, %v624
      %v1724 = vsub.f32 %v1717, %v1723
      %v1725 = vmul.f32 %v1724, %v1724
      %v1726 = vsel %vm620, %v1725, 0.0
      %1727 = vadd.xlane.f32.xlu0 %v1726
      %v1728 = vpop.xlane.xlu0 %1727
      %v1729 = vmul.f32 %v1728, %v624
      %v1730 = vadd.f32 %v1729, 1e-05
      %v1731 = vrsqrt.pop %v1730
      %v1732 = vmul.f32 %v1724, %v1731
      %v1734 = vlaneseq
      %v1735 = vshrl.u32 %v1734, 7
      %v1736 = vsub.s32 0, %v1735
      %v1737 = vrot.slane %v1718, %v1736
      %v1739 = vmul.f32 %v1732, %v1737
      %v1741 = vlaneseq
      %v1742 = vshrl.u32 %v1741, 7
      %v1743 = vsub.s32 0, %v1742
      %v1744 = vrot.slane %v1719, %v1743
      %v1746 = vadd.f32 %v1739, %v1744
      %v1747 = vld [vmem:[%s512 + $0x10] sm:$0xff]
      %v1748 = vld [vmem:[%s512 + $0x40] sm:$0xff]
      %v1749 = vld [vmem:[%s512 + $0x70] sm:$0xff]
      %v1750 = vld [vmem:[%s512 + $0xa0] sm:$0xff]
      %v1751 = vld [vmem:[%s521 + $0x2] sm:$0x1]
      %v1753 = vlaneseq
      %v1754 = vshrl.u32 %v1753, 7
      %v1755 = vsub.s32 0, %v1754
      %v1756 = vrot.slane %v1751, %v1755
      %v1759 = vsel %vm660, %v1746, 0
      %1761 = vmatprep.subr.mxu0 0.0
      %1762 = vmatpush1.msra.mxu0 0.0
      %1763 = vmatprep.subr.mxu0 0.0
      %1764 = vmatpush1.msra.mxu0 0.0
      %1765 = vmatprep.subr.mxu0 0.0
      %1766 = vmatpush1.msra.mxu0 0.0
      %1767 = vmatprep.subr.mxu0 0.0
      %1768 = vmatpush1.msra.mxu0 0.0
      %1769 = vmatprep.subr.mxu0 0.0
      %1770 = vmatpush1.msra.mxu0 0.0
      %1771 = vmatprep.subr.mxu0 0.0
      %1772 = vmatpush1.msra.mxu0 0.0
      %1773 = vmatprep.subr.mxu0 0.0
      %1774 = vmatpush1.msra.mxu0 0.0
      %1775 = vmatprep.subr.mxu0 0.0
      %1776 = vmatpush1.msra.mxu0 0.0
      %1777 = vmatprep.subr.mxu0 0.0
      %1778 = vmatpush1.msra.mxu0 0.0
      %1779 = vmatprep.subr.mxu0 0.0
      %1780 = vmatpush1.msra.mxu0 0.0
      %1781 = vmatprep.subr.mxu0 0.0
      %1782 = vmatpush1.msra.mxu0 0.0
      %1783 = vmatprep.subr.mxu0 0.0
      %1784 = vmatpush1.msra.mxu0 0.0
      %1785 = vmatprep.subr.mxu0 0.0
      %1786 = vmatpush1.msra.mxu0 %v1750
      %1787 = vmatprep.subr.mxu0 0.0
      %1788 = vmatpush1.msra.mxu0 %v1749
      %1789 = vmatprep.subr.mxu0 0.0
      %1790 = vmatpush1.msra.mxu0 %v1748
      %1791 = vmatprep.subr.mxu0 0.0
      %1792 = vmatpush1.msra.mxu0 %v1747
      %1793 = vmatprep.subr.mxu0 0.0
      %1794 = vmatpush2.msra.mxu0 0.0
      %1795 = vmatprep.subr.mxu0 0.0
      %1796 = vmatpush2.msra.mxu0 0.0
      %1797 = vmatprep.subr.mxu0 0.0
      %1798 = vmatpush2.msra.mxu0 0.0
      %1799 = vmatprep.subr.mxu0 0.0
      %1800 = vmatpush2.msra.mxu0 0.0
      %1801 = vmatprep.subr.mxu0 0.0
      %1802 = vmatpush2.msra.mxu0 0.0
      %1803 = vmatprep.subr.mxu0 0.0
      %1804 = vmatpush2.msra.mxu0 0.0
      %1805 = vmatprep.subr.mxu0 0.0
      %1806 = vmatpush2.msra.mxu0 0.0
      %1807 = vmatprep.subr.mxu0 0.0
      %1808 = vmatpush2.msra.mxu0 0.0
      %1809 = vmatprep.subr.mxu0 0.0
      %1810 = vmatpush2.msra.mxu0 0.0
      %1811 = vmatprep.subr.mxu0 0.0
      %1812 = vmatpush2.msra.mxu0 0.0
      %1813 = vmatprep.subr.mxu0 0.0
      %1814 = vmatpush2.msra.mxu0 0.0
      %1815 = vmatprep.subr.mxu0 0.0
      %1816 = vmatpush2.msra.mxu0 0.0
      %1817 = vmatprep.subr.mxu0 0.0
      %1818 = vmatpush2.msra.mxu0 0.0
      %1819 = vmatprep.subr.mxu0 0.0
      %1820 = vmatpush2.msra.mxu0 0.0
      %1821 = vmatprep.subr.mxu0 0.0
      %1822 = vmatpush2.msra.mxu0 0.0
      %1823 = vmatprep.subr.mxu0 0.0
      %1824 = vmatpush2.msra.mxu0 0.0
      %1825 = vmatprep.mubr.f32.mxu0 0.0
      %1826 = vmatmul.mubr.f32.gmra.mxu0 %v1759
      %v1827 = vpop.f32.mrf.mxu0
      %v1828 = vadd.f32 %v1756, %v1827
      %v1829 = vpop.f32.mrf.mxu0
      %1830 = vdwg.mxu0
      %v1831 = vld [vmem:[%s512 + $0x18] sm:$0xff]
      %v1832 = vld [vmem:[%s512 + $0x48] sm:$0xff]
      %v1833 = vld [vmem:[%s512 + $0x78] sm:$0xff]
      %v1834 = vld [vmem:[%s512 + $0xa8] sm:$0xff]
      %v1835 = vld [vmem:[%s521 + $0x3] sm:$0x1]
      %v1837 = vlaneseq
      %v1838 = vshrl.u32 %v1837, 7
      %v1839 = vsub.s32 0, %v1838
      %v1840 = vrot.slane %v1835, %v1839
      %v1843 = vsel %vm660, %v617, 0
      %1845 = vmatprep.subr.mxu0 0.0
      %1846 = vmatpush1.msra.mxu0 0.0
      %1847 = vmatprep.subr.mxu0 0.0
      %1848 = vmatpush1.msra.mxu0 0.0
      %1849 = vmatprep.subr.mxu0 0.0
      %1850 = vmatpush1.msra.mxu0 0.0
      %1851 = vmatprep.subr.mxu0 0.0
      %1852 = vmatpush1.msra.mxu0 0.0
      %1853 = vmatprep.subr.mxu0 0.0
      %1854 = vmatpush1.msra.mxu0 0.0
      %1855 = vmatprep.subr.mxu0 0.0
      %1856 = vmatpush1.msra.mxu0 0.0
      %1857 = vmatprep.subr.mxu0 0.0
      %1858 = vmatpush1.msra.mxu0 0.0
      %1859 = vmatprep.subr.mxu0 0.0
      %1860 = vmatpush1.msra.mxu0 0.0
      %1861 = vmatprep.subr.mxu0 0.0
      %1862 = vmatpush1.msra.mxu0 0.0
      %1863 = vmatprep.subr.mxu0 0.0
      %1864 = vmatpush1.msra.mxu0 0.0
      %1865 = vmatprep.subr.mxu0 0.0
      %1866 = vmatpush1.msra.mxu0 0.0
      %1867 = vmatprep.subr.mxu0 0.0
      %1868 = vmatpush1.msra.mxu0 0.0
      %1869 = vmatprep.subr.mxu0 0.0
      %1870 = vmatpush1.msra.mxu0 %v1834
      %1871 = vmatprep.subr.mxu0 0.0
      %1872 = vmatpush1.msra.mxu0 %v1833
      %1873 = vmatprep.subr.mxu0 0.0
      %1874 = vmatpush1.msra.mxu0 %v1832
      %1875 = vmatprep.subr.mxu0 0.0
      %1876 = vmatpush1.msra.mxu0 %v1831
      %1877 = vmatprep.subr.mxu0 0.0
      %1878 = vmatpush2.msra.mxu0 0.0
      %1879 = vmatprep.subr.mxu0 0.0
      %1880 = vmatpush2.msra.mxu0 0.0
      %1881 = vmatprep.subr.mxu0 0.0
      %1882 = vmatpush2.msra.mxu0 0.0
      %1883 = vmatprep.subr.mxu0 0.0
      %1884 = vmatpush2.msra.mxu0 0.0
      %1885 = vmatprep.subr.mxu0 0.0
      %1886 = vmatpush2.msra.mxu0 0.0
      %1887 = vmatprep.subr.mxu0 0.0
      %1888 = vmatpush2.msra.mxu0 0.0
      %1889 = vmatprep.subr.mxu0 0.0
      %1890 = vmatpush2.msra.mxu0 0.0
      %1891 = vmatprep.subr.mxu0 0.0
      %1892 = vmatpush2.msra.mxu0 0.0
      %1893 = vmatprep.subr.mxu0 0.0
      %1894 = vmatpush2.msra.mxu0 0.0
      %1895 = vmatprep.subr.mxu0 0.0
      %1896 = vmatpush2.msra.mxu0 0.0
      %1897 = vmatprep.subr.mxu0 0.0
      %1898 = vmatpush2.msra.mxu0 0.0
      %1899 = vmatprep.subr.mxu0 0.0
      %1900 = vmatpush2.msra.mxu0 0.0
      %1901 = vmatprep.subr.mxu0 0.0
      %1902 = vmatpush2.msra.mxu0 0.0
      %1903 = vmatprep.subr.mxu0 0.0
      %1904 = vmatpush2.msra.mxu0 0.0
      %1905 = vmatprep.subr.mxu0 0.0
      %1906 = vmatpush2.msra.mxu0 0.0
      %1907 = vmatprep.subr.mxu0 0.0
      %1908 = vmatpush2.msra.mxu0 0.0
      %1909 = vmatprep.mubr.f32.mxu0 0.0
      %1910 = vmatmul.mubr.f32.gmra.mxu0 %v1843
      %v1911 = vpop.f32.mrf.mxu0
      %v1912 = vadd.f32 %v1840, %v1911
      %v1913 = vpop.f32.mrf.mxu0
      %1914 = vdwg.mxu0
      %v1915 = vld [vmem:[%s507] sm:$0x1]
      %v1916 = vld [vmem:[%s512 + $0x20] sm:$0xff]
      %v1917 = vld [vmem:[%s512 + $0x50] sm:$0xff]
      %v1918 = vld [vmem:[%s512 + $0x80] sm:$0xff]
      %v1919 = vld [vmem:[%s512 + $0xb0] sm:$0xff]
      %v1920 = vld [vmem:[%s521 + $0x4] sm:$0x1]
      %v1922 = vsel %vm743, %v1828, 0
      %v1925 = vsel %vm743, %v1912, 0
      %1927 = vmatprep.subr.mxu0 0.0
      %1928 = vmatpush1.xpose.msra.mxu0 0.0
      %1929 = vmatprep.subr.mxu0 0.0
      %1930 = vmatpush1.xpose.msra.mxu0 0.0
      %1931 = vmatprep.subr.mxu0 0.0
      %1932 = vmatpush1.xpose.msra.mxu0 0.0
      %1933 = vmatprep.subr.mxu0 0.0
      %1934 = vmatpush1.xpose.msra.mxu0 0.0
      %1935 = vmatprep.subr.mxu0 0.0
      %1936 = vmatpush1.xpose.msra.mxu0 0.0
      %1937 = vmatprep.subr.mxu0 0.0
      %1938 = vmatpush1.xpose.msra.mxu0 0.0
      %1939 = vmatprep.subr.mxu0 0.0
      %1940 = vmatpush1.xpose.msra.mxu0 0.0
      %1941 = vmatprep.subr.mxu0 0.0
      %1942 = vmatpush1.xpose.msra.mxu0 0.0
      %1943 = vmatprep.subr.mxu0 0.0
      %1944 = vmatpush1.xpose.msra.mxu0 0.0
      %1945 = vmatprep.subr.mxu0 0.0
      %1946 = vmatpush1.xpose.msra.mxu0 0.0
      %1947 = vmatprep.subr.mxu0 0.0
      %1948 = vmatpush1.xpose.msra.mxu0 0.0
      %1949 = vmatprep.subr.mxu0 0.0
      %1950 = vmatpush1.xpose.msra.mxu0 0.0
      %1951 = vmatprep.subr.mxu0 0.0
      %1952 = vmatpush1.xpose.msra.mxu0 0.0
      %1953 = vmatprep.subr.mxu0 0.0
      %1954 = vmatpush1.xpose.msra.mxu0 0.0
      %1955 = vmatprep.subr.mxu0 0.0
      %1956 = vmatpush1.xpose.msra.mxu0 0.0
      %1957 = vmatprep.subr.mxu0 0.0
      %1958 = vmatpush1.xpose.msra.mxu0 %v1925
      %1959 = vmatprep.subr.mxu0 0.0
      %1960 = vmatpush2.xpose.msra.mxu0 0.0
      %1961 = vmatprep.subr.mxu0 0.0
      %1962 = vmatpush2.xpose.msra.mxu0 0.0
      %1963 = vmatprep.subr.mxu0 0.0
      %1964 = vmatpush2.xpose.msra.mxu0 0.0
      %1965 = vmatprep.subr.mxu0 0.0
      %1966 = vmatpush2.xpose.msra.mxu0 0.0
      %1967 = vmatprep.subr.mxu0 0.0
      %1968 = vmatpush2.xpose.msra.mxu0 0.0
      %1969 = vmatprep.subr.mxu0 0.0
      %1970 = vmatpush2.xpose.msra.mxu0 0.0
      %1971 = vmatprep.subr.mxu0 0.0
      %1972 = vmatpush2.xpose.msra.mxu0 0.0
      %1973 = vmatprep.subr.mxu0 0.0
      %1974 = vmatpush2.xpose.msra.mxu0 0.0
      %1975 = vmatprep.subr.mxu0 0.0
      %1976 = vmatpush2.xpose.msra.mxu0 0.0
      %1977 = vmatprep.subr.mxu0 0.0
      %1978 = vmatpush2.xpose.msra.mxu0 0.0
      %1979 = vmatprep.subr.mxu0 0.0
      %1980 = vmatpush2.xpose.msra.mxu0 0.0
      %1981 = vmatprep.subr.mxu0 0.0
      %1982 = vmatpush2.xpose.msra.mxu0 0.0
      %1983 = vmatprep.subr.mxu0 0.0
      %1984 = vmatpush2.xpose.msra.mxu0 0.0
      %1985 = vmatprep.subr.mxu0 0.0
      %1986 = vmatpush2.xpose.msra.mxu0 0.0
      %1987 = vmatprep.subr.mxu0 0.0
      %1988 = vmatpush2.xpose.msra.mxu0 0.0
      %1989 = vmatprep.subr.mxu0 0.0
      %1990 = vmatpush2.xpose.msra.mxu0 0.0
      %1991 = vmatprep.mubr.f32.mxu0 0.0
      %1992 = vmatmul.mubr.f32.gmra.mxu0 %v1922
      %v1993 = vpop.f32.mrf.mxu0
      %v1994 = vadd.f32 0.0, %v1993
      %v1995 = vpop.f32.mrf.mxu0
      %1996 = vdwg.mxu0
      %v1997 = vmul.f32 %v1994, 0.35355338
      %v1999 = vlaneseq
      %v2000 = vshrl.u32 %v1999, 7
      %v2001 = vsub.s32 0, %v2000
      %v2002 = vrot.slane %v1915, %v2001
      %v2004 = vadd.f32 %v1997, %v2002
      %vm2005 = vcmask 21504
      %v2006 = vsel %vm2005, %v2004, -inf
      %2007 = vmax.xlane.f32.xlu0 %v2006
      %v2008 = vpop.xlane.xlu0 %2007
      %v2009 = vsub.f32 %v2004, %v2008
      %v2010 = vmul.f32 %v2009, 1.442695
      %v2011 = vpow.pop %v2010
      %v2012 = vsel %vm2005, %v2011, 0.0
      %2013 = vadd.xlane.f32.xlu0 %v2012
      %v2014 = vpop.xlane.xlu0 %2013
      %v2015 = vrcp.pop %v2014
      %v2016 = vmul.f32 %v2011, %v2015
      %2017 = vrot.lane.b32.xlu0 %v1912, 96
      %v2018 = vpop.permute.xlu0 %2017
      %vm2019 = vcmask 23552
      %v2021 = vsel %vm2019, %v2016, 0
      %vm2023 = vcmask 1042432
      %v2024 = vsel %vm2023, %v2018, 0
      %2026 = vmatprep.subr.mxu0 0.0
      %2027 = vmatpush1.msra.mxu0 0.0
      %2028 = vmatprep.subr.mxu0 0.0
      %2029 = vmatpush1.msra.mxu0 0.0
      %2030 = vmatprep.subr.mxu0 0.0
      %2031 = vmatpush1.msra.mxu0 0.0
      %2032 = vmatprep.subr.mxu0 0.0
      %2033 = vmatpush1.msra.mxu0 0.0
      %2034 = vmatprep.subr.mxu0 0.0
      %2035 = vmatpush1.msra.mxu0 0.0
      %2036 = vmatprep.subr.mxu0 0.0
      %2037 = vmatpush1.msra.mxu0 0.0
      %2038 = vmatprep.subr.mxu0 0.0
      %2039 = vmatpush1.msra.mxu0 0.0
      %2040 = vmatprep.subr.mxu0 0.0
      %2041 = vmatpush1.msra.mxu0 0.0
      %2042 = vmatprep.subr.mxu0 0.0
      %2043 = vmatpush1.msra.mxu0 0.0
      %2044 = vmatprep.subr.mxu0 0.0
      %2045 = vmatpush1.msra.mxu0 0.0
      %2046 = vmatprep.subr.mxu0 0.0
      %2047 = vmatpush1.msra.mxu0 0.0
      %2048 = vmatprep.subr.mxu0 0.0
      %2049 = vmatpush1.msra.mxu0 0.0
      %2050 = vmatprep.subr.mxu0 0.0
      %2051 = vmatpush1.msra.mxu0 0.0
      %2052 = vmatprep.subr.mxu0 0.0
      %2053 = vmatpush1.msra.mxu0 0.0
      %2054 = vmatprep.subr.mxu0 0.0
      %2055 = vmatpush1.msra.mxu0 0.0
      %2056 = vmatprep.subr.mxu0 0.0
      %2057 = vmatpush1.msra.mxu0 %v2024
      %2058 = vmatprep.subr.mxu0 0.0
      %2059 = vmatpush2.msra.mxu0 0.0
      %2060 = vmatprep.subr.mxu0 0.0
      %2061 = vmatpush2.msra.mxu0 0.0
      %2062 = vmatprep.subr.mxu0 0.0
      %2063 = vmatpush2.msra.mxu0 0.0
      %2064 = vmatprep.subr.mxu0 0.0
      %2065 = vmatpush2.msra.mxu0 0.0
      %2066 = vmatprep.subr.mxu0 0.0
      %2067 = vmatpush2.msra.mxu0 0.0
      %2068 = vmatprep.subr.mxu0 0.0
      %2069 = vmatpush2.msra.mxu0 0.0
      %2070 = vmatprep.subr.mxu0 0.0
      %2071 = vmatpush2.msra.mxu0 0.0
      %2072 = vmatprep.subr.mxu0 0.0
      %2073 = vmatpush2.msra.mxu0 0.0
      %2074 = vmatprep.subr.mxu0 0.0
      %2075 = vmatpush2.msra.mxu0 0.0
      %2076 = vmatprep.subr.mxu0 0.0
      %2077 = vmatpush2.msra.mxu0 0.0
      %2078 = vmatprep.subr.mxu0 0.0
      %2079 = vmatpush2.msra.mxu0 0.0
      %2080 = vmatprep.subr.mxu0 0.0
      %2081 = vmatpush2.msra.mxu0 0.0
      %2082 = vmatprep.subr.mxu0 0.0
      %2083 = vmatpush2.msra.mxu0 0.0
      %2084 = vmatprep.subr.mxu0 0.0
      %2085 = vmatpush2.msra.mxu0 0.0
      %2086 = vmatprep.subr.mxu0 0.0
      %2087 = vmatpush2.msra.mxu0 0.0
      %2088 = vmatprep.subr.mxu0 0.0
      %2089 = vmatpush2.msra.mxu0 0.0
      %2090 = vmatprep.mubr.f32.mxu0 0.0
      %2091 = vmatmul.mubr.f32.gmra.mxu0 %v2021
      %v2092 = vpop.f32.mrf.mxu0
      %v2093 = vadd.f32 0.0, %v2092
      %v2094 = vpop.f32.mrf.mxu0
      %2095 = vdwg.mxu0
      %v2097 = vsel %vm743, %v2093, 0
      %2099 = vmatprep.subr.mxu0 0.0
      %2100 = vmatpush1.msra.mxu0 0.0
      %2101 = vmatprep.subr.mxu0 0.0
      %2102 = vmatpush1.msra.mxu0 0.0
      %2103 = vmatprep.subr.mxu0 0.0
      %2104 = vmatpush1.msra.mxu0 0.0
      %2105 = vmatprep.subr.mxu0 0.0
      %2106 = vmatpush1.msra.mxu0 0.0
      %2107 = vmatprep.subr.mxu0 0.0
      %2108 = vmatpush1.msra.mxu0 0.0
      %2109 = vmatprep.subr.mxu0 0.0
      %2110 = vmatpush1.msra.mxu0 0.0
      %2111 = vmatprep.subr.mxu0 0.0
      %2112 = vmatpush1.msra.mxu0 0.0
      %2113 = vmatprep.subr.mxu0 0.0
      %2114 = vmatpush1.msra.mxu0 0.0
      %2115 = vmatprep.subr.mxu0 0.0
      %2116 = vmatpush1.msra.mxu0 0.0
      %2117 = vmatprep.subr.mxu0 0.0
      %2118 = vmatpush1.msra.mxu0 0.0
      %2119 = vmatprep.subr.mxu0 0.0
      %2120 = vmatpush1.msra.mxu0 0.0
      %2121 = vmatprep.subr.mxu0 0.0
      %2122 = vmatpush1.msra.mxu0 0.0
      %2123 = vmatprep.subr.mxu0 0.0
      %2124 = vmatpush1.msra.mxu0 0.0
      %2125 = vmatprep.subr.mxu0 0.0
      %2126 = vmatpush1.msra.mxu0 0.0
      %2127 = vmatprep.subr.mxu0 0.0
      %2128 = vmatpush1.msra.mxu0 0.0
      %2129 = vmatprep.subr.mxu0 0.0
      %2130 = vmatpush1.msra.mxu0 %v1916
      %2131 = vmatprep.subr.mxu0 0.0
      %2132 = vmatpush2.msra.mxu0 0.0
      %2133 = vmatprep.subr.mxu0 0.0
      %2134 = vmatpush2.msra.mxu0 0.0
      %2135 = vmatprep.subr.mxu0 0.0
      %2136 = vmatpush2.msra.mxu0 0.0
      %2137 = vmatprep.subr.mxu0 0.0
      %2138 = vmatpush2.msra.mxu0 0.0
      %2139 = vmatprep.subr.mxu0 0.0
      %2140 = vmatpush2.msra.mxu0 0.0
      %2141 = vmatprep.subr.mxu0 0.0
      %2142 = vmatpush2.msra.mxu0 0.0
      %2143 = vmatprep.subr.mxu0 0.0
      %2144 = vmatpush2.msra.mxu0 0.0
      %2145 = vmatprep.subr.mxu0 0.0
      %2146 = vmatpush2.msra.mxu0 0.0
      %2147 = vmatprep.subr.mxu0 0.0
      %2148 = vmatpush2.msra.mxu0 0.0
      %2149 = vmatprep.subr.mxu0 0.0
      %2150 = vmatpush2.msra.mxu0 0.0
      %2151 = vmatprep.subr.mxu0 0.0
      %2152 = vmatpush2.msra.mxu0 0.0
      %2153 = vmatprep.subr.mxu0 0.0
      %2154 = vmatpush2.msra.mxu0 0.0
      %2155 = vmatprep.subr.mxu0 0.0
      %2156 = vmatpush2.msra.mxu0 0.0
      %2157 = vmatprep.subr.mxu0 0.0
      %2158 = vmatpush2.msra.mxu0 0.0
      %2159 = vmatprep.subr.mxu0 0.0
      %2160 = vmatpush2.msra.mxu0 0.0
      %2161 = vmatprep.subr.mxu0 0.0
      %2162 = vmatpush2.msra.mxu0 0.0
      %2163 = vmatprep.mubr.f32.mxu0 0.0
      %2164 = vmatmul.mubr.f32.gmra.mxu0 %v2097
      %v2165 = vpop.f32.mrf.mxu0
      %v2166 = vadd.f32 0.0, %v2165
      %v2167 = vpop.f32.mrf.mxu0
      %2168 = vdwg.mxu0
      %v2170 = vlaneseq
      %v2171 = vshrl.u32 %v2170, 7
      %v2172 = vsub.s32 0, %v2171
      %v2173 = vrot.slane %v1920, %v2172
      %v2175 = vadd.f32 %v2173, %v2166
      %2176 = vrot.lane.b32.xlu0 %v1828, 120
      %v2177 = vpop.permute.xlu0 %2176
      %2178 = vrot.lane.b32.xlu0 %v1912, 120
      %v2179 = vpop.permute.xlu0 %2178
      %v2180 = vsel %vm743, %v2177, 0
      %v2182 = vsel %vm743, %v2179, 0
      %2184 = vmatprep.subr.mxu0 0.0
      %2185 = vmatpush1.xpose.msra.mxu0 0.0
      %2186 = vmatprep.subr.mxu0 0.0
      %2187 = vmatpush1.xpose.msra.mxu0 0.0
      %2188 = vmatprep.subr.mxu0 0.0
      %2189 = vmatpush1.xpose.msra.mxu0 0.0
      %2190 = vmatprep.subr.mxu0 0.0
      %2191 = vmatpush1.xpose.msra.mxu0 0.0
      %2192 = vmatprep.subr.mxu0 0.0
      %2193 = vmatpush1.xpose.msra.mxu0 0.0
      %2194 = vmatprep.subr.mxu0 0.0
      %2195 = vmatpush1.xpose.msra.mxu0 0.0
      %2196 = vmatprep.subr.mxu0 0.0
      %2197 = vmatpush1.xpose.msra.mxu0 0.0
      %2198 = vmatprep.subr.mxu0 0.0
      %2199 = vmatpush1.xpose.msra.mxu0 0.0
      %2200 = vmatprep.subr.mxu0 0.0
      %2201 = vmatpush1.xpose.msra.mxu0 0.0
      %2202 = vmatprep.subr.mxu0 0.0
      %2203 = vmatpush1.xpose.msra.mxu0 0.0
      %2204 = vmatprep.subr.mxu0 0.0
      %2205 = vmatpush1.xpose.msra.mxu0 0.0
      %2206 = vmatprep.subr.mxu0 0.0
      %2207 = vmatpush1.xpose.msra.mxu0 0.0
      %2208 = vmatprep.subr.mxu0 0.0
      %2209 = vmatpush1.xpose.msra.mxu0 0.0
      %2210 = vmatprep.subr.mxu0 0.0
      %2211 = vmatpush1.xpose.msra.mxu0 0.0
      %2212 = vmatprep.subr.mxu0 0.0
      %2213 = vmatpush1.xpose.msra.mxu0 0.0
      %2214 = vmatprep.subr.mxu0 0.0
      %2215 = vmatpush1.xpose.msra.mxu0 %v2182
      %2216 = vmatprep.subr.mxu0 0.0
      %2217 = vmatpush2.xpose.msra.mxu0 0.0
      %2218 = vmatprep.subr.mxu0 0.0
      %2219 = vmatpush2.xpose.msra.mxu0 0.0
      %2220 = vmatprep.subr.mxu0 0.0
      %2221 = vmatpush2.xpose.msra.mxu0 0.0
      %2222 = vmatprep.subr.mxu0 0.0
      %2223 = vmatpush2.xpose.msra.mxu0 0.0
      %2224 = vmatprep.subr.mxu0 0.0
      %2225 = vmatpush2.xpose.msra.mxu0 0.0
      %2226 = vmatprep.subr.mxu0 0.0
      %2227 = vmatpush2.xpose.msra.mxu0 0.0
      %2228 = vmatprep.subr.mxu0 0.0
      %2229 = vmatpush2.xpose.msra.mxu0 0.0
      %2230 = vmatprep.subr.mxu0 0.0
      %2231 = vmatpush2.xpose.msra.mxu0 0.0
      %2232 = vmatprep.subr.mxu0 0.0
      %2233 = vmatpush2.xpose.msra.mxu0 0.0
      %2234 = vmatprep.subr.mxu0 0.0
      %2235 = vmatpush2.xpose.msra.mxu0 0.0
      %2236 = vmatprep.subr.mxu0 0.0
      %2237 = vmatpush2.xpose.msra.mxu0 0.0
      %2238 = vmatprep.subr.mxu0 0.0
      %2239 = vmatpush2.xpose.msra.mxu0 0.0
      %2240 = vmatprep.subr.mxu0 0.0
      %2241 = vmatpush2.xpose.msra.mxu0 0.0
      %2242 = vmatprep.subr.mxu0 0.0
      %2243 = vmatpush2.xpose.msra.mxu0 0.0
      %2244 = vmatprep.subr.mxu0 0.0
      %2245 = vmatpush2.xpose.msra.mxu0 0.0
      %2246 = vmatprep.subr.mxu0 0.0
      %2247 = vmatpush2.xpose.msra.mxu0 0.0
      %2248 = vmatprep.mubr.f32.mxu0 0.0
      %2249 = vmatmul.mubr.f32.gmra.mxu0 %v2180
      %v2250 = vpop.f32.mrf.mxu0
      %v2251 = vadd.f32 0.0, %v2250
      %v2252 = vpop.f32.mrf.mxu0
      %2253 = vdwg.mxu0
      %v2254 = vmul.f32 %v2251, 0.35355338
      %v2255 = vadd.f32 %v2254, %v2002
      %v2256 = vsel %vm2005, %v2255, -inf
      %2257 = vmax.xlane.f32.xlu0 %v2256
      %v2258 = vpop.xlane.xlu0 %2257
      %v2259 = vsub.f32 %v2255, %v2258
      %v2260 = vmul.f32 %v2259, 1.442695
      %v2261 = vpow.pop %v2260
      %v2262 = vsel %vm2005, %v2261, 0.0
      %2263 = vadd.xlane.f32.xlu0 %v2262
      %v2264 = vpop.xlane.xlu0 %2263
      %v2265 = vrcp.pop %v2264
      %v2266 = vmul.f32 %v2261, %v2265
      %2267 = vrot.lane.b32.xlu0 %v1912, 88
      %v2268 = vpop.permute.xlu0 %2267
      %v2270 = vsel %vm2019, %v2266, 0
      %v2272 = vsel %vm2023, %v2268, 0
      %2274 = vmatprep.subr.mxu0 0.0
      %2275 = vmatpush1.msra.mxu0 0.0
      %2276 = vmatprep.subr.mxu0 0.0
      %2277 = vmatpush1.msra.mxu0 0.0
      %2278 = vmatprep.subr.mxu0 0.0
      %2279 = vmatpush1.msra.mxu0 0.0
      %2280 = vmatprep.subr.mxu0 0.0
      %2281 = vmatpush1.msra.mxu0 0.0
      %2282 = vmatprep.subr.mxu0 0.0
      %2283 = vmatpush1.msra.mxu0 0.0
      %2284 = vmatprep.subr.mxu0 0.0
      %2285 = vmatpush1.msra.mxu0 0.0
      %2286 = vmatprep.subr.mxu0 0.0
      %2287 = vmatpush1.msra.mxu0 0.0
      %2288 = vmatprep.subr.mxu0 0.0
      %2289 = vmatpush1.msra.mxu0 0.0
      %2290 = vmatprep.subr.mxu0 0.0
      %2291 = vmatpush1.msra.mxu0 0.0
      %2292 = vmatprep.subr.mxu0 0.0
      %2293 = vmatpush1.msra.mxu0 0.0
      %2294 = vmatprep.subr.mxu0 0.0
      %2295 = vmatpush1.msra.mxu0 0.0
      %2296 = vmatprep.subr.mxu0 0.0
      %2297 = vmatpush1.msra.mxu0 0.0
      %2298 = vmatprep.subr.mxu0 0.0
      %2299 = vmatpush1.msra.mxu0 0.0
      %2300 = vmatprep.subr.mxu0 0.0
      %2301 = vmatpush1.msra.mxu0 0.0
      %2302 = vmatprep.subr.mxu0 0.0
      %2303 = vmatpush1.msra.mxu0 0.0
      %2304 = vmatprep.subr.mxu0 0.0
      %2305 = vmatpush1.msra.mxu0 %v2272
      %2306 = vmatprep.subr.mxu0 0.0
      %2307 = vmatpush2.msra.mxu0 0.0
      %2308 = vmatprep.subr.mxu0 0.0
      %2309 = vmatpush2.msra.mxu0 0.0
      %2310 = vmatprep.subr.mxu0 0.0
      %2311 = vmatpush2.msra.mxu0 0.0
      %2312 = vmatprep.subr.mxu0 0.0
      %2313 = vmatpush2.msra.mxu0 0.0
      %2314 = vmatprep.subr.mxu0 0.0
      %2315 = vmatpush2.msra.mxu0 0.0
      %2316 = vmatprep.subr.mxu0 0.0
      %2317 = vmatpush2.msra.mxu0 0.0
      %2318 = vmatprep.subr.mxu0 0.0
      %2319 = vmatpush2.msra.mxu0 0.0
      %2320 = vmatprep.subr.mxu0 0.0
      %2321 = vmatpush2.msra.mxu0 0.0
      %2322 = vmatprep.subr.mxu0 0.0
      %2323 = vmatpush2.msra.mxu0 0.0
      %2324 = vmatprep.subr.mxu0 0.0
      %2325 = vmatpush2.msra.mxu0 0.0
      %2326 = vmatprep.subr.mxu0 0.0
      %2327 = vmatpush2.msra.mxu0 0.0
      %2328 = vmatprep.subr.mxu0 0.0
      %2329 = vmatpush2.msra.mxu0 0.0
      %2330 = vmatprep.subr.mxu0 0.0
      %2331 = vmatpush2.msra.mxu0 0.0
      %2332 = vmatprep.subr.mxu0 0.0
      %2333 = vmatpush2.msra.mxu0 0.0
      %2334 = vmatprep.subr.mxu0 0.0
      %2335 = vmatpush2.msra.mxu0 0.0
      %2336 = vmatprep.subr.mxu0 0.0
      %2337 = vmatpush2.msra.mxu0 0.0
      %2338 = vmatprep.mubr.f32.mxu0 0.0
      %2339 = vmatmul.mubr.f32.gmra.mxu0 %v2270
      %v2340 = vpop.f32.mrf.mxu0
      %v2341 = vadd.f32 0.0, %v2340
      %v2342 = vpop.f32.mrf.mxu0
      %2343 = vdwg.mxu0
      %v2345 = vsel %vm743, %v2341, 0
      %2347 = vmatprep.subr.mxu0 0.0
      %2348 = vmatpush1.msra.mxu0 0.0
      %2349 = vmatprep.subr.mxu0 0.0
      %2350 = vmatpush1.msra.mxu0 0.0
      %2351 = vmatprep.subr.mxu0 0.0
      %2352 = vmatpush1.msra.mxu0 0.0
      %2353 = vmatprep.subr.mxu0 0.0
      %2354 = vmatpush1.msra.mxu0 0.0
      %2355 = vmatprep.subr.mxu0 0.0
      %2356 = vmatpush1.msra.mxu0 0.0
      %2357 = vmatprep.subr.mxu0 0.0
      %2358 = vmatpush1.msra.mxu0 0.0
      %2359 = vmatprep.subr.mxu0 0.0
      %2360 = vmatpush1.msra.mxu0 0.0
      %2361 = vmatprep.subr.mxu0 0.0
      %2362 = vmatpush1.msra.mxu0 0.0
      %2363 = vmatprep.subr.mxu0 0.0
      %2364 = vmatpush1.msra.mxu0 0.0
      %2365 = vmatprep.subr.mxu0 0.0
      %2366 = vmatpush1.msra.mxu0 0.0
      %2367 = vmatprep.subr.mxu0 0.0
      %2368 = vmatpush1.msra.mxu0 0.0
      %2369 = vmatprep.subr.mxu0 0.0
      %2370 = vmatpush1.msra.mxu0 0.0
      %2371 = vmatprep.subr.mxu0 0.0
      %2372 = vmatpush1.msra.mxu0 0.0
      %2373 = vmatprep.subr.mxu0 0.0
      %2374 = vmatpush1.msra.mxu0 0.0
      %2375 = vmatprep.subr.mxu0 0.0
      %2376 = vmatpush1.msra.mxu0 0.0
      %2377 = vmatprep.subr.mxu0 0.0
      %2378 = vmatpush1.msra.mxu0 %v1917
      %2379 = vmatprep.subr.mxu0 0.0
      %2380 = vmatpush2.msra.mxu0 0.0
      %2381 = vmatprep.subr.mxu0 0.0
      %2382 = vmatpush2.msra.mxu0 0.0
      %2383 = vmatprep.subr.mxu0 0.0
      %2384 = vmatpush2.msra.mxu0 0.0
      %2385 = vmatprep.subr.mxu0 0.0
      %2386 = vmatpush2.msra.mxu0 0.0
      %2387 = vmatprep.subr.mxu0 0.0
      %2388 = vmatpush2.msra.mxu0 0.0
      %2389 = vmatprep.subr.mxu0 0.0
      %2390 = vmatpush2.msra.mxu0 0.0
      %2391 = vmatprep.subr.mxu0 0.0
      %2392 = vmatpush2.msra.mxu0 0.0
      %2393 = vmatprep.subr.mxu0 0.0
      %2394 = vmatpush2.msra.mxu0 0.0
      %2395 = vmatprep.subr.mxu0 0.0
      %2396 = vmatpush2.msra.mxu0 0.0
      %2397 = vmatprep.subr.mxu0 0.0
      %2398 = vmatpush2.msra.mxu0 0.0
      %2399 = vmatprep.subr.mxu0 0.0
      %2400 = vmatpush2.msra.mxu0 0.0
      %2401 = vmatprep.subr.mxu0 0.0
      %2402 = vmatpush2.msra.mxu0 0.0
      %2403 = vmatprep.subr.mxu0 0.0
      %2404 = vmatpush2.msra.mxu0 0.0
      %2405 = vmatprep.subr.mxu0 0.0
      %2406 = vmatpush2.msra.mxu0 0.0
      %2407 = vmatprep.subr.mxu0 0.0
      %2408 = vmatpush2.msra.mxu0 0.0
      %2409 = vmatprep.subr.mxu0 0.0
      %2410 = vmatpush2.msra.mxu0 0.0
      %2411 = vmatprep.mubr.f32.mxu0 0.0
      %2412 = vmatmul.mubr.f32.gmra.mxu0 %v2345
      %v2413 = vpop.f32.mrf.mxu0
      %v2414 = vadd.f32 0.0, %v2413
      %v2415 = vpop.f32.mrf.mxu0
      %2416 = vdwg.mxu0
      %v2417 = vadd.f32 %v2175, %v2414
      %2418 = vrot.lane.b32.xlu0 %v1828, 112
      %v2419 = vpop.permute.xlu0 %2418
      %2420 = vrot.lane.b32.xlu0 %v1912, 112
      %v2421 = vpop.permute.xlu0 %2420
      %v2422 = vsel %vm743, %v2419, 0
      %v2424 = vsel %vm743, %v2421, 0
      %2426 = vmatprep.subr.mxu0 0.0
      %2427 = vmatpush1.xpose.msra.mxu0 0.0
      %2428 = vmatprep.subr.mxu0 0.0
      %2429 = vmatpush1.xpose.msra.mxu0 0.0
      %2430 = vmatprep.subr.mxu0 0.0
      %2431 = vmatpush1.xpose.msra.mxu0 0.0
      %2432 = vmatprep.subr.mxu0 0.0
      %2433 = vmatpush1.xpose.msra.mxu0 0.0
      %2434 = vmatprep.subr.mxu0 0.0
      %2435 = vmatpush1.xpose.msra.mxu0 0.0
      %2436 = vmatprep.subr.mxu0 0.0
      %2437 = vmatpush1.xpose.msra.mxu0 0.0
      %2438 = vmatprep.subr.mxu0 0.0
      %2439 = vmatpush1.xpose.msra.mxu0 0.0
      %2440 = vmatprep.subr.mxu0 0.0
      %2441 = vmatpush1.xpose.msra.mxu0 0.0
      %2442 = vmatprep.subr.mxu0 0.0
      %2443 = vmatpush1.xpose.msra.mxu0 0.0
      %2444 = vmatprep.subr.mxu0 0.0
      %2445 = vmatpush1.xpose.msra.mxu0 0.0
      %2446 = vmatprep.subr.mxu0 0.0
      %2447 = vmatpush1.xpose.msra.mxu0 0.0
      %2448 = vmatprep.subr.mxu0 0.0
      %2449 = vmatpush1.xpose.msra.mxu0 0.0
      %2450 = vmatprep.subr.mxu0 0.0
      %2451 = vmatpush1.xpose.msra.mxu0 0.0
      %2452 = vmatprep.subr.mxu0 0.0
      %2453 = vmatpush1.xpose.msra.mxu0 0.0
      %2454 = vmatprep.subr.mxu0 0.0
      %2455 = vmatpush1.xpose.msra.mxu0 0.0
      %2456 = vmatprep.subr.mxu0 0.0
      %2457 = vmatpush1.xpose.msra.mxu0 %v2424
      %2458 = vmatprep.subr.mxu0 0.0
      %2459 = vmatpush2.xpose.msra.mxu0 0.0
      %2460 = vmatprep.subr.mxu0 0.0
      %2461 = vmatpush2.xpose.msra.mxu0 0.0
      %2462 = vmatprep.subr.mxu0 0.0
      %2463 = vmatpush2.xpose.msra.mxu0 0.0
      %2464 = vmatprep.subr.mxu0 0.0
      %2465 = vmatpush2.xpose.msra.mxu0 0.0
      %2466 = vmatprep.subr.mxu0 0.0
      %2467 = vmatpush2.xpose.msra.mxu0 0.0
      %2468 = vmatprep.subr.mxu0 0.0
      %2469 = vmatpush2.xpose.msra.mxu0 0.0
      %2470 = vmatprep.subr.mxu0 0.0
      %2471 = vmatpush2.xpose.msra.mxu0 0.0
      %2472 = vmatprep.subr.mxu0 0.0
      %2473 = vmatpush2.xpose.msra.mxu0 0.0
      %2474 = vmatprep.subr.mxu0 0.0
      %2475 = vmatpush2.xpose.msra.mxu0 0.0
      %2476 = vmatprep.subr.mxu0 0.0
      %2477 = vmatpush2.xpose.msra.mxu0 0.0
      %2478 = vmatprep.subr.mxu0 0.0
      %2479 = vmatpush2.xpose.msra.mxu0 0.0
      %2480 = vmatprep.subr.mxu0 0.0
      %2481 = vmatpush2.xpose.msra.mxu0 0.0
      %2482 = vmatprep.subr.mxu0 0.0
      %2483 = vmatpush2.xpose.msra.mxu0 0.0
      %2484 = vmatprep.subr.mxu0 0.0
      %2485 = vmatpush2.xpose.msra.mxu0 0.0
      %2486 = vmatprep.subr.mxu0 0.0
      %2487 = vmatpush2.xpose.msra.mxu0 0.0
      %2488 = vmatprep.subr.mxu0 0.0
      %2489 = vmatpush2.xpose.msra.mxu0 0.0
      %2490 = vmatprep.mubr.f32.mxu0 0.0
      %2491 = vmatmul.mubr.f32.gmra.mxu0 %v2422
      %v2492 = vpop.f32.mrf.mxu0
      %v2493 = vadd.f32 0.0, %v2492
      %v2494 = vpop.f32.mrf.mxu0
      %2495 = vdwg.mxu0
      %v2496 = vmul.f32 %v2493, 0.35355338
      %v2497 = vadd.f32 %v2496, %v2002
      %v2498 = vsel %vm2005, %v2497, -inf
      %2499 = vmax.xlane.f32.xlu0 %v2498
      %v2500 = vpop.xlane.xlu0 %2499
      %v2501 = vsub.f32 %v2497, %v2500
      %v2502 = vmul.f32 %v2501, 1.442695
      %v2503 = vpow.pop %v2502
      %v2504 = vsel %vm2005, %v2503, 0.0
      %2505 = vadd.xlane.f32.xlu0 %v2504
      %v2506 = vpop.xlane.xlu0 %2505
      %v2507 = vrcp.pop %v2506
      %v2508 = vmul.f32 %v2503, %v2507
      %2509 = vrot.lane.b32.xlu0 %v1912, 80
      %v2510 = vpop.permute.xlu0 %2509
      %v2512 = vsel %vm2019, %v2508, 0
      %v2514 = vsel %vm2023, %v2510, 0
      %2516 = vmatprep.subr.mxu0 0.0
      %2517 = vmatpush1.msra.mxu0 0.0
      %2518 = vmatprep.subr.mxu0 0.0
      %2519 = vmatpush1.msra.mxu0 0.0
      %2520 = vmatprep.subr.mxu0 0.0
      %2521 = vmatpush1.msra.mxu0 0.0
      %2522 = vmatprep.subr.mxu0 0.0
      %2523 = vmatpush1.msra.mxu0 0.0
      %2524 = vmatprep.subr.mxu0 0.0
      %2525 = vmatpush1.msra.mxu0 0.0
      %2526 = vmatprep.subr.mxu0 0.0
      %2527 = vmatpush1.msra.mxu0 0.0
      %2528 = vmatprep.subr.mxu0 0.0
      %2529 = vmatpush1.msra.mxu0 0.0
      %2530 = vmatprep.subr.mxu0 0.0
      %2531 = vmatpush1.msra.mxu0 0.0
      %2532 = vmatprep.subr.mxu0 0.0
      %2533 = vmatpush1.msra.mxu0 0.0
      %2534 = vmatprep.subr.mxu0 0.0
      %2535 = vmatpush1.msra.mxu0 0.0
      %2536 = vmatprep.subr.mxu0 0.0
      %2537 = vmatpush1.msra.mxu0 0.0
      %2538 = vmatprep.subr.mxu0 0.0
      %2539 = vmatpush1.msra.mxu0 0.0
      %2540 = vmatprep.subr.mxu0 0.0
      %2541 = vmatpush1.msra.mxu0 0.0
      %2542 = vmatprep.subr.mxu0 0.0
      %2543 = vmatpush1.msra.mxu0 0.0
      %2544 = vmatprep.subr.mxu0 0.0
      %2545 = vmatpush1.msra.mxu0 0.0
      %2546 = vmatprep.subr.mxu0 0.0
      %2547 = vmatpush1.msra.mxu0 %v2514
      %2548 = vmatprep.subr.mxu0 0.0
      %2549 = vmatpush2.msra.mxu0 0.0
      %2550 = vmatprep.subr.mxu0 0.0
      %2551 = vmatpush2.msra.mxu0 0.0
      %2552 = vmatprep.subr.mxu0 0.0
      %2553 = vmatpush2.msra.mxu0 0.0
      %2554 = vmatprep.subr.mxu0 0.0
      %2555 = vmatpush2.msra.mxu0 0.0
      %2556 = vmatprep.subr.mxu0 0.0
      %2557 = vmatpush2.msra.mxu0 0.0
      %2558 = vmatprep.subr.mxu0 0.0
      %2559 = vmatpush2.msra.mxu0 0.0
      %2560 = vmatprep.subr.mxu0 0.0
      %2561 = vmatpush2.msra.mxu0 0.0
      %2562 = vmatprep.subr.mxu0 0.0
      %2563 = vmatpush2.msra.mxu0 0.0
      %2564 = vmatprep.subr.mxu0 0.0
      %2565 = vmatpush2.msra.mxu0 0.0
      %2566 = vmatprep.subr.mxu0 0.0
      %2567 = vmatpush2.msra.mxu0 0.0
      %2568 = vmatprep.subr.mxu0 0.0
      %2569 = vmatpush2.msra.mxu0 0.0
      %2570 = vmatprep.subr.mxu0 0.0
      %2571 = vmatpush2.msra.mxu0 0.0
      %2572 = vmatprep.subr.mxu0 0.0
      %2573 = vmatpush2.msra.mxu0 0.0
      %2574 = vmatprep.subr.mxu0 0.0
      %2575 = vmatpush2.msra.mxu0 0.0
      %2576 = vmatprep.subr.mxu0 0.0
      %2577 = vmatpush2.msra.mxu0 0.0
      %2578 = vmatprep.subr.mxu0 0.0
      %2579 = vmatpush2.msra.mxu0 0.0
      %2580 = vmatprep.mubr.f32.mxu0 0.0
      %2581 = vmatmul.mubr.f32.gmra.mxu0 %v2512
      %v2582 = vpop.f32.mrf.mxu0
      %v2583 = vadd.f32 0.0, %v2582
      %v2584 = vpop.f32.mrf.mxu0
      %2585 = vdwg.mxu0
      %v2587 = vsel %vm743, %v2583, 0
      %2589 = vmatprep.subr.mxu0 0.0
      %2590 = vmatpush1.msra.mxu0 0.0
      %2591 = vmatprep.subr.mxu0 0.0
      %2592 = vmatpush1.msra.mxu0 0.0
      %2593 = vmatprep.subr.mxu0 0.0
      %2594 = vmatpush1.msra.mxu0 0.0
      %2595 = vmatprep.subr.mxu0 0.0
      %2596 = vmatpush1.msra.mxu0 0.0
      %2597 = vmatprep.subr.mxu0 0.0
      %2598 = vmatpush1.msra.mxu0 0.0
      %2599 = vmatprep.subr.mxu0 0.0
      %2600 = vmatpush1.msra.mxu0 0.0
      %2601 = vmatprep.subr.mxu0 0.0
      %2602 = vmatpush1.msra.mxu0 0.0
      %2603 = vmatprep.subr.mxu0 0.0
      %2604 = vmatpush1.msra.mxu0 0.0
      %2605 = vmatprep.subr.mxu0 0.0
      %2606 = vmatpush1.msra.mxu0 0.0
      %2607 = vmatprep.subr.mxu0 0.0
      %2608 = vmatpush1.msra.mxu0 0.0
      %2609 = vmatprep.subr.mxu0 0.0
      %2610 = vmatpush1.msra.mxu0 0.0
      %2611 = vmatprep.subr.mxu0 0.0
      %2612 = vmatpush1.msra.mxu0 0.0
      %2613 = vmatprep.subr.mxu0 0.0
      %2614 = vmatpush1.msra.mxu0 0.0
      %2615 = vmatprep.subr.mxu0 0.0
      %2616 = vmatpush1.msra.mxu0 0.0
      %2617 = vmatprep.subr.mxu0 0.0
      %2618 = vmatpush1.msra.mxu0 0.0
      %2619 = vmatprep.subr.mxu0 0.0
      %2620 = vmatpush1.msra.mxu0 %v1918
      %2621 = vmatprep.subr.mxu0 0.0
      %2622 = vmatpush2.msra.mxu0 0.0
      %2623 = vmatprep.subr.mxu0 0.0
      %2624 = vmatpush2.msra.mxu0 0.0
      %2625 = vmatprep.subr.mxu0 0.0
      %2626 = vmatpush2.msra.mxu0 0.0
      %2627 = vmatprep.subr.mxu0 0.0
      %2628 = vmatpush2.msra.mxu0 0.0
      %2629 = vmatprep.subr.mxu0 0.0
      %2630 = vmatpush2.msra.mxu0 0.0
      %2631 = vmatprep.subr.mxu0 0.0
      %2632 = vmatpush2.msra.mxu0 0.0
      %2633 = vmatprep.subr.mxu0 0.0
      %2634 = vmatpush2.msra.mxu0 0.0
      %2635 = vmatprep.subr.mxu0 0.0
      %2636 = vmatpush2.msra.mxu0 0.0
      %2637 = vmatprep.subr.mxu0 0.0
      %2638 = vmatpush2.msra.mxu0 0.0
      %2639 = vmatprep.subr.mxu0 0.0
      %2640 = vmatpush2.msra.mxu0 0.0
      %2641 = vmatprep.subr.mxu0 0.0
      %2642 = vmatpush2.msra.mxu0 0.0
      %2643 = vmatprep.subr.mxu0 0.0
      %2644 = vmatpush2.msra.mxu0 0.0
      %2645 = vmatprep.subr.mxu0 0.0
      %2646 = vmatpush2.msra.mxu0 0.0
      %2647 = vmatprep.subr.mxu0 0.0
      %2648 = vmatpush2.msra.mxu0 0.0
      %2649 = vmatprep.subr.mxu0 0.0
      %2650 = vmatpush2.msra.mxu0 0.0
      %2651 = vmatprep.subr.mxu0 0.0
      %2652 = vmatpush2.msra.mxu0 0.0
      %2653 = vmatprep.mubr.f32.mxu0 0.0
      %2654 = vmatmul.mubr.f32.gmra.mxu0 %v2587
      %v2655 = vpop.f32.mrf.mxu0
      %v2656 = vadd.f32 0.0, %v2655
      %v2657 = vpop.f32.mrf.mxu0
      %2658 = vdwg.mxu0
      %v2659 = vadd.f32 %v2417, %v2656
      %2660 = vrot.lane.b32.xlu0 %v1828, 104
      %v2661 = vpop.permute.xlu0 %2660
      %2662 = vrot.lane.b32.xlu0 %v1912, 104
      %v2663 = vpop.permute.xlu0 %2662
      %v2664 = vsel %vm743, %v2661, 0
      %v2666 = vsel %vm743, %v2663, 0
      %2668 = vmatprep.subr.mxu0 0.0
      %2669 = vmatpush1.xpose.msra.mxu0 0.0
      %2670 = vmatprep.subr.mxu0 0.0
      %2671 = vmatpush1.xpose.msra.mxu0 0.0
      %2672 = vmatprep.subr.mxu0 0.0
      %2673 = vmatpush1.xpose.msra.mxu0 0.0
      %2674 = vmatprep.subr.mxu0 0.0
      %2675 = vmatpush1.xpose.msra.mxu0 0.0
      %2676 = vmatprep.subr.mxu0 0.0
      %2677 = vmatpush1.xpose.msra.mxu0 0.0
      %2678 = vmatprep.subr.mxu0 0.0
      %2679 = vmatpush1.xpose.msra.mxu0 0.0
      %2680 = vmatprep.subr.mxu0 0.0
      %2681 = vmatpush1.xpose.msra.mxu0 0.0
      %2682 = vmatprep.subr.mxu0 0.0
      %2683 = vmatpush1.xpose.msra.mxu0 0.0
      %2684 = vmatprep.subr.mxu0 0.0
      %2685 = vmatpush1.xpose.msra.mxu0 0.0
      %2686 = vmatprep.subr.mxu0 0.0
      %2687 = vmatpush1.xpose.msra.mxu0 0.0
      %2688 = vmatprep.subr.mxu0 0.0
      %2689 = vmatpush1.xpose.msra.mxu0 0.0
      %2690 = vmatprep.subr.mxu0 0.0
      %2691 = vmatpush1.xpose.msra.mxu0 0.0
      %2692 = vmatprep.subr.mxu0 0.0
      %2693 = vmatpush1.xpose.msra.mxu0 0.0
      %2694 = vmatprep.subr.mxu0 0.0
      %2695 = vmatpush1.xpose.msra.mxu0 0.0
      %2696 = vmatprep.subr.mxu0 0.0
      %2697 = vmatpush1.xpose.msra.mxu0 0.0
      %2698 = vmatprep.subr.mxu0 0.0
      %2699 = vmatpush1.xpose.msra.mxu0 %v2666
      %2700 = vmatprep.subr.mxu0 0.0
      %2701 = vmatpush2.xpose.msra.mxu0 0.0
      %2702 = vmatprep.subr.mxu0 0.0
      %2703 = vmatpush2.xpose.msra.mxu0 0.0
      %2704 = vmatprep.subr.mxu0 0.0
      %2705 = vmatpush2.xpose.msra.mxu0 0.0
      %2706 = vmatprep.subr.mxu0 0.0
      %2707 = vmatpush2.xpose.msra.mxu0 0.0
      %2708 = vmatprep.subr.mxu0 0.0
      %2709 = vmatpush2.xpose.msra.mxu0 0.0
      %2710 = vmatprep.subr.mxu0 0.0
      %2711 = vmatpush2.xpose.msra.mxu0 0.0
      %2712 = vmatprep.subr.mxu0 0.0
      %2713 = vmatpush2.xpose.msra.mxu0 0.0
      %2714 = vmatprep.subr.mxu0 0.0
      %2715 = vmatpush2.xpose.msra.mxu0 0.0
      %2716 = vmatprep.subr.mxu0 0.0
      %2717 = vmatpush2.xpose.msra.mxu0 0.0
      %2718 = vmatprep.subr.mxu0 0.0
      %2719 = vmatpush2.xpose.msra.mxu0 0.0
      %2720 = vmatprep.subr.mxu0 0.0
      %2721 = vmatpush2.xpose.msra.mxu0 0.0
      %2722 = vmatprep.subr.mxu0 0.0
      %2723 = vmatpush2.xpose.msra.mxu0 0.0
      %2724 = vmatprep.subr.mxu0 0.0
      %2725 = vmatpush2.xpose.msra.mxu0 0.0
      %2726 = vmatprep.subr.mxu0 0.0
      %2727 = vmatpush2.xpose.msra.mxu0 0.0
      %2728 = vmatprep.subr.mxu0 0.0
      %2729 = vmatpush2.xpose.msra.mxu0 0.0
      %2730 = vmatprep.subr.mxu0 0.0
      %2731 = vmatpush2.xpose.msra.mxu0 0.0
      %2732 = vmatprep.mubr.f32.mxu0 0.0
      %2733 = vmatmul.mubr.f32.gmra.mxu0 %v2664
      %v2734 = vpop.f32.mrf.mxu0
      %v2735 = vadd.f32 0.0, %v2734
      %v2736 = vpop.f32.mrf.mxu0
      %2737 = vdwg.mxu0
      %v2738 = vmul.f32 %v2735, 0.35355338
      %v2739 = vadd.f32 %v2738, %v2002
      %v2740 = vsel %vm2005, %v2739, -inf
      %2741 = vmax.xlane.f32.xlu0 %v2740
      %v2742 = vpop.xlane.xlu0 %2741
      %v2743 = vsub.f32 %v2739, %v2742
      %v2744 = vmul.f32 %v2743, 1.442695
      %v2745 = vpow.pop %v2744
      %v2746 = vsel %vm2005, %v2745, 0.0
      %2747 = vadd.xlane.f32.xlu0 %v2746
      %v2748 = vpop.xlane.xlu0 %2747
      %v2749 = vrcp.pop %v2748
      %v2750 = vmul.f32 %v2745, %v2749
      %2751 = vrot.lane.b32.xlu0 %v1912, 72
      %v2752 = vpop.permute.xlu0 %2751
      %v2754 = vsel %vm2019, %v2750, 0
      %v2756 = vsel %vm2023, %v2752, 0
      %2758 = vmatprep.subr.mxu0 0.0
      %2759 = vmatpush1.msra.mxu0 0.0
      %2760 = vmatprep.subr.mxu0 0.0
      %2761 = vmatpush1.msra.mxu0 0.0
      %2762 = vmatprep.subr.mxu0 0.0
      %2763 = vmatpush1.msra.mxu0 0.0
      %2764 = vmatprep.subr.mxu0 0.0
      %2765 = vmatpush1.msra.mxu0 0.0
      %2766 = vmatprep.subr.mxu0 0.0
      %2767 = vmatpush1.msra.mxu0 0.0
      %2768 = vmatprep.subr.mxu0 0.0
      %2769 = vmatpush1.msra.mxu0 0.0
      %2770 = vmatprep.subr.mxu0 0.0
      %2771 = vmatpush1.msra.mxu0 0.0
      %2772 = vmatprep.subr.mxu0 0.0
      %2773 = vmatpush1.msra.mxu0 0.0
      %2774 = vmatprep.subr.mxu0 0.0
      %2775 = vmatpush1.msra.mxu0 0.0
      %2776 = vmatprep.subr.mxu0 0.0
      %2777 = vmatpush1.msra.mxu0 0.0
      %2778 = vmatprep.subr.mxu0 0.0
      %2779 = vmatpush1.msra.mxu0 0.0
      %2780 = vmatprep.subr.mxu0 0.0
      %2781 = vmatpush1.msra.mxu0 0.0
      %2782 = vmatprep.subr.mxu0 0.0
      %2783 = vmatpush1.msra.mxu0 0.0
      %2784 = vmatprep.subr.mxu0 0.0
      %2785 = vmatpush1.msra.mxu0 0.0
      %2786 = vmatprep.subr.mxu0 0.0
      %2787 = vmatpush1.msra.mxu0 0.0
      %2788 = vmatprep.subr.mxu0 0.0
      %2789 = vmatpush1.msra.mxu0 %v2756
      %2790 = vmatprep.subr.mxu0 0.0
      %2791 = vmatpush2.msra.mxu0 0.0
      %2792 = vmatprep.subr.mxu0 0.0
      %2793 = vmatpush2.msra.mxu0 0.0
      %2794 = vmatprep.subr.mxu0 0.0
      %2795 = vmatpush2.msra.mxu0 0.0
      %2796 = vmatprep.subr.mxu0 0.0
      %2797 = vmatpush2.msra.mxu0 0.0
      %2798 = vmatprep.subr.mxu0 0.0
      %2799 = vmatpush2.msra.mxu0 0.0
      %2800 = vmatprep.subr.mxu0 0.0
      %2801 = vmatpush2.msra.mxu0 0.0
      %2802 = vmatprep.subr.mxu0 0.0
      %2803 = vmatpush2.msra.mxu0 0.0
      %2804 = vmatprep.subr.mxu0 0.0
      %2805 = vmatpush2.msra.mxu0 0.0
      %2806 = vmatprep.subr.mxu0 0.0
      %2807 = vmatpush2.msra.mxu0 0.0
      %2808 = vmatprep.subr.mxu0 0.0
      %2809 = vmatpush2.msra.mxu0 0.0
      %2810 = vmatprep.subr.mxu0 0.0
      %2811 = vmatpush2.msra.mxu0 0.0
      %2812 = vmatprep.subr.mxu0 0.0
      %2813 = vmatpush2.msra.mxu0 0.0
      %2814 = vmatprep.subr.mxu0 0.0
      %2815 = vmatpush2.msra.mxu0 0.0
      %2816 = vmatprep.subr.mxu0 0.0
      %2817 = vmatpush2.msra.mxu0 0.0
      %2818 = vmatprep.subr.mxu0 0.0
      %2819 = vmatpush2.msra.mxu0 0.0
      %2820 = vmatprep.subr.mxu0 0.0
      %2821 = vmatpush2.msra.mxu0 0.0
      %2822 = vmatprep.mubr.f32.mxu0 0.0
      %2823 = vmatmul.mubr.f32.gmra.mxu0 %v2754
      %v2824 = vpop.f32.mrf.mxu0
      %v2825 = vadd.f32 0.0, %v2824
      %v2826 = vpop.f32.mrf.mxu0
      %2827 = vdwg.mxu0
      %v2829 = vsel %vm743, %v2825, 0
      %2831 = vmatprep.subr.mxu0 0.0
      %2832 = vmatpush1.msra.mxu0 0.0
      %2833 = vmatprep.subr.mxu0 0.0
      %2834 = vmatpush1.msra.mxu0 0.0
      %2835 = vmatprep.subr.mxu0 0.0
      %2836 = vmatpush1.msra.mxu0 0.0
      %2837 = vmatprep.subr.mxu0 0.0
      %2838 = vmatpush1.msra.mxu0 0.0
      %2839 = vmatprep.subr.mxu0 0.0
      %2840 = vmatpush1.msra.mxu0 0.0
      %2841 = vmatprep.subr.mxu0 0.0
      %2842 = vmatpush1.msra.mxu0 0.0
      %2843 = vmatprep.subr.mxu0 0.0
      %2844 = vmatpush1.msra.mxu0 0.0
      %2845 = vmatprep.subr.mxu0 0.0
      %2846 = vmatpush1.msra.mxu0 0.0
      %2847 = vmatprep.subr.mxu0 0.0
      %2848 = vmatpush1.msra.mxu0 0.0
      %2849 = vmatprep.subr.mxu0 0.0
      %2850 = vmatpush1.msra.mxu0 0.0
      %2851 = vmatprep.subr.mxu0 0.0
      %2852 = vmatpush1.msra.mxu0 0.0
      %2853 = vmatprep.subr.mxu0 0.0
      %2854 = vmatpush1.msra.mxu0 0.0
      %2855 = vmatprep.subr.mxu0 0.0
      %2856 = vmatpush1.msra.mxu0 0.0
      %2857 = vmatprep.subr.mxu0 0.0
      %2858 = vmatpush1.msra.mxu0 0.0
      %2859 = vmatprep.subr.mxu0 0.0
      %2860 = vmatpush1.msra.mxu0 0.0
      %2861 = vmatprep.subr.mxu0 0.0
      %2862 = vmatpush1.msra.mxu0 %v1919
      %2863 = vmatprep.subr.mxu0 0.0
      %2864 = vmatpush2.msra.mxu0 0.0
      %2865 = vmatprep.subr.mxu0 0.0
      %2866 = vmatpush2.msra.mxu0 0.0
      %2867 = vmatprep.subr.mxu0 0.0
      %2868 = vmatpush2.msra.mxu0 0.0
      %2869 = vmatprep.subr.mxu0 0.0
      %2870 = vmatpush2.msra.mxu0 0.0
      %2871 = vmatprep.subr.mxu0 0.0
      %2872 = vmatpush2.msra.mxu0 0.0
      %2873 = vmatprep.subr.mxu0 0.0
      %2874 = vmatpush2.msra.mxu0 0.0
      %2875 = vmatprep.subr.mxu0 0.0
      %2876 = vmatpush2.msra.mxu0 0.0
      %2877 = vmatprep.subr.mxu0 0.0
      %2878 = vmatpush2.msra.mxu0 0.0
      %2879 = vmatprep.subr.mxu0 0.0
      %2880 = vmatpush2.msra.mxu0 0.0
      %2881 = vmatprep.subr.mxu0 0.0
      %2882 = vmatpush2.msra.mxu0 0.0
      %2883 = vmatprep.subr.mxu0 0.0
      %2884 = vmatpush2.msra.mxu0 0.0
      %2885 = vmatprep.subr.mxu0 0.0
      %2886 = vmatpush2.msra.mxu0 0.0
      %2887 = vmatprep.subr.mxu0 0.0
      %2888 = vmatpush2.msra.mxu0 0.0
      %2889 = vmatprep.subr.mxu0 0.0
      %2890 = vmatpush2.msra.mxu0 0.0
      %2891 = vmatprep.subr.mxu0 0.0
      %2892 = vmatpush2.msra.mxu0 0.0
      %2893 = vmatprep.subr.mxu0 0.0
      %2894 = vmatpush2.msra.mxu0 0.0
      %2895 = vmatprep.mubr.f32.mxu0 0.0
      %2896 = vmatmul.mubr.f32.gmra.mxu0 %v2829
      %v2897 = vpop.f32.mrf.mxu0
      %v2898 = vadd.f32 0.0, %v2897
      %v2899 = vpop.f32.mrf.mxu0
      %2900 = vdwg.mxu0
      %v2901 = vadd.f32 %v2659, %v2898
      %v2902 = vadd.f32 %v1717, %v2901
      %v2903 = vld [vmem:[%s521 + $0x9] sm:$0x1]
      %v2904 = vld [vmem:[%s521 + $0xc] sm:$0x1]
      %v2905 = vsel %vm620, %v2902, 0.0
      %2906 = vadd.xlane.f32.xlu0 %v2905
      %v2907 = vpop.xlane.xlu0 %2906
      %v2908 = vmul.f32 %v2907, %v624
      %v2909 = vsub.f32 %v2902, %v2908
      %v2910 = vmul.f32 %v2909, %v2909
      %v2911 = vsel %vm620, %v2910, 0.0
      %2912 = vadd.xlane.f32.xlu0 %v2911
      %v2913 = vpop.xlane.xlu0 %2912
      %v2914 = vmul.f32 %v2913, %v624
      %v2915 = vadd.f32 %v2914, 1e-05
      %v2916 = vrsqrt.pop %v2915
      %v2917 = vmul.f32 %v2909, %v2916
      %v2919 = vlaneseq
      %v2920 = vshrl.u32 %v2919, 7
      %v2921 = vsub.s32 0, %v2920
      %v2922 = vrot.slane %v2903, %v2921
      %v2924 = vmul.f32 %v2917, %v2922
      %v2926 = vlaneseq
      %v2927 = vshrl.u32 %v2926, 7
      %v2928 = vsub.s32 0, %v2927
      %v2929 = vrot.slane %v2904, %v2928
      %v2931 = vadd.f32 %v2924, %v2929
      %v2932 = vld [vmem:[%s512 + $0x28] sm:$0xff]
      %v2933 = vld [vmem:[%s512 + $0x58] sm:$0xff]
      %v2934 = vld [vmem:[%s512 + $0x88] sm:$0xff]
      %v2935 = vld [vmem:[%s512 + $0xb8] sm:$0xff]
      %v2936 = vld [vmem:[%s521 + $0x5] sm:$0x1]
      %v2938 = vlaneseq
      %v2939 = vshrl.u32 %v2938, 7
      %v2940 = vsub.s32 0, %v2939
      %v2941 = vrot.slane %v2936, %v2940
      %v2944 = vsel %vm660, %v2931, 0
      %2946 = vmatprep.subr.mxu0 0.0
      %2947 = vmatpush1.msra.mxu0 0.0
      %2948 = vmatprep.subr.mxu0 0.0
      %2949 = vmatpush1.msra.mxu0 0.0
      %2950 = vmatprep.subr.mxu0 0.0
      %2951 = vmatpush1.msra.mxu0 0.0
      %2952 = vmatprep.subr.mxu0 0.0
      %2953 = vmatpush1.msra.mxu0 0.0
      %2954 = vmatprep.subr.mxu0 0.0
      %2955 = vmatpush1.msra.mxu0 0.0
      %2956 = vmatprep.subr.mxu0 0.0
      %2957 = vmatpush1.msra.mxu0 0.0
      %2958 = vmatprep.subr.mxu0 0.0
      %2959 = vmatpush1.msra.mxu0 0.0
      %2960 = vmatprep.subr.mxu0 0.0
      %2961 = vmatpush1.msra.mxu0 0.0
      %2962 = vmatprep.subr.mxu0 0.0
      %2963 = vmatpush1.msra.mxu0 0.0
      %2964 = vmatprep.subr.mxu0 0.0
      %2965 = vmatpush1.msra.mxu0 0.0
      %2966 = vmatprep.subr.mxu0 0.0
      %2967 = vmatpush1.msra.mxu0 0.0
      %2968 = vmatprep.subr.mxu0 0.0
      %2969 = vmatpush1.msra.mxu0 0.0
      %2970 = vmatprep.subr.mxu0 0.0
      %2971 = vmatpush1.msra.mxu0 %v2935
      %2972 = vmatprep.subr.mxu0 0.0
      %2973 = vmatpush1.msra.mxu0 %v2934
      %2974 = vmatprep.subr.mxu0 0.0
      %2975 = vmatpush1.msra.mxu0 %v2933
      %2976 = vmatprep.subr.mxu0 0.0
      %2977 = vmatpush1.msra.mxu0 %v2932
      %2978 = vmatprep.subr.mxu0 0.0
      %2979 = vmatpush2.msra.mxu0 0.0
      %2980 = vmatprep.subr.mxu0 0.0
      %2981 = vmatpush2.msra.mxu0 0.0
      %2982 = vmatprep.subr.mxu0 0.0
      %2983 = vmatpush2.msra.mxu0 0.0
      %2984 = vmatprep.subr.mxu0 0.0
      %2985 = vmatpush2.msra.mxu0 0.0
      %2986 = vmatprep.subr.mxu0 0.0
      %2987 = vmatpush2.msra.mxu0 0.0
      %2988 = vmatprep.subr.mxu0 0.0
      %2989 = vmatpush2.msra.mxu0 0.0
      %2990 = vmatprep.subr.mxu0 0.0
      %2991 = vmatpush2.msra.mxu0 0.0
      %2992 = vmatprep.subr.mxu0 0.0
      %2993 = vmatpush2.msra.mxu0 0.0
      %2994 = vmatprep.subr.mxu0 0.0
      %2995 = vmatpush2.msra.mxu0 0.0
      %2996 = vmatprep.subr.mxu0 0.0
      %2997 = vmatpush2.msra.mxu0 0.0
      %2998 = vmatprep.subr.mxu0 0.0
      %2999 = vmatpush2.msra.mxu0 0.0
      %3000 = vmatprep.subr.mxu0 0.0
      %3001 = vmatpush2.msra.mxu0 0.0
      %3002 = vmatprep.subr.mxu0 0.0
      %3003 = vmatpush2.msra.mxu0 0.0
      %3004 = vmatprep.subr.mxu0 0.0
      %3005 = vmatpush2.msra.mxu0 0.0
      %3006 = vmatprep.subr.mxu0 0.0
      %3007 = vmatpush2.msra.mxu0 0.0
      %3008 = vmatprep.subr.mxu0 0.0
      %3009 = vmatpush2.msra.mxu0 0.0
      %3010 = vmatprep.mubr.f32.mxu0 0.0
      %3011 = vmatmul.mubr.f32.gmra.mxu0 %v2944
      %v3012 = vpop.f32.mrf.mxu0
      %v3013 = vadd.f32 %v2941, %v3012
      %v3014 = vpop.f32.mrf.mxu0
      %3015 = vdwg.mxu0
      %v3016 = vmax.f32 %v3013, 0.0
      %v3017 = vld [vmem:[%s517] sm:$0xff]
      %v3018 = vld [vmem:[%s517 + $0x8] sm:$0xff]
      %v3019 = vld [vmem:[%s517 + $0x10] sm:$0xff]
      %v3020 = vld [vmem:[%s517 + $0x18] sm:$0xff]
      %v3021 = vld [vmem:[%s517 + $0x20] sm:$0xff]
      %v3022 = vld [vmem:[%s517 + $0x28] sm:$0xff]
      %v3023 = vld [vmem:[%s517 + $0x30] sm:$0xff]
      %v3024 = vld [vmem:[%s517 + $0x38] sm:$0xff]
      %vm3025 = vcmask 523264
      %v3027 = vsel %vm3025, %v3016, 0
      %3029 = vmatprep.subr.mxu0 0.0
      %3030 = vmatpush1.msra.mxu0 0.0
      %3031 = vmatprep.subr.mxu0 0.0
      %3032 = vmatpush1.msra.mxu0 0.0
      %3033 = vmatprep.subr.mxu0 0.0
      %3034 = vmatpush1.msra.mxu0 0.0
      %3035 = vmatprep.subr.mxu0 0.0
      %3036 = vmatpush1.msra.mxu0 0.0
      %3037 = vmatprep.subr.mxu0 0.0
      %3038 = vmatpush1.msra.mxu0 0.0
      %3039 = vmatprep.subr.mxu0 0.0
      %3040 = vmatpush1.msra.mxu0 0.0
      %3041 = vmatprep.subr.mxu0 0.0
      %3042 = vmatpush1.msra.mxu0 0.0
      %3043 = vmatprep.subr.mxu0 0.0
      %3044 = vmatpush1.msra.mxu0 0.0
      %3045 = vmatprep.subr.mxu0 0.0
      %3046 = vmatpush1.msra.mxu0 %v3024
      %3047 = vmatprep.subr.mxu0 0.0
      %3048 = vmatpush1.msra.mxu0 %v3023
      %3049 = vmatprep.subr.mxu0 0.0
      %3050 = vmatpush1.msra.mxu0 %v3022
      %3051 = vmatprep.subr.mxu0 0.0
      %3052 = vmatpush1.msra.mxu0 %v3021
      %3053 = vmatprep.subr.mxu0 0.0
      %3054 = vmatpush1.msra.mxu0 %v3020
      %3055 = vmatprep.subr.mxu0 0.0
      %3056 = vmatpush1.msra.mxu0 %v3019
      %3057 = vmatprep.subr.mxu0 0.0
      %3058 = vmatpush1.msra.mxu0 %v3018
      %3059 = vmatprep.subr.mxu0 0.0
      %3060 = vmatpush1.msra.mxu0 %v3017
      %3061 = vmatprep.subr.mxu0 0.0
      %3062 = vmatpush2.msra.mxu0 0.0
      %3063 = vmatprep.subr.mxu0 0.0
      %3064 = vmatpush2.msra.mxu0 0.0
      %3065 = vmatprep.subr.mxu0 0.0
      %3066 = vmatpush2.msra.mxu0 0.0
      %3067 = vmatprep.subr.mxu0 0.0
      %3068 = vmatpush2.msra.mxu0 0.0
      %3069 = vmatprep.subr.mxu0 0.0
      %3070 = vmatpush2.msra.mxu0 0.0
      %3071 = vmatprep.subr.mxu0 0.0
      %3072 = vmatpush2.msra.mxu0 0.0
      %3073 = vmatprep.subr.mxu0 0.0
      %3074 = vmatpush2.msra.mxu0 0.0
      %3075 = vmatprep.subr.mxu0 0.0
      %3076 = vmatpush2.msra.mxu0 0.0
      %3077 = vmatprep.subr.mxu0 0.0
      %3078 = vmatpush2.msra.mxu0 0.0
      %3079 = vmatprep.subr.mxu0 0.0
      %3080 = vmatpush2.msra.mxu0 0.0
      %3081 = vmatprep.subr.mxu0 0.0
      %3082 = vmatpush2.msra.mxu0 0.0
      %3083 = vmatprep.subr.mxu0 0.0
      %3084 = vmatpush2.msra.mxu0 0.0
      %3085 = vmatprep.subr.mxu0 0.0
      %3086 = vmatpush2.msra.mxu0 0.0
      %3087 = vmatprep.subr.mxu0 0.0
      %3088 = vmatpush2.msra.mxu0 0.0
      %3089 = vmatprep.subr.mxu0 0.0
      %3090 = vmatpush2.msra.mxu0 0.0
      %3091 = vmatprep.subr.mxu0 0.0
      %3092 = vmatpush2.msra.mxu0 0.0
      %3093 = vmatprep.mubr.f32.mxu0 0.0
      %3094 = vmatmul.mubr.f32.gmra.mxu0 %v3027
      %v3095 = vpop.f32.mrf.mxu0
      %v3096 = vadd.f32 0.0, %v3095
      %v3097 = vpop.f32.mrf.mxu0
      %3098 = vdwg.mxu0
      %v3099 = vadd.f32 %v2902, %v3096
      %v3100 = vld [vmem:[%s521 + $0x6] sm:$0x1]
      %v3102 = vlaneseq
      %v3103 = vshrl.u32 %v3102, 7
      %v3104 = vsub.s32 0, %v3103
      %v3105 = vrot.slane %v3100, %v3104
      %v3107 = vadd.f32 %v3099, %v3105
      %3108 = vst.msk [vmem:[#allocation2] sm:$0x3f] %vm620, %v3107
      // Predicated region
      $region73: #{conformer_aed_forward.7} parent=67 // pred_check
        %p3109 = pneg %p526
      $region74: #{conformer_aed_forward.7} parent=67 // pred_check_branch
        %3111 = sbr.rel (%p3109) target = $region76
      $region75: #{conformer_aed_forward.7} parent=67 // pred_region
        %v3112 = vld [vmem:[%s11] sm:$0x1]
        %v3113 = vsel %vm620, %v3107, 0.0
        %3114 = vadd.xlane.f32.xlu0 %v3113
        %v3115 = vpop.xlane.xlu0 %3114
        %v3116 = vmul.f32 %v3115, %v624
        %v3117 = vsub.f32 %v3107, %v3116
        %v3118 = vmul.f32 %v3117, %v3117
        %v3119 = vsel %vm620, %v3118, 0.0
        %3120 = vadd.xlane.f32.xlu0 %v3119
        %v3121 = vpop.xlane.xlu0 %3120
        %v3122 = vmul.f32 %v3121, %v624
        %v3123 = vadd.f32 %v3122, 1e-05
        %v3124 = vrsqrt.pop %v3123
        %v3125 = vmul.f32 %v3117, %v3124
        %v3127 = vlaneseq
        %v3128 = vshrl.u32 %v3127, 7
        %v3129 = vsub.s32 0, %v3128
        %v3130 = vrot.slane %v3112, %v3129
        %v3132 = vmul.f32 %v3125, %v3130
        %3133 = vrot.lane.b32.xlu0 %v3130, 96
        %v3134 = vpop.permute.xlu0 %3133
        %v3136 = vadd.f32 %v3132, %v3134
        %v3137 = vld [vmem:[%s9] sm:$0xff]
        %v3138 = vld [vmem:[%s9 + $0x8] sm:$0xff]
        %v3139 = vld [vmem:[%s9 + $0x10] sm:$0xff]
        %v3140 = vld [vmem:[%s9 + $0x18] sm:$0xff]
        %v3141 = vld [vmem:[%s10] sm:$0x1]
        %v3143 = vlaneseq
        %v3144 = vshrl.u32 %v3143, 7
        %v3145 = vsub.s32 0, %v3144
        %v3146 = vrot.slane %v3141, %v3145
        %v3149 = vsel %vm660, %v3136, 0
        %3151 = vmatprep.subr.mxu0 0.0
        %3152 = vmatpush1.msra.mxu0 0.0
        %3153 = vmatprep.subr.mxu0 0.0
        %3154 = vmatpush1.msra.mxu0 0.0
        %3155 = vmatprep.subr.mxu0 0.0
        %3156 = vmatpush1.msra.mxu0 0.0
        %3157 = vmatprep.subr.mxu0 0.0
        %3158 = vmatpush1.msra.mxu0 0.0
        %3159 = vmatprep.subr.mxu0 0.0
        %3160 = vmatpush1.msra.mxu0 0.0
        %3161 = vmatprep.subr.mxu0 0.0
        %3162 = vmatpush1.msra.mxu0 0.0
        %3163 = vmatprep.subr.mxu0 0.0
        %3164 = vmatpush1.msra.mxu0 0.0
        %3165 = vmatprep.subr.mxu0 0.0
        %3166 = vmatpush1.msra.mxu0 0.0
        %3167 = vmatprep.subr.mxu0 0.0
        %3168 = vmatpush1.msra.mxu0 0.0
        %3169 = vmatprep.subr.mxu0 0.0
        %3170 = vmatpush1.msra.mxu0 0.0
        %3171 = vmatprep.subr.mxu0 0.0
        %3172 = vmatpush1.msra.mxu0 0.0
        %3173 = vmatprep.subr.mxu0 0.0
        %3174 = vmatpush1.msra.mxu0 0.0
        %3175 = vmatprep.subr.mxu0 0.0
        %3176 = vmatpush1.msra.mxu0 %v3140
        %3177 = vmatprep.subr.mxu0 0.0
        %3178 = vmatpush1.msra.mxu0 %v3139
        %3179 = vmatprep.subr.mxu0 0.0
        %3180 = vmatpush1.msra.mxu0 %v3138
        %3181 = vmatprep.subr.mxu0 0.0
        %3182 = vmatpush1.msra.mxu0 %v3137
        %3183 = vmatprep.subr.mxu0 0.0
        %3184 = vmatpush2.msra.mxu0 0.0
        %3185 = vmatprep.subr.mxu0 0.0
        %3186 = vmatpush2.msra.mxu0 0.0
        %3187 = vmatprep.subr.mxu0 0.0
        %3188 = vmatpush2.msra.mxu0 0.0
        %3189 = vmatprep.subr.mxu0 0.0
        %3190 = vmatpush2.msra.mxu0 0.0
        %3191 = vmatprep.subr.mxu0 0.0
        %3192 = vmatpush2.msra.mxu0 0.0
        %3193 = vmatprep.subr.mxu0 0.0
        %3194 = vmatpush2.msra.mxu0 0.0
        %3195 = vmatprep.subr.mxu0 0.0
        %3196 = vmatpush2.msra.mxu0 0.0
        %3197 = vmatprep.subr.mxu0 0.0
        %3198 = vmatpush2.msra.mxu0 0.0
        %3199 = vmatprep.subr.mxu0 0.0
        %3200 = vmatpush2.msra.mxu0 0.0
        %3201 = vmatprep.subr.mxu0 0.0
        %3202 = vmatpush2.msra.mxu0 0.0
        %3203 = vmatprep.subr.mxu0 0.0
        %3204 = vmatpush2.msra.mxu0 0.0
        %3205 = vmatprep.subr.mxu0 0.0
        %3206 = vmatpush2.msra.mxu0 0.0
        %3207 = vmatprep.subr.mxu0 0.0
        %3208 = vmatpush2.msra.mxu0 0.0
        %3209 = vmatprep.subr.mxu0 0.0
        %3210 = vmatpush2.msra.mxu0 0.0
        %3211 = vmatprep.subr.mxu0 0.0
        %3212 = vmatpush2.msra.mxu0 0.0
        %3213 = vmatprep.subr.mxu0 0.0
        %3214 = vmatpush2.msra.mxu0 0.0
        %3215 = vmatprep.mubr.f32.mxu0 0.0
        %3216 = vmatmul.mubr.f32.gmra.mxu0 %v3149
        %v3217 = vpop.f32.mrf.mxu0
        %v3218 = vadd.f32 %v3146, %v3217
        %v3219 = vpop.f32.mrf.mxu0
        %3220 = vdwg.mxu0
        %3221 = vst [vmem:[%s525] sm:$0x3f] %v3218
      $region76: #{conformer_aed_forward.7} parent=67 // pred_fallthru
        _
      %p3222 = scmp.lt.s32.totalorder %s27, 1
      %s3223 = scalar_select %p3222, %s27, 1
      %s3224 = smul.addr %s3223, 8
      %s3225 = scalar_lea.vmem %s12, %s3224
      // Predicated region
      $region77: #{conformer_aed_forward.7} parent=67 // pred_check
        %p3226 = pneg %p340
      $region78: #{conformer_aed_forward.7} parent=67 // pred_check_branch
        %3228 = sbr.rel (%p3226) target = $region80
      $region79: #{conformer_aed_forward.7} parent=67 // pred_region
        _
      $region80: #{conformer_aed_forward.7} parent=67 // pred_fallthru
        _
    $region68: #{conformer_aed_forward.7} parent=5 // pred_fallthru
      _
    %p3229 = scmp.le.s32.totalorder 2, %s18
    // Predicated region
    $region81: #{conformer_aed_forward.7} parent=5 // pred_check
      %p3230 = pneg %p3229
    $region82: #{conformer_aed_forward.7} parent=5 // pred_check_branch
      %3232 = sbr.rel (%p3230) target = $region84
    $region83: #{conformer_aed_forward.7} parent=5 // pred_region
      %s3233 = ssub.s32 %s18, 2
      // Predicated region
      $region85: #{conformer_aed_forward.7} parent=83 // pred_check
        %p3234 = pneg %p346
      $region86: #{conformer_aed_forward.7} parent=83 // pred_check_branch
        %3236 = sbr.rel (%p3234) target = $region88
      $region87: #{conformer_aed_forward.7} parent=83 // pred_region
        %p3237 = scmp.lt.s32.totalorder %s29, 1
        %s3238 = scalar_select %p3237, %s29, 1
        %s3239 = smul.addr %s3238, 8
        %s3240 = scalar_lea.vmem %s12, %s3239
      $region88: #{conformer_aed_forward.7} parent=83 // pred_fallthru
        _
    $region84: #{conformer_aed_forward.7} parent=5 // pred_fallthru
      _
  $region6: #{conformer_aed_forward.7} parent=0 // loop_footer
    %s22 = sadd.s32 1, %s18
  $region7: #{conformer_aed_forward.7} parent=0 // loop_footer_branch
    %17 = sbr.rel target = $region3
  $region8: #{conformer_aed_forward.7} parent=0 // loop_exit
    _

</llo_original>
